<compile_context>
chip_gen: v6e
topology: v6e:2x2x1
jax: 0.10.0
libtpu: 0.0.40
codegen_flags: <defaults>
</compile_context>

<pallas_src>
import functools

import jax
import jax.numpy as jnp
from jax.experimental import pallas as pl
from jax.experimental.pallas import tpu as pltpu

OUT_LAYER_SIZE = (3,) + tuple(2 ** p for p in range(4, 10))
ERR_LAYER_SIZE = tuple(s * 2 for s in OUT_LAYER_SIZE)
IN_LAYER_SIZE = (3,) + ERR_LAYER_SIZE

_LANES = 128                      # packed-output lane width (dense vst)
_VMEM_LIMIT = 32 * 1024 * 1024    # >= v5e's 16 MiB scoped default


# --------------------------------------------------------------------------
# BlockSpec helpers: tile only the batch axis, everything else whole-block.
# --------------------------------------------------------------------------
def _batch_spec(shape):
    ndim = len(shape)
    zeros = (0,) * (ndim - 1)
    return pl.BlockSpec((1,) + tuple(shape[1:]), lambda b: (b,) + zeros)


def _full_spec(shape):
    zeros = (0,) * len(shape)
    return pl.BlockSpec(tuple(shape), lambda b: zeros)


# --------------------------------------------------------------------------
# In-kernel conv building blocks
# --------------------------------------------------------------------------
def _pad_hw_bf16(x):
    """(H, W, C) value -> zero-halo (H+2, W+2, C), cast to bf16 exactly once."""
    H, W, C = x.shape
    xb = x.astype(jnp.bfloat16)
    zc = jnp.zeros((H, 1, C), jnp.bfloat16)
    xb = jnp.concatenate([zc, xb, zc], axis=1)          # pad W
    zr = jnp.zeros((1, W + 2, C), jnp.bfloat16)
    return jnp.concatenate([zr, xb, zr], axis=0)        # pad H


def _im2col3x3(x):
    """(H, W, C) value -> (H*W, 9*C) bf16 im2col (tap-major, channel-minor).

    Built as 3 horizontal shifts concatenated along lanes, then 3 vertical
    shifts, so only 3 sublane-offset slices are needed and the column order
    matches an HWIO weight reshaped to (9*C, Cout).
    """
    H, W, C = x.shape
    xp = _pad_hw_bf16(x)                                        # (H+2, W+2, C)
    xw = jnp.concatenate(
        [xp[:, 0:W, :], xp[:, 1:W + 1, :], xp[:, 2:W + 2, :]], axis=-1)
    xi = jnp.concatenate(
        [xw[0:H], xw[1:H + 1], xw[2:H + 2]], axis=-1)           # (H, W, 9*C)
    return xi.reshape(H * W, 9 * C)


def _conv3x3_same(x, w, b):
    """3x3 'same' conv as ONE MXU matmul.

    x: (H, W, Cin) value; w: (9*Cin, Cout) bf16; b: (1, Cout) f32.
    Returns (H*W, Cout) f32 (f32 accumulation on the MXU)."""
    a = _im2col3x3(x)
    return jnp.dot(a, w, preferred_element_type=jnp.float32) + b


def _lstm_gates(acc, c_prev, hid):
    """e-lab ConvLSTMCell gate math; chunk order (in, remember, out, cell)."""
    sig = jax.nn.sigmoid(acc[:, :3 * hid])     # one EUP pass, contiguous lanes
    i_g = sig[:, 0 * hid:1 * hid]
    r_g = sig[:, 1 * hid:2 * hid]
    o_g = sig[:, 2 * hid:3 * hid]
    g_g = jnp.tanh(acc[:, 3 * hid:4 * hid])
    c_new = r_g * c_prev + i_g * g_g
    h_new = o_g * jnp.tanh(c_new)
    return h_new, c_new


def _maxpool2x2(y, H, W, C):
    """2x2 / stride-2 max pool on a flat (H*W, C) conv output -> (H*W//4, C)."""
    y = y.reshape(H, W, C).reshape(H // 2, 2, W, C)
    y = jnp.maximum(y[:, 0], y[:, 1])                  # pool along H
    y = y.reshape(H // 2, W // 2, 2, C)
    y = jnp.maximum(y[:, :, 0, :], y[:, :, 1, :])      # pool along W
    return y.reshape((H // 2) * (W // 2), C)


# --------------------------------------------------------------------------
# Kernel 1: generator_2 ConvLSTM (gate conv over cat(error[1], h_prev)).
# --------------------------------------------------------------------------
def _gen2_kernel(err_ref, h_ref, c_ref, w_ref, b_ref, out_ref, *, hid):
    _, H, W, _ = err_ref.shape
    HW = H * W
    x = jnp.concatenate([err_ref[0], h_ref[0]], axis=-1)     # (H, W, Ce+hid)
    acc = _conv3x3_same(x, w_ref[...], b_ref[...])           # (HW, 4*hid) f32
    c_prev = c_ref[0].reshape(HW, hid)
    h_new, c_new = _lstm_gates(acc, c_prev, hid)
    pad = jnp.zeros((HW, _LANES - 2 * hid), jnp.float32)
    # lane-dense packed store: [h | c | 0...] in one 128-lane f32 slab
    out_ref[0] = jnp.concatenate([h_new, c_new, pad], axis=-1)


def _run_generator_2(err1, h1_prev, c1_prev, w, b):
    B, H2, W2, _ = err1.shape
    hid = OUT_LAYER_SIZE[1]
    out = pl.pallas_call(
        functools.partial(_gen2_kernel, hid=hid),
        out_shape=jax.ShapeDtypeStruct((B, H2 * W2, _LANES), jnp.float32),
        grid=(B,),
        in_specs=[_batch_spec(err1.shape), _batch_spec(h1_prev.shape),
                  _batch_spec(c1_prev.shape), _full_spec(w.shape),
                  _full_spec(b.shape)],
        out_specs=pl.BlockSpec((1, H2 * W2, _LANES), lambda bb: (bb, 0, 0)),
        compiler_params=pltpu.CompilerParams(
            dimension_semantics=("parallel",),
            vmem_limit_bytes=_VMEM_LIMIT),
    )(err1, h1_prev, c1_prev, w, b)
    h1 = out[:, :, :hid].reshape(B, H2, W2, hid)
    c1 = out[:, :, hid:2 * hid].reshape(B, H2, W2, hid)
    return h1, c1


# --------------------------------------------------------------------------
# Kernel 2: generator_1 ConvLSTM + discriminator_1 + discriminator_2, fused.
# --------------------------------------------------------------------------
def _layer_stack_kernel(err0_ref, up_ref, h0_ref, c0_ref, x_ref, h1_ref,
                        wg1_ref, bg1_ref, ws1_ref, bs1_ref,
                        wb2_ref, bb2_ref, ws2_ref, bs2_ref,
                        out0_ref, out1_ref, *, hid0, hid1):
    _, H, W, _ = err0_ref.shape
    HW = H * W
    H2, W2 = H // 2, W // 2
    HW2 = H2 * W2

    # ---- generator_1: ConvLSTM over cat(error[0], up2x(h1), h0_prev) -------
    g_in = jnp.concatenate([err0_ref[0], up_ref[0], h0_ref[0]], axis=-1)
    acc = _conv3x3_same(g_in, wg1_ref[...], bg1_ref[...])     # (HW, 4*hid0)
    c0_prev = c0_ref[0].reshape(HW, hid0)
    h0_new, c0_new = _lstm_gates(acc, c0_prev, hid0)

    # ---- discriminator_1 (first=True): sp = relu(conv(h0)); err = +-relu ---
    sp = jnp.maximum(
        _conv3x3_same(h0_new.reshape(H, W, hid0), ws1_ref[...], bs1_ref[...]),
        0.0)
    d = x_ref[0].reshape(HW, x_ref.shape[-1]) - sp
    err0_new = jnp.concatenate(
        [jnp.maximum(d, 0.0), jnp.maximum(-d, 0.0)], axis=-1)  # (HW, 2*hid0)

    pad0 = jnp.zeros((HW, _LANES - 4 * hid0), jnp.float32)
    out0_ref[0] = jnp.concatenate([h0_new, c0_new, err0_new, pad0], axis=-1)

    # ---- discriminator_2: ip = maxpool(relu(conv_b(err0))); sp = relu(conv_s(h1))
    yb = jnp.maximum(
        _conv3x3_same(err0_new.reshape(H, W, 2 * hid0), wb2_ref[...],
                      bb2_ref[...]), 0.0)                       # (HW, hid1)
    ip = _maxpool2x2(yb, H, W, hid1)                            # (HW2, hid1)
    sp2 = jnp.maximum(
        _conv3x3_same(h1_ref[0], ws2_ref[...], bs2_ref[...]), 0.0)
    d2 = ip - sp2
    err1_new = jnp.concatenate(
        [jnp.maximum(d2, 0.0), jnp.maximum(-d2, 0.0)], axis=-1)  # (HW2, 2*hid1)
    pad1 = jnp.zeros((HW2, _LANES - 2 * hid1), jnp.float32)
    out1_ref[0] = jnp.concatenate([err1_new, pad1], axis=-1)


def _run_layer_stack(err0, up_h1, h0_prev, c0_prev, x, h1, prepped):
    B, H, W, _ = err0.shape
    H2, W2 = H // 2, W // 2
    hid0, hid1 = OUT_LAYER_SIZE[0], OUT_LAYER_SIZE[1]
    wg1, bg1 = prepped['gen1']
    ws1, bs1 = prepped['disc1_state']
    wb2, bb2 = prepped['disc2_bottom']
    ws2, bs2 = prepped['disc2_state']
    out0, out1 = pl.pallas_call(
        functools.partial(_layer_stack_kernel, hid0=hid0, hid1=hid1),
        out_shape=(jax.ShapeDtypeStruct((B, H * W, _LANES), jnp.float32),
                   jax.ShapeDtypeStruct((B, H2 * W2, _LANES), jnp.float32)),
        grid=(B,),
        in_specs=[_batch_spec(err0.shape), _batch_spec(up_h1.shape),
                  _batch_spec(h0_prev.shape), _batch_spec(c0_prev.shape),
                  _batch_spec(x.shape), _batch_spec(h1.shape),
                  _full_spec(wg1.shape), _full_spec(bg1.shape),
                  _full_spec(ws1.shape), _full_spec(bs1.shape),
                  _full_spec(wb2.shape), _full_spec(bb2.shape),
                  _full_spec(ws2.shape), _full_spec(bs2.shape)],
        out_specs=(pl.BlockSpec((1, H * W, _LANES), lambda bb: (bb, 0, 0)),
                   pl.BlockSpec((1, H2 * W2, _LANES), lambda bb: (bb, 0, 0))),
        compiler_params=pltpu.CompilerParams(
            dimension_semantics=("parallel",),
            vmem_limit_bytes=_VMEM_LIMIT),
    )(err0, up_h1, h0_prev, c0_prev, x, h1,
      wg1, bg1, ws1, bs1, wb2, bb2, ws2, bs2)
    h0 = out0[:, :, :hid0].reshape(B, H, W, hid0)
    c0 = out0[:, :, hid0:2 * hid0].reshape(B, H, W, hid0)
    e0 = out0[:, :, 2 * hid0:4 * hid0].reshape(B, H, W, 2 * hid0)
    e1 = out1[:, :, :2 * hid1].reshape(B, H2, W2, 2 * hid1)
    return h0, c0, e0, e1


# --------------------------------------------------------------------------
# Parameters (deterministic, synthetic) + one-time MXU-layout prep
# --------------------------------------------------------------------------
def init_params(key):
    def conv_init(k, cin, cout):
        kw_, kb_ = jax.random.split(k)
        return {'w': 0.05 * jax.random.normal(kw_, (3, 3, cin, cout),
                                              jnp.float32),
                'b': 0.05 * jax.random.normal(kb_, (cout,), jnp.float32)}

    keys = jax.random.split(key, 5)
    return {
        # discriminator_1 (first=True): only from_state conv, 3 -> 3
        'disc1_state': conv_init(keys[0], OUT_LAYER_SIZE[0], OUT_LAYER_SIZE[0]),
        # discriminator_2: from_bottom 6 -> 16, from_state 16 -> 16
        'disc2_bottom': conv_init(keys[1], IN_LAYER_SIZE[1], OUT_LAYER_SIZE[1]),
        'disc2_state': conv_init(keys[2], OUT_LAYER_SIZE[1], OUT_LAYER_SIZE[1]),
        # generator_1 gates: (err 6 + up 16) + hidden 3 = 25 -> 4*3
        'gen1_gates': conv_init(
            keys[3],
            ERR_LAYER_SIZE[0] + OUT_LAYER_SIZE[1] + OUT_LAYER_SIZE[0],
            4 * OUT_LAYER_SIZE[0]),
        # generator_2 gates: err 32 + hidden 16 = 48 -> 4*16
        'gen2_gates': conv_init(
            keys[4], ERR_LAYER_SIZE[1] + OUT_LAYER_SIZE[1],
            4 * OUT_LAYER_SIZE[1]),
    }


def prepare_params(params):
    """One-time prep: HWIO f32 -> (9*Cin, Cout) bf16 MXU operand + (1,Cout) f32."""
    def prep(p):
        w, b = p['w'], p['b']
        cout = w.shape[-1]
        return (w.reshape(9 * w.shape[2], cout).astype(jnp.bfloat16),
                b.reshape(1, cout).astype(jnp.float32))
    return {
        'gen2': prep(params['gen2_gates']),
        'gen1': prep(params['gen1_gates']),
        'disc1_state': prep(params['disc1_state']),
        'disc2_bottom': prep(params['disc2_bottom']),
        'disc2_state': prep(params['disc2_state']),
    }


# --------------------------------------------------------------------------
# _BuildTwoLayerModel.forward equivalent (external tensors are NCHW)
# --------------------------------------------------------------------------
def _to_nhwc(t):
    return jnp.transpose(t, (0, 2, 3, 1))


def _to_nchw(t):
    return jnp.transpose(t, (0, 3, 1, 2))


@functools.partial(jax.jit, static_argnums=(4,))
def two_layer_prednet_forward(prepped, bottom_up_input, error, state,
                              error_size_list):
    B, _, H, W = bottom_up_input.shape
    H2, W2 = H // 2, W // 2
    hid0, hid1 = OUT_LAYER_SIZE[0], OUT_LAYER_SIZE[1]

    x = _to_nhwc(bottom_up_input).astype(jnp.float32)

    def err_or_zeros(e, size_nchw):
        if e is None:
            b_, c_, h_, w_ = size_nchw
            return jnp.zeros((b_, h_, w_, c_), jnp.float32)
        return _to_nhwc(e).astype(jnp.float32)

    err0 = err_or_zeros(error[0], error_size_list[0])
    err1 = err_or_zeros(error[1], error_size_list[1])

    def state_or_zeros(s, h_, w_, c_):
        if s is None:
            z = jnp.zeros((B, h_, w_, c_), jnp.float32)
            return z, z
        return (_to_nhwc(s[0]).astype(jnp.float32),
                _to_nhwc(s[1]).astype(jnp.float32))

    h0_prev, c0_prev = state_or_zeros(state[0], H, W, hid0)
    h1_prev, c1_prev = state_or_zeros(state[1], H2, W2, hid1)

    # state[1] = generator_2(error[1], None, state[1])
    h1, c1 = _run_generator_2(err1, h1_prev, c1_prev, *prepped['gen2'])

    # nearest-2x upsample of the layer-1 hidden state (tiny; stays as glue).
    # TODO(synk): fold this sublane/lane interleave into the layer-stack kernel.
    up_h1 = jnp.repeat(jnp.repeat(h1, 2, axis=1), 2, axis=2)

    # state[0] = generator_1(error[0], state[1][0], state[0])
    # error[0] = discriminator_1(bottom_up_input, state[0][0])
    # error[1] = discriminator_2(error[0], state[1][0])
    h0, c0, e0, e1 = _run_layer_stack(err0, up_h1, h0_prev, c0_prev, x, h1,
                                      prepped)

    error_out = [_to_nchw(e0), _to_nchw(e1)]
    state_out = [(_to_nchw(h0), _to_nchw(c0)), (_to_nchw(h1), _to_nchw(c1))]
    return error_out, state_out


# --------------------------------------------------------------------------
if __name__ == "__main__":
    B, H, W = 2, 16, 16
    key = jax.random.PRNGKey(0)
    kp, k1, k2, k3, k4, k5, k6, k7 = jax.random.split(key, 8)

    params = init_params(kp)
    prepped = prepare_params(params)   # one-time bf16/(9*Cin,Cout) weight prep

    bottom_up_input = jax.random.normal(k1, (B, 3, H, W), jnp.float32)
    error = [jax.random.normal(k2, (B, ERR_LAYER_SIZE[0], H, W), jnp.float32),
             jax.random.normal(k3, (B, ERR_LAYER_SIZE[1], H // 2, W // 2),
                               jnp.float32)]
    state = [(jax.random.normal(k4, (B, OUT_LAYER_SIZE[0], H, W), jnp.float32),
              jax.random.normal(k5, (B, OUT_LAYER_SIZE[0], H, W), jnp.float32)),
             (jax.random.normal(k6, (B, OUT_LAYER_SIZE[1], H // 2, W // 2),
                                jnp.float32),
              jax.random.normal(k7, (B, OUT_LAYER_SIZE[1], H // 2, W // 2),
                                jnp.float32))]
    error_size_list = ((B, ERR_LAYER_SIZE[0], H, W),
                       (B, ERR_LAYER_SIZE[1], H // 2, W // 2))

    error_out, state_out = two_layer_prednet_forward(
        prepped, bottom_up_input, error, state, error_size_list)
    jax.block_until_ready((error_out, state_out))

    assert error_out[0].shape == (B, 6, H, W)
    assert error_out[1].shape == (B, 32, H // 2, W // 2)
    assert state_out[0][0].shape == (B, 3, H, W)
    assert state_out[0][1].shape == (B, 3, H, W)
    assert state_out[1][0].shape == (B, 16, H // 2, W // 2)
    assert state_out[1][1].shape == (B, 16, H // 2, W // 2)
    print("KERNEL_OK")
</pallas_src>

<mosaic_0001>
module attributes {stable_mosaic.version = 11 : i64} {
  func.func @_gen2_kernel(%arg0: i32, %arg1: memref<1x8x8x32xf32, #tpu.memory_space<vmem>>, %arg2: memref<1x8x8x16xf32, #tpu.memory_space<vmem>>, %arg3: memref<1x8x8x16xf32, #tpu.memory_space<vmem>>, %arg4: memref<432x64xbf16, #tpu.memory_space<vmem>>, %arg5: memref<1x64xf32, #tpu.memory_space<vmem>>, %arg6: memref<1x64x128xf32, #tpu.memory_space<vmem>>) attributes {dimension_semantics = [#tpu.dimension_semantics<parallel>], iteration_bounds = array<i64: 2>, scalar_prefetch = 0 : i64, scratch_operands = 0 : i64, tpu.core_type = #tpu.core_type<tc>, window_params = [{transform_indices = @transform_0, window_bounds = array<i64: 1, 8, 8, 32>}, {transform_indices = @transform_1, window_bounds = array<i64: 1, 8, 8, 16>}, {transform_indices = @transform_2, window_bounds = array<i64: 1, 8, 8, 16>}, {pipeline_mode = #tpu.pipeline_mode<synchronous>, transform_indices = @transform_3, window_bounds = array<i64: 432, 64>}, {pipeline_mode = #tpu.pipeline_mode<synchronous>, transform_indices = @transform_4, window_bounds = array<i64: 1, 64>}, {transform_indices = @transform_5, window_bounds = array<i64: 1, 64, 128>}]} {
    %c0 = arith.constant 0 : index
    %c0_0 = arith.constant 0 : index
    %c0_1 = arith.constant 0 : index
    %c0_2 = arith.constant 0 : index
    %0 = vector.load %arg1[%c0, %c0_0, %c0_1, %c0_2] : memref<1x8x8x32xf32, #tpu.memory_space<vmem>>, vector<1x8x8x32xf32>
    %1 = vector.shape_cast %0 : vector<1x8x8x32xf32> to vector<8x8x32xf32>
    %c0_3 = arith.constant 0 : index
    %c0_4 = arith.constant 0 : index
    %c0_5 = arith.constant 0 : index
    %c0_6 = arith.constant 0 : index
    %2 = vector.load %arg2[%c0_3, %c0_4, %c0_5, %c0_6] : memref<1x8x8x16xf32, #tpu.memory_space<vmem>>, vector<1x8x8x16xf32>
    %3 = vector.shape_cast %2 : vector<1x8x8x16xf32> to vector<8x8x16xf32>
    %4 = tpu.concatenate %1, %3 in 2 : vector<8x8x32xf32>, vector<8x8x16xf32> -> vector<8x8x48xf32>
    %c0_7 = arith.constant 0 : index
    %c0_8 = arith.constant 0 : index
    %5 = vector.load %arg4[%c0_7, %c0_8] : memref<432x64xbf16, #tpu.memory_space<vmem>>, vector<432x64xbf16>
    %c0_9 = arith.constant 0 : index
    %c0_10 = arith.constant 0 : index
    %6 = vector.load %arg5[%c0_9, %c0_10] : memref<1x64xf32, #tpu.memory_space<vmem>>, vector<1x64xf32>
    %7 = arith.truncf %4 : vector<8x8x48xf32> to vector<8x8x48xbf16>
    %cst = arith.constant 0.000000e+00 : bf16
    %8 = vector.broadcast %cst : bf16 to vector<8x1x48xbf16>
    %9 = tpu.concatenate %8, %7, %8 in 1 : vector<8x1x48xbf16>, vector<8x8x48xbf16>, vector<8x1x48xbf16> -> vector<8x10x48xbf16>
    %cst_11 = arith.constant 0.000000e+00 : bf16
    %10 = vector.broadcast %cst_11 : bf16 to vector<1x10x48xbf16>
    %11 = tpu.concatenate %10, %9, %10 in 0 : vector<1x10x48xbf16>, vector<8x10x48xbf16>, vector<1x10x48xbf16> -> vector<10x10x48xbf16>
    %12 = vector.extract_strided_slice %11 {offsets = [0, 0, 0], sizes = [10, 8, 48], strides = [1, 1, 1]} : vector<10x10x48xbf16> to vector<10x8x48xbf16>
    %13 = vector.extract_strided_slice %11 {offsets = [0, 1, 0], sizes = [10, 8, 48], strides = [1, 1, 1]} : vector<10x10x48xbf16> to vector<10x8x48xbf16>
    %14 = vector.extract_strided_slice %11 {offsets = [0, 2, 0], sizes = [10, 8, 48], strides = [1, 1, 1]} : vector<10x10x48xbf16> to vector<10x8x48xbf16>
    %15 = tpu.concatenate %12, %13, %14 in 2 : vector<10x8x48xbf16>, vector<10x8x48xbf16>, vector<10x8x48xbf16> -> vector<10x8x144xbf16>
    %16 = vector.extract_strided_slice %15 {offsets = [0, 0, 0], sizes = [8, 8, 144], strides = [1, 1, 1]} : vector<10x8x144xbf16> to vector<8x8x144xbf16>
    %17 = vector.extract_strided_slice %15 {offsets = [1, 0, 0], sizes = [8, 8, 144], strides = [1, 1, 1]} : vector<10x8x144xbf16> to vector<8x8x144xbf16>
    %18 = vector.extract_strided_slice %15 {offsets = [2, 0, 0], sizes = [8, 8, 144], strides = [1, 1, 1]} : vector<10x8x144xbf16> to vector<8x8x144xbf16>
    %19 = tpu.concatenate %16, %17, %18 in 2 : vector<8x8x144xbf16>, vector<8x8x144xbf16>, vector<8x8x144xbf16> -> vector<8x8x432xbf16>
    %20 = vector.shape_cast %19 : vector<8x8x432xbf16> to vector<64x432xbf16>
    %cst_12 = arith.constant dense<0.000000e+00> : vector<64x64xf32>
    %21 = tpu.matmul %20, %5, %cst_12 {dimension_numbers = #tpu.dot_dimension_numbers<[1], [0], [0], [1], [0, 0, 1, 1], [], []>} : vector<64x432xbf16>, vector<432x64xbf16>, vector<64x64xf32> -> vector<64x64xf32>
    %22 = vector.broadcast %6 : vector<1x64xf32> to vector<64x64xf32>
    %23 = arith.addf %21, %22 : vector<64x64xf32>
    %c0_13 = arith.constant 0 : index
    %c0_14 = arith.constant 0 : index
    %c0_15 = arith.constant 0 : index
    %c0_16 = arith.constant 0 : index
    %24 = vector.load %arg3[%c0_13, %c0_14, %c0_15, %c0_16] : memref<1x8x8x16xf32, #tpu.memory_space<vmem>>, vector<1x8x8x16xf32>
    %25 = vector.shape_cast %24 : vector<1x8x8x16xf32> to vector<8x8x16xf32>
    %26 = vector.shape_cast %25 : vector<8x8x16xf32> to vector<64x16xf32>
    %27 = vector.extract_strided_slice %23 {offsets = [0, 0], sizes = [64, 48], strides = [1, 1]} : vector<64x64xf32> to vector<64x48xf32>
    %28 = arith.negf %27 : vector<64x48xf32>
    %29 = math.exp %28 : vector<64x48xf32>
    %cst_17 = arith.constant 1.000000e+00 : f32
    %30 = vector.broadcast %cst_17 : f32 to vector<64x48xf32>
    %31 = arith.addf %30, %29 : vector<64x48xf32>
    %32 = arith.divf %30, %31 : vector<64x48xf32>
    %33 = vector.extract_strided_slice %32 {offsets = [0, 0], sizes = [64, 16], strides = [1, 1]} : vector<64x48xf32> to vector<64x16xf32>
    %34 = vector.extract_strided_slice %32 {offsets = [0, 16], sizes = [64, 16], strides = [1, 1]} : vector<64x48xf32> to vector<64x16xf32>
    %35 = vector.extract_strided_slice %32 {offsets = [0, 32], sizes = [64, 16], strides = [1, 1]} : vector<64x48xf32> to vector<64x16xf32>
    %36 = vector.extract_strided_slice %23 {offsets = [0, 48], sizes = [64, 16], strides = [1, 1]} : vector<64x64xf32> to vector<64x16xf32>
    %37 = math.tanh %36 : vector<64x16xf32>
    %38 = arith.mulf %34, %26 : vector<64x16xf32>
    %39 = arith.mulf %33, %37 : vector<64x16xf32>
    %40 = arith.addf %38, %39 : vector<64x16xf32>
    %41 = math.tanh %40 : vector<64x16xf32>
    %42 = arith.mulf %35, %41 : vector<64x16xf32>
    %cst_18 = arith.constant 0.000000e+00 : f32
    %43 = vector.broadcast %cst_18 : f32 to vector<64x96xf32>
    %44 = tpu.concatenate %42, %40, %43 in 1 : vector<64x16xf32>, vector<64x16xf32>, vector<64x96xf32> -> vector<64x128xf32>
    %c0_19 = arith.constant 0 : index
    %c0_20 = arith.constant 0 : index
    %c0_21 = arith.constant 0 : index
    %45 = vector.load %arg6[%c0_19, %c0_20, %c0_21] : memref<1x64x128xf32, #tpu.memory_space<vmem>>, vector<1x64x128xf32>
    %46 = vector.shape_cast %45 : vector<1x64x128xf32> to vector<64x128xf32>
    %47 = vector.shape_cast %44 : vector<64x128xf32> to vector<1x64x128xf32>
    tpu.vector_store %arg6[%c0_19, %c0_20, %c0_21], %47 {strides = array<i32>} : memref<1x64x128xf32, #tpu.memory_space<vmem>>, vector<1x64x128xf32>,
    return
  }
  func.func @transform_0(%arg0: i32) -> (i32, i32, i32, i32) {
    %c0_i32 = arith.constant 0 : i32
    %c0_i32_0 = arith.constant 0 : i32
    %c0_i32_1 = arith.constant 0 : i32
    %c0_i32_2 = arith.constant 0 : i32
    return %arg0, %c0_i32, %c0_i32_0, %c0_i32_1 : i32, i32, i32, i32
  }
  func.func @transform_1(%arg0: i32) -> (i32, i32, i32, i32) {
    %c0_i32 = arith.constant 0 : i32
    %c0_i32_0 = arith.constant 0 : i32
    %c0_i32_1 = arith.constant 0 : i32
    %c0_i32_2 = arith.constant 0 : i32
    return %arg0, %c0_i32, %c0_i32_0, %c0_i32_1 : i32, i32, i32, i32
  }
  func.func @transform_2(%arg0: i32) -> (i32, i32, i32, i32) {
    %c0_i32 = arith.constant 0 : i32
    %c0_i32_0 = arith.constant 0 : i32
    %c0_i32_1 = arith.constant 0 : i32
    %c0_i32_2 = arith.constant 0 : i32
    return %arg0, %c0_i32, %c0_i32_0, %c0_i32_1 : i32, i32, i32, i32
  }
  func.func @transform_3(%arg0: i32) -> (i32, i32) {
    %c0_i32 = arith.constant 0 : i32
    %c0_i32_0 = arith.constant 0 : i32
    %c0_i32_1 = arith.constant 0 : i32
    return %c0_i32, %c0_i32_0 : i32, i32
  }
  func.func @transform_4(%arg0: i32) -> (i32, i32) {
    %c0_i32 = arith.constant 0 : i32
    %c0_i32_0 = arith.constant 0 : i32
    %c0_i32_1 = arith.constant 0 : i32
    return %c0_i32, %c0_i32_0 : i32, i32
  }
  func.func @transform_5(%arg0: i32) -> (i32, i32, i32) {
    %c0_i32 = arith.constant 0 : i32
    %c0_i32_0 = arith.constant 0 : i32
    %c0_i32_1 = arith.constant 0 : i32
    return %arg0, %c0_i32, %c0_i32_0 : i32, i32, i32
  }
}

module attributes {stable_mosaic.version = 11 : i64} {
  func.func @_layer_stack_kernel(%arg0: i32, %arg1: memref<1x16x16x6xf32, #tpu.memory_space<vmem>>, %arg2: memref<1x16x16x16xf32, #tpu.memory_space<vmem>>, %arg3: memref<1x16x16x3xf32, #tpu.memory_space<vmem>>, %arg4: memref<1x16x16x3xf32, #tpu.memory_space<vmem>>, %arg5: memref<1x16x16x3xf32, #tpu.memory_space<vmem>>, %arg6: memref<1x8x8x16xf32, #tpu.memory_space<vmem>>, %arg7: memref<225x12xbf16, #tpu.memory_space<vmem>>, %arg8: memref<1x12xf32, #tpu.memory_space<vmem>>, %arg9: memref<27x3xbf16, #tpu.memory_space<vmem>>, %arg10: memref<1x3xf32, #tpu.memory_space<vmem>>, %arg11: memref<54x16xbf16, #tpu.memory_space<vmem>>, %arg12: memref<1x16xf32, #tpu.memory_space<vmem>>, %arg13: memref<144x16xbf16, #tpu.memory_space<vmem>>, %arg14: memref<1x16xf32, #tpu.memory_space<vmem>>, %arg15: memref<1x256x128xf32, #tpu.memory_space<vmem>>, %arg16: memref<1x64x128xf32, #tpu.memory_space<vmem>>) attributes {dimension_semantics = [#tpu.dimension_semantics<parallel>], iteration_bounds = array<i64: 2>, scalar_prefetch = 0 : i64, scratch_operands = 0 : i64, tpu.core_type = #tpu.core_type<tc>, window_params = [{transform_indices = @transform_0, window_bounds = array<i64: 1, 16, 16, 6>}, {transform_indices = @transform_1, window_bounds = array<i64: 1, 16, 16, 16>}, {transform_indices = @transform_2, window_bounds = array<i64: 1, 16, 16, 3>}, {transform_indices = @transform_3, window_bounds = array<i64: 1, 16, 16, 3>}, {transform_indices = @transform_4, window_bounds = array<i64: 1, 16, 16, 3>}, {transform_indices = @transform_5, window_bounds = array<i64: 1, 8, 8, 16>}, {pipeline_mode = #tpu.pipeline_mode<synchronous>, transform_indices = @transform_6, window_bounds = array<i64: 225, 12>}, {pipeline_mode = #tpu.pipeline_mode<synchronous>, transform_indices = @transform_7, window_bounds = array<i64: 1, 12>}, {pipeline_mode = #tpu.pipeline_mode<synchronous>, transform_indices = @transform_8, window_bounds = array<i64: 27, 3>}, {pipeline_mode = #tpu.pipeline_mode<synchronous>, transform_indices = @transform_9, window_bounds = array<i64: 1, 3>}, {pipeline_mode = #tpu.pipeline_mode<synchronous>, transform_indices = @transform_10, window_bounds = array<i64: 54, 16>}, {pipeline_mode = #tpu.pipeline_mode<synchronous>, transform_indices = @transform_11, window_bounds = array<i64: 1, 16>}, {pipeline_mode = #tpu.pipeline_mode<synchronous>, transform_indices = @transform_12, window_bounds = array<i64: 144, 16>}, {pipeline_mode = #tpu.pipeline_mode<synchronous>, transform_indices = @transform_13, window_bounds = array<i64: 1, 16>}, {transform_indices = @transform_14, window_bounds = array<i64: 1, 256, 128>}, {transform_indices = @transform_15, window_bounds = array<i64: 1, 64, 128>}]} {
    %c0 = arith.constant 0 : index
    %c0_0 = arith.constant 0 : index
    %c0_1 = arith.constant 0 : index
    %c0_2 = arith.constant 0 : index
    %0 = vector.load %arg1[%c0, %c0_0, %c0_1, %c0_2] : memref<1x16x16x6xf32, #tpu.memory_space<vmem>>, vector<1x16x16x6xf32>
    %1 = vector.shape_cast %0 : vector<1x16x16x6xf32> to vector<16x16x6xf32>
    %c0_3 = arith.constant 0 : index
    %c0_4 = arith.constant 0 : index
    %c0_5 = arith.constant 0 : index
    %c0_6 = arith.constant 0 : index
    %2 = vector.load %arg2[%c0_3, %c0_4, %c0_5, %c0_6] : memref<1x16x16x16xf32, #tpu.memory_space<vmem>>, vector<1x16x16x16xf32>
    %3 = vector.shape_cast %2 : vector<1x16x16x16xf32> to vector<16x16x16xf32>
    %c0_7 = arith.constant 0 : index
    %c0_8 = arith.constant 0 : index
    %c0_9 = arith.constant 0 : index
    %c0_10 = arith.constant 0 : index
    %4 = vector.load %arg3[%c0_7, %c0_8, %c0_9, %c0_10] : memref<1x16x16x3xf32, #tpu.memory_space<vmem>>, vector<1x16x16x3xf32>
    %5 = vector.shape_cast %4 : vector<1x16x16x3xf32> to vector<16x16x3xf32>
    %6 = tpu.concatenate %1, %3, %5 in 2 : vector<16x16x6xf32>, vector<16x16x16xf32>, vector<16x16x3xf32> -> vector<16x16x25xf32>
    %c0_11 = arith.constant 0 : index
    %c0_12 = arith.constant 0 : index
    %7 = vector.load %arg7[%c0_11, %c0_12] : memref<225x12xbf16, #tpu.memory_space<vmem>>, vector<225x12xbf16>
    %c0_13 = arith.constant 0 : index
    %c0_14 = arith.constant 0 : index
    %8 = vector.load %arg8[%c0_13, %c0_14] : memref<1x12xf32, #tpu.memory_space<vmem>>, vector<1x12xf32>
    %9 = arith.truncf %6 : vector<16x16x25xf32> to vector<16x16x25xbf16>
    %cst = arith.constant 0.000000e+00 : bf16
    %10 = vector.broadcast %cst : bf16 to vector<16x1x25xbf16>
    %11 = tpu.concatenate %10, %9, %10 in 1 : vector<16x1x25xbf16>, vector<16x16x25xbf16>, vector<16x1x25xbf16> -> vector<16x18x25xbf16>
    %cst_15 = arith.constant 0.000000e+00 : bf16
    %12 = vector.broadcast %cst_15 : bf16 to vector<1x18x25xbf16>
    %13 = tpu.concatenate %12, %11, %12 in 0 : vector<1x18x25xbf16>, vector<16x18x25xbf16>, vector<1x18x25xbf16> -> vector<18x18x25xbf16>
    %14 = vector.extract_strided_slice %13 {offsets = [0, 0, 0], sizes = [18, 16, 25], strides = [1, 1, 1]} : vector<18x18x25xbf16> to vector<18x16x25xbf16>
    %15 = vector.extract_strided_slice %13 {offsets = [0, 1, 0], sizes = [18, 16, 25], strides = [1, 1, 1]} : vector<18x18x25xbf16> to vector<18x16x25xbf16>
    %16 = vector.extract_strided_slice %13 {offsets = [0, 2, 0], sizes = [18, 16, 25], strides = [1, 1, 1]} : vector<18x18x25xbf16> to vector<18x16x25xbf16>
    %17 = tpu.concatenate %14, %15, %16 in 2 : vector<18x16x25xbf16>, vector<18x16x25xbf16>, vector<18x16x25xbf16> -> vector<18x16x75xbf16>
    %18 = vector.extract_strided_slice %17 {offsets = [0, 0, 0], sizes = [16, 16, 75], strides = [1, 1, 1]} : vector<18x16x75xbf16> to vector<16x16x75xbf16>
    %19 = vector.extract_strided_slice %17 {offsets = [1, 0, 0], sizes = [16, 16, 75], strides = [1, 1, 1]} : vector<18x16x75xbf16> to vector<16x16x75xbf16>
    %20 = vector.extract_strided_slice %17 {offsets = [2, 0, 0], sizes = [16, 16, 75], strides = [1, 1, 1]} : vector<18x16x75xbf16> to vector<16x16x75xbf16>
    %21 = tpu.concatenate %18, %19, %20 in 2 : vector<16x16x75xbf16>, vector<16x16x75xbf16>, vector<16x16x75xbf16> -> vector<16x16x225xbf16>
    %22 = vector.shape_cast %21 : vector<16x16x225xbf16> to vector<256x225xbf16>
    %cst_16 = arith.constant dense<0.000000e+00> : vector<256x12xf32>
    %23 = tpu.matmul %22, %7, %cst_16 {dimension_numbers = #tpu.dot_dimension_numbers<[1], [0], [0], [1], [0, 0, 1, 1], [], []>} : vector<256x225xbf16>, vector<225x12xbf16>, vector<256x12xf32> -> vector<256x12xf32>
    %24 = vector.broadcast %8 : vector<1x12xf32> to vector<256x12xf32>
    %25 = arith.addf %23, %24 : vector<256x12xf32>
    %c0_17 = arith.constant 0 : index
    %c0_18 = arith.constant 0 : index
    %c0_19 = arith.constant 0 : index
    %c0_20 = arith.constant 0 : index
    %26 = vector.load %arg4[%c0_17, %c0_18, %c0_19, %c0_20] : memref<1x16x16x3xf32, #tpu.memory_space<vmem>>, vector<1x16x16x3xf32>
    %27 = vector.shape_cast %26 : vector<1x16x16x3xf32> to vector<16x16x3xf32>
    %28 = vector.shape_cast %27 : vector<16x16x3xf32> to vector<256x3xf32>
    %29 = vector.extract_strided_slice %25 {offsets = [0, 0], sizes = [256, 9], strides = [1, 1]} : vector<256x12xf32> to vector<256x9xf32>
    %30 = arith.negf %29 : vector<256x9xf32>
    %31 = math.exp %30 : vector<256x9xf32>
    %cst_21 = arith.constant 1.000000e+00 : f32
    %32 = vector.broadcast %cst_21 : f32 to vector<256x9xf32>
    %33 = arith.addf %32, %31 : vector<256x9xf32>
    %34 = arith.divf %32, %33 : vector<256x9xf32>
    %35 = vector.extract_strided_slice %34 {offsets = [0, 0], sizes = [256, 3], strides = [1, 1]} : vector<256x9xf32> to vector<256x3xf32>
    %36 = vector.extract_strided_slice %34 {offsets = [0, 3], sizes = [256, 3], strides = [1, 1]} : vector<256x9xf32> to vector<256x3xf32>
    %37 = vector.extract_strided_slice %34 {offsets = [0, 6], sizes = [256, 3], strides = [1, 1]} : vector<256x9xf32> to vector<256x3xf32>
    %38 = vector.extract_strided_slice %25 {offsets = [0, 9], sizes = [256, 3], strides = [1, 1]} : vector<256x12xf32> to vector<256x3xf32>
    %39 = math.tanh %38 : vector<256x3xf32>
    %40 = arith.mulf %36, %28 : vector<256x3xf32>
    %41 = arith.mulf %35, %39 : vector<256x3xf32>
    %42 = arith.addf %40, %41 : vector<256x3xf32>
    %43 = math.tanh %42 : vector<256x3xf32>
    %44 = arith.mulf %37, %43 : vector<256x3xf32>
    %45 = vector.shape_cast %44 : vector<256x3xf32> to vector<16x16x3xf32>
    %c0_22 = arith.constant 0 : index
    %c0_23 = arith.constant 0 : index
    %46 = vector.load %arg9[%c0_22, %c0_23] : memref<27x3xbf16, #tpu.memory_space<vmem>>, vector<27x3xbf16>
    %c0_24 = arith.constant 0 : index
    %c0_25 = arith.constant 0 : index
    %47 = vector.load %arg10[%c0_24, %c0_25] : memref<1x3xf32, #tpu.memory_space<vmem>>, vector<1x3xf32>
    %48 = arith.truncf %45 : vector<16x16x3xf32> to vector<16x16x3xbf16>
    %cst_26 = arith.constant 0.000000e+00 : bf16
    %49 = vector.broadcast %cst_26 : bf16 to vector<16x1x3xbf16>
    %50 = tpu.concatenate %49, %48, %49 in 1 : vector<16x1x3xbf16>, vector<16x16x3xbf16>, vector<16x1x3xbf16> -> vector<16x18x3xbf16>
    %cst_27 = arith.constant 0.000000e+00 : bf16
    %51 = vector.broadcast %cst_27 : bf16 to vector<1x18x3xbf16>
    %52 = tpu.concatenate %51, %50, %51 in 0 : vector<1x18x3xbf16>, vector<16x18x3xbf16>, vector<1x18x3xbf16> -> vector<18x18x3xbf16>
    %53 = vector.extract_strided_slice %52 {offsets = [0, 0, 0], sizes = [18, 16, 3], strides = [1, 1, 1]} : vector<18x18x3xbf16> to vector<18x16x3xbf16>
    %54 = vector.extract_strided_slice %52 {offsets = [0, 1, 0], sizes = [18, 16, 3], strides = [1, 1, 1]} : vector<18x18x3xbf16> to vector<18x16x3xbf16>
    %55 = vector.extract_strided_slice %52 {offsets = [0, 2, 0], sizes = [18, 16, 3], strides = [1, 1, 1]} : vector<18x18x3xbf16> to vector<18x16x3xbf16>
    %56 = tpu.concatenate %53, %54, %55 in 2 : vector<18x16x3xbf16>, vector<18x16x3xbf16>, vector<18x16x3xbf16> -> vector<18x16x9xbf16>
    %57 = vector.extract_strided_slice %56 {offsets = [0, 0, 0], sizes = [16, 16, 9], strides = [1, 1, 1]} : vector<18x16x9xbf16> to vector<16x16x9xbf16>
    %58 = vector.extract_strided_slice %56 {offsets = [1, 0, 0], sizes = [16, 16, 9], strides = [1, 1, 1]} : vector<18x16x9xbf16> to vector<16x16x9xbf16>
    %59 = vector.extract_strided_slice %56 {offsets = [2, 0, 0], sizes = [16, 16, 9], strides = [1, 1, 1]} : vector<18x16x9xbf16> to vector<16x16x9xbf16>
    %60 = tpu.concatenate %57, %58, %59 in 2 : vector<16x16x9xbf16>, vector<16x16x9xbf16>, vector<16x16x9xbf16> -> vector<16x16x27xbf16>
    %61 = vector.shape_cast %60 : vector<16x16x27xbf16> to vector<256x27xbf16>
    %cst_28 = arith.constant dense<0.000000e+00> : vector<256x3xf32>
    %62 = tpu.matmul %61, %46, %cst_28 {dimension_numbers = #tpu.dot_dimension_numbers<[1], [0], [0], [1], [0, 0, 1, 1], [], []>} : vector<256x27xbf16>, vector<27x3xbf16>, vector<256x3xf32> -> vector<256x3xf32>
    %63 = vector.broadcast %47 : vector<1x3xf32> to vector<256x3xf32>
    %64 = arith.addf %62, %63 : vector<256x3xf32>
    %cst_29 = arith.constant 0.000000e+00 : f32
    %65 = vector.broadcast %cst_29 : f32 to vector<256x3xf32>
    %66 = arith.maximumf %64, %65 : vector<256x3xf32>
    %c0_30 = arith.constant 0 : index
    %c0_31 = arith.constant 0 : index
    %c0_32 = arith.constant 0 : index
    %c0_33 = arith.constant 0 : index
    %67 = vector.load %arg5[%c0_30, %c0_31, %c0_32, %c0_33] : memref<1x16x16x3xf32, #tpu.memory_space<vmem>>, vector<1x16x16x3xf32>
    %68 = vector.shape_cast %67 : vector<1x16x16x3xf32> to vector<16x16x3xf32>
    %69 = vector.shape_cast %68 : vector<16x16x3xf32> to vector<256x3xf32>
    %70 = arith.subf %69, %66 : vector<256x3xf32>
    %cst_34 = arith.constant 0.000000e+00 : f32
    %71 = vector.broadcast %cst_34 : f32 to vector<256x3xf32>
    %72 = arith.maximumf %70, %71 : vector<256x3xf32>
    %cst_35 = arith.constant 0.000000e+00 : f32
    %73 = vector.broadcast %cst_35 : f32 to vector<256x3xf32>
    %74 = arith.subf %73, %70 : vector<256x3xf32>
    %cst_36 = arith.constant 0.000000e+00 : f32
    %75 = vector.broadcast %cst_36 : f32 to vector<256x3xf32>
    %76 = arith.maximumf %74, %75 : vector<256x3xf32>
    %77 = tpu.concatenate %72, %76 in 1 : vector<256x3xf32>, vector<256x3xf32> -> vector<256x6xf32>
    %cst_37 = arith.constant 0.000000e+00 : f32
    %78 = vector.broadcast %cst_37 : f32 to vector<256x116xf32>
    %79 = tpu.concatenate %44, %42, %77, %78 in 1 : vector<256x3xf32>, vector<256x3xf32>, vector<256x6xf32>, vector<256x116xf32> -> vector<256x128xf32>
    %c0_38 = arith.constant 0 : index
    %c0_39 = arith.constant 0 : index
    %c0_40 = arith.constant 0 : index
    %80 = vector.load %arg15[%c0_38, %c0_39, %c0_40] : memref<1x256x128xf32, #tpu.memory_space<vmem>>, vector<1x256x128xf32>
    %81 = vector.shape_cast %80 : vector<1x256x128xf32> to vector<256x128xf32>
    %82 = vector.shape_cast %79 : vector<256x128xf32> to vector<1x256x128xf32>
    tpu.vector_store %arg15[%c0_38, %c0_39, %c0_40], %82 {strides = array<i32>} : memref<1x256x128xf32, #tpu.memory_space<vmem>>, vector<1x256x128xf32>,
    %83 = vector.shape_cast %77 : vector<256x6xf32> to vector<16x16x6xf32>
    %c0_41 = arith.constant 0 : index
    %c0_42 = arith.constant 0 : index
    %84 = vector.load %arg11[%c0_41, %c0_42] : memref<54x16xbf16, #tpu.memory_space<vmem>>, vector<54x16xbf16>
    %c0_43 = arith.constant 0 : index
    %c0_44 = arith.constant 0 : index
    %85 = vector.load %arg12[%c0_43, %c0_44] : memref<1x16xf32, #tpu.memory_space<vmem>>, vector<1x16xf32>
    %86 = arith.truncf %83 : vector<16x16x6xf32> to vector<16x16x6xbf16>
    %cst_45 = arith.constant 0.000000e+00 : bf16
    %87 = vector.broadcast %cst_45 : bf16 to vector<16x1x6xbf16>
    %88 = tpu.concatenate %87, %86, %87 in 1 : vector<16x1x6xbf16>, vector<16x16x6xbf16>, vector<16x1x6xbf16> -> vector<16x18x6xbf16>
    %cst_46 = arith.constant 0.000000e+00 : bf16
    %89 = vector.broadcast %cst_46 : bf16 to vector<1x18x6xbf16>
    %90 = tpu.concatenate %89, %88, %89 in 0 : vector<1x18x6xbf16>, vector<16x18x6xbf16>, vector<1x18x6xbf16> -> vector<18x18x6xbf16>
    %91 = vector.extract_strided_slice %90 {offsets = [0, 0, 0], sizes = [18, 16, 6], strides = [1, 1, 1]} : vector<18x18x6xbf16> to vector<18x16x6xbf16>
    %92 = vector.extract_strided_slice %90 {offsets = [0, 1, 0], sizes = [18, 16, 6], strides = [1, 1, 1]} : vector<18x18x6xbf16> to vector<18x16x6xbf16>
    %93 = vector.extract_strided_slice %90 {offsets = [0, 2, 0], sizes = [18, 16, 6], strides = [1, 1, 1]} : vector<18x18x6xbf16> to vector<18x16x6xbf16>
    %94 = tpu.concatenate %91, %92, %93 in 2 : vector<18x16x6xbf16>, vector<18x16x6xbf16>, vector<18x16x6xbf16> -> vector<18x16x18xbf16>
    %95 = vector.extract_strided_slice %94 {offsets = [0, 0, 0], sizes = [16, 16, 18], strides = [1, 1, 1]} : vector<18x16x18xbf16> to vector<16x16x18xbf16>
    %96 = vector.extract_strided_slice %94 {offsets = [1, 0, 0], sizes = [16, 16, 18], strides = [1, 1, 1]} : vector<18x16x18xbf16> to vector<16x16x18xbf16>
    %97 = vector.extract_strided_slice %94 {offsets = [2, 0, 0], sizes = [16, 16, 18], strides = [1, 1, 1]} : vector<18x16x18xbf16> to vector<16x16x18xbf16>
    %98 = tpu.concatenate %95, %96, %97 in 2 : vector<16x16x18xbf16>, vector<16x16x18xbf16>, vector<16x16x18xbf16> -> vector<16x16x54xbf16>
    %99 = vector.shape_cast %98 : vector<16x16x54xbf16> to vector<256x54xbf16>
    %cst_47 = arith.constant dense<0.000000e+00> : vector<256x16xf32>
    %100 = tpu.matmul %99, %84, %cst_47 {dimension_numbers = #tpu.dot_dimension_numbers<[1], [0], [0], [1], [0, 0, 1, 1], [], []>} : vector<256x54xbf16>, vector<54x16xbf16>, vector<256x16xf32> -> vector<256x16xf32>
    %101 = vector.broadcast %85 : vector<1x16xf32> to vector<256x16xf32>
    %102 = arith.addf %100, %101 : vector<256x16xf32>
    %cst_48 = arith.constant 0.000000e+00 : f32
    %103 = vector.broadcast %cst_48 : f32 to vector<256x16xf32>
    %104 = arith.maximumf %102, %103 : vector<256x16xf32>
    %105 = vector.shape_cast %104 : vector<256x16xf32> to vector<16x16x16xf32>
    %106 = vector.shape_cast %105 : vector<16x16x16xf32> to vector<8x2x16x16xf32>
    %107 = vector.extract_strided_slice %106 {offsets = [0, 0, 0, 0], sizes = [8, 1, 16, 16], strides = [1, 1, 1, 1]} : vector<8x2x16x16xf32> to vector<8x1x16x16xf32>
    %108 = vector.shape_cast %107 : vector<8x1x16x16xf32> to vector<8x16x16xf32>
    %109 = vector.extract_strided_slice %106 {offsets = [0, 1, 0, 0], sizes = [8, 1, 16, 16], strides = [1, 1, 1, 1]} : vector<8x2x16x16xf32> to vector<8x1x16x16xf32>
    %110 = vector.shape_cast %109 : vector<8x1x16x16xf32> to vector<8x16x16xf32>
    %111 = arith.maximumf %108, %110 : vector<8x16x16xf32>
    %112 = vector.shape_cast %111 : vector<8x16x16xf32> to vector<8x8x2x16xf32>
    %113 = vector.extract_strided_slice %112 {offsets = [0, 0, 0, 0], sizes = [8, 8, 1, 16], strides = [1, 1, 1, 1]} : vector<8x8x2x16xf32> to vector<8x8x1x16xf32>
    %114 = vector.shape_cast %113 : vector<8x8x1x16xf32> to vector<8x8x16xf32>
    %115 = vector.extract_strided_slice %112 {offsets = [0, 0, 1, 0], sizes = [8, 8, 1, 16], strides = [1, 1, 1, 1]} : vector<8x8x2x16xf32> to vector<8x8x1x16xf32>
    %116 = vector.shape_cast %115 : vector<8x8x1x16xf32> to vector<8x8x16xf32>
    %117 = arith.maximumf %114, %116 : vector<8x8x16xf32>
    %118 = vector.shape_cast %117 : vector<8x8x16xf32> to vector<64x16xf32>
    %c0_49 = arith.constant 0 : index
    %c0_50 = arith.constant 0 : index
    %c0_51 = arith.constant 0 : index
    %c0_52 = arith.constant 0 : index
    %119 = vector.load %arg6[%c0_49, %c0_50, %c0_51, %c0_52] : memref<1x8x8x16xf32, #tpu.memory_space<vmem>>, vector<1x8x8x16xf32>
    %120 = vector.shape_cast %119 : vector<1x8x8x16xf32> to vector<8x8x16xf32>
    %c0_53 = arith.constant 0 : index
    %c0_54 = arith.constant 0 : index
    %121 = vector.load %arg13[%c0_53, %c0_54] : memref<144x16xbf16, #tpu.memory_space<vmem>>, vector<144x16xbf16>
    %c0_55 = arith.constant 0 : index
    %c0_56 = arith.constant 0 : index
    %122 = vector.load %arg14[%c0_55, %c0_56] : memref<1x16xf32, #tpu.memory_space<vmem>>, vector<1x16xf32>
    %123 = arith.truncf %120 : vector<8x8x16xf32> to vector<8x8x16xbf16>
    %cst_57 = arith.constant 0.000000e+00 : bf16
    %124 = vector.broadcast %cst_57 : bf16 to vector<8x1x16xbf16>
    %125 = tpu.concatenate %124, %123, %124 in 1 : vector<8x1x16xbf16>, vector<8x8x16xbf16>, vector<8x1x16xbf16> -> vector<8x10x16xbf16>
    %cst_58 = arith.constant 0.000000e+00 : bf16
    %126 = vector.broadcast %cst_58 : bf16 to vector<1x10x16xbf16>
    %127 = tpu.concatenate %126, %125, %126 in 0 : vector<1x10x16xbf16>, vector<8x10x16xbf16>, vector<1x10x16xbf16> -> vector<10x10x16xbf16>
    %128 = vector.extract_strided_slice %127 {offsets = [0, 0, 0], sizes = [10, 8, 16], strides = [1, 1, 1]} : vector<10x10x16xbf16> to vector<10x8x16xbf16>
    %129 = vector.extract_strided_slice %127 {offsets = [0, 1, 0], sizes = [10, 8, 16], strides = [1, 1, 1]} : vector<10x10x16xbf16> to vector<10x8x16xbf16>
    %130 = vector.extract_strided_slice %127 {offsets = [0, 2, 0], sizes = [10, 8, 16], strides = [1, 1, 1]} : vector<10x10x16xbf16> to vector<10x8x16xbf16>
    %131 = tpu.concatenate %128, %129, %130 in 2 : vector<10x8x16xbf16>, vector<10x8x16xbf16>, vector<10x8x16xbf16> -> vector<10x8x48xbf16>
    %132 = vector.extract_strided_slice %131 {offsets = [0, 0, 0], sizes = [8, 8, 48], strides = [1, 1, 1]} : vector<10x8x48xbf16> to vector<8x8x48xbf16>
    %133 = vector.extract_strided_slice %131 {offsets = [1, 0, 0], sizes = [8, 8, 48], strides = [1, 1, 1]} : vector<10x8x48xbf16> to vector<8x8x48xbf16>
    %134 = vector.extract_strided_slice %131 {offsets = [2, 0, 0], sizes = [8, 8, 48], strides = [1, 1, 1]} : vector<10x8x48xbf16> to vector<8x8x48xbf16>
    %135 = tpu.concatenate %132, %133, %134 in 2 : vector<8x8x48xbf16>, vector<8x8x48xbf16>, vector<8x8x48xbf16> -> vector<8x8x144xbf16>
    %136 = vector.shape_cast %135 : vector<8x8x144xbf16> to vector<64x144xbf16>
    %cst_59 = arith.constant dense<0.000000e+00> : vector<64x16xf32>
    %137 = tpu.matmul %136, %121, %cst_59 {dimension_numbers = #tpu.dot_dimension_numbers<[1], [0], [0], [1], [0, 0, 1, 1], [], []>} : vector<64x144xbf16>, vector<144x16xbf16>, vector<64x16xf32> -> vector<64x16xf32>
    %138 = vector.broadcast %122 : vector<1x16xf32> to vector<64x16xf32>
    %139 = arith.addf %137, %138 : vector<64x16xf32>
    %cst_60 = arith.constant 0.000000e+00 : f32
    %140 = vector.broadcast %cst_60 : f32 to vector<64x16xf32>
    %141 = arith.maximumf %139, %140 : vector<64x16xf32>
    %142 = arith.subf %118, %141 : vector<64x16xf32>
    %cst_61 = arith.constant 0.000000e+00 : f32
    %143 = vector.broadcast %cst_61 : f32 to vector<64x16xf32>
    %144 = arith.maximumf %142, %143 : vector<64x16xf32>
    %cst_62 = arith.constant 0.000000e+00 : f32
    %145 = vector.broadcast %cst_62 : f32 to vector<64x16xf32>
    %146 = arith.subf %145, %142 : vector<64x16xf32>
    %cst_63 = arith.constant 0.000000e+00 : f32
    %147 = vector.broadcast %cst_63 : f32 to vector<64x16xf32>
    %148 = arith.maximumf %146, %147 : vector<64x16xf32>
    %149 = tpu.concatenate %144, %148 in 1 : vector<64x16xf32>, vector<64x16xf32> -> vector<64x32xf32>
    %cst_64 = arith.constant 0.000000e+00 : f32
    %150 = vector.broadcast %cst_64 : f32 to vector<64x96xf32>
    %151 = tpu.concatenate %149, %150 in 1 : vector<64x32xf32>, vector<64x96xf32> -> vector<64x128xf32>
    %c0_65 = arith.constant 0 : index
    %c0_66 = arith.constant 0 : index
    %c0_67 = arith.constant 0 : index
    %152 = vector.load %arg16[%c0_65, %c0_66, %c0_67] : memref<1x64x128xf32, #tpu.memory_space<vmem>>, vector<1x64x128xf32>
    %153 = vector.shape_cast %152 : vector<1x64x128xf32> to vector<64x128xf32>
    %154 = vector.shape_cast %151 : vector<64x128xf32> to vector<1x64x128xf32>
    tpu.vector_store %arg16[%c0_65, %c0_66, %c0_67], %154 {strides = array<i32>} : memref<1x64x128xf32, #tpu.memory_space<vmem>>, vector<1x64x128xf32>,
    return
  }
  func.func @transform_0(%arg0: i32) -> (i32, i32, i32, i32) {
    %c0_i32 = arith.constant 0 : i32
    %c0_i32_0 = arith.constant 0 : i32
    %c0_i32_1 = arith.constant 0 : i32
    %c0_i32_2 = arith.constant 0 : i32
    return %arg0, %c0_i32, %c0_i32_0, %c0_i32_1 : i32, i32, i32, i32
  }
  func.func @transform_1(%arg0: i32) -> (i32, i32, i32, i32) {
    %c0_i32 = arith.constant 0 : i32
    %c0_i32_0 = arith.constant 0 : i32
    %c0_i32_1 = arith.constant 0 : i32
    %c0_i32_2 = arith.constant 0 : i32
    return %arg0, %c0_i32, %c0_i32_0, %c0_i32_1 : i32, i32, i32, i32
  }
  func.func @transform_2(%arg0: i32) -> (i32, i32, i32, i32) {
    %c0_i32 = arith.constant 0 : i32
    %c0_i32_0 = arith.constant 0 : i32
    %c0_i32_1 = arith.constant 0 : i32
    %c0_i32_2 = arith.constant 0 : i32
    return %arg0, %c0_i32, %c0_i32_0, %c0_i32_1 : i32, i32, i32, i32
  }
  func.func @transform_3(%arg0: i32) -> (i32, i32, i32, i32) {
    %c0_i32 = arith.constant 0 : i32
    %c0_i32_0 = arith.constant 0 : i32
    %c0_i32_1 = arith.constant 0 : i32
    %c0_i32_2 = arith.constant 0 : i32
    return %arg0, %c0_i32, %c0_i32_0, %c0_i32_1 : i32, i32, i32, i32
  }
  func.func @transform_4(%arg0: i32) -> (i32, i32, i32, i32) {
    %c0_i32 = arith.constant 0 : i32
    %c0_i32_0 = arith.constant 0 : i32
    %c0_i32_1 = arith.constant 0 : i32
    %c0_i32_2 = arith.constant 0 : i32
    return %arg0, %c0_i32, %c0_i32_0, %c0_i32_1 : i32, i32, i32, i32
  }
  func.func @transform_5(%arg0: i32) -> (i32, i32, i32, i32) {
    %c0_i32 = arith.constant 0 : i32
    %c0_i32_0 = arith.constant 0 : i32
    %c0_i32_1 = arith.constant 0 : i32
    %c0_i32_2 = arith.constant 0 : i32
    return %arg0, %c0_i32, %c0_i32_0, %c0_i32_1 : i32, i32, i32, i32
  }
  func.func @transform_6(%arg0: i32) -> (i32, i32) {
    %c0_i32 = arith.constant 0 : i32
    %c0_i32_0 = arith.constant 0 : i32
    %c0_i32_1 = arith.constant 0 : i32
    return %c0_i32, %c0_i32_0 : i32, i32
  }
  func.func @transform_7(%arg0: i32) -> (i32, i32) {
    %c0_i32 = arith.constant 0 : i32
    %c0_i32_0 = arith.constant 0 : i32
    %c0_i32_1 = arith.constant 0 : i32
    return %c0_i32, %c0_i32_0 : i32, i32
  }
  func.func @transform_8(%arg0: i32) -> (i32, i32) {
    %c0_i32 = arith.constant 0 : i32
    %c0_i32_0 = arith.constant 0 : i32
    %c0_i32_1 = arith.constant 0 : i32
    return %c0_i32, %c0_i32_0 : i32, i32
  }
  func.func @transform_9(%arg0: i32) -> (i32, i32) {
    %c0_i32 = arith.constant 0 : i32
    %c0_i32_0 = arith.constant 0 : i32
    %c0_i32_1 = arith.constant 0 : i32
    return %c0_i32, %c0_i32_0 : i32, i32
  }
  func.func @transform_10(%arg0: i32) -> (i32, i32) {
    %c0_i32 = arith.constant 0 : i32
    %c0_i32_0 = arith.constant 0 : i32
    %c0_i32_1 = arith.constant 0 : i32
    return %c0_i32, %c0_i32_0 : i32, i32
  }
  func.func @transform_11(%arg0: i32) -> (i32, i32) {
    %c0_i32 = arith.constant 0 : i32
    %c0_i32_0 = arith.constant 0 : i32
    %c0_i32_1 = arith.constant 0 : i32
    return %c0_i32, %c0_i32_0 : i32, i32
  }
  func.func @transform_12(%arg0: i32) -> (i32, i32) {
    %c0_i32 = arith.constant 0 : i32
    %c0_i32_0 = arith.constant 0 : i32
    %c0_i32_1 = arith.constant 0 : i32
    return %c0_i32, %c0_i32_0 : i32, i32
  }
  func.func @transform_13(%arg0: i32) -> (i32, i32) {
    %c0_i32 = arith.constant 0 : i32
    %c0_i32_0 = arith.constant 0 : i32
    %c0_i32_1 = arith.constant 0 : i32
    return %c0_i32, %c0_i32_0 : i32, i32
  }
  func.func @transform_14(%arg0: i32) -> (i32, i32, i32) {
    %c0_i32 = arith.constant 0 : i32
    %c0_i32_0 = arith.constant 0 : i32
    %c0_i32_1 = arith.constant 0 : i32
    return %arg0, %c0_i32, %c0_i32_0 : i32, i32, i32
  }
  func.func @transform_15(%arg0: i32) -> (i32, i32, i32) {
    %c0_i32 = arith.constant 0 : i32
    %c0_i32_0 = arith.constant 0 : i32
    %c0_i32_1 = arith.constant 0 : i32
    return %arg0, %c0_i32, %c0_i32_0 : i32, i32, i32
  }
}

</mosaic_0001>

<llo_original>
// kernel: two_layer_prednet_forward.2
$region0: #{two_layer_prednet_forward.2}
  #allocation0 [shape = 'u32[]', space=smem, size = 0x4, offset = 0x4, fixed_abs, tag = 'smem constant byte address 0x4 - core index']
  #allocation1 [shape = 'u32[144,128]{1,0:T(1,128)}', space=vmem, size = 0x12000, scoped, tag = 'internal scratch']
  %s0 = inlined_call_operand.vmem [shape: f32[2,8,8,32], index: 0, kind: input, shape index: {}]
  %s1 = inlined_call_operand.vmem [shape: f32[2,8,8,16], index: 1, kind: input, shape index: {}]
  %s2 = inlined_call_operand.vmem [shape: f32[2,8,8,16], index: 2, kind: input, shape index: {}]
  %s3 = inlined_call_operand.vmem [shape: bf16[432,64], index: 3, kind: input, shape index: {}]
  %s4 = inlined_call_operand.vmem [shape: f32[1,64], index: 4, kind: input, shape index: {}]
  %s5 = inlined_call_operand.vmem [shape: f32[2,64,128], index: 5, kind: output, shape index: {}]
  %s6 = sld [smem:[#allocation0]]
  $region53: #{two_layer_prednet_forward.2} parent=0
    _
  %s8 = ssub.s32 1, %s6
  %s9 = scalar_select 0, %s8, %s6
  loop: start=0, step=1, limit=4
  $region2: #{two_layer_prednet_forward.2} parent=0 // loop_pre_header
    _
  $region3: #{two_layer_prednet_forward.2} parent=0 // loop_header
    %s11 = sphi 0, %s15
    %p12 = scmp.ge.s32.totalorder %s11, 4
    %s21 = sphi 0, %s23
    %s24 = sphi 0, %s21
    %s25 = sphi 0, %s24
    %s41 = sphi 0, %s25
    %s47 = sphi 0, %s49
    %s50 = sphi 0, %s47
    %s51 = sphi 0, %s50
    %s67 = sphi 0, %s51
    %s73 = sphi 0, %s75
    %s76 = sphi 0, %s73
    %s77 = sphi 0, %s76
    %s93 = sphi 0, %s77
    %s97 = sphi 0, %s97
    %s99 = sphi 0, %s97
    %s100 = sphi 0, %s99
    %s114 = sphi 0, %s100
    %s118 = sphi 0, %s118
    %s120 = sphi 0, %s118
    %s121 = sphi 0, %s120
    %s135 = sphi 0, %s121
    %s141 = sphi 0, %s143
    %s144 = sphi 0, %s141
    %s145 = sphi 0, %s144
    %s161 = sphi 0, %s145
  $region4: #{two_layer_prednet_forward.2} parent=0 // loop_header_branch
    %14 = sbr.rel (%p12) target = $region8
  $region5: #{two_layer_prednet_forward.2} parent=0 // loop_body
    %s16 = ssub.s32 %s11, 1
    %s17 = ssub.s32 %s11, 2
    %s18 = sadd.s32 %s11, 1
    %s19 = ssub.s32 %s11, %s18
    %p20 = scmp.eq.s32.totalorder %s19, 0
    %s22 = sadd.s32 %s21, 1
    %s23 = scalar_select %p20, %s21, %s22
    %p26 = pneg %p20
    %p27 = scmp.eq.s32.totalorder %s11, 1
    %p28 = por %p26, %p27
    %p29 = scmp.ne.s32.totalorder %s21, %s24
    %p30 = scmp.eq.s32.totalorder %s11, 0
    %p31 = por %p29, %p30
    %p32 = scmp.ne.s32.totalorder %s21, %s24
    %p33 = scmp.eq.s32.totalorder %s16, 1
    %p34 = por %p32, %p33
    %p35 = scmp.ne.s32.totalorder %s24, %s25
    %p36 = scmp.eq.s32.totalorder %s16, 0
    %p37 = por %p35, %p36
    %p38 = scmp.ne.s32.totalorder %s24, %s25
    %p39 = scmp.eq.s32.totalorder %s17, 1
    %p40 = por %p38, %p39
    %p42 = scmp.ne.s32.totalorder %s25, %s41
    %p43 = scmp.eq.s32.totalorder %s17, 0
    %p44 = por %p42, %p43
    %s45 = ssub.s32 %s11, %s18
    %p46 = scmp.eq.s32.totalorder %s45, 0
    %s48 = sadd.s32 %s47, 1
    %s49 = scalar_select %p46, %s47, %s48
    %p52 = pneg %p46
    %p53 = scmp.eq.s32.totalorder %s11, 1
    %p54 = por %p52, %p53
    %p55 = scmp.ne.s32.totalorder %s47, %s50
    %p56 = scmp.eq.s32.totalorder %s11, 0
    %p57 = por %p55, %p56
    %p58 = scmp.ne.s32.totalorder %s47, %s50
    %p59 = scmp.eq.s32.totalorder %s16, 1
    %p60 = por %p58, %p59
    %p61 = scmp.ne.s32.totalorder %s50, %s51
    %p62 = scmp.eq.s32.totalorder %s16, 0
    %p63 = por %p61, %p62
    %p64 = scmp.ne.s32.totalorder %s50, %s51
    %p65 = scmp.eq.s32.totalorder %s17, 1
    %p66 = por %p64, %p65
    %p68 = scmp.ne.s32.totalorder %s51, %s67
    %p69 = scmp.eq.s32.totalorder %s17, 0
    %p70 = por %p68, %p69
    %s71 = ssub.s32 %s11, %s18
    %p72 = scmp.eq.s32.totalorder %s71, 0
    %s74 = sadd.s32 %s73, 1
    %s75 = scalar_select %p72, %s73, %s74
    %p78 = pneg %p72
    %p79 = scmp.eq.s32.totalorder %s11, 1
    %p80 = por %p78, %p79
    %p81 = scmp.ne.s32.totalorder %s73, %s76
    %p82 = scmp.eq.s32.totalorder %s11, 0
    %p83 = por %p81, %p82
    %p84 = scmp.ne.s32.totalorder %s73, %s76
    %p85 = scmp.eq.s32.totalorder %s16, 1
    %p86 = por %p84, %p85
    %p87 = scmp.ne.s32.totalorder %s76, %s77
    %p88 = scmp.eq.s32.totalorder %s16, 0
    %p89 = por %p87, %p88
    %p90 = scmp.ne.s32.totalorder %s76, %s77
    %p91 = scmp.eq.s32.totalorder %s17, 1
    %p92 = por %p90, %p91
    %p94 = scmp.ne.s32.totalorder %s77, %s93
    %p95 = scmp.eq.s32.totalorder %s17, 0
    %p96 = por %p94, %p95
    %s98 = sadd.s32 %s97, 1
    %p101 = scmp.eq.s32.totalorder %s11, 1
    %p102 = scmp.ne.s32.totalorder %s97, %s99
    %p103 = scmp.eq.s32.totalorder %s11, 0
    %p104 = por %p102, %p103
    %p105 = scmp.ne.s32.totalorder %s97, %s99
    %p106 = scmp.eq.s32.totalorder %s16, 1
    %p107 = por %p105, %p106
    %p108 = scmp.ne.s32.totalorder %s99, %s100
    %p109 = scmp.eq.s32.totalorder %s16, 0
    %p110 = por %p108, %p109
    %p111 = scmp.ne.s32.totalorder %s99, %s100
    %p112 = scmp.eq.s32.totalorder %s17, 1
    %p113 = por %p111, %p112
    %p115 = scmp.ne.s32.totalorder %s100, %s114
    %p116 = scmp.eq.s32.totalorder %s17, 0
    %p117 = por %p115, %p116
    %s119 = sadd.s32 %s118, 1
    %p122 = scmp.eq.s32.totalorder %s11, 1
    %p123 = scmp.ne.s32.totalorder %s118, %s120
    %p124 = scmp.eq.s32.totalorder %s11, 0
    %p125 = por %p123, %p124
    %p126 = scmp.ne.s32.totalorder %s118, %s120
    %p127 = scmp.eq.s32.totalorder %s16, 1
    %p128 = por %p126, %p127
    %p129 = scmp.ne.s32.totalorder %s120, %s121
    %p130 = scmp.eq.s32.totalorder %s16, 0
    %p131 = por %p129, %p130
    %p132 = scmp.ne.s32.totalorder %s120, %s121
    %p133 = scmp.eq.s32.totalorder %s17, 1
    %p134 = por %p132, %p133
    %p136 = scmp.ne.s32.totalorder %s121, %s135
    %p137 = scmp.eq.s32.totalorder %s17, 0
    %p138 = por %p136, %p137
    %s139 = ssub.s32 %s11, %s18
    %p140 = scmp.eq.s32.totalorder %s139, 0
    %s142 = sadd.s32 %s141, 1
    %s143 = scalar_select %p140, %s141, %s142
    %p146 = pneg %p140
    %p147 = scmp.eq.s32.totalorder %s11, 1
    %p148 = por %p146, %p147
    %p149 = scmp.ne.s32.totalorder %s141, %s144
    %p150 = scmp.eq.s32.totalorder %s11, 0
    %p151 = por %p149, %p150
    %p152 = scmp.ne.s32.totalorder %s141, %s144
    %p153 = scmp.eq.s32.totalorder %s16, 1
    %p154 = por %p152, %p153
    %p155 = scmp.ne.s32.totalorder %s144, %s145
    %p156 = scmp.eq.s32.totalorder %s16, 0
    %p157 = por %p155, %p156
    %p158 = scmp.ne.s32.totalorder %s144, %s145
    %p159 = scmp.eq.s32.totalorder %s17, 1
    %p160 = por %p158, %p159
    %p162 = scmp.ne.s32.totalorder %s145, %s161
    %p163 = scmp.eq.s32.totalorder %s17, 0
    %p164 = por %p162, %p163
    %p165 = scmp.le.s32.totalorder 1, %s11
    %p166 = scmp.lt.s32.totalorder %s11, 3
    %p167 = pnand %p165, %p166
    %p168 = pneg %p167
    // Predicated region
    $region9: #{two_layer_prednet_forward.2} parent=5 // pred_check
      _
    $region10: #{two_layer_prednet_forward.2} parent=5 // pred_check_branch
      %170 = sbr.rel (%p167) target = $region12
    $region11: #{two_layer_prednet_forward.2} parent=5 // pred_region
      %s171 = ssub.s32 %s11, 1
      // Predicated region
      $region13: #{two_layer_prednet_forward.2} parent=11 // pred_check
        %p172 = pneg %p110
      $region14: #{two_layer_prednet_forward.2} parent=11 // pred_check_branch
        %174 = sbr.rel (%p172) target = $region16
      $region15: #{two_layer_prednet_forward.2} parent=11 // pred_region
        _
      $region16: #{two_layer_prednet_forward.2} parent=11 // pred_fallthru
        _
      // Predicated region
      $region17: #{two_layer_prednet_forward.2} parent=11 // pred_check
        %p175 = pneg %p131
      $region18: #{two_layer_prednet_forward.2} parent=11 // pred_check_branch
        %177 = sbr.rel (%p175) target = $region20
      $region19: #{two_layer_prednet_forward.2} parent=11 // pred_region
        _
      $region20: #{two_layer_prednet_forward.2} parent=11 // pred_fallthru
        _
    $region12: #{two_layer_prednet_forward.2} parent=5 // pred_fallthru
      _
    %p178 = scmp.lt.s32.totalorder %s11, 2
    // Predicated region
    $region21: #{two_layer_prednet_forward.2} parent=5 // pred_check
      %p179 = pneg %p178
    $region22: #{two_layer_prednet_forward.2} parent=5 // pred_check_branch
      %181 = sbr.rel (%p179) target = $region24
    $region23: #{two_layer_prednet_forward.2} parent=5 // pred_region
      // Predicated region
      $region25: #{two_layer_prednet_forward.2} parent=23 // pred_check
        %p182 = pneg %p31
      $region26: #{two_layer_prednet_forward.2} parent=23 // pred_check_branch
        %184 = sbr.rel (%p182) target = $region28
      $region27: #{two_layer_prednet_forward.2} parent=23 // pred_region
        %p185 = scmp.lt.s32.totalorder %s11, 1
        %s186 = scalar_select %p185, %s11, 1
        %s187 = smul.addr %s186, 8
        %s188 = smul.addr %s187, 8
        %s189 = scalar_lea.vmem %s0, %s188
      $region28: #{two_layer_prednet_forward.2} parent=23 // pred_fallthru
        _
      // Predicated region
      $region29: #{two_layer_prednet_forward.2} parent=23 // pred_check
        %p190 = pneg %p57
      $region30: #{two_layer_prednet_forward.2} parent=23 // pred_check_branch
        %192 = sbr.rel (%p190) target = $region32
      $region31: #{two_layer_prednet_forward.2} parent=23 // pred_region
        %p193 = scmp.lt.s32.totalorder %s11, 1
        %s194 = scalar_select %p193, %s11, 1
        %s195 = smul.addr %s194, 8
        %s196 = smul.addr %s195, 8
        %s197 = scalar_lea.vmem %s1, %s196
      $region32: #{two_layer_prednet_forward.2} parent=23 // pred_fallthru
        _
      // Predicated region
      $region33: #{two_layer_prednet_forward.2} parent=23 // pred_check
        %p198 = pneg %p83
      $region34: #{two_layer_prednet_forward.2} parent=23 // pred_check_branch
        %200 = sbr.rel (%p198) target = $region36
      $region35: #{two_layer_prednet_forward.2} parent=23 // pred_region
        %p201 = scmp.lt.s32.totalorder %s11, 1
        %s202 = scalar_select %p201, %s11, 1
        %s203 = smul.addr %s202, 8
        %s204 = smul.addr %s203, 8
        %s205 = scalar_lea.vmem %s2, %s204
      $region36: #{two_layer_prednet_forward.2} parent=23 // pred_fallthru
        _
    $region24: #{two_layer_prednet_forward.2} parent=5 // pred_fallthru
      _
    %p206 = scmp.le.s32.totalorder 1, %s11
    %p207 = scmp.lt.s32.totalorder %s11, 3
    %p208 = pnand %p206, %p207
    %p209 = pneg %p208
    // Predicated region
    $region37: #{two_layer_prednet_forward.2} parent=5 // pred_check
      _
    $region38: #{two_layer_prednet_forward.2} parent=5 // pred_check_branch
      %211 = sbr.rel (%p208) target = $region40
    $region39: #{two_layer_prednet_forward.2} parent=5 // pred_region
      %s212 = ssub.s32 %s11, 1
      %p213 = scmp.lt.s32.totalorder %s16, 1
      %s214 = scalar_select %p213, %s16, 1
      %s215 = smul.addr %s214, 8
      %s216 = smul.addr %s215, 8
      %s217 = scalar_lea.vmem %s0, %s216
      %p218 = pneg %p37
      %p219 = pneg %p34
      %p220 = scmp.lt.s32.totalorder %s16, 1
      %s221 = scalar_select %p220, %s16, 1
      %s222 = smul.addr %s221, 8
      %s223 = smul.addr %s222, 8
      %s224 = scalar_lea.vmem %s1, %s223
      %p225 = pneg %p63
      %p226 = pneg %p60
      %p227 = scmp.lt.s32.totalorder %s16, 1
      %s228 = scalar_select %p227, %s16, 1
      %s229 = smul.addr %s228, 8
      %s230 = smul.addr %s229, 8
      %s231 = scalar_lea.vmem %s2, %s230
      %p232 = pneg %p89
      %p233 = pneg %p86
      %p234 = pneg %p110
      %p235 = pneg %p107
      %p236 = pneg %p131
      %p237 = pneg %p128
      %p238 = pneg %p157
      %p239 = pneg %p154
      %p240 = scmp.lt.s32.totalorder %s16, 1
      %s241 = scalar_select %p240, %s16, 1
      %s242 = smul.addr %s241, 8
      %s243 = smul.addr %s242, 8
      %s244 = scalar_lea.vmem %s5, %s243
      %p245 = scmp.lt.s32.totalorder %s16, 1
      %s246 = scalar_select %p245, %s16, 1
      %s247 = smul.addr %s246, 8
      %s248 = smul.addr %s247, 8
      %s249 = scalar_lea.vmem %s0, %s248
      %p250 = scmp.lt.s32.totalorder %s16, 1
      %s251 = scalar_select %p250, %s16, 1
      %s252 = smul.addr %s251, 8
      %s253 = smul.addr %s252, 8
      %s254 = scalar_lea.vmem %s1, %s253
      %p255 = scmp.lt.s32.totalorder %s16, 1
      %s256 = scalar_select %p255, %s16, 1
      %s257 = smul.addr %s256, 8
      %s258 = smul.addr %s257, 8
      %s259 = scalar_lea.vmem %s2, %s258
      %p260 = scmp.lt.s32.totalorder %s16, 1
      %s261 = scalar_select %p260, %s16, 1
      %s262 = smul.addr %s261, 8
      %s263 = smul.addr %s262, 8
      %s264 = scalar_lea.vmem %s5, %s263
      %v266 = vld [vmem:[%s249] sm:$0xff]
      %v267 = vld [vmem:[%s249 + $0x8] sm:$0xff]
      %v268 = vld [vmem:[%s249 + $0x10] sm:$0xff]
      %v269 = vld [vmem:[%s249 + $0x18] sm:$0xff]
      %v270 = vld [vmem:[%s249 + $0x20] sm:$0xff]
      %v271 = vld [vmem:[%s249 + $0x28] sm:$0xff]
      %v272 = vld [vmem:[%s249 + $0x30] sm:$0xff]
      %v273 = vld [vmem:[%s249 + $0x38] sm:$0xff]
      %v274 = vld [vmem:[%s254] sm:$0xff]
      %v275 = vld [vmem:[%s254 + $0x8] sm:$0xff]
      %v276 = vld [vmem:[%s254 + $0x10] sm:$0xff]
      %v277 = vld [vmem:[%s254 + $0x18] sm:$0xff]
      %v278 = vld [vmem:[%s254 + $0x20] sm:$0xff]
      %v279 = vld [vmem:[%s254 + $0x28] sm:$0xff]
      %v280 = vld [vmem:[%s254 + $0x30] sm:$0xff]
      %v281 = vld [vmem:[%s254 + $0x38] sm:$0xff]
      %290 = vrot.lane.b32.xlu0 %v274, 32
      %v291 = vpop.permute.xlu0 %290
      %292 = vrot.lane.b32.xlu0 %v275, 32
      %v293 = vpop.permute.xlu0 %292
      %294 = vrot.lane.b32.xlu0 %v276, 32
      %v295 = vpop.permute.xlu0 %294
      %296 = vrot.lane.b32.xlu0 %v277, 32
      %v297 = vpop.permute.xlu0 %296
      %298 = vrot.lane.b32.xlu0 %v278, 32
      %v299 = vpop.permute.xlu0 %298
      %300 = vrot.lane.b32.xlu0 %v279, 32
      %v301 = vpop.permute.xlu0 %300
      %302 = vrot.lane.b32.xlu0 %v280, 32
      %v303 = vpop.permute.xlu0 %302
      %304 = vrot.lane.b32.xlu0 %v281, 32
      %v305 = vpop.permute.xlu0 %304
      %vm314 = vcmask 261120
      %v315 = vsel %vm314, %v266, %v291
      %v316 = vsel %vm314, %v267, %v293
      %v317 = vsel %vm314, %v268, %v295
      %v318 = vsel %vm314, %v269, %v297
      %v319 = vsel %vm314, %v270, %v299
      %v320 = vsel %vm314, %v271, %v301
      %v321 = vsel %vm314, %v272, %v303
      %v322 = vsel %vm314, %v273, %v305
      %v323 = vld [vmem:[%s3] sm:$0xf]
      %v324 = vld [vmem:[%s3 + $0x4] sm:$0xf]
      %v325 = vld [vmem:[%s3 + $0x8] sm:$0xf]
      %v326 = vld [vmem:[%s3 + $0xc] sm:$0xf]
      %v327 = vld [vmem:[%s3 + $0x10] sm:$0xf]
      %v328 = vld [vmem:[%s3 + $0x14] sm:$0xf]
      %v329 = vld [vmem:[%s3 + $0x18] sm:$0xf]
      %v330 = vld [vmem:[%s3 + $0x1c] sm:$0xf]
      %v331 = vld [vmem:[%s3 + $0x20] sm:$0xf]
      %v332 = vld [vmem:[%s3 + $0x24] sm:$0xf]
      %v333 = vld [vmem:[%s3 + $0x28] sm:$0xf]
      %v334 = vld [vmem:[%s3 + $0x2c] sm:$0xf]
      %v335 = vld [vmem:[%s3 + $0x30] sm:$0xf]
      %v336 = vld [vmem:[%s3 + $0x34] sm:$0xf]
      %v337 = vld [vmem:[%s3 + $0x38] sm:$0xf]
      %v338 = vld [vmem:[%s3 + $0x3c] sm:$0xf]
      %v339 = vld [vmem:[%s3 + $0x40] sm:$0xf]
      %v340 = vld [vmem:[%s3 + $0x44] sm:$0xf]
      %v341 = vld [vmem:[%s3 + $0x48] sm:$0xf]
      %v342 = vld [vmem:[%s3 + $0x4c] sm:$0xf]
      %v343 = vld [vmem:[%s3 + $0x50] sm:$0xf]
      %v344 = vld [vmem:[%s3 + $0x54] sm:$0xf]
      %v345 = vld [vmem:[%s3 + $0x58] sm:$0xf]
      %v346 = vld [vmem:[%s3 + $0x5c] sm:$0xf]
      %v347 = vld [vmem:[%s3 + $0x60] sm:$0xf]
      %v348 = vld [vmem:[%s3 + $0x64] sm:$0xf]
      %v349 = vld [vmem:[%s3 + $0x68] sm:$0xf]
      %v350 = vld [vmem:[%s3 + $0x6c] sm:$0xf]
      %v351 = vld [vmem:[%s3 + $0x70] sm:$0xf]
      %v352 = vld [vmem:[%s3 + $0x74] sm:$0xf]
      %v353 = vld [vmem:[%s3 + $0x78] sm:$0xf]
      %v354 = vld [vmem:[%s3 + $0x7c] sm:$0xf]
      %v355 = vld [vmem:[%s3 + $0x80] sm:$0xf]
      %v356 = vld [vmem:[%s3 + $0x84] sm:$0xf]
      %v357 = vld [vmem:[%s3 + $0x88] sm:$0xf]
      %v358 = vld [vmem:[%s3 + $0x8c] sm:$0xf]
      %v359 = vld [vmem:[%s3 + $0x90] sm:$0xf]
      %v360 = vld [vmem:[%s3 + $0x94] sm:$0xf]
      %v361 = vld [vmem:[%s3 + $0x98] sm:$0xf]
      %v362 = vld [vmem:[%s3 + $0x9c] sm:$0xf]
      %v363 = vld [vmem:[%s3 + $0xa0] sm:$0xf]
      %v364 = vld [vmem:[%s3 + $0xa4] sm:$0xf]
      %v365 = vld [vmem:[%s3 + $0xa8] sm:$0xf]
      %v366 = vld [vmem:[%s3 + $0xac] sm:$0xf]
      %v367 = vld [vmem:[%s3 + $0xb0] sm:$0xf]
      %v368 = vld [vmem:[%s3 + $0xb4] sm:$0xf]
      %v369 = vld [vmem:[%s3 + $0xb8] sm:$0xf]
      %v370 = vld [vmem:[%s3 + $0xbc] sm:$0xf]
      %v371 = vld [vmem:[%s3 + $0xc0] sm:$0xf]
      %v372 = vld [vmem:[%s3 + $0xc4] sm:$0xf]
      %v373 = vld [vmem:[%s3 + $0xc8] sm:$0xf]
      %v374 = vld [vmem:[%s3 + $0xcc] sm:$0xf]
      %v375 = vld [vmem:[%s3 + $0xd0] sm:$0xf]
      %v376 = vld [vmem:[%s3 + $0xd4] sm:$0xf]
      %v377 = vld [vmem:[%s4] sm:$0x1]
      %v378 = vpack.c.bf16 %v315, %v315
      %v379 = vpack.c.bf16 %v316, %v316
      %v380 = vpack.c.bf16 %v317, %v317
      %v381 = vpack.c.bf16 %v318, %v318
      %v382 = vpack.c.bf16 %v319, %v319
      %v383 = vpack.c.bf16 %v320, %v320
      %v384 = vpack.c.bf16 %v321, %v321
      %v385 = vpack.c.bf16 %v322, %v322
      %v387 = vshrl.u32 %v378, 16
      %v389 = vrot.slane %v387, 7
      %v390 = vshll.u32 %v378, 16
      %v392 = vor.u32 %v389, %v390
      %v394 = vshrl.u32 %v379, 16
      %v396 = vrot.slane %v394, 7
      %v397 = vshll.u32 %v379, 16
      %v399 = vor.u32 %v396, %v397
      %v401 = vshrl.u32 %v380, 16
      %v403 = vrot.slane %v401, 7
      %v404 = vshll.u32 %v380, 16
      %v406 = vor.u32 %v403, %v404
      %v408 = vshrl.u32 %v381, 16
      %v410 = vrot.slane %v408, 7
      %v411 = vshll.u32 %v381, 16
      %v413 = vor.u32 %v410, %v411
      %v415 = vshrl.u32 %v382, 16
      %v417 = vrot.slane %v415, 7
      %v418 = vshll.u32 %v382, 16
      %v420 = vor.u32 %v417, %v418
      %v422 = vshrl.u32 %v383, 16
      %v424 = vrot.slane %v422, 7
      %v425 = vshll.u32 %v383, 16
      %v427 = vor.u32 %v424, %v425
      %v429 = vshrl.u32 %v384, 16
      %v431 = vrot.slane %v429, 7
      %v432 = vshll.u32 %v384, 16
      %v434 = vor.u32 %v431, %v432
      %v436 = vshrl.u32 %v385, 16
      %v438 = vrot.slane %v436, 7
      %v439 = vshll.u32 %v385, 16
      %v441 = vor.u32 %v438, %v439
      %vm450 = vcmask 1040384
      %vm451 = vsmask.f32 256
      %vm452 = vmand %vm450, %vm451
      %v453 = vsel %vm452, 0, %v392
      %v454 = vsel %vm452, 0, %v399
      %v455 = vsel %vm452, 0, %v406
      %v456 = vsel %vm452, 0, %v413
      %v457 = vsel %vm452, 0, %v420
      %v458 = vsel %vm452, 0, %v427
      %v459 = vsel %vm452, 0, %v434
      %v460 = vsel %vm452, 0, %v441
      %vm461 = vcmask 1044480
      %vm462 = vsmask.f32 4352
      %vm463 = vmand %vm461, %vm462
      %v464 = vsel %vm463, %v453, 0
      %v465 = vsel %vm463, %v454, 0
      %v466 = vsel %vm463, %v455, 0
      %v467 = vsel %vm463, %v456, 0
      %v468 = vsel %vm463, %v457, 0
      %v469 = vsel %vm463, %v458, 0
      %v470 = vsel %vm463, %v459, 0
      %v471 = vsel %vm463, %v460, 0
      %v473 = vshrl.u32 0, 16
      %v475 = vshll.u32 0, 16
      %v477 = vrot.slane %v475, 1
      %v478 = vor.u32 %v473, %v477
      %v480 = vshrl.u32 %v464, 16
      %v482 = vshll.u32 %v464, 16
      %v484 = vrot.slane %v482, 1
      %v485 = vor.u32 %v480, %v484
      %v487 = vshrl.u32 %v465, 16
      %v489 = vshll.u32 %v465, 16
      %v491 = vrot.slane %v489, 1
      %v492 = vor.u32 %v487, %v491
      %v494 = vshrl.u32 %v466, 16
      %v496 = vshll.u32 %v466, 16
      %v498 = vrot.slane %v496, 1
      %v499 = vor.u32 %v494, %v498
      %v501 = vshrl.u32 %v467, 16
      %v503 = vshll.u32 %v467, 16
      %v505 = vrot.slane %v503, 1
      %v506 = vor.u32 %v501, %v505
      %v508 = vshrl.u32 %v468, 16
      %v510 = vshll.u32 %v468, 16
      %v512 = vrot.slane %v510, 1
      %v513 = vor.u32 %v508, %v512
      %v515 = vshrl.u32 %v469, 16
      %v517 = vshll.u32 %v469, 16
      %v519 = vrot.slane %v517, 1
      %v520 = vor.u32 %v515, %v519
      %v522 = vshrl.u32 %v470, 16
      %v524 = vshll.u32 %v470, 16
      %v526 = vrot.slane %v524, 1
      %v527 = vor.u32 %v522, %v526
      %v529 = vshrl.u32 %v471, 16
      %v531 = vshll.u32 %v471, 16
      %v533 = vrot.slane %v531, 1
      %v534 = vor.u32 %v529, %v533
      %535 = vrot.lane.b32.xlu0 %v478, 48
      %v536 = vpop.permute.xlu0 %535
      %537 = vrot.lane.b32.xlu0 %v485, 48
      %v538 = vpop.permute.xlu0 %537
      %539 = vrot.lane.b32.xlu0 %v492, 48
      %v540 = vpop.permute.xlu0 %539
      %541 = vrot.lane.b32.xlu0 %v499, 48
      %v542 = vpop.permute.xlu0 %541
      %543 = vrot.lane.b32.xlu0 %v506, 48
      %v544 = vpop.permute.xlu0 %543
      %545 = vrot.lane.b32.xlu0 %v513, 48
      %v546 = vpop.permute.xlu0 %545
      %547 = vrot.lane.b32.xlu0 %v520, 48
      %v548 = vpop.permute.xlu0 %547
      %549 = vrot.lane.b32.xlu0 %v527, 48
      %v550 = vpop.permute.xlu0 %549
      %551 = vrot.lane.b32.xlu0 %v534, 48
      %v552 = vpop.permute.xlu0 %551
      %v562 = vrot.slane 0, 1
      %v563 = vrot.slane %v464, 1
      %v564 = vrot.slane %v465, 1
      %v565 = vrot.slane %v466, 1
      %v566 = vrot.slane %v467, 1
      %v567 = vrot.slane %v468, 1
      %v568 = vrot.slane %v469, 1
      %v569 = vrot.slane %v470, 1
      %v570 = vrot.slane %v471, 1
      %571 = vrot.lane.b32.xlu0 %v562, 96
      %v572 = vpop.permute.xlu0 %571
      %573 = vrot.lane.b32.xlu0 %v563, 96
      %v574 = vpop.permute.xlu0 %573
      %575 = vrot.lane.b32.xlu0 %v564, 96
      %v576 = vpop.permute.xlu0 %575
      %577 = vrot.lane.b32.xlu0 %v565, 96
      %v578 = vpop.permute.xlu0 %577
      %579 = vrot.lane.b32.xlu0 %v566, 96
      %v580 = vpop.permute.xlu0 %579
      %581 = vrot.lane.b32.xlu0 %v567, 96
      %v582 = vpop.permute.xlu0 %581
      %583 = vrot.lane.b32.xlu0 %v568, 96
      %v584 = vpop.permute.xlu0 %583
      %585 = vrot.lane.b32.xlu0 %v569, 96
      %v586 = vpop.permute.xlu0 %585
      %587 = vrot.lane.b32.xlu0 %v570, 96
      %v588 = vpop.permute.xlu0 %587
      %vm589 = vcmask 392192
      %v591 = vsel %vm589, 0, %v536
      %v593 = vsel %vm589, %v464, %v538
      %v595 = vsel %vm589, %v465, %v540
      %v597 = vsel %vm589, %v466, %v542
      %v599 = vsel %vm589, %v467, %v544
      %v601 = vsel %vm589, %v468, %v546
      %v603 = vsel %vm589, %v469, %v548
      %v605 = vsel %vm589, %v470, %v550
      %v607 = vsel %vm589, %v471, %v552
      %vm608 = vcmask 785408
      %v610 = vsel %vm608, %v591, %v572
      %v612 = vsel %vm608, %v593, %v574
      %v614 = vsel %vm608, %v595, %v576
      %v616 = vsel %vm608, %v597, %v578
      %v618 = vsel %vm608, %v599, %v580
      %v620 = vsel %vm608, %v601, %v582
      %v622 = vsel %vm608, %v603, %v584
      %v624 = vsel %vm608, %v605, %v586
      %v626 = vsel %vm608, %v607, %v588
      %635 = vrot.lane.b32.xlu0 %v612, 16
      %v636 = vpop.permute.xlu0 %635
      %637 = vrot.lane.b32.xlu0 %v574, 16
      %v638 = vpop.permute.xlu0 %637
      %639 = vrot.lane.b32.xlu0 %v614, 16
      %v640 = vpop.permute.xlu0 %639
      %641 = vrot.lane.b32.xlu0 %v576, 16
      %v642 = vpop.permute.xlu0 %641
      %643 = vrot.lane.b32.xlu0 %v616, 16
      %v644 = vpop.permute.xlu0 %643
      %645 = vrot.lane.b32.xlu0 %v578, 16
      %v646 = vpop.permute.xlu0 %645
      %647 = vrot.lane.b32.xlu0 %v618, 16
      %v648 = vpop.permute.xlu0 %647
      %649 = vrot.lane.b32.xlu0 %v580, 16
      %v650 = vpop.permute.xlu0 %649
      %651 = vrot.lane.b32.xlu0 %v620, 16
      %v652 = vpop.permute.xlu0 %651
      %653 = vrot.lane.b32.xlu0 %v582, 16
      %v654 = vpop.permute.xlu0 %653
      %655 = vrot.lane.b32.xlu0 %v622, 16
      %v656 = vpop.permute.xlu0 %655
      %657 = vrot.lane.b32.xlu0 %v584, 16
      %v658 = vpop.permute.xlu0 %657
      %659 = vrot.lane.b32.xlu0 %v624, 16
      %v660 = vpop.permute.xlu0 %659
      %661 = vrot.lane.b32.xlu0 %v586, 16
      %v662 = vpop.permute.xlu0 %661
      %663 = vrot.lane.b32.xlu0 %v626, 16
      %v664 = vpop.permute.xlu0 %663
      %665 = vrot.lane.b32.xlu0 %v588, 16
      %v666 = vpop.permute.xlu0 %665
      %vm667 = vcmask 130048
      %v668 = vsel %vm667, %v636, %v638
      %v669 = vsel %vm667, %v640, %v642
      %v670 = vsel %vm667, %v644, %v646
      %v671 = vsel %vm667, %v648, %v650
      %v672 = vsel %vm667, %v652, %v654
      %v673 = vsel %vm667, %v656, %v658
      %v674 = vsel %vm667, %v660, %v662
      %v675 = vsel %vm667, %v664, %v666
      %677 = vrot.lane.b32.xlu0 %v614, 32
      %v678 = vpop.permute.xlu0 %677
      %679 = vrot.lane.b32.xlu0 %v576, 32
      %v680 = vpop.permute.xlu0 %679
      %681 = vrot.lane.b32.xlu0 %v616, 32
      %v682 = vpop.permute.xlu0 %681
      %683 = vrot.lane.b32.xlu0 %v578, 32
      %v684 = vpop.permute.xlu0 %683
      %685 = vrot.lane.b32.xlu0 %v618, 32
      %v686 = vpop.permute.xlu0 %685
      %687 = vrot.lane.b32.xlu0 %v580, 32
      %v688 = vpop.permute.xlu0 %687
      %689 = vrot.lane.b32.xlu0 %v620, 32
      %v690 = vpop.permute.xlu0 %689
      %691 = vrot.lane.b32.xlu0 %v582, 32
      %v692 = vpop.permute.xlu0 %691
      %693 = vrot.lane.b32.xlu0 %v622, 32
      %v694 = vpop.permute.xlu0 %693
      %695 = vrot.lane.b32.xlu0 %v584, 32
      %v696 = vpop.permute.xlu0 %695
      %697 = vrot.lane.b32.xlu0 %v624, 32
      %v698 = vpop.permute.xlu0 %697
      %699 = vrot.lane.b32.xlu0 %v586, 32
      %v700 = vpop.permute.xlu0 %699
      %701 = vrot.lane.b32.xlu0 %v626, 32
      %v702 = vpop.permute.xlu0 %701
      %703 = vrot.lane.b32.xlu0 %v588, 32
      %v704 = vpop.permute.xlu0 %703
      %705 = vrot.lane.b32.xlu0 %v610, 32
      %v706 = vpop.permute.xlu0 %705
      %707 = vrot.lane.b32.xlu0 %v572, 32
      %v708 = vpop.permute.xlu0 %707
      %vm709 = vcmask 261120
      %v710 = vsel %vm709, %v678, %v680
      %v711 = vsel %vm709, %v682, %v684
      %v712 = vsel %vm709, %v686, %v688
      %v713 = vsel %vm709, %v690, %v692
      %v714 = vsel %vm709, %v694, %v696
      %v715 = vsel %vm709, %v698, %v700
      %v716 = vsel %vm709, %v702, %v704
      %v717 = vsel %vm709, %v706, %v708
      %vm718 = vcmask 130048
      %v720 = vsel %vm718, %v572, %v636
      %v722 = vsel %vm718, %v574, %v640
      %v724 = vsel %vm718, %v576, %v644
      %v726 = vsel %vm718, %v578, %v648
      %v728 = vsel %vm718, %v580, %v652
      %v730 = vsel %vm718, %v582, %v656
      %v732 = vsel %vm718, %v584, %v660
      %v734 = vsel %vm718, %v586, %v664
      %v737 = vsel %vm314, %v668, %v678
      %v740 = vsel %vm314, %v669, %v682
      %v743 = vsel %vm314, %v670, %v686
      %v746 = vsel %vm314, %v671, %v690
      %v749 = vsel %vm314, %v672, %v694
      %v752 = vsel %vm314, %v673, %v698
      %v755 = vsel %vm314, %v674, %v702
      %v758 = vsel %vm314, %v675, %v706
      %v775 = vunpack.c.l.b16 %v610
      %v776 = vunpack.c.l.b16 %v720
      %v777 = vunpack.c.l.b16 %v737
      %v778 = vunpack.c.l.b16 %v710
      %v779 = vunpack.c.l.b16 %v612
      %v780 = vunpack.c.l.b16 %v722
      %v781 = vunpack.c.l.b16 %v740
      %v782 = vunpack.c.l.b16 %v711
      %v783 = vunpack.c.l.b16 %v614
      %v784 = vunpack.c.l.b16 %v724
      %v785 = vunpack.c.l.b16 %v743
      %v786 = vunpack.c.l.b16 %v712
      %v787 = vunpack.c.l.b16 %v616
      %v788 = vunpack.c.l.b16 %v726
      %v789 = vunpack.c.l.b16 %v746
      %v790 = vunpack.c.l.b16 %v713
      %v791 = vunpack.c.l.b16 %v618
      %v792 = vunpack.c.l.b16 %v728
      %v793 = vunpack.c.l.b16 %v749
      %v794 = vunpack.c.l.b16 %v714
      %v795 = vunpack.c.l.b16 %v620
      %v796 = vunpack.c.l.b16 %v730
      %v797 = vunpack.c.l.b16 %v752
      %v798 = vunpack.c.l.b16 %v715
      %v799 = vunpack.c.l.b16 %v622
      %v800 = vunpack.c.l.b16 %v732
      %v801 = vunpack.c.l.b16 %v755
      %v802 = vunpack.c.l.b16 %v716
      %v803 = vunpack.c.l.b16 %v624
      %v804 = vunpack.c.l.b16 %v734
      %v805 = vunpack.c.l.b16 %v758
      %v806 = vunpack.c.l.b16 %v717
      %v808 = vlaneseq
      %v809 = vshrl.u32 %v808, 7
      %v810 = vsub.s32 0, %v809
      %v811 = vrot.slane %v377, %v810
      %v813 = vpack.c.b16 %v779, %v775
      %v814 = vpack.c.b16 %v780, %v776
      %v815 = vpack.c.b16 %v781, %v777
      %v816 = vpack.c.b16 %v782, %v778
      %v817 = vpack.c.b16 %v787, %v783
      %v818 = vpack.c.b16 %v788, %v784
      %v819 = vpack.c.b16 %v789, %v785
      %v820 = vpack.c.b16 %v790, %v786
      %v821 = vpack.c.b16 %v795, %v791
      %v822 = vpack.c.b16 %v796, %v792
      %v823 = vpack.c.b16 %v797, %v793
      %v824 = vpack.c.b16 %v798, %v794
      %v825 = vpack.c.b16 %v803, %v799
      %v826 = vpack.c.b16 %v804, %v800
      %v827 = vpack.c.b16 %v805, %v801
      %v828 = vpack.c.b16 %v806, %v802
      %v895 = vunpack.c.l.b16 %v323
      %v896 = vunpack.c.l.b16 %v324
      %v897 = vunpack.c.l.b16 %v325
      %v898 = vunpack.c.l.b16 %v326
      %v899 = vunpack.c.l.b16 %v327
      %v900 = vunpack.c.l.b16 %v328
      %v901 = vunpack.c.l.b16 %v329
      %v902 = vunpack.c.l.b16 %v330
      %v903 = vunpack.c.l.b16 %v331
      %v904 = vunpack.c.l.b16 %v332
      %v905 = vunpack.c.l.b16 %v333
      %v906 = vunpack.c.l.b16 %v334
      %v907 = vunpack.c.l.b16 %v335
      %v908 = vunpack.c.l.b16 %v336
      %v909 = vunpack.c.l.b16 %v337
      %v910 = vunpack.c.l.b16 %v338
      %v911 = vunpack.c.l.b16 %v339
      %v912 = vunpack.c.l.b16 %v340
      %v913 = vunpack.c.l.b16 %v341
      %v914 = vunpack.c.l.b16 %v342
      %v915 = vunpack.c.l.b16 %v343
      %v916 = vunpack.c.l.b16 %v344
      %v917 = vunpack.c.l.b16 %v345
      %v918 = vunpack.c.l.b16 %v346
      %v919 = vunpack.c.l.b16 %v347
      %v920 = vunpack.c.l.b16 %v348
      %v921 = vunpack.c.l.b16 %v349
      %v922 = vunpack.c.l.b16 %v350
      %v923 = vunpack.c.l.b16 %v351
      %v924 = vunpack.c.l.b16 %v352
      %v925 = vunpack.c.l.b16 %v353
      %v926 = vunpack.c.l.b16 %v354
      %v927 = vunpack.c.l.b16 %v355
      %v928 = vunpack.c.l.b16 %v356
      %v929 = vunpack.c.l.b16 %v357
      %v930 = vunpack.c.l.b16 %v358
      %v931 = vunpack.c.l.b16 %v359
      %v932 = vunpack.c.l.b16 %v360
      %v933 = vunpack.c.l.b16 %v361
      %v934 = vunpack.c.l.b16 %v362
      %v935 = vunpack.c.l.b16 %v363
      %v936 = vunpack.c.l.b16 %v364
      %v937 = vunpack.c.l.b16 %v365
      %v938 = vunpack.c.l.b16 %v366
      %v939 = vunpack.c.l.b16 %v367
      %v940 = vunpack.c.l.b16 %v368
      %v941 = vunpack.c.l.b16 %v369
      %v942 = vunpack.c.l.b16 %v370
      %v943 = vunpack.c.l.b16 %v371
      %v944 = vunpack.c.l.b16 %v372
      %v945 = vunpack.c.l.b16 %v373
      %v946 = vunpack.c.l.b16 %v374
      %v947 = vunpack.c.l.b16 %v375
      %v948 = vunpack.c.l.b16 %v376
      %v949 = vpack.c.b16 %v896, %v895
      %v950 = vpack.c.b16 %v898, %v897
      %v951 = vpack.c.b16 %v900, %v899
      %v952 = vpack.c.b16 %v902, %v901
      %v953 = vpack.c.b16 %v904, %v903
      %v954 = vpack.c.b16 %v906, %v905
      %v955 = vpack.c.b16 %v908, %v907
      %v956 = vpack.c.b16 %v910, %v909
      %v957 = vpack.c.b16 %v912, %v911
      %v958 = vpack.c.b16 %v914, %v913
      %v959 = vpack.c.b16 %v916, %v915
      %v960 = vpack.c.b16 %v918, %v917
      %v961 = vpack.c.b16 %v920, %v919
      %v962 = vpack.c.b16 %v922, %v921
      %v963 = vpack.c.b16 %v924, %v923
      %v964 = vpack.c.b16 %v926, %v925
      %v965 = vpack.c.b16 %v928, %v927
      %v966 = vpack.c.b16 %v930, %v929
      %v967 = vpack.c.b16 %v932, %v931
      %v968 = vpack.c.b16 %v934, %v933
      %v969 = vpack.c.b16 %v936, %v935
      %v970 = vpack.c.b16 %v938, %v937
      %v971 = vpack.c.b16 %v940, %v939
      %v972 = vpack.c.b16 %v942, %v941
      %v973 = vpack.c.b16 %v944, %v943
      %v974 = vpack.c.b16 %v946, %v945
      %v975 = vpack.c.b16 %v948, %v947
      %v1004 = vsel %vm589, %v816, 0
      %v1007 = vsel %vm589, %v820, 0
      %v1010 = vsel %vm589, %v824, 0
      %v1013 = vsel %vm589, %v828, 0
      %1015 = vmatprep.subr.bf16.mxu0 0
      %1016 = vmatpush1.bf16.msra.mxu0 %v956
      %1017 = vmatprep.subr.bf16.mxu0 0
      %1018 = vmatpush1.bf16.msra.mxu0 %v955
      %1019 = vmatprep.subr.bf16.mxu0 0
      %1020 = vmatpush1.bf16.msra.mxu0 %v954
      %1021 = vmatprep.subr.bf16.mxu0 0
      %1022 = vmatpush1.bf16.msra.mxu0 %v953
      %1023 = vmatprep.subr.bf16.mxu0 0
      %1024 = vmatpush1.bf16.msra.mxu0 %v952
      %1025 = vmatprep.subr.bf16.mxu0 0
      %1026 = vmatpush1.bf16.msra.mxu0 %v951
      %1027 = vmatprep.subr.bf16.mxu0 0
      %1028 = vmatpush1.bf16.msra.mxu0 %v950
      %1029 = vmatprep.subr.bf16.mxu0 0
      %1030 = vmatpush1.bf16.msra.mxu0 %v949
      %1031 = vmatprep.subr.bf16.mxu0 0
      %1032 = vmatpush2.bf16.msra.mxu0 %v964
      %1033 = vmatprep.subr.bf16.mxu0 0
      %1034 = vmatpush2.bf16.msra.mxu0 %v963
      %1035 = vmatprep.subr.bf16.mxu0 0
      %1036 = vmatpush2.bf16.msra.mxu0 %v962
      %1037 = vmatprep.subr.bf16.mxu0 0
      %1038 = vmatpush2.bf16.msra.mxu0 %v961
      %1039 = vmatprep.subr.bf16.mxu0 0
      %1040 = vmatpush2.bf16.msra.mxu0 %v960
      %1041 = vmatprep.subr.bf16.mxu0 0
      %1042 = vmatpush2.bf16.msra.mxu0 %v959
      %1043 = vmatprep.subr.bf16.mxu0 0
      %1044 = vmatpush2.bf16.msra.mxu0 %v958
      %1045 = vmatprep.subr.bf16.mxu0 0
      %1046 = vmatpush2.bf16.msra.mxu0 %v957
      %1047 = vmatprep.mubr.bf16.mxu0 %v814
      %1048 = vmatmul.mubr.bf16.gmra.mxu0 %v813
      %v1049 = vpop.f32.mrf.mxu0
      %v1050 = vadd.f32 %v811, %v1049
      %v1051 = vpop.f32.mrf.mxu0
      %v1052 = vpop.f32.mrf.mxu0
      %v1053 = vadd.f32 %v811, %v1052
      %v1054 = vpop.f32.mrf.mxu0
      %1055 = vmatprep.mubr.bf16.mxu0 %v818
      %1056 = vmatmul.mubr.bf16.gmra.mxu0 %v817
      %v1057 = vpop.f32.mrf.mxu0
      %v1058 = vadd.f32 %v811, %v1057
      %v1059 = vpop.f32.mrf.mxu0
      %v1060 = vpop.f32.mrf.mxu0
      %v1061 = vadd.f32 %v811, %v1060
      %v1062 = vpop.f32.mrf.mxu0
      %1063 = vmatprep.mubr.bf16.mxu0 %v822
      %1064 = vmatmul.mubr.bf16.gmra.mxu0 %v821
      %v1065 = vpop.f32.mrf.mxu0
      %v1066 = vadd.f32 %v811, %v1065
      %v1067 = vpop.f32.mrf.mxu0
      %v1068 = vpop.f32.mrf.mxu0
      %v1069 = vadd.f32 %v811, %v1068
      %v1070 = vpop.f32.mrf.mxu0
      %1071 = vmatprep.mubr.bf16.mxu0 %v826
      %1072 = vmatmul.mubr.bf16.gmra.mxu0 %v825
      %v1073 = vpop.f32.mrf.mxu0
      %v1074 = vadd.f32 %v811, %v1073
      %v1075 = vpop.f32.mrf.mxu0
      %v1076 = vpop.f32.mrf.mxu0
      %v1077 = vadd.f32 %v811, %v1076
      %v1078 = vpop.f32.mrf.mxu0
      %1079 = vdwg.mxu0
      %1080 = vmatprep.subr.bf16.mxu0 0
      %1081 = vmatpush1.bf16.msra.mxu0 %v972
      %1082 = vmatprep.subr.bf16.mxu0 0
      %1083 = vmatpush1.bf16.msra.mxu0 %v971
      %1084 = vmatprep.subr.bf16.mxu0 0
      %1085 = vmatpush1.bf16.msra.mxu0 %v970
      %1086 = vmatprep.subr.bf16.mxu0 0
      %1087 = vmatpush1.bf16.msra.mxu0 %v969
      %1088 = vmatprep.subr.bf16.mxu0 0
      %1089 = vmatpush1.bf16.msra.mxu0 %v968
      %1090 = vmatprep.subr.bf16.mxu0 0
      %1091 = vmatpush1.bf16.msra.mxu0 %v967
      %1092 = vmatprep.subr.bf16.mxu0 0
      %1093 = vmatpush1.bf16.msra.mxu0 %v966
      %1094 = vmatprep.subr.bf16.mxu0 0
      %1095 = vmatpush1.bf16.msra.mxu0 %v965
      %1096 = vmatprep.subr.bf16.mxu0 0
      %1097 = vmatpush2.bf16.msra.mxu0 0
      %1098 = vmatprep.subr.bf16.mxu0 0
      %1099 = vmatpush2.bf16.msra.mxu0 0
      %1100 = vmatprep.subr.bf16.mxu0 0
      %1101 = vmatpush2.bf16.msra.mxu0 0
      %1102 = vmatprep.subr.bf16.mxu0 0
      %1103 = vmatpush2.bf16.msra.mxu0 0
      %1104 = vmatprep.subr.bf16.mxu0 0
      %1105 = vmatpush2.bf16.msra.mxu0 0
      %1106 = vmatprep.subr.bf16.mxu0 0
      %1107 = vmatpush2.bf16.msra.mxu0 %v975
      %1108 = vmatprep.subr.bf16.mxu0 0
      %1109 = vmatpush2.bf16.msra.mxu0 %v974
      %1110 = vmatprep.subr.bf16.mxu0 0
      %1111 = vmatpush2.bf16.msra.mxu0 %v973
      %1112 = vmatprep.mubr.bf16.mxu0 %v1004
      %1113 = vmatmul.mubr.bf16.gmra.mxu0 %v815
      %v1114 = vpop.f32.mrf.mxu0
      %v1115 = vadd.f32 %v1050, %v1114
      %v1116 = vpop.f32.mrf.mxu0
      %v1117 = vpop.f32.mrf.mxu0
      %v1118 = vadd.f32 %v1053, %v1117
      %v1119 = vpop.f32.mrf.mxu0
      %1120 = vmatprep.mubr.bf16.mxu0 %v1007
      %1121 = vmatmul.mubr.bf16.gmra.mxu0 %v819
      %v1122 = vpop.f32.mrf.mxu0
      %v1123 = vadd.f32 %v1058, %v1122
      %v1124 = vpop.f32.mrf.mxu0
      %v1125 = vpop.f32.mrf.mxu0
      %v1126 = vadd.f32 %v1061, %v1125
      %v1127 = vpop.f32.mrf.mxu0
      %1128 = vmatprep.mubr.bf16.mxu0 %v1010
      %1129 = vmatmul.mubr.bf16.gmra.mxu0 %v823
      %v1130 = vpop.f32.mrf.mxu0
      %v1131 = vadd.f32 %v1066, %v1130
      %v1132 = vpop.f32.mrf.mxu0
      %v1133 = vpop.f32.mrf.mxu0
      %v1134 = vadd.f32 %v1069, %v1133
      %v1135 = vpop.f32.mrf.mxu0
      %1136 = vmatprep.mubr.bf16.mxu0 %v1013
      %1137 = vmatmul.mubr.bf16.gmra.mxu0 %v827
      %v1138 = vpop.f32.mrf.mxu0
      %v1139 = vadd.f32 %v1074, %v1138
      %v1140 = vpop.f32.mrf.mxu0
      %v1141 = vpop.f32.mrf.mxu0
      %v1142 = vadd.f32 %v1077, %v1141
      %v1143 = vpop.f32.mrf.mxu0
      %1144 = vdwg.mxu0
      %v1145 = vld [vmem:[%s259] sm:$0xff]
      %v1146 = vld [vmem:[%s259 + $0x8] sm:$0xff]
      %v1147 = vld [vmem:[%s259 + $0x10] sm:$0xff]
      %v1148 = vld [vmem:[%s259 + $0x18] sm:$0xff]
      %v1149 = vld [vmem:[%s259 + $0x20] sm:$0xff]
      %v1150 = vld [vmem:[%s259 + $0x28] sm:$0xff]
      %v1151 = vld [vmem:[%s259 + $0x30] sm:$0xff]
      %v1152 = vld [vmem:[%s259 + $0x38] sm:$0xff]
      %v1153 = vxor.u32 %v1115, 2147483648
      %v1154 = vxor.u32 %v1118, 2147483648
      %v1155 = vxor.u32 %v1123, 2147483648
      %v1156 = vxor.u32 %v1126, 2147483648
      %v1157 = vxor.u32 %v1131, 2147483648
      %v1158 = vxor.u32 %v1134, 2147483648
      %v1159 = vxor.u32 %v1139, 2147483648
      %v1160 = vxor.u32 %v1142, 2147483648
      %v1161 = vmul.f32 %v1153, 1.442695
      %v1162 = vpow.pop %v1161
      %v1163 = vmul.f32 %v1154, 1.442695
      %v1164 = vpow.pop %v1163
      %v1165 = vmul.f32 %v1155, 1.442695
      %v1166 = vpow.pop %v1165
      %v1167 = vmul.f32 %v1156, 1.442695
      %v1168 = vpow.pop %v1167
      %v1169 = vmul.f32 %v1157, 1.442695
      %v1170 = vpow.pop %v1169
      %v1171 = vmul.f32 %v1158, 1.442695
      %v1172 = vpow.pop %v1171
      %v1173 = vmul.f32 %v1159, 1.442695
      %v1174 = vpow.pop %v1173
      %v1175 = vmul.f32 %v1160, 1.442695
      %v1176 = vpow.pop %v1175
      %v1177 = vadd.f32 %v1162, 1.0
      %v1178 = vadd.f32 %v1164, 1.0
      %v1179 = vadd.f32 %v1166, 1.0
      %v1180 = vadd.f32 %v1168, 1.0
      %v1181 = vadd.f32 %v1170, 1.0
      %v1182 = vadd.f32 %v1172, 1.0
      %v1183 = vadd.f32 %v1174, 1.0
      %v1184 = vadd.f32 %v1176, 1.0
      %v1185 = vrcp.pop %v1177
      %v1186 = vmul.f32 1.0, %v1185
      %v1187 = vrcp.pop %v1178
      %v1188 = vmul.f32 1.0, %v1187
      %v1189 = vrcp.pop %v1179
      %v1190 = vmul.f32 1.0, %v1189
      %v1191 = vrcp.pop %v1180
      %v1192 = vmul.f32 1.0, %v1191
      %v1193 = vrcp.pop %v1181
      %v1194 = vmul.f32 1.0, %v1193
      %v1195 = vrcp.pop %v1182
      %v1196 = vmul.f32 1.0, %v1195
      %v1197 = vrcp.pop %v1183
      %v1198 = vmul.f32 1.0, %v1197
      %v1199 = vrcp.pop %v1184
      %v1200 = vmul.f32 1.0, %v1199
      %v1201 = vtanh.pop %v1115
      %v1202 = vtanh.pop %v1118
      %v1203 = vtanh.pop %v1123
      %v1204 = vtanh.pop %v1126
      %v1205 = vtanh.pop %v1131
      %v1206 = vtanh.pop %v1134
      %v1207 = vtanh.pop %v1139
      %v1208 = vtanh.pop %v1142
      %1217 = vrot.lane.b32.xlu0 %v1145, 16
      %v1218 = vpop.permute.xlu0 %1217
      %1219 = vrot.lane.b32.xlu0 %v1146, 16
      %v1220 = vpop.permute.xlu0 %1219
      %1221 = vrot.lane.b32.xlu0 %v1147, 16
      %v1222 = vpop.permute.xlu0 %1221
      %1223 = vrot.lane.b32.xlu0 %v1148, 16
      %v1224 = vpop.permute.xlu0 %1223
      %1225 = vrot.lane.b32.xlu0 %v1149, 16
      %v1226 = vpop.permute.xlu0 %1225
      %1227 = vrot.lane.b32.xlu0 %v1150, 16
      %v1228 = vpop.permute.xlu0 %1227
      %1229 = vrot.lane.b32.xlu0 %v1151, 16
      %v1230 = vpop.permute.xlu0 %1229
      %1231 = vrot.lane.b32.xlu0 %v1152, 16
      %v1232 = vpop.permute.xlu0 %1231
      %v1241 = vmul.f32 %v1186, %v1218
      %v1242 = vmul.f32 %v1188, %v1220
      %v1243 = vmul.f32 %v1190, %v1222
      %v1244 = vmul.f32 %v1192, %v1224
      %v1245 = vmul.f32 %v1194, %v1226
      %v1246 = vmul.f32 %v1196, %v1228
      %v1247 = vmul.f32 %v1198, %v1230
      %v1248 = vmul.f32 %v1200, %v1232
      %1257 = vrot.lane.b32.xlu0 %v1201, 80
      %v1258 = vpop.permute.xlu0 %1257
      %1259 = vrot.lane.b32.xlu0 %v1202, 80
      %v1260 = vpop.permute.xlu0 %1259
      %1261 = vrot.lane.b32.xlu0 %v1203, 80
      %v1262 = vpop.permute.xlu0 %1261
      %1263 = vrot.lane.b32.xlu0 %v1204, 80
      %v1264 = vpop.permute.xlu0 %1263
      %1265 = vrot.lane.b32.xlu0 %v1205, 80
      %v1266 = vpop.permute.xlu0 %1265
      %1267 = vrot.lane.b32.xlu0 %v1206, 80
      %v1268 = vpop.permute.xlu0 %1267
      %1269 = vrot.lane.b32.xlu0 %v1207, 80
      %v1270 = vpop.permute.xlu0 %1269
      %1271 = vrot.lane.b32.xlu0 %v1208, 80
      %v1272 = vpop.permute.xlu0 %1271
      %v1281 = vmul.f32 %v1186, %v1258
      %v1282 = vmul.f32 %v1188, %v1260
      %v1283 = vmul.f32 %v1190, %v1262
      %v1284 = vmul.f32 %v1192, %v1264
      %v1285 = vmul.f32 %v1194, %v1266
      %v1286 = vmul.f32 %v1196, %v1268
      %v1287 = vmul.f32 %v1198, %v1270
      %v1288 = vmul.f32 %v1200, %v1272
      %1297 = vrot.lane.b32.xlu0 %v1281, 16
      %v1298 = vpop.permute.xlu0 %1297
      %1299 = vrot.lane.b32.xlu0 %v1282, 16
      %v1300 = vpop.permute.xlu0 %1299
      %1301 = vrot.lane.b32.xlu0 %v1283, 16
      %v1302 = vpop.permute.xlu0 %1301
      %1303 = vrot.lane.b32.xlu0 %v1284, 16
      %v1304 = vpop.permute.xlu0 %1303
      %1305 = vrot.lane.b32.xlu0 %v1285, 16
      %v1306 = vpop.permute.xlu0 %1305
      %1307 = vrot.lane.b32.xlu0 %v1286, 16
      %v1308 = vpop.permute.xlu0 %1307
      %1309 = vrot.lane.b32.xlu0 %v1287, 16
      %v1310 = vpop.permute.xlu0 %1309
      %1311 = vrot.lane.b32.xlu0 %v1288, 16
      %v1312 = vpop.permute.xlu0 %1311
      %v1321 = vadd.f32 %v1241, %v1298
      %v1322 = vadd.f32 %v1242, %v1300
      %v1323 = vadd.f32 %v1243, %v1302
      %v1324 = vadd.f32 %v1244, %v1304
      %v1325 = vadd.f32 %v1245, %v1306
      %v1326 = vadd.f32 %v1246, %v1308
      %v1327 = vadd.f32 %v1247, %v1310
      %v1328 = vadd.f32 %v1248, %v1312
      %v1329 = vtanh.pop %v1321
      %v1330 = vtanh.pop %v1322
      %v1331 = vtanh.pop %v1323
      %v1332 = vtanh.pop %v1324
      %v1333 = vtanh.pop %v1325
      %v1334 = vtanh.pop %v1326
      %v1335 = vtanh.pop %v1327
      %v1336 = vtanh.pop %v1328
      %1345 = vrot.lane.b32.xlu0 %v1329, 16
      %v1346 = vpop.permute.xlu0 %1345
      %1347 = vrot.lane.b32.xlu0 %v1330, 16
      %v1348 = vpop.permute.xlu0 %1347
      %1349 = vrot.lane.b32.xlu0 %v1331, 16
      %v1350 = vpop.permute.xlu0 %1349
      %1351 = vrot.lane.b32.xlu0 %v1332, 16
      %v1352 = vpop.permute.xlu0 %1351
      %1353 = vrot.lane.b32.xlu0 %v1333, 16
      %v1354 = vpop.permute.xlu0 %1353
      %1355 = vrot.lane.b32.xlu0 %v1334, 16
      %v1356 = vpop.permute.xlu0 %1355
      %1357 = vrot.lane.b32.xlu0 %v1335, 16
      %v1358 = vpop.permute.xlu0 %1357
      %1359 = vrot.lane.b32.xlu0 %v1336, 16
      %v1360 = vpop.permute.xlu0 %1359
      %v1369 = vmul.f32 %v1186, %v1346
      %v1370 = vmul.f32 %v1188, %v1348
      %v1371 = vmul.f32 %v1190, %v1350
      %v1372 = vmul.f32 %v1192, %v1352
      %v1373 = vmul.f32 %v1194, %v1354
      %v1374 = vmul.f32 %v1196, %v1356
      %v1375 = vmul.f32 %v1198, %v1358
      %v1376 = vmul.f32 %v1200, %v1360
      %1385 = vrot.lane.b32.xlu0 %v1369, 96
      %v1386 = vpop.permute.xlu0 %1385
      %1387 = vrot.lane.b32.xlu0 %v1370, 96
      %v1388 = vpop.permute.xlu0 %1387
      %1389 = vrot.lane.b32.xlu0 %v1371, 96
      %v1390 = vpop.permute.xlu0 %1389
      %1391 = vrot.lane.b32.xlu0 %v1372, 96
      %v1392 = vpop.permute.xlu0 %1391
      %1393 = vrot.lane.b32.xlu0 %v1373, 96
      %v1394 = vpop.permute.xlu0 %1393
      %1395 = vrot.lane.b32.xlu0 %v1374, 96
      %v1396 = vpop.permute.xlu0 %1395
      %1397 = vrot.lane.b32.xlu0 %v1375, 96
      %v1398 = vpop.permute.xlu0 %1397
      %1399 = vrot.lane.b32.xlu0 %v1376, 96
      %v1400 = vpop.permute.xlu0 %1399
      %v1409 = vsel %vm718, %v1386, %v1321
      %v1410 = vsel %vm718, %v1388, %v1322
      %v1411 = vsel %vm718, %v1390, %v1323
      %v1412 = vsel %vm718, %v1392, %v1324
      %v1413 = vsel %vm718, %v1394, %v1325
      %v1414 = vsel %vm718, %v1396, %v1326
      %v1415 = vsel %vm718, %v1398, %v1327
      %v1416 = vsel %vm718, %v1400, %v1328
      %v1417 = vsel %vm314, %v1409, 0.0
      %v1418 = vsel %vm314, %v1410, 0.0
      %v1419 = vsel %vm314, %v1411, 0.0
      %v1420 = vsel %vm314, %v1412, 0.0
      %v1421 = vsel %vm314, %v1413, 0.0
      %v1422 = vsel %vm314, %v1414, 0.0
      %v1423 = vsel %vm314, %v1415, 0.0
      %v1424 = vsel %vm314, %v1416, 0.0
      %1425 = vst [vmem:[%s264] sm:$0xff] %v1417
      %1426 = vst [vmem:[%s264 + $0x8] sm:$0xff] %v1418
      %1427 = vst [vmem:[%s264 + $0x10] sm:$0xff] %v1419
      %1428 = vst [vmem:[%s264 + $0x18] sm:$0xff] %v1420
      %1429 = vst [vmem:[%s264 + $0x20] sm:$0xff] %v1421
      %1430 = vst [vmem:[%s264 + $0x28] sm:$0xff] %v1422
      %1431 = vst [vmem:[%s264 + $0x30] sm:$0xff] %v1423
      %1432 = vst [vmem:[%s264 + $0x38] sm:$0xff] %v1424
      %p1433 = scmp.lt.s32.totalorder %s16, 1
      %s1434 = scalar_select %p1433, %s16, 1
      %s1435 = smul.addr %s1434, 8
      %s1436 = smul.addr %s1435, 8
      %s1437 = scalar_lea.vmem %s5, %s1436
      // Predicated region
      $region41: #{two_layer_prednet_forward.2} parent=39 // pred_check
        %p1438 = pneg %p154
      $region42: #{two_layer_prednet_forward.2} parent=39 // pred_check_branch
        %1440 = sbr.rel (%p1438) target = $region44
      $region43: #{two_layer_prednet_forward.2} parent=39 // pred_region
        _
      $region44: #{two_layer_prednet_forward.2} parent=39 // pred_fallthru
        _
    $region40: #{two_layer_prednet_forward.2} parent=5 // pred_fallthru
      _
    %p1441 = scmp.le.s32.totalorder 2, %s11
    // Predicated region
    $region45: #{two_layer_prednet_forward.2} parent=5 // pred_check
      %p1442 = pneg %p1441
    $region46: #{two_layer_prednet_forward.2} parent=5 // pred_check_branch
      %1444 = sbr.rel (%p1442) target = $region48
    $region47: #{two_layer_prednet_forward.2} parent=5 // pred_region
      %s1445 = ssub.s32 %s11, 2
      // Predicated region
      $region49: #{two_layer_prednet_forward.2} parent=47 // pred_check
        %p1446 = pneg %p160
      $region50: #{two_layer_prednet_forward.2} parent=47 // pred_check_branch
        %1448 = sbr.rel (%p1446) target = $region52
      $region51: #{two_layer_prednet_forward.2} parent=47 // pred_region
        %p1449 = scmp.lt.s32.totalorder %s17, 1
        %s1450 = scalar_select %p1449, %s17, 1
        %s1451 = smul.addr %s1450, 8
        %s1452 = smul.addr %s1451, 8
        %s1453 = scalar_lea.vmem %s5, %s1452
      $region52: #{two_layer_prednet_forward.2} parent=47 // pred_fallthru
        _
    $region48: #{two_layer_prednet_forward.2} parent=5 // pred_fallthru
      _
  $region6: #{two_layer_prednet_forward.2} parent=0 // loop_footer
    %s15 = sadd.s32 1, %s11
  $region7: #{two_layer_prednet_forward.2} parent=0 // loop_footer_branch
    %10 = sbr.rel target = $region3
  $region8: #{two_layer_prednet_forward.2} parent=0 // loop_exit
    _

// kernel: two_layer_prednet_forward.3
$region0: #{two_layer_prednet_forward.3}
  #allocation0 [shape = 'u32[]', space=smem, size = 0x4, offset = 0x4, fixed_abs, tag = 'smem constant byte address 0x4 - core index']
  #allocation1 [shape = 'u32[144,128]{1,0:T(1,128)}', space=vmem, size = 0x12000, scoped, tag = 'internal scratch']
  %s0 = inlined_call_operand.vmem [shape: f32[2,16,16,6], index: 0, kind: input, shape index: {}]
  %s1 = inlined_call_operand.vmem [shape: f32[2,16,16,16], index: 1, kind: input, shape index: {}]
  %s2 = inlined_call_operand.vmem [shape: f32[2,16,16,3], index: 2, kind: input, shape index: {}]
  %s3 = inlined_call_operand.vmem [shape: f32[2,16,16,3], index: 3, kind: input, shape index: {}]
  %s4 = inlined_call_operand.vmem [shape: f32[2,16,16,3], index: 4, kind: input, shape index: {}]
  %s5 = inlined_call_operand.vmem [shape: f32[2,8,8,16], index: 5, kind: input, shape index: {}]
  %s6 = inlined_call_operand.vmem [shape: bf16[225,12], index: 6, kind: input, shape index: {}]
  %s7 = inlined_call_operand.vmem [shape: f32[1,12], index: 7, kind: input, shape index: {}]
  %s8 = inlined_call_operand.vmem [shape: bf16[27,3], index: 8, kind: input, shape index: {}]
  %s9 = inlined_call_operand.vmem [shape: f32[1,3], index: 9, kind: input, shape index: {}]
  %s10 = inlined_call_operand.vmem [shape: bf16[54,16], index: 10, kind: input, shape index: {}]
  %s11 = inlined_call_operand.vmem [shape: f32[1,16], index: 11, kind: input, shape index: {}]
  %s12 = inlined_call_operand.vmem [shape: bf16[144,16], index: 12, kind: input, shape index: {}]
  %s13 = inlined_call_operand.vmem [shape: f32[1,16], index: 13, kind: input, shape index: {}]
  %s14 = inlined_call_operand.vmem [shape: f32[2,256,128], index: 14, kind: output, shape index: {0}]
  %s15 = inlined_call_operand.vmem [shape: f32[2,64,128], index: 15, kind: output, shape index: {1}]
  %16 = xla_tuple %s14, %s15
  %s17 = sld [smem:[#allocation0]]
  $region97: #{two_layer_prednet_forward.3} parent=0
    _
  %s19 = ssub.s32 1, %s17
  %s20 = scalar_select 0, %s19, %s17
  loop: start=0, step=1, limit=4
  $region2: #{two_layer_prednet_forward.3} parent=0 // loop_pre_header
    _
  $region3: #{two_layer_prednet_forward.3} parent=0 // loop_header
    %s22 = sphi 0, %s26
    %p23 = scmp.ge.s32.totalorder %s22, 4
    %s32 = sphi 0, %s34
    %s35 = sphi 0, %s32
    %s36 = sphi 0, %s35
    %s52 = sphi 0, %s36
    %s58 = sphi 0, %s60
    %s61 = sphi 0, %s58
    %s62 = sphi 0, %s61
    %s78 = sphi 0, %s62
    %s84 = sphi 0, %s86
    %s87 = sphi 0, %s84
    %s88 = sphi 0, %s87
    %s104 = sphi 0, %s88
    %s110 = sphi 0, %s112
    %s113 = sphi 0, %s110
    %s114 = sphi 0, %s113
    %s130 = sphi 0, %s114
    %s136 = sphi 0, %s138
    %s139 = sphi 0, %s136
    %s140 = sphi 0, %s139
    %s156 = sphi 0, %s140
    %s162 = sphi 0, %s164
    %s165 = sphi 0, %s162
    %s166 = sphi 0, %s165
    %s182 = sphi 0, %s166
    %s186 = sphi 0, %s186
    %s188 = sphi 0, %s186
    %s189 = sphi 0, %s188
    %s203 = sphi 0, %s189
    %s207 = sphi 0, %s207
    %s209 = sphi 0, %s207
    %s210 = sphi 0, %s209
    %s224 = sphi 0, %s210
    %s228 = sphi 0, %s228
    %s230 = sphi 0, %s228
    %s231 = sphi 0, %s230
    %s245 = sphi 0, %s231
    %s249 = sphi 0, %s249
    %s251 = sphi 0, %s249
    %s252 = sphi 0, %s251
    %s266 = sphi 0, %s252
    %s270 = sphi 0, %s270
    %s272 = sphi 0, %s270
    %s273 = sphi 0, %s272
    %s287 = sphi 0, %s273
    %s291 = sphi 0, %s291
    %s293 = sphi 0, %s291
    %s294 = sphi 0, %s293
    %s308 = sphi 0, %s294
    %s312 = sphi 0, %s312
    %s314 = sphi 0, %s312
    %s315 = sphi 0, %s314
    %s329 = sphi 0, %s315
    %s333 = sphi 0, %s333
    %s335 = sphi 0, %s333
    %s336 = sphi 0, %s335
    %s350 = sphi 0, %s336
    %s356 = sphi 0, %s358
    %s359 = sphi 0, %s356
    %s360 = sphi 0, %s359
    %s376 = sphi 0, %s360
    %s382 = sphi 0, %s384
    %s385 = sphi 0, %s382
    %s386 = sphi 0, %s385
    %s402 = sphi 0, %s386
  $region4: #{two_layer_prednet_forward.3} parent=0 // loop_header_branch
    %25 = sbr.rel (%p23) target = $region8
  $region5: #{two_layer_prednet_forward.3} parent=0 // loop_body
    %s27 = ssub.s32 %s22, 1
    %s28 = ssub.s32 %s22, 2
    %s29 = sadd.s32 %s22, 1
    %s30 = ssub.s32 %s22, %s29
    %p31 = scmp.eq.s32.totalorder %s30, 0
    %s33 = sadd.s32 %s32, 1
    %s34 = scalar_select %p31, %s32, %s33
    %p37 = pneg %p31
    %p38 = scmp.eq.s32.totalorder %s22, 1
    %p39 = por %p37, %p38
    %p40 = scmp.ne.s32.totalorder %s32, %s35
    %p41 = scmp.eq.s32.totalorder %s22, 0
    %p42 = por %p40, %p41
    %p43 = scmp.ne.s32.totalorder %s32, %s35
    %p44 = scmp.eq.s32.totalorder %s27, 1
    %p45 = por %p43, %p44
    %p46 = scmp.ne.s32.totalorder %s35, %s36
    %p47 = scmp.eq.s32.totalorder %s27, 0
    %p48 = por %p46, %p47
    %p49 = scmp.ne.s32.totalorder %s35, %s36
    %p50 = scmp.eq.s32.totalorder %s28, 1
    %p51 = por %p49, %p50
    %p53 = scmp.ne.s32.totalorder %s36, %s52
    %p54 = scmp.eq.s32.totalorder %s28, 0
    %p55 = por %p53, %p54
    %s56 = ssub.s32 %s22, %s29
    %p57 = scmp.eq.s32.totalorder %s56, 0
    %s59 = sadd.s32 %s58, 1
    %s60 = scalar_select %p57, %s58, %s59
    %p63 = pneg %p57
    %p64 = scmp.eq.s32.totalorder %s22, 1
    %p65 = por %p63, %p64
    %p66 = scmp.ne.s32.totalorder %s58, %s61
    %p67 = scmp.eq.s32.totalorder %s22, 0
    %p68 = por %p66, %p67
    %p69 = scmp.ne.s32.totalorder %s58, %s61
    %p70 = scmp.eq.s32.totalorder %s27, 1
    %p71 = por %p69, %p70
    %p72 = scmp.ne.s32.totalorder %s61, %s62
    %p73 = scmp.eq.s32.totalorder %s27, 0
    %p74 = por %p72, %p73
    %p75 = scmp.ne.s32.totalorder %s61, %s62
    %p76 = scmp.eq.s32.totalorder %s28, 1
    %p77 = por %p75, %p76
    %p79 = scmp.ne.s32.totalorder %s62, %s78
    %p80 = scmp.eq.s32.totalorder %s28, 0
    %p81 = por %p79, %p80
    %s82 = ssub.s32 %s22, %s29
    %p83 = scmp.eq.s32.totalorder %s82, 0
    %s85 = sadd.s32 %s84, 1
    %s86 = scalar_select %p83, %s84, %s85
    %p89 = pneg %p83
    %p90 = scmp.eq.s32.totalorder %s22, 1
    %p91 = por %p89, %p90
    %p92 = scmp.ne.s32.totalorder %s84, %s87
    %p93 = scmp.eq.s32.totalorder %s22, 0
    %p94 = por %p92, %p93
    %p95 = scmp.ne.s32.totalorder %s84, %s87
    %p96 = scmp.eq.s32.totalorder %s27, 1
    %p97 = por %p95, %p96
    %p98 = scmp.ne.s32.totalorder %s87, %s88
    %p99 = scmp.eq.s32.totalorder %s27, 0
    %p100 = por %p98, %p99
    %p101 = scmp.ne.s32.totalorder %s87, %s88
    %p102 = scmp.eq.s32.totalorder %s28, 1
    %p103 = por %p101, %p102
    %p105 = scmp.ne.s32.totalorder %s88, %s104
    %p106 = scmp.eq.s32.totalorder %s28, 0
    %p107 = por %p105, %p106
    %s108 = ssub.s32 %s22, %s29
    %p109 = scmp.eq.s32.totalorder %s108, 0
    %s111 = sadd.s32 %s110, 1
    %s112 = scalar_select %p109, %s110, %s111
    %p115 = pneg %p109
    %p116 = scmp.eq.s32.totalorder %s22, 1
    %p117 = por %p115, %p116
    %p118 = scmp.ne.s32.totalorder %s110, %s113
    %p119 = scmp.eq.s32.totalorder %s22, 0
    %p120 = por %p118, %p119
    %p121 = scmp.ne.s32.totalorder %s110, %s113
    %p122 = scmp.eq.s32.totalorder %s27, 1
    %p123 = por %p121, %p122
    %p124 = scmp.ne.s32.totalorder %s113, %s114
    %p125 = scmp.eq.s32.totalorder %s27, 0
    %p126 = por %p124, %p125
    %p127 = scmp.ne.s32.totalorder %s113, %s114
    %p128 = scmp.eq.s32.totalorder %s28, 1
    %p129 = por %p127, %p128
    %p131 = scmp.ne.s32.totalorder %s114, %s130
    %p132 = scmp.eq.s32.totalorder %s28, 0
    %p133 = por %p131, %p132
    %s134 = ssub.s32 %s22, %s29
    %p135 = scmp.eq.s32.totalorder %s134, 0
    %s137 = sadd.s32 %s136, 1
    %s138 = scalar_select %p135, %s136, %s137
    %p141 = pneg %p135
    %p142 = scmp.eq.s32.totalorder %s22, 1
    %p143 = por %p141, %p142
    %p144 = scmp.ne.s32.totalorder %s136, %s139
    %p145 = scmp.eq.s32.totalorder %s22, 0
    %p146 = por %p144, %p145
    %p147 = scmp.ne.s32.totalorder %s136, %s139
    %p148 = scmp.eq.s32.totalorder %s27, 1
    %p149 = por %p147, %p148
    %p150 = scmp.ne.s32.totalorder %s139, %s140
    %p151 = scmp.eq.s32.totalorder %s27, 0
    %p152 = por %p150, %p151
    %p153 = scmp.ne.s32.totalorder %s139, %s140
    %p154 = scmp.eq.s32.totalorder %s28, 1
    %p155 = por %p153, %p154
    %p157 = scmp.ne.s32.totalorder %s140, %s156
    %p158 = scmp.eq.s32.totalorder %s28, 0
    %p159 = por %p157, %p158
    %s160 = ssub.s32 %s22, %s29
    %p161 = scmp.eq.s32.totalorder %s160, 0
    %s163 = sadd.s32 %s162, 1
    %s164 = scalar_select %p161, %s162, %s163
    %p167 = pneg %p161
    %p168 = scmp.eq.s32.totalorder %s22, 1
    %p169 = por %p167, %p168
    %p170 = scmp.ne.s32.totalorder %s162, %s165
    %p171 = scmp.eq.s32.totalorder %s22, 0
    %p172 = por %p170, %p171
    %p173 = scmp.ne.s32.totalorder %s162, %s165
    %p174 = scmp.eq.s32.totalorder %s27, 1
    %p175 = por %p173, %p174
    %p176 = scmp.ne.s32.totalorder %s165, %s166
    %p177 = scmp.eq.s32.totalorder %s27, 0
    %p178 = por %p176, %p177
    %p179 = scmp.ne.s32.totalorder %s165, %s166
    %p180 = scmp.eq.s32.totalorder %s28, 1
    %p181 = por %p179, %p180
    %p183 = scmp.ne.s32.totalorder %s166, %s182
    %p184 = scmp.eq.s32.totalorder %s28, 0
    %p185 = por %p183, %p184
    %s187 = sadd.s32 %s186, 1
    %p190 = scmp.eq.s32.totalorder %s22, 1
    %p191 = scmp.ne.s32.totalorder %s186, %s188
    %p192 = scmp.eq.s32.totalorder %s22, 0
    %p193 = por %p191, %p192
    %p194 = scmp.ne.s32.totalorder %s186, %s188
    %p195 = scmp.eq.s32.totalorder %s27, 1
    %p196 = por %p194, %p195
    %p197 = scmp.ne.s32.totalorder %s188, %s189
    %p198 = scmp.eq.s32.totalorder %s27, 0
    %p199 = por %p197, %p198
    %p200 = scmp.ne.s32.totalorder %s188, %s189
    %p201 = scmp.eq.s32.totalorder %s28, 1
    %p202 = por %p200, %p201
    %p204 = scmp.ne.s32.totalorder %s189, %s203
    %p205 = scmp.eq.s32.totalorder %s28, 0
    %p206 = por %p204, %p205
    %s208 = sadd.s32 %s207, 1
    %p211 = scmp.eq.s32.totalorder %s22, 1
    %p212 = scmp.ne.s32.totalorder %s207, %s209
    %p213 = scmp.eq.s32.totalorder %s22, 0
    %p214 = por %p212, %p213
    %p215 = scmp.ne.s32.totalorder %s207, %s209
    %p216 = scmp.eq.s32.totalorder %s27, 1
    %p217 = por %p215, %p216
    %p218 = scmp.ne.s32.totalorder %s209, %s210
    %p219 = scmp.eq.s32.totalorder %s27, 0
    %p220 = por %p218, %p219
    %p221 = scmp.ne.s32.totalorder %s209, %s210
    %p222 = scmp.eq.s32.totalorder %s28, 1
    %p223 = por %p221, %p222
    %p225 = scmp.ne.s32.totalorder %s210, %s224
    %p226 = scmp.eq.s32.totalorder %s28, 0
    %p227 = por %p225, %p226
    %s229 = sadd.s32 %s228, 1
    %p232 = scmp.eq.s32.totalorder %s22, 1
    %p233 = scmp.ne.s32.totalorder %s228, %s230
    %p234 = scmp.eq.s32.totalorder %s22, 0
    %p235 = por %p233, %p234
    %p236 = scmp.ne.s32.totalorder %s228, %s230
    %p237 = scmp.eq.s32.totalorder %s27, 1
    %p238 = por %p236, %p237
    %p239 = scmp.ne.s32.totalorder %s230, %s231
    %p240 = scmp.eq.s32.totalorder %s27, 0
    %p241 = por %p239, %p240
    %p242 = scmp.ne.s32.totalorder %s230, %s231
    %p243 = scmp.eq.s32.totalorder %s28, 1
    %p244 = por %p242, %p243
    %p246 = scmp.ne.s32.totalorder %s231, %s245
    %p247 = scmp.eq.s32.totalorder %s28, 0
    %p248 = por %p246, %p247
    %s250 = sadd.s32 %s249, 1
    %p253 = scmp.eq.s32.totalorder %s22, 1
    %p254 = scmp.ne.s32.totalorder %s249, %s251
    %p255 = scmp.eq.s32.totalorder %s22, 0
    %p256 = por %p254, %p255
    %p257 = scmp.ne.s32.totalorder %s249, %s251
    %p258 = scmp.eq.s32.totalorder %s27, 1
    %p259 = por %p257, %p258
    %p260 = scmp.ne.s32.totalorder %s251, %s252
    %p261 = scmp.eq.s32.totalorder %s27, 0
    %p262 = por %p260, %p261
    %p263 = scmp.ne.s32.totalorder %s251, %s252
    %p264 = scmp.eq.s32.totalorder %s28, 1
    %p265 = por %p263, %p264
    %p267 = scmp.ne.s32.totalorder %s252, %s266
    %p268 = scmp.eq.s32.totalorder %s28, 0
    %p269 = por %p267, %p268
    %s271 = sadd.s32 %s270, 1
    %p274 = scmp.eq.s32.totalorder %s22, 1
    %p275 = scmp.ne.s32.totalorder %s270, %s272
    %p276 = scmp.eq.s32.totalorder %s22, 0
    %p277 = por %p275, %p276
    %p278 = scmp.ne.s32.totalorder %s270, %s272
    %p279 = scmp.eq.s32.totalorder %s27, 1
    %p280 = por %p278, %p279
    %p281 = scmp.ne.s32.totalorder %s272, %s273
    %p282 = scmp.eq.s32.totalorder %s27, 0
    %p283 = por %p281, %p282
    %p284 = scmp.ne.s32.totalorder %s272, %s273
    %p285 = scmp.eq.s32.totalorder %s28, 1
    %p286 = por %p284, %p285
    %p288 = scmp.ne.s32.totalorder %s273, %s287
    %p289 = scmp.eq.s32.totalorder %s28, 0
    %p290 = por %p288, %p289
    %s292 = sadd.s32 %s291, 1
    %p295 = scmp.eq.s32.totalorder %s22, 1
    %p296 = scmp.ne.s32.totalorder %s291, %s293
    %p297 = scmp.eq.s32.totalorder %s22, 0
    %p298 = por %p296, %p297
    %p299 = scmp.ne.s32.totalorder %s291, %s293
    %p300 = scmp.eq.s32.totalorder %s27, 1
    %p301 = por %p299, %p300
    %p302 = scmp.ne.s32.totalorder %s293, %s294
    %p303 = scmp.eq.s32.totalorder %s27, 0
    %p304 = por %p302, %p303
    %p305 = scmp.ne.s32.totalorder %s293, %s294
    %p306 = scmp.eq.s32.totalorder %s28, 1
    %p307 = por %p305, %p306
    %p309 = scmp.ne.s32.totalorder %s294, %s308
    %p310 = scmp.eq.s32.totalorder %s28, 0
    %p311 = por %p309, %p310
    %s313 = sadd.s32 %s312, 1
    %p316 = scmp.eq.s32.totalorder %s22, 1
    %p317 = scmp.ne.s32.totalorder %s312, %s314
    %p318 = scmp.eq.s32.totalorder %s22, 0
    %p319 = por %p317, %p318
    %p320 = scmp.ne.s32.totalorder %s312, %s314
    %p321 = scmp.eq.s32.totalorder %s27, 1
    %p322 = por %p320, %p321
    %p323 = scmp.ne.s32.totalorder %s314, %s315
    %p324 = scmp.eq.s32.totalorder %s27, 0
    %p325 = por %p323, %p324
    %p326 = scmp.ne.s32.totalorder %s314, %s315
    %p327 = scmp.eq.s32.totalorder %s28, 1
    %p328 = por %p326, %p327
    %p330 = scmp.ne.s32.totalorder %s315, %s329
    %p331 = scmp.eq.s32.totalorder %s28, 0
    %p332 = por %p330, %p331
    %s334 = sadd.s32 %s333, 1
    %p337 = scmp.eq.s32.totalorder %s22, 1
    %p338 = scmp.ne.s32.totalorder %s333, %s335
    %p339 = scmp.eq.s32.totalorder %s22, 0
    %p340 = por %p338, %p339
    %p341 = scmp.ne.s32.totalorder %s333, %s335
    %p342 = scmp.eq.s32.totalorder %s27, 1
    %p343 = por %p341, %p342
    %p344 = scmp.ne.s32.totalorder %s335, %s336
    %p345 = scmp.eq.s32.totalorder %s27, 0
    %p346 = por %p344, %p345
    %p347 = scmp.ne.s32.totalorder %s335, %s336
    %p348 = scmp.eq.s32.totalorder %s28, 1
    %p349 = por %p347, %p348
    %p351 = scmp.ne.s32.totalorder %s336, %s350
    %p352 = scmp.eq.s32.totalorder %s28, 0
    %p353 = por %p351, %p352
    %s354 = ssub.s32 %s22, %s29
    %p355 = scmp.eq.s32.totalorder %s354, 0
    %s357 = sadd.s32 %s356, 1
    %s358 = scalar_select %p355, %s356, %s357
    %p361 = pneg %p355
    %p362 = scmp.eq.s32.totalorder %s22, 1
    %p363 = por %p361, %p362
    %p364 = scmp.ne.s32.totalorder %s356, %s359
    %p365 = scmp.eq.s32.totalorder %s22, 0
    %p366 = por %p364, %p365
    %p367 = scmp.ne.s32.totalorder %s356, %s359
    %p368 = scmp.eq.s32.totalorder %s27, 1
    %p369 = por %p367, %p368
    %p370 = scmp.ne.s32.totalorder %s359, %s360
    %p371 = scmp.eq.s32.totalorder %s27, 0
    %p372 = por %p370, %p371
    %p373 = scmp.ne.s32.totalorder %s359, %s360
    %p374 = scmp.eq.s32.totalorder %s28, 1
    %p375 = por %p373, %p374
    %p377 = scmp.ne.s32.totalorder %s360, %s376
    %p378 = scmp.eq.s32.totalorder %s28, 0
    %p379 = por %p377, %p378
    %s380 = ssub.s32 %s22, %s29
    %p381 = scmp.eq.s32.totalorder %s380, 0
    %s383 = sadd.s32 %s382, 1
    %s384 = scalar_select %p381, %s382, %s383
    %p387 = pneg %p381
    %p388 = scmp.eq.s32.totalorder %s22, 1
    %p389 = por %p387, %p388
    %p390 = scmp.ne.s32.totalorder %s382, %s385
    %p391 = scmp.eq.s32.totalorder %s22, 0
    %p392 = por %p390, %p391
    %p393 = scmp.ne.s32.totalorder %s382, %s385
    %p394 = scmp.eq.s32.totalorder %s27, 1
    %p395 = por %p393, %p394
    %p396 = scmp.ne.s32.totalorder %s385, %s386
    %p397 = scmp.eq.s32.totalorder %s27, 0
    %p398 = por %p396, %p397
    %p399 = scmp.ne.s32.totalorder %s385, %s386
    %p400 = scmp.eq.s32.totalorder %s28, 1
    %p401 = por %p399, %p400
    %p403 = scmp.ne.s32.totalorder %s386, %s402
    %p404 = scmp.eq.s32.totalorder %s28, 0
    %p405 = por %p403, %p404
    %p406 = scmp.le.s32.totalorder 1, %s22
    %p407 = scmp.lt.s32.totalorder %s22, 3
    %p408 = pnand %p406, %p407
    %p409 = pneg %p408
    // Predicated region
    $region9: #{two_layer_prednet_forward.3} parent=5 // pred_check
      _
    $region10: #{two_layer_prednet_forward.3} parent=5 // pred_check_branch
      %411 = sbr.rel (%p408) target = $region12
    $region11: #{two_layer_prednet_forward.3} parent=5 // pred_region
      %s412 = ssub.s32 %s22, 1
      // Predicated region
      $region13: #{two_layer_prednet_forward.3} parent=11 // pred_check
        %p413 = pneg %p199
      $region14: #{two_layer_prednet_forward.3} parent=11 // pred_check_branch
        %415 = sbr.rel (%p413) target = $region16
      $region15: #{two_layer_prednet_forward.3} parent=11 // pred_region
        _
      $region16: #{two_layer_prednet_forward.3} parent=11 // pred_fallthru
        _
      // Predicated region
      $region17: #{two_layer_prednet_forward.3} parent=11 // pred_check
        %p416 = pneg %p220
      $region18: #{two_layer_prednet_forward.3} parent=11 // pred_check_branch
        %418 = sbr.rel (%p416) target = $region20
      $region19: #{two_layer_prednet_forward.3} parent=11 // pred_region
        _
      $region20: #{two_layer_prednet_forward.3} parent=11 // pred_fallthru
        _
      // Predicated region
      $region21: #{two_layer_prednet_forward.3} parent=11 // pred_check
        %p419 = pneg %p241
      $region22: #{two_layer_prednet_forward.3} parent=11 // pred_check_branch
        %421 = sbr.rel (%p419) target = $region24
      $region23: #{two_layer_prednet_forward.3} parent=11 // pred_region
        _
      $region24: #{two_layer_prednet_forward.3} parent=11 // pred_fallthru
        _
      // Predicated region
      $region25: #{two_layer_prednet_forward.3} parent=11 // pred_check
        %p422 = pneg %p262
      $region26: #{two_layer_prednet_forward.3} parent=11 // pred_check_branch
        %424 = sbr.rel (%p422) target = $region28
      $region27: #{two_layer_prednet_forward.3} parent=11 // pred_region
        _
      $region28: #{two_layer_prednet_forward.3} parent=11 // pred_fallthru
        _
      // Predicated region
      $region29: #{two_layer_prednet_forward.3} parent=11 // pred_check
        %p425 = pneg %p283
      $region30: #{two_layer_prednet_forward.3} parent=11 // pred_check_branch
        %427 = sbr.rel (%p425) target = $region32
      $region31: #{two_layer_prednet_forward.3} parent=11 // pred_region
        _
      $region32: #{two_layer_prednet_forward.3} parent=11 // pred_fallthru
        _
      // Predicated region
      $region33: #{two_layer_prednet_forward.3} parent=11 // pred_check
        %p428 = pneg %p304
      $region34: #{two_layer_prednet_forward.3} parent=11 // pred_check_branch
        %430 = sbr.rel (%p428) target = $region36
      $region35: #{two_layer_prednet_forward.3} parent=11 // pred_region
        _
      $region36: #{two_layer_prednet_forward.3} parent=11 // pred_fallthru
        _
      // Predicated region
      $region37: #{two_layer_prednet_forward.3} parent=11 // pred_check
        %p431 = pneg %p325
      $region38: #{two_layer_prednet_forward.3} parent=11 // pred_check_branch
        %433 = sbr.rel (%p431) target = $region40
      $region39: #{two_layer_prednet_forward.3} parent=11 // pred_region
        _
      $region40: #{two_layer_prednet_forward.3} parent=11 // pred_fallthru
        _
      // Predicated region
      $region41: #{two_layer_prednet_forward.3} parent=11 // pred_check
        %p434 = pneg %p346
      $region42: #{two_layer_prednet_forward.3} parent=11 // pred_check_branch
        %436 = sbr.rel (%p434) target = $region44
      $region43: #{two_layer_prednet_forward.3} parent=11 // pred_region
        _
      $region44: #{two_layer_prednet_forward.3} parent=11 // pred_fallthru
        _
    $region12: #{two_layer_prednet_forward.3} parent=5 // pred_fallthru
      _
    %p437 = scmp.lt.s32.totalorder %s22, 2
    // Predicated region
    $region45: #{two_layer_prednet_forward.3} parent=5 // pred_check
      %p438 = pneg %p437
    $region46: #{two_layer_prednet_forward.3} parent=5 // pred_check_branch
      %440 = sbr.rel (%p438) target = $region48
    $region47: #{two_layer_prednet_forward.3} parent=5 // pred_region
      // Predicated region
      $region49: #{two_layer_prednet_forward.3} parent=47 // pred_check
        %p441 = pneg %p42
      $region50: #{two_layer_prednet_forward.3} parent=47 // pred_check_branch
        %443 = sbr.rel (%p441) target = $region52
      $region51: #{two_layer_prednet_forward.3} parent=47 // pred_region
        %p444 = scmp.lt.s32.totalorder %s22, 1
        %s445 = scalar_select %p444, %s22, 1
        %s446 = smul.addr %s445, 32
        %s447 = smul.addr %s446, 8
        %s448 = scalar_lea.vmem %s0, %s447
      $region52: #{two_layer_prednet_forward.3} parent=47 // pred_fallthru
        _
      // Predicated region
      $region53: #{two_layer_prednet_forward.3} parent=47 // pred_check
        %p449 = pneg %p68
      $region54: #{two_layer_prednet_forward.3} parent=47 // pred_check_branch
        %451 = sbr.rel (%p449) target = $region56
      $region55: #{two_layer_prednet_forward.3} parent=47 // pred_region
        %p452 = scmp.lt.s32.totalorder %s22, 1
        %s453 = scalar_select %p452, %s22, 1
        %s454 = smul.addr %s453, 32
        %s455 = smul.addr %s454, 8
        %s456 = scalar_lea.vmem %s1, %s455
      $region56: #{two_layer_prednet_forward.3} parent=47 // pred_fallthru
        _
      // Predicated region
      $region57: #{two_layer_prednet_forward.3} parent=47 // pred_check
        %p457 = pneg %p94
      $region58: #{two_layer_prednet_forward.3} parent=47 // pred_check_branch
        %459 = sbr.rel (%p457) target = $region60
      $region59: #{two_layer_prednet_forward.3} parent=47 // pred_region
        %p460 = scmp.lt.s32.totalorder %s22, 1
        %s461 = scalar_select %p460, %s22, 1
        %s462 = smul.addr %s461, 32
        %s463 = smul.addr %s462, 8
        %s464 = scalar_lea.vmem %s2, %s463
      $region60: #{two_layer_prednet_forward.3} parent=47 // pred_fallthru
        _
      // Predicated region
      $region61: #{two_layer_prednet_forward.3} parent=47 // pred_check
        %p465 = pneg %p120
      $region62: #{two_layer_prednet_forward.3} parent=47 // pred_check_branch
        %467 = sbr.rel (%p465) target = $region64
      $region63: #{two_layer_prednet_forward.3} parent=47 // pred_region
        %p468 = scmp.lt.s32.totalorder %s22, 1
        %s469 = scalar_select %p468, %s22, 1
        %s470 = smul.addr %s469, 32
        %s471 = smul.addr %s470, 8
        %s472 = scalar_lea.vmem %s3, %s471
      $region64: #{two_layer_prednet_forward.3} parent=47 // pred_fallthru
        _
      // Predicated region
      $region65: #{two_layer_prednet_forward.3} parent=47 // pred_check
        %p473 = pneg %p146
      $region66: #{two_layer_prednet_forward.3} parent=47 // pred_check_branch
        %475 = sbr.rel (%p473) target = $region68
      $region67: #{two_layer_prednet_forward.3} parent=47 // pred_region
        %p476 = scmp.lt.s32.totalorder %s22, 1
        %s477 = scalar_select %p476, %s22, 1
        %s478 = smul.addr %s477, 32
        %s479 = smul.addr %s478, 8
        %s480 = scalar_lea.vmem %s4, %s479
      $region68: #{two_layer_prednet_forward.3} parent=47 // pred_fallthru
        _
      // Predicated region
      $region69: #{two_layer_prednet_forward.3} parent=47 // pred_check
        %p481 = pneg %p172
      $region70: #{two_layer_prednet_forward.3} parent=47 // pred_check_branch
        %483 = sbr.rel (%p481) target = $region72
      $region71: #{two_layer_prednet_forward.3} parent=47 // pred_region
        %p484 = scmp.lt.s32.totalorder %s22, 1
        %s485 = scalar_select %p484, %s22, 1
        %s486 = smul.addr %s485, 8
        %s487 = smul.addr %s486, 8
        %s488 = scalar_lea.vmem %s5, %s487
      $region72: #{two_layer_prednet_forward.3} parent=47 // pred_fallthru
        _
    $region48: #{two_layer_prednet_forward.3} parent=5 // pred_fallthru
      _
    %p489 = scmp.le.s32.totalorder 1, %s22
    %p490 = scmp.lt.s32.totalorder %s22, 3
    %p491 = pnand %p489, %p490
    %p492 = pneg %p491
    // Predicated region
    $region73: #{two_layer_prednet_forward.3} parent=5 // pred_check
      _
    $region74: #{two_layer_prednet_forward.3} parent=5 // pred_check_branch
      %494 = sbr.rel (%p491) target = $region76
    $region75: #{two_layer_prednet_forward.3} parent=5 // pred_region
      %s495 = ssub.s32 %s22, 1
      %p496 = scmp.lt.s32.totalorder %s27, 1
      %s497 = scalar_select %p496, %s27, 1
      %s498 = smul.addr %s497, 32
      %s499 = smul.addr %s498, 8
      %s500 = scalar_lea.vmem %s0, %s499
      %p501 = pneg %p48
      %p502 = pneg %p45
      %p503 = scmp.lt.s32.totalorder %s27, 1
      %s504 = scalar_select %p503, %s27, 1
      %s505 = smul.addr %s504, 32
      %s506 = smul.addr %s505, 8
      %s507 = scalar_lea.vmem %s1, %s506
      %p508 = pneg %p74
      %p509 = pneg %p71
      %p510 = scmp.lt.s32.totalorder %s27, 1
      %s511 = scalar_select %p510, %s27, 1
      %s512 = smul.addr %s511, 32
      %s513 = smul.addr %s512, 8
      %s514 = scalar_lea.vmem %s2, %s513
      %p515 = pneg %p100
      %p516 = pneg %p97
      %p517 = scmp.lt.s32.totalorder %s27, 1
      %s518 = scalar_select %p517, %s27, 1
      %s519 = smul.addr %s518, 32
      %s520 = smul.addr %s519, 8
      %s521 = scalar_lea.vmem %s3, %s520
      %p522 = pneg %p126
      %p523 = pneg %p123
      %p524 = scmp.lt.s32.totalorder %s27, 1
      %s525 = scalar_select %p524, %s27, 1
      %s526 = smul.addr %s525, 32
      %s527 = smul.addr %s526, 8
      %s528 = scalar_lea.vmem %s4, %s527
      %p529 = pneg %p152
      %p530 = pneg %p149
      %p531 = scmp.lt.s32.totalorder %s27, 1
      %s532 = scalar_select %p531, %s27, 1
      %s533 = smul.addr %s532, 8
      %s534 = smul.addr %s533, 8
      %s535 = scalar_lea.vmem %s5, %s534
      %p536 = pneg %p178
      %p537 = pneg %p175
      %p538 = pneg %p199
      %p539 = pneg %p196
      %p540 = pneg %p220
      %p541 = pneg %p217
      %p542 = pneg %p241
      %p543 = pneg %p238
      %p544 = pneg %p262
      %p545 = pneg %p259
      %p546 = pneg %p283
      %p547 = pneg %p280
      %p548 = pneg %p304
      %p549 = pneg %p301
      %p550 = pneg %p325
      %p551 = pneg %p322
      %p552 = pneg %p346
      %p553 = pneg %p343
      %p554 = pneg %p372
      %p555 = pneg %p369
      %p556 = scmp.lt.s32.totalorder %s27, 1
      %s557 = scalar_select %p556, %s27, 1
      %s558 = smul.addr %s557, 32
      %s559 = smul.addr %s558, 8
      %s560 = scalar_lea.vmem %s14, %s559
      %p561 = pneg %p398
      %p562 = pneg %p395
      %p563 = scmp.lt.s32.totalorder %s27, 1
      %s564 = scalar_select %p563, %s27, 1
      %s565 = smul.addr %s564, 8
      %s566 = smul.addr %s565, 8
      %s567 = scalar_lea.vmem %s15, %s566
      %p568 = scmp.lt.s32.totalorder %s27, 1
      %s569 = scalar_select %p568, %s27, 1
      %s570 = smul.addr %s569, 32
      %s571 = smul.addr %s570, 8
      %s572 = scalar_lea.vmem %s0, %s571
      %p573 = scmp.lt.s32.totalorder %s27, 1
      %s574 = scalar_select %p573, %s27, 1
      %s575 = smul.addr %s574, 32
      %s576 = smul.addr %s575, 8
      %s577 = scalar_lea.vmem %s1, %s576
      %p578 = scmp.lt.s32.totalorder %s27, 1
      %s579 = scalar_select %p578, %s27, 1
      %s580 = smul.addr %s579, 32
      %s581 = smul.addr %s580, 8
      %s582 = scalar_lea.vmem %s2, %s581
      %p583 = scmp.lt.s32.totalorder %s27, 1
      %s584 = scalar_select %p583, %s27, 1
      %s585 = smul.addr %s584, 32
      %s586 = smul.addr %s585, 8
      %s587 = scalar_lea.vmem %s3, %s586
      %p588 = scmp.lt.s32.totalorder %s27, 1
      %s589 = scalar_select %p588, %s27, 1
      %s590 = smul.addr %s589, 32
      %s591 = smul.addr %s590, 8
      %s592 = scalar_lea.vmem %s4, %s591
      %p593 = scmp.lt.s32.totalorder %s27, 1
      %s594 = scalar_select %p593, %s27, 1
      %s595 = smul.addr %s594, 8
      %s596 = smul.addr %s595, 8
      %s597 = scalar_lea.vmem %s5, %s596
      %p598 = scmp.lt.s32.totalorder %s27, 1
      %s599 = scalar_select %p598, %s27, 1
      %s600 = smul.addr %s599, 32
      %s601 = smul.addr %s600, 8
      %s602 = scalar_lea.vmem %s14, %s601
      %p603 = scmp.lt.s32.totalorder %s27, 1
      %s604 = scalar_select %p603, %s27, 1
      %s605 = smul.addr %s604, 8
      %s606 = smul.addr %s605, 8
      %s607 = scalar_lea.vmem %s15, %s606
      %v609 = vld [vmem:[%s572] sm:$0xff]
      %v610 = vld [vmem:[%s572 + $0x8] sm:$0xff]
      %v611 = vld [vmem:[%s572 + $0x10] sm:$0xff]
      %v612 = vld [vmem:[%s572 + $0x18] sm:$0xff]
      %v613 = vld [vmem:[%s572 + $0x20] sm:$0xff]
      %v614 = vld [vmem:[%s572 + $0x28] sm:$0xff]
      %v615 = vld [vmem:[%s572 + $0x30] sm:$0xff]
      %v616 = vld [vmem:[%s572 + $0x38] sm:$0xff]
      %v617 = vld [vmem:[%s572 + $0x40] sm:$0xff]
      %v618 = vld [vmem:[%s572 + $0x48] sm:$0xff]
      %v619 = vld [vmem:[%s572 + $0x50] sm:$0xff]
      %v620 = vld [vmem:[%s572 + $0x58] sm:$0xff]
      %v621 = vld [vmem:[%s572 + $0x60] sm:$0xff]
      %v622 = vld [vmem:[%s572 + $0x68] sm:$0xff]
      %v623 = vld [vmem:[%s572 + $0x70] sm:$0xff]
      %v624 = vld [vmem:[%s572 + $0x78] sm:$0xff]
      %v625 = vld [vmem:[%s572 + $0x80] sm:$0xff]
      %v626 = vld [vmem:[%s572 + $0x88] sm:$0xff]
      %v627 = vld [vmem:[%s572 + $0x90] sm:$0xff]
      %v628 = vld [vmem:[%s572 + $0x98] sm:$0xff]
      %v629 = vld [vmem:[%s572 + $0xa0] sm:$0xff]
      %v630 = vld [vmem:[%s572 + $0xa8] sm:$0xff]
      %v631 = vld [vmem:[%s572 + $0xb0] sm:$0xff]
      %v632 = vld [vmem:[%s572 + $0xb8] sm:$0xff]
      %v633 = vld [vmem:[%s572 + $0xc0] sm:$0xff]
      %v634 = vld [vmem:[%s572 + $0xc8] sm:$0xff]
      %v635 = vld [vmem:[%s572 + $0xd0] sm:$0xff]
      %v636 = vld [vmem:[%s572 + $0xd8] sm:$0xff]
      %v637 = vld [vmem:[%s572 + $0xe0] sm:$0xff]
      %v638 = vld [vmem:[%s572 + $0xe8] sm:$0xff]
      %v639 = vld [vmem:[%s572 + $0xf0] sm:$0xff]
      %v640 = vld [vmem:[%s572 + $0xf8] sm:$0xff]
      %v641 = vld [vmem:[%s577] sm:$0xff]
      %v642 = vld [vmem:[%s577 + $0x8] sm:$0xff]
      %v643 = vld [vmem:[%s577 + $0x10] sm:$0xff]
      %v644 = vld [vmem:[%s577 + $0x18] sm:$0xff]
      %v645 = vld [vmem:[%s577 + $0x20] sm:$0xff]
      %v646 = vld [vmem:[%s577 + $0x28] sm:$0xff]
      %v647 = vld [vmem:[%s577 + $0x30] sm:$0xff]
      %v648 = vld [vmem:[%s577 + $0x38] sm:$0xff]
      %v649 = vld [vmem:[%s577 + $0x40] sm:$0xff]
      %v650 = vld [vmem:[%s577 + $0x48] sm:$0xff]
      %v651 = vld [vmem:[%s577 + $0x50] sm:$0xff]
      %v652 = vld [vmem:[%s577 + $0x58] sm:$0xff]
      %v653 = vld [vmem:[%s577 + $0x60] sm:$0xff]
      %v654 = vld [vmem:[%s577 + $0x68] sm:$0xff]
      %v655 = vld [vmem:[%s577 + $0x70] sm:$0xff]
      %v656 = vld [vmem:[%s577 + $0x78] sm:$0xff]
      %v657 = vld [vmem:[%s577 + $0x80] sm:$0xff]
      %v658 = vld [vmem:[%s577 + $0x88] sm:$0xff]
      %v659 = vld [vmem:[%s577 + $0x90] sm:$0xff]
      %v660 = vld [vmem:[%s577 + $0x98] sm:$0xff]
      %v661 = vld [vmem:[%s577 + $0xa0] sm:$0xff]
      %v662 = vld [vmem:[%s577 + $0xa8] sm:$0xff]
      %v663 = vld [vmem:[%s577 + $0xb0] sm:$0xff]
      %v664 = vld [vmem:[%s577 + $0xb8] sm:$0xff]
      %v665 = vld [vmem:[%s577 + $0xc0] sm:$0xff]
      %v666 = vld [vmem:[%s577 + $0xc8] sm:$0xff]
      %v667 = vld [vmem:[%s577 + $0xd0] sm:$0xff]
      %v668 = vld [vmem:[%s577 + $0xd8] sm:$0xff]
      %v669 = vld [vmem:[%s577 + $0xe0] sm:$0xff]
      %v670 = vld [vmem:[%s577 + $0xe8] sm:$0xff]
      %v671 = vld [vmem:[%s577 + $0xf0] sm:$0xff]
      %v672 = vld [vmem:[%s577 + $0xf8] sm:$0xff]
      %v673 = vld [vmem:[%s582] sm:$0xff]
      %v674 = vld [vmem:[%s582 + $0x8] sm:$0xff]
      %v675 = vld [vmem:[%s582 + $0x10] sm:$0xff]
      %v676 = vld [vmem:[%s582 + $0x18] sm:$0xff]
      %v677 = vld [vmem:[%s582 + $0x20] sm:$0xff]
      %v678 = vld [vmem:[%s582 + $0x28] sm:$0xff]
      %v679 = vld [vmem:[%s582 + $0x30] sm:$0xff]
      %v680 = vld [vmem:[%s582 + $0x38] sm:$0xff]
      %v681 = vld [vmem:[%s582 + $0x40] sm:$0xff]
      %v682 = vld [vmem:[%s582 + $0x48] sm:$0xff]
      %v683 = vld [vmem:[%s582 + $0x50] sm:$0xff]
      %v684 = vld [vmem:[%s582 + $0x58] sm:$0xff]
      %v685 = vld [vmem:[%s582 + $0x60] sm:$0xff]
      %v686 = vld [vmem:[%s582 + $0x68] sm:$0xff]
      %v687 = vld [vmem:[%s582 + $0x70] sm:$0xff]
      %v688 = vld [vmem:[%s582 + $0x78] sm:$0xff]
      %v689 = vld [vmem:[%s582 + $0x80] sm:$0xff]
      %v690 = vld [vmem:[%s582 + $0x88] sm:$0xff]
      %v691 = vld [vmem:[%s582 + $0x90] sm:$0xff]
      %v692 = vld [vmem:[%s582 + $0x98] sm:$0xff]
      %v693 = vld [vmem:[%s582 + $0xa0] sm:$0xff]
      %v694 = vld [vmem:[%s582 + $0xa8] sm:$0xff]
      %v695 = vld [vmem:[%s582 + $0xb0] sm:$0xff]
      %v696 = vld [vmem:[%s582 + $0xb8] sm:$0xff]
      %v697 = vld [vmem:[%s582 + $0xc0] sm:$0xff]
      %v698 = vld [vmem:[%s582 + $0xc8] sm:$0xff]
      %v699 = vld [vmem:[%s582 + $0xd0] sm:$0xff]
      %v700 = vld [vmem:[%s582 + $0xd8] sm:$0xff]
      %v701 = vld [vmem:[%s582 + $0xe0] sm:$0xff]
      %v702 = vld [vmem:[%s582 + $0xe8] sm:$0xff]
      %v703 = vld [vmem:[%s582 + $0xf0] sm:$0xff]
      %v704 = vld [vmem:[%s582 + $0xf8] sm:$0xff]
      %737 = vrot.lane.b32.xlu0 %v641, 6
      %v738 = vpop.permute.xlu0 %737
      %739 = vrot.lane.b32.xlu0 %v642, 6
      %v740 = vpop.permute.xlu0 %739
      %741 = vrot.lane.b32.xlu0 %v643, 6
      %v742 = vpop.permute.xlu0 %741
      %743 = vrot.lane.b32.xlu0 %v644, 6
      %v744 = vpop.permute.xlu0 %743
      %745 = vrot.lane.b32.xlu0 %v645, 6
      %v746 = vpop.permute.xlu0 %745
      %747 = vrot.lane.b32.xlu0 %v646, 6
      %v748 = vpop.permute.xlu0 %747
      %749 = vrot.lane.b32.xlu0 %v647, 6
      %v750 = vpop.permute.xlu0 %749
      %751 = vrot.lane.b32.xlu0 %v648, 6
      %v752 = vpop.permute.xlu0 %751
      %753 = vrot.lane.b32.xlu0 %v649, 6
      %v754 = vpop.permute.xlu0 %753
      %755 = vrot.lane.b32.xlu0 %v650, 6
      %v756 = vpop.permute.xlu0 %755
      %757 = vrot.lane.b32.xlu0 %v651, 6
      %v758 = vpop.permute.xlu0 %757
      %759 = vrot.lane.b32.xlu0 %v652, 6
      %v760 = vpop.permute.xlu0 %759
      %761 = vrot.lane.b32.xlu0 %v653, 6
      %v762 = vpop.permute.xlu0 %761
      %763 = vrot.lane.b32.xlu0 %v654, 6
      %v764 = vpop.permute.xlu0 %763
      %765 = vrot.lane.b32.xlu0 %v655, 6
      %v766 = vpop.permute.xlu0 %765
      %767 = vrot.lane.b32.xlu0 %v656, 6
      %v768 = vpop.permute.xlu0 %767
      %769 = vrot.lane.b32.xlu0 %v657, 6
      %v770 = vpop.permute.xlu0 %769
      %771 = vrot.lane.b32.xlu0 %v658, 6
      %v772 = vpop.permute.xlu0 %771
      %773 = vrot.lane.b32.xlu0 %v659, 6
      %v774 = vpop.permute.xlu0 %773
      %775 = vrot.lane.b32.xlu0 %v660, 6
      %v776 = vpop.permute.xlu0 %775
      %777 = vrot.lane.b32.xlu0 %v661, 6
      %v778 = vpop.permute.xlu0 %777
      %779 = vrot.lane.b32.xlu0 %v662, 6
      %v780 = vpop.permute.xlu0 %779
      %781 = vrot.lane.b32.xlu0 %v663, 6
      %v782 = vpop.permute.xlu0 %781
      %783 = vrot.lane.b32.xlu0 %v664, 6
      %v784 = vpop.permute.xlu0 %783
      %785 = vrot.lane.b32.xlu0 %v665, 6
      %v786 = vpop.permute.xlu0 %785
      %787 = vrot.lane.b32.xlu0 %v666, 6
      %v788 = vpop.permute.xlu0 %787
      %789 = vrot.lane.b32.xlu0 %v667, 6
      %v790 = vpop.permute.xlu0 %789
      %791 = vrot.lane.b32.xlu0 %v668, 6
      %v792 = vpop.permute.xlu0 %791
      %793 = vrot.lane.b32.xlu0 %v669, 6
      %v794 = vpop.permute.xlu0 %793
      %795 = vrot.lane.b32.xlu0 %v670, 6
      %v796 = vpop.permute.xlu0 %795
      %797 = vrot.lane.b32.xlu0 %v671, 6
      %v798 = vpop.permute.xlu0 %797
      %799 = vrot.lane.b32.xlu0 %v672, 6
      %v800 = vpop.permute.xlu0 %799
      %865 = vrot.lane.b32.xlu0 %v673, 22
      %v866 = vpop.permute.xlu0 %865
      %867 = vrot.lane.b32.xlu0 %v674, 22
      %v868 = vpop.permute.xlu0 %867
      %869 = vrot.lane.b32.xlu0 %v675, 22
      %v870 = vpop.permute.xlu0 %869
      %871 = vrot.lane.b32.xlu0 %v676, 22
      %v872 = vpop.permute.xlu0 %871
      %873 = vrot.lane.b32.xlu0 %v677, 22
      %v874 = vpop.permute.xlu0 %873
      %875 = vrot.lane.b32.xlu0 %v678, 22
      %v876 = vpop.permute.xlu0 %875
      %877 = vrot.lane.b32.xlu0 %v679, 22
      %v878 = vpop.permute.xlu0 %877
      %879 = vrot.lane.b32.xlu0 %v680, 22
      %v880 = vpop.permute.xlu0 %879
      %881 = vrot.lane.b32.xlu0 %v681, 22
      %v882 = vpop.permute.xlu0 %881
      %883 = vrot.lane.b32.xlu0 %v682, 22
      %v884 = vpop.permute.xlu0 %883
      %885 = vrot.lane.b32.xlu0 %v683, 22
      %v886 = vpop.permute.xlu0 %885
      %887 = vrot.lane.b32.xlu0 %v684, 22
      %v888 = vpop.permute.xlu0 %887
      %889 = vrot.lane.b32.xlu0 %v685, 22
      %v890 = vpop.permute.xlu0 %889
      %891 = vrot.lane.b32.xlu0 %v686, 22
      %v892 = vpop.permute.xlu0 %891
      %893 = vrot.lane.b32.xlu0 %v687, 22
      %v894 = vpop.permute.xlu0 %893
      %895 = vrot.lane.b32.xlu0 %v688, 22
      %v896 = vpop.permute.xlu0 %895
      %897 = vrot.lane.b32.xlu0 %v689, 22
      %v898 = vpop.permute.xlu0 %897
      %899 = vrot.lane.b32.xlu0 %v690, 22
      %v900 = vpop.permute.xlu0 %899
      %901 = vrot.lane.b32.xlu0 %v691, 22
      %v902 = vpop.permute.xlu0 %901
      %903 = vrot.lane.b32.xlu0 %v692, 22
      %v904 = vpop.permute.xlu0 %903
      %905 = vrot.lane.b32.xlu0 %v693, 22
      %v906 = vpop.permute.xlu0 %905
      %907 = vrot.lane.b32.xlu0 %v694, 22
      %v908 = vpop.permute.xlu0 %907
      %909 = vrot.lane.b32.xlu0 %v695, 22
      %v910 = vpop.permute.xlu0 %909
      %911 = vrot.lane.b32.xlu0 %v696, 22
      %v912 = vpop.permute.xlu0 %911
      %913 = vrot.lane.b32.xlu0 %v697, 22
      %v914 = vpop.permute.xlu0 %913
      %915 = vrot.lane.b32.xlu0 %v698, 22
      %v916 = vpop.permute.xlu0 %915
      %917 = vrot.lane.b32.xlu0 %v699, 22
      %v918 = vpop.permute.xlu0 %917
      %919 = vrot.lane.b32.xlu0 %v700, 22
      %v920 = vpop.permute.xlu0 %919
      %921 = vrot.lane.b32.xlu0 %v701, 22
      %v922 = vpop.permute.xlu0 %921
      %923 = vrot.lane.b32.xlu0 %v702, 22
      %v924 = vpop.permute.xlu0 %923
      %925 = vrot.lane.b32.xlu0 %v703, 22
      %v926 = vpop.permute.xlu0 %925
      %927 = vrot.lane.b32.xlu0 %v704, 22
      %v928 = vpop.permute.xlu0 %927
      %vm961 = vcmask 48128
      %v962 = vsel %vm961, %v609, %v738
      %v963 = vsel %vm961, %v610, %v740
      %v964 = vsel %vm961, %v611, %v742
      %v965 = vsel %vm961, %v612, %v744
      %v966 = vsel %vm961, %v613, %v746
      %v967 = vsel %vm961, %v614, %v748
      %v968 = vsel %vm961, %v615, %v750
      %v969 = vsel %vm961, %v616, %v752
      %v970 = vsel %vm961, %v617, %v754
      %v971 = vsel %vm961, %v618, %v756
      %v972 = vsel %vm961, %v619, %v758
      %v973 = vsel %vm961, %v620, %v760
      %v974 = vsel %vm961, %v621, %v762
      %v975 = vsel %vm961, %v622, %v764
      %v976 = vsel %vm961, %v623, %v766
      %v977 = vsel %vm961, %v624, %v768
      %v978 = vsel %vm961, %v625, %v770
      %v979 = vsel %vm961, %v626, %v772
      %v980 = vsel %vm961, %v627, %v774
      %v981 = vsel %vm961, %v628, %v776
      %v982 = vsel %vm961, %v629, %v778
      %v983 = vsel %vm961, %v630, %v780
      %v984 = vsel %vm961, %v631, %v782
      %v985 = vsel %vm961, %v632, %v784
      %v986 = vsel %vm961, %v633, %v786
      %v987 = vsel %vm961, %v634, %v788
      %v988 = vsel %vm961, %v635, %v790
      %v989 = vsel %vm961, %v636, %v792
      %v990 = vsel %vm961, %v637, %v794
      %v991 = vsel %vm961, %v638, %v796
      %v992 = vsel %vm961, %v639, %v798
      %v993 = vsel %vm961, %v640, %v800
      %vm994 = vcmask 179200
      %v995 = vsel %vm994, %v962, %v866
      %v996 = vsel %vm994, %v963, %v868
      %v997 = vsel %vm994, %v964, %v870
      %v998 = vsel %vm994, %v965, %v872
      %v999 = vsel %vm994, %v966, %v874
      %v1000 = vsel %vm994, %v967, %v876
      %v1001 = vsel %vm994, %v968, %v878
      %v1002 = vsel %vm994, %v969, %v880
      %v1003 = vsel %vm994, %v970, %v882
      %v1004 = vsel %vm994, %v971, %v884
      %v1005 = vsel %vm994, %v972, %v886
      %v1006 = vsel %vm994, %v973, %v888
      %v1007 = vsel %vm994, %v974, %v890
      %v1008 = vsel %vm994, %v975, %v892
      %v1009 = vsel %vm994, %v976, %v894
      %v1010 = vsel %vm994, %v977, %v896
      %v1011 = vsel %vm994, %v978, %v898
      %v1012 = vsel %vm994, %v979, %v900
      %v1013 = vsel %vm994, %v980, %v902
      %v1014 = vsel %vm994, %v981, %v904
      %v1015 = vsel %vm994, %v982, %v906
      %v1016 = vsel %vm994, %v983, %v908
      %v1017 = vsel %vm994, %v984, %v910
      %v1018 = vsel %vm994, %v985, %v912
      %v1019 = vsel %vm994, %v986, %v914
      %v1020 = vsel %vm994, %v987, %v916
      %v1021 = vsel %vm994, %v988, %v918
      %v1022 = vsel %vm994, %v989, %v920
      %v1023 = vsel %vm994, %v990, %v922
      %v1024 = vsel %vm994, %v991, %v924
      %v1025 = vsel %vm994, %v992, %v926
      %v1026 = vsel %vm994, %v993, %v928
      %v1027 = vld [vmem:[%s6] sm:$0xf]
      %v1028 = vld [vmem:[%s6 + $0x4] sm:$0xf]
      %v1029 = vld [vmem:[%s6 + $0x8] sm:$0xf]
      %v1030 = vld [vmem:[%s6 + $0xc] sm:$0xf]
      %v1031 = vld [vmem:[%s6 + $0x10] sm:$0xf]
      %v1032 = vld [vmem:[%s6 + $0x14] sm:$0xf]
      %v1033 = vld [vmem:[%s6 + $0x18] sm:$0xf]
      %v1034 = vld [vmem:[%s6 + $0x1c] sm:$0xf]
      %v1035 = vld [vmem:[%s6 + $0x20] sm:$0xf]
      %v1036 = vld [vmem:[%s6 + $0x24] sm:$0xf]
      %v1037 = vld [vmem:[%s6 + $0x28] sm:$0xf]
      %v1038 = vld [vmem:[%s6 + $0x2c] sm:$0xf]
      %v1039 = vld [vmem:[%s6 + $0x30] sm:$0xf]
      %v1040 = vld [vmem:[%s6 + $0x34] sm:$0xf]
      %v1041 = vld [vmem:[%s6 + $0x38] sm:$0xf]
      %v1042 = vld [vmem:[%s6 + $0x3c] sm:$0xf]
      %v1043 = vld [vmem:[%s6 + $0x40] sm:$0xf]
      %v1044 = vld [vmem:[%s6 + $0x44] sm:$0xf]
      %v1045 = vld [vmem:[%s6 + $0x48] sm:$0xf]
      %v1046 = vld [vmem:[%s6 + $0x4c] sm:$0xf]
      %v1047 = vld [vmem:[%s6 + $0x50] sm:$0xf]
      %v1048 = vld [vmem:[%s6 + $0x54] sm:$0xf]
      %v1049 = vld [vmem:[%s6 + $0x58] sm:$0xf]
      %v1050 = vld [vmem:[%s6 + $0x5c] sm:$0xf]
      %v1051 = vld [vmem:[%s6 + $0x60] sm:$0xf]
      %v1052 = vld [vmem:[%s6 + $0x64] sm:$0xf]
      %v1053 = vld [vmem:[%s6 + $0x68] sm:$0xf]
      %v1054 = vld [vmem:[%s6 + $0x6c] sm:$0xf]
      %v1055 = vld [vmem:[%s6 + $0x70] sm:$0x1]
      %v1056 = vld [vmem:[%s7] sm:$0x1]
      %v1057 = vpack.c.bf16 %v996, %v995
      %v1058 = vpack.c.bf16 %v998, %v997
      %v1059 = vpack.c.bf16 %v1000, %v999
      %v1060 = vpack.c.bf16 %v1002, %v1001
      %v1061 = vpack.c.bf16 %v1004, %v1003
      %v1062 = vpack.c.bf16 %v1006, %v1005
      %v1063 = vpack.c.bf16 %v1008, %v1007
      %v1064 = vpack.c.bf16 %v1010, %v1009
      %v1065 = vpack.c.bf16 %v1012, %v1011
      %v1066 = vpack.c.bf16 %v1014, %v1013
      %v1067 = vpack.c.bf16 %v1016, %v1015
      %v1068 = vpack.c.bf16 %v1018, %v1017
      %v1069 = vpack.c.bf16 %v1020, %v1019
      %v1070 = vpack.c.bf16 %v1022, %v1021
      %v1071 = vpack.c.bf16 %v1024, %v1023
      %v1072 = vpack.c.bf16 %v1026, %v1025
      %v1074 = vshrl.u32 %v1057, 16
      %v1076 = vrot.slane %v1074, 7
      %v1077 = vshll.u32 %v1057, 16
      %v1079 = vor.u32 %v1076, %v1077
      %v1081 = vshrl.u32 %v1058, 16
      %v1083 = vrot.slane %v1081, 7
      %v1084 = vshll.u32 %v1058, 16
      %v1086 = vor.u32 %v1083, %v1084
      %v1088 = vshrl.u32 %v1059, 16
      %v1090 = vrot.slane %v1088, 7
      %v1091 = vshll.u32 %v1059, 16
      %v1093 = vor.u32 %v1090, %v1091
      %v1095 = vshrl.u32 %v1060, 16
      %v1097 = vrot.slane %v1095, 7
      %v1098 = vshll.u32 %v1060, 16
      %v1100 = vor.u32 %v1097, %v1098
      %v1102 = vshrl.u32 %v1061, 16
      %v1104 = vrot.slane %v1102, 7
      %v1105 = vshll.u32 %v1061, 16
      %v1107 = vor.u32 %v1104, %v1105
      %v1109 = vshrl.u32 %v1062, 16
      %v1111 = vrot.slane %v1109, 7
      %v1112 = vshll.u32 %v1062, 16
      %v1114 = vor.u32 %v1111, %v1112
      %v1116 = vshrl.u32 %v1063, 16
      %v1118 = vrot.slane %v1116, 7
      %v1119 = vshll.u32 %v1063, 16
      %v1121 = vor.u32 %v1118, %v1119
      %v1123 = vshrl.u32 %v1064, 16
      %v1125 = vrot.slane %v1123, 7
      %v1126 = vshll.u32 %v1064, 16
      %v1128 = vor.u32 %v1125, %v1126
      %v1130 = vshrl.u32 %v1065, 16
      %v1132 = vrot.slane %v1130, 7
      %v1133 = vshll.u32 %v1065, 16
      %v1135 = vor.u32 %v1132, %v1133
      %v1137 = vshrl.u32 %v1066, 16
      %v1139 = vrot.slane %v1137, 7
      %v1140 = vshll.u32 %v1066, 16
      %v1142 = vor.u32 %v1139, %v1140
      %v1144 = vshrl.u32 %v1067, 16
      %v1146 = vrot.slane %v1144, 7
      %v1147 = vshll.u32 %v1067, 16
      %v1149 = vor.u32 %v1146, %v1147
      %v1151 = vshrl.u32 %v1068, 16
      %v1153 = vrot.slane %v1151, 7
      %v1154 = vshll.u32 %v1068, 16
      %v1156 = vor.u32 %v1153, %v1154
      %v1158 = vshrl.u32 %v1069, 16
      %v1160 = vrot.slane %v1158, 7
      %v1161 = vshll.u32 %v1069, 16
      %v1163 = vor.u32 %v1160, %v1161
      %v1165 = vshrl.u32 %v1070, 16
      %v1167 = vrot.slane %v1165, 7
      %v1168 = vshll.u32 %v1070, 16
      %v1170 = vor.u32 %v1167, %v1168
      %v1172 = vshrl.u32 %v1071, 16
      %v1174 = vrot.slane %v1172, 7
      %v1175 = vshll.u32 %v1071, 16
      %v1177 = vor.u32 %v1174, %v1175
      %v1179 = vshrl.u32 %v1072, 16
      %v1181 = vrot.slane %v1179, 7
      %v1182 = vshll.u32 %v1072, 16
      %v1184 = vor.u32 %v1181, %v1182
      %vm1217 = vcmask 1040384
      %vm1218 = vsmask.f32 256
      %vm1219 = vmand %vm1217, %vm1218
      %v1220 = vsel %vm1219, 0, %v1079
      %v1221 = vsel %vm1219, 0, %v1086
      %v1222 = vsel %vm1219, 0, %v1093
      %v1223 = vsel %vm1219, 0, %v1100
      %v1224 = vsel %vm1219, 0, %v1107
      %v1225 = vsel %vm1219, 0, %v1114
      %v1226 = vsel %vm1219, 0, %v1121
      %v1227 = vsel %vm1219, 0, %v1128
      %v1228 = vsel %vm1219, 0, %v1135
      %v1229 = vsel %vm1219, 0, %v1142
      %v1230 = vsel %vm1219, 0, %v1149
      %v1231 = vsel %vm1219, 0, %v1156
      %v1232 = vsel %vm1219, 0, %v1163
      %v1233 = vsel %vm1219, 0, %v1170
      %v1234 = vsel %vm1219, 0, %v1177
      %v1235 = vsel %vm1219, 0, %v1184
      %v1236 = vsel %vm1219, %v1076, 0
      %v1237 = vsel %vm1219, %v1083, 0
      %v1238 = vsel %vm1219, %v1090, 0
      %v1239 = vsel %vm1219, %v1097, 0
      %v1240 = vsel %vm1219, %v1104, 0
      %v1241 = vsel %vm1219, %v1111, 0
      %v1242 = vsel %vm1219, %v1118, 0
      %v1243 = vsel %vm1219, %v1125, 0
      %v1244 = vsel %vm1219, %v1132, 0
      %v1245 = vsel %vm1219, %v1139, 0
      %v1246 = vsel %vm1219, %v1146, 0
      %v1247 = vsel %vm1219, %v1153, 0
      %v1248 = vsel %vm1219, %v1160, 0
      %v1249 = vsel %vm1219, %v1167, 0
      %v1250 = vsel %vm1219, %v1174, 0
      %v1251 = vsel %vm1219, %v1181, 0
      %vm1252 = vsmask.f32 7424
      %v1254 = vshrl.u32 0, 16
      %v1256 = vshll.u32 0, 16
      %v1258 = vrot.slane %v1256, 1
      %v1259 = vor.u32 %v1254, %v1258
      %v1260 = vsel %vm1252, %v1259, %v1258
      %v1262 = vshrl.u32 %v1220, 16
      %v1264 = vshll.u32 %v1220, 16
      %v1266 = vrot.slane %v1264, 1
      %v1267 = vor.u32 %v1262, %v1266
      %v1269 = vshll.u32 %v1236, 16
      %v1271 = vrot.slane %v1269, 1
      %v1272 = vsel %vm1252, %v1267, %v1271
      %v1274 = vshrl.u32 %v1221, 16
      %v1276 = vshll.u32 %v1221, 16
      %v1278 = vrot.slane %v1276, 1
      %v1279 = vor.u32 %v1274, %v1278
      %v1281 = vshll.u32 %v1237, 16
      %v1283 = vrot.slane %v1281, 1
      %v1284 = vsel %vm1252, %v1279, %v1283
      %v1286 = vshrl.u32 %v1222, 16
      %v1288 = vshll.u32 %v1222, 16
      %v1290 = vrot.slane %v1288, 1
      %v1291 = vor.u32 %v1286, %v1290
      %v1293 = vshll.u32 %v1238, 16
      %v1295 = vrot.slane %v1293, 1
      %v1296 = vsel %vm1252, %v1291, %v1295
      %v1298 = vshrl.u32 %v1223, 16
      %v1300 = vshll.u32 %v1223, 16
      %v1302 = vrot.slane %v1300, 1
      %v1303 = vor.u32 %v1298, %v1302
      %v1305 = vshll.u32 %v1239, 16
      %v1307 = vrot.slane %v1305, 1
      %v1308 = vsel %vm1252, %v1303, %v1307
      %v1310 = vshrl.u32 %v1224, 16
      %v1312 = vshll.u32 %v1224, 16
      %v1314 = vrot.slane %v1312, 1
      %v1315 = vor.u32 %v1310, %v1314
      %v1317 = vshll.u32 %v1240, 16
      %v1319 = vrot.slane %v1317, 1
      %v1320 = vsel %vm1252, %v1315, %v1319
      %v1322 = vshrl.u32 %v1225, 16
      %v1324 = vshll.u32 %v1225, 16
      %v1326 = vrot.slane %v1324, 1
      %v1327 = vor.u32 %v1322, %v1326
      %v1329 = vshll.u32 %v1241, 16
      %v1331 = vrot.slane %v1329, 1
      %v1332 = vsel %vm1252, %v1327, %v1331
      %v1334 = vshrl.u32 %v1226, 16
      %v1336 = vshll.u32 %v1226, 16
      %v1338 = vrot.slane %v1336, 1
      %v1339 = vor.u32 %v1334, %v1338
      %v1341 = vshll.u32 %v1242, 16
      %v1343 = vrot.slane %v1341, 1
      %v1344 = vsel %vm1252, %v1339, %v1343
      %v1346 = vshrl.u32 %v1227, 16
      %v1348 = vshll.u32 %v1227, 16
      %v1350 = vrot.slane %v1348, 1
      %v1351 = vor.u32 %v1346, %v1350
      %v1353 = vshll.u32 %v1243, 16
      %v1355 = vrot.slane %v1353, 1
      %v1356 = vsel %vm1252, %v1351, %v1355
      %v1358 = vshrl.u32 %v1228, 16
      %v1360 = vshll.u32 %v1228, 16
      %v1362 = vrot.slane %v1360, 1
      %v1363 = vor.u32 %v1358, %v1362
      %v1365 = vshll.u32 %v1244, 16
      %v1367 = vrot.slane %v1365, 1
      %v1368 = vsel %vm1252, %v1363, %v1367
      %v1370 = vshrl.u32 %v1229, 16
      %v1372 = vshll.u32 %v1229, 16
      %v1374 = vrot.slane %v1372, 1
      %v1375 = vor.u32 %v1370, %v1374
      %v1377 = vshll.u32 %v1245, 16
      %v1379 = vrot.slane %v1377, 1
      %v1380 = vsel %vm1252, %v1375, %v1379
      %v1382 = vshrl.u32 %v1230, 16
      %v1384 = vshll.u32 %v1230, 16
      %v1386 = vrot.slane %v1384, 1
      %v1387 = vor.u32 %v1382, %v1386
      %v1389 = vshll.u32 %v1246, 16
      %v1391 = vrot.slane %v1389, 1
      %v1392 = vsel %vm1252, %v1387, %v1391
      %v1394 = vshrl.u32 %v1231, 16
      %v1396 = vshll.u32 %v1231, 16
      %v1398 = vrot.slane %v1396, 1
      %v1399 = vor.u32 %v1394, %v1398
      %v1401 = vshll.u32 %v1247, 16
      %v1403 = vrot.slane %v1401, 1
      %v1404 = vsel %vm1252, %v1399, %v1403
      %v1406 = vshrl.u32 %v1232, 16
      %v1408 = vshll.u32 %v1232, 16
      %v1410 = vrot.slane %v1408, 1
      %v1411 = vor.u32 %v1406, %v1410
      %v1413 = vshll.u32 %v1248, 16
      %v1415 = vrot.slane %v1413, 1
      %v1416 = vsel %vm1252, %v1411, %v1415
      %v1418 = vshrl.u32 %v1233, 16
      %v1420 = vshll.u32 %v1233, 16
      %v1422 = vrot.slane %v1420, 1
      %v1423 = vor.u32 %v1418, %v1422
      %v1425 = vshll.u32 %v1249, 16
      %v1427 = vrot.slane %v1425, 1
      %v1428 = vsel %vm1252, %v1423, %v1427
      %v1430 = vshrl.u32 %v1234, 16
      %v1432 = vshll.u32 %v1234, 16
      %v1434 = vrot.slane %v1432, 1
      %v1435 = vor.u32 %v1430, %v1434
      %v1437 = vshll.u32 %v1250, 16
      %v1439 = vrot.slane %v1437, 1
      %v1440 = vsel %vm1252, %v1435, %v1439
      %v1442 = vshrl.u32 %v1235, 16
      %v1444 = vshll.u32 %v1235, 16
      %v1446 = vrot.slane %v1444, 1
      %v1447 = vor.u32 %v1442, %v1446
      %v1449 = vshll.u32 %v1251, 16
      %v1451 = vrot.slane %v1449, 1
      %v1452 = vsel %vm1252, %v1447, %v1451
      %1453 = vrot.lane.b32.xlu0 %v1260, 25
      %v1454 = vpop.permute.xlu0 %1453
      %1455 = vrot.lane.b32.xlu0 %v1272, 25
      %v1456 = vpop.permute.xlu0 %1455
      %1457 = vrot.lane.b32.xlu0 %v1284, 25
      %v1458 = vpop.permute.xlu0 %1457
      %1459 = vrot.lane.b32.xlu0 %v1296, 25
      %v1460 = vpop.permute.xlu0 %1459
      %1461 = vrot.lane.b32.xlu0 %v1308, 25
      %v1462 = vpop.permute.xlu0 %1461
      %1463 = vrot.lane.b32.xlu0 %v1320, 25
      %v1464 = vpop.permute.xlu0 %1463
      %1465 = vrot.lane.b32.xlu0 %v1332, 25
      %v1466 = vpop.permute.xlu0 %1465
      %1467 = vrot.lane.b32.xlu0 %v1344, 25
      %v1468 = vpop.permute.xlu0 %1467
      %1469 = vrot.lane.b32.xlu0 %v1356, 25
      %v1470 = vpop.permute.xlu0 %1469
      %1471 = vrot.lane.b32.xlu0 %v1368, 25
      %v1472 = vpop.permute.xlu0 %1471
      %1473 = vrot.lane.b32.xlu0 %v1380, 25
      %v1474 = vpop.permute.xlu0 %1473
      %1475 = vrot.lane.b32.xlu0 %v1392, 25
      %v1476 = vpop.permute.xlu0 %1475
      %1477 = vrot.lane.b32.xlu0 %v1404, 25
      %v1478 = vpop.permute.xlu0 %1477
      %1479 = vrot.lane.b32.xlu0 %v1416, 25
      %v1480 = vpop.permute.xlu0 %1479
      %1481 = vrot.lane.b32.xlu0 %v1428, 25
      %v1482 = vpop.permute.xlu0 %1481
      %1483 = vrot.lane.b32.xlu0 %v1440, 25
      %v1484 = vpop.permute.xlu0 %1483
      %1485 = vrot.lane.b32.xlu0 %v1452, 25
      %v1486 = vpop.permute.xlu0 %1485
      %vm1520 = vcmask 1046528
      %v1521 = vrot.slane 0, 1
      %v1522 = vsel %vm1520, %v1521, %v1521
      %v1523 = vrot.slane %v1220, 1
      %v1524 = vrot.slane %v1236, 1
      %v1525 = vsel %vm1520, %v1523, %v1524
      %v1526 = vrot.slane %v1221, 1
      %v1527 = vrot.slane %v1237, 1
      %v1528 = vsel %vm1520, %v1526, %v1527
      %v1529 = vrot.slane %v1222, 1
      %v1530 = vrot.slane %v1238, 1
      %v1531 = vsel %vm1520, %v1529, %v1530
      %v1532 = vrot.slane %v1223, 1
      %v1533 = vrot.slane %v1239, 1
      %v1534 = vsel %vm1520, %v1532, %v1533
      %v1535 = vrot.slane %v1224, 1
      %v1536 = vrot.slane %v1240, 1
      %v1537 = vsel %vm1520, %v1535, %v1536
      %v1538 = vrot.slane %v1225, 1
      %v1539 = vrot.slane %v1241, 1
      %v1540 = vsel %vm1520, %v1538, %v1539
      %v1541 = vrot.slane %v1226, 1
      %v1542 = vrot.slane %v1242, 1
      %v1543 = vsel %vm1520, %v1541, %v1542
      %v1544 = vrot.slane %v1227, 1
      %v1545 = vrot.slane %v1243, 1
      %v1546 = vsel %vm1520, %v1544, %v1545
      %v1547 = vrot.slane %v1228, 1
      %v1548 = vrot.slane %v1244, 1
      %v1549 = vsel %vm1520, %v1547, %v1548
      %v1550 = vrot.slane %v1229, 1
      %v1551 = vrot.slane %v1245, 1
      %v1552 = vsel %vm1520, %v1550, %v1551
      %v1553 = vrot.slane %v1230, 1
      %v1554 = vrot.slane %v1246, 1
      %v1555 = vsel %vm1520, %v1553, %v1554
      %v1556 = vrot.slane %v1231, 1
      %v1557 = vrot.slane %v1247, 1
      %v1558 = vsel %vm1520, %v1556, %v1557
      %v1559 = vrot.slane %v1232, 1
      %v1560 = vrot.slane %v1248, 1
      %v1561 = vsel %vm1520, %v1559, %v1560
      %v1562 = vrot.slane %v1233, 1
      %v1563 = vrot.slane %v1249, 1
      %v1564 = vsel %vm1520, %v1562, %v1563
      %v1565 = vrot.slane %v1234, 1
      %v1566 = vrot.slane %v1250, 1
      %v1567 = vsel %vm1520, %v1565, %v1566
      %v1568 = vrot.slane %v1235, 1
      %v1569 = vrot.slane %v1251, 1
      %v1570 = vsel %vm1520, %v1568, %v1569
      %1571 = vrot.lane.b32.xlu0 %v1522, 50
      %v1572 = vpop.permute.xlu0 %1571
      %1573 = vrot.lane.b32.xlu0 %v1525, 50
      %v1574 = vpop.permute.xlu0 %1573
      %1575 = vrot.lane.b32.xlu0 %v1528, 50
      %v1576 = vpop.permute.xlu0 %1575
      %1577 = vrot.lane.b32.xlu0 %v1531, 50
      %v1578 = vpop.permute.xlu0 %1577
      %1579 = vrot.lane.b32.xlu0 %v1534, 50
      %v1580 = vpop.permute.xlu0 %1579
      %1581 = vrot.lane.b32.xlu0 %v1537, 50
      %v1582 = vpop.permute.xlu0 %1581
      %1583 = vrot.lane.b32.xlu0 %v1540, 50
      %v1584 = vpop.permute.xlu0 %1583
      %1585 = vrot.lane.b32.xlu0 %v1543, 50
      %v1586 = vpop.permute.xlu0 %1585
      %1587 = vrot.lane.b32.xlu0 %v1546, 50
      %v1588 = vpop.permute.xlu0 %1587
      %1589 = vrot.lane.b32.xlu0 %v1549, 50
      %v1590 = vpop.permute.xlu0 %1589
      %1591 = vrot.lane.b32.xlu0 %v1552, 50
      %v1592 = vpop.permute.xlu0 %1591
      %1593 = vrot.lane.b32.xlu0 %v1555, 50
      %v1594 = vpop.permute.xlu0 %1593
      %1595 = vrot.lane.b32.xlu0 %v1558, 50
      %v1596 = vpop.permute.xlu0 %1595
      %1597 = vrot.lane.b32.xlu0 %v1561, 50
      %v1598 = vpop.permute.xlu0 %1597
      %1599 = vrot.lane.b32.xlu0 %v1564, 50
      %v1600 = vpop.permute.xlu0 %1599
      %1601 = vrot.lane.b32.xlu0 %v1567, 50
      %v1602 = vpop.permute.xlu0 %1601
      %1603 = vrot.lane.b32.xlu0 %v1570, 50
      %v1604 = vpop.permute.xlu0 %1603
      %vm1605 = vcmask 203776
      %v1607 = vsel %vm1605, 0, %v1454
      %v1609 = vsel %vm1605, %v1220, %v1456
      %v1611 = vsel %vm1605, %v1221, %v1458
      %v1613 = vsel %vm1605, %v1222, %v1460
      %v1615 = vsel %vm1605, %v1223, %v1462
      %v1617 = vsel %vm1605, %v1224, %v1464
      %v1619 = vsel %vm1605, %v1225, %v1466
      %v1621 = vsel %vm1605, %v1226, %v1468
      %v1623 = vsel %vm1605, %v1227, %v1470
      %v1625 = vsel %vm1605, %v1228, %v1472
      %v1627 = vsel %vm1605, %v1229, %v1474
      %v1629 = vsel %vm1605, %v1230, %v1476
      %v1631 = vsel %vm1605, %v1231, %v1478
      %v1633 = vsel %vm1605, %v1232, %v1480
      %v1635 = vsel %vm1605, %v1233, %v1482
      %v1637 = vsel %vm1605, %v1234, %v1484
      %v1639 = vsel %vm1605, %v1235, %v1486
      %vm1640 = vcmask 408576
      %v1642 = vsel %vm1640, %v1607, %v1572
      %v1644 = vsel %vm1640, %v1609, %v1574
      %v1646 = vsel %vm1640, %v1611, %v1576
      %v1648 = vsel %vm1640, %v1613, %v1578
      %v1650 = vsel %vm1640, %v1615, %v1580
      %v1652 = vsel %vm1640, %v1617, %v1582
      %v1654 = vsel %vm1640, %v1619, %v1584
      %v1656 = vsel %vm1640, %v1621, %v1586
      %v1658 = vsel %vm1640, %v1623, %v1588
      %v1660 = vsel %vm1640, %v1625, %v1590
      %v1662 = vsel %vm1640, %v1627, %v1592
      %v1664 = vsel %vm1640, %v1629, %v1594
      %v1666 = vsel %vm1640, %v1631, %v1596
      %v1668 = vsel %vm1640, %v1633, %v1598
      %v1670 = vsel %vm1640, %v1635, %v1600
      %v1672 = vsel %vm1640, %v1637, %v1602
      %v1674 = vsel %vm1640, %v1639, %v1604
      %1691 = vrot.lane.b32.xlu0 %v1644, 75
      %v1692 = vpop.permute.xlu0 %1691
      %1693 = vrot.lane.b32.xlu0 %v1646, 75
      %v1694 = vpop.permute.xlu0 %1693
      %1695 = vrot.lane.b32.xlu0 %v1648, 75
      %v1696 = vpop.permute.xlu0 %1695
      %1697 = vrot.lane.b32.xlu0 %v1650, 75
      %v1698 = vpop.permute.xlu0 %1697
      %1699 = vrot.lane.b32.xlu0 %v1652, 75
      %v1700 = vpop.permute.xlu0 %1699
      %1701 = vrot.lane.b32.xlu0 %v1654, 75
      %v1702 = vpop.permute.xlu0 %1701
      %1703 = vrot.lane.b32.xlu0 %v1656, 75
      %v1704 = vpop.permute.xlu0 %1703
      %1705 = vrot.lane.b32.xlu0 %v1658, 75
      %v1706 = vpop.permute.xlu0 %1705
      %1707 = vrot.lane.b32.xlu0 %v1660, 75
      %v1708 = vpop.permute.xlu0 %1707
      %1709 = vrot.lane.b32.xlu0 %v1662, 75
      %v1710 = vpop.permute.xlu0 %1709
      %1711 = vrot.lane.b32.xlu0 %v1664, 75
      %v1712 = vpop.permute.xlu0 %1711
      %1713 = vrot.lane.b32.xlu0 %v1666, 75
      %v1714 = vpop.permute.xlu0 %1713
      %1715 = vrot.lane.b32.xlu0 %v1668, 75
      %v1716 = vpop.permute.xlu0 %1715
      %1717 = vrot.lane.b32.xlu0 %v1670, 75
      %v1718 = vpop.permute.xlu0 %1717
      %1719 = vrot.lane.b32.xlu0 %v1672, 75
      %v1720 = vpop.permute.xlu0 %1719
      %1721 = vrot.lane.b32.xlu0 %v1674, 75
      %v1722 = vpop.permute.xlu0 %1721
      %1724 = vrot.lane.b32.xlu0 %v1646, 22
      %v1725 = vpop.permute.xlu0 %1724
      %1726 = vrot.lane.b32.xlu0 %v1648, 22
      %v1727 = vpop.permute.xlu0 %1726
      %1728 = vrot.lane.b32.xlu0 %v1650, 22
      %v1729 = vpop.permute.xlu0 %1728
      %1730 = vrot.lane.b32.xlu0 %v1652, 22
      %v1731 = vpop.permute.xlu0 %1730
      %1732 = vrot.lane.b32.xlu0 %v1654, 22
      %v1733 = vpop.permute.xlu0 %1732
      %1734 = vrot.lane.b32.xlu0 %v1656, 22
      %v1735 = vpop.permute.xlu0 %1734
      %1736 = vrot.lane.b32.xlu0 %v1658, 22
      %v1737 = vpop.permute.xlu0 %1736
      %1738 = vrot.lane.b32.xlu0 %v1660, 22
      %v1739 = vpop.permute.xlu0 %1738
      %1740 = vrot.lane.b32.xlu0 %v1662, 22
      %v1741 = vpop.permute.xlu0 %1740
      %1742 = vrot.lane.b32.xlu0 %v1664, 22
      %v1743 = vpop.permute.xlu0 %1742
      %1744 = vrot.lane.b32.xlu0 %v1666, 22
      %v1745 = vpop.permute.xlu0 %1744
      %1746 = vrot.lane.b32.xlu0 %v1668, 22
      %v1747 = vpop.permute.xlu0 %1746
      %1748 = vrot.lane.b32.xlu0 %v1670, 22
      %v1749 = vpop.permute.xlu0 %1748
      %1750 = vrot.lane.b32.xlu0 %v1672, 22
      %v1751 = vpop.permute.xlu0 %1750
      %1752 = vrot.lane.b32.xlu0 %v1674, 22
      %v1753 = vpop.permute.xlu0 %1752
      %1754 = vrot.lane.b32.xlu0 %v1642, 22
      %v1755 = vpop.permute.xlu0 %1754
      %vm1756 = vcmask 613376
      %v1758 = vsel %vm1756, %v1642, %v1692
      %v1761 = vsel %vm1756, %v1644, %v1694
      %v1764 = vsel %vm1756, %v1646, %v1696
      %v1767 = vsel %vm1756, %v1648, %v1698
      %v1770 = vsel %vm1756, %v1650, %v1700
      %v1773 = vsel %vm1756, %v1652, %v1702
      %v1776 = vsel %vm1756, %v1654, %v1704
      %v1779 = vsel %vm1756, %v1656, %v1706
      %v1782 = vsel %vm1756, %v1658, %v1708
      %v1785 = vsel %vm1756, %v1660, %v1710
      %v1788 = vsel %vm1756, %v1662, %v1712
      %v1791 = vsel %vm1756, %v1664, %v1714
      %v1794 = vsel %vm1756, %v1666, %v1716
      %v1797 = vsel %vm1756, %v1668, %v1718
      %v1800 = vsel %vm1756, %v1670, %v1720
      %v1803 = vsel %vm1756, %v1672, %v1722
      %v1806 = vsel %vm994, %v1692, %v1725
      %v1808 = vsel %vm994, %v1694, %v1727
      %v1810 = vsel %vm994, %v1696, %v1729
      %v1812 = vsel %vm994, %v1698, %v1731
      %v1814 = vsel %vm994, %v1700, %v1733
      %v1816 = vsel %vm994, %v1702, %v1735
      %v1818 = vsel %vm994, %v1704, %v1737
      %v1820 = vsel %vm994, %v1706, %v1739
      %v1822 = vsel %vm994, %v1708, %v1741
      %v1824 = vsel %vm994, %v1710, %v1743
      %v1826 = vsel %vm994, %v1712, %v1745
      %v1828 = vsel %vm994, %v1714, %v1747
      %v1830 = vsel %vm994, %v1716, %v1749
      %v1832 = vsel %vm994, %v1718, %v1751
      %v1834 = vsel %vm994, %v1720, %v1753
      %v1836 = vsel %vm994, %v1722, %v1755
      %v1838 = vlaneseq
      %v1839 = vshrl.u32 %v1838, 7
      %v1840 = vsub.s32 0, %v1839
      %v1841 = vrot.slane %v1056, %v1840
      %v1872 = vunpack.c.l.b16 %v1027
      %v1873 = vunpack.c.l.b16 %v1028
      %v1874 = vunpack.c.l.b16 %v1029
      %v1875 = vunpack.c.l.b16 %v1030
      %v1876 = vunpack.c.l.b16 %v1031
      %v1877 = vunpack.c.l.b16 %v1032
      %v1878 = vunpack.c.l.b16 %v1033
      %v1879 = vunpack.c.l.b16 %v1034
      %v1880 = vunpack.c.l.b16 %v1035
      %v1881 = vunpack.c.l.b16 %v1036
      %v1882 = vunpack.c.l.b16 %v1037
      %v1883 = vunpack.c.l.b16 %v1038
      %v1884 = vunpack.c.l.b16 %v1039
      %v1885 = vunpack.c.l.b16 %v1040
      %v1886 = vunpack.c.l.b16 %v1041
      %v1887 = vunpack.c.l.b16 %v1042
      %v1888 = vunpack.c.l.b16 %v1043
      %v1889 = vunpack.c.l.b16 %v1044
      %v1890 = vunpack.c.l.b16 %v1045
      %v1891 = vunpack.c.l.b16 %v1046
      %v1892 = vunpack.c.l.b16 %v1047
      %v1893 = vunpack.c.l.b16 %v1048
      %v1894 = vunpack.c.l.b16 %v1049
      %v1895 = vunpack.c.l.b16 %v1050
      %v1896 = vunpack.c.l.b16 %v1051
      %v1897 = vunpack.c.l.b16 %v1052
      %v1898 = vunpack.c.l.b16 %v1053
      %v1899 = vunpack.c.l.b16 %v1054
      %v1900 = vunpack.c.l.b16 %v1055
      %v1901 = vpack.c.b16 %v1873, %v1872
      %v1902 = vpack.c.b16 %v1875, %v1874
      %v1903 = vpack.c.b16 %v1877, %v1876
      %v1904 = vpack.c.b16 %v1879, %v1878
      %v1905 = vpack.c.b16 %v1881, %v1880
      %v1906 = vpack.c.b16 %v1883, %v1882
      %v1907 = vpack.c.b16 %v1885, %v1884
      %v1908 = vpack.c.b16 %v1887, %v1886
      %v1909 = vpack.c.b16 %v1889, %v1888
      %v1910 = vpack.c.b16 %v1891, %v1890
      %v1911 = vpack.c.b16 %v1893, %v1892
      %v1912 = vpack.c.b16 %v1895, %v1894
      %v1913 = vpack.c.b16 %v1897, %v1896
      %v1914 = vpack.c.b16 %v1899, %v1898
      %v1915 = vpack.c.b16 %v1900, %v1900
      %vm1930 = vcmask 793600
      %v1931 = vsel %vm1930, %v1806, 0
      %v1933 = vsel %vm1930, %v1808, 0
      %v1935 = vsel %vm1930, %v1810, 0
      %v1937 = vsel %vm1930, %v1812, 0
      %v1939 = vsel %vm1930, %v1814, 0
      %v1941 = vsel %vm1930, %v1816, 0
      %v1943 = vsel %vm1930, %v1818, 0
      %v1945 = vsel %vm1930, %v1820, 0
      %v1947 = vsel %vm1930, %v1822, 0
      %v1949 = vsel %vm1930, %v1824, 0
      %v1951 = vsel %vm1930, %v1826, 0
      %v1953 = vsel %vm1930, %v1828, 0
      %v1955 = vsel %vm1930, %v1830, 0
      %v1957 = vsel %vm1930, %v1832, 0
      %v1959 = vsel %vm1930, %v1834, 0
      %v1961 = vsel %vm1930, %v1836, 0
      %vm1963 = vcmask 1040384
      %v1964 = vsel 0, 4294967295, 65535
      %v1965 = vsel %vm1963, %v1964, 0
      %v1967 = vand.u32 %v1915, %v1965
      %1969 = vmatprep.subr.bf16.mxu0 0
      %1970 = vmatpush1.bf16.msra.mxu0 %v1908
      %1971 = vmatprep.subr.bf16.mxu0 0
      %1972 = vmatpush1.bf16.msra.mxu0 %v1907
      %1973 = vmatprep.subr.bf16.mxu0 0
      %1974 = vmatpush1.bf16.msra.mxu0 %v1906
      %1975 = vmatprep.subr.bf16.mxu0 0
      %1976 = vmatpush1.bf16.msra.mxu0 %v1905
      %1977 = vmatprep.subr.bf16.mxu0 0
      %1978 = vmatpush1.bf16.msra.mxu0 %v1904
      %1979 = vmatprep.subr.bf16.mxu0 0
      %1980 = vmatpush1.bf16.msra.mxu0 %v1903
      %1981 = vmatprep.subr.bf16.mxu0 0
      %1982 = vmatpush1.bf16.msra.mxu0 %v1902
      %1983 = vmatprep.subr.bf16.mxu0 0
      %1984 = vmatpush1.bf16.msra.mxu0 %v1901
      %1985 = vmatprep.subr.bf16.mxu0 0
      %1986 = vmatpush2.bf16.msra.mxu0 0
      %1987 = vmatprep.subr.bf16.mxu0 0
      %1988 = vmatpush2.bf16.msra.mxu0 %v1967
      %1989 = vmatprep.subr.bf16.mxu0 0
      %1990 = vmatpush2.bf16.msra.mxu0 %v1914
      %1991 = vmatprep.subr.bf16.mxu0 0
      %1992 = vmatpush2.bf16.msra.mxu0 %v1913
      %1993 = vmatprep.subr.bf16.mxu0 0
      %1994 = vmatpush2.bf16.msra.mxu0 %v1912
      %1995 = vmatprep.subr.bf16.mxu0 0
      %1996 = vmatpush2.bf16.msra.mxu0 %v1911
      %1997 = vmatprep.subr.bf16.mxu0 0
      %1998 = vmatpush2.bf16.msra.mxu0 %v1910
      %1999 = vmatprep.subr.bf16.mxu0 0
      %2000 = vmatpush2.bf16.msra.mxu0 %v1909
      %2001 = vmatprep.mubr.bf16.mxu0 %v1931
      %2002 = vmatmul.mubr.bf16.gmra.mxu0 %v1758
      %v2003 = vpop.f32.mrf.mxu0
      %v2004 = vadd.f32 %v1841, %v2003
      %v2005 = vpop.f32.mrf.mxu0
      %v2006 = vpop.f32.mrf.mxu0
      %v2007 = vadd.f32 %v1841, %v2006
      %v2008 = vpop.f32.mrf.mxu0
      %2009 = vmatprep.mubr.bf16.mxu0 %v1933
      %2010 = vmatmul.mubr.bf16.gmra.mxu0 %v1761
      %v2011 = vpop.f32.mrf.mxu0
      %v2012 = vadd.f32 %v1841, %v2011
      %v2013 = vpop.f32.mrf.mxu0
      %v2014 = vpop.f32.mrf.mxu0
      %v2015 = vadd.f32 %v1841, %v2014
      %v2016 = vpop.f32.mrf.mxu0
      %2017 = vmatprep.mubr.bf16.mxu0 %v1935
      %2018 = vmatmul.mubr.bf16.gmra.mxu0 %v1764
      %v2019 = vpop.f32.mrf.mxu0
      %v2020 = vadd.f32 %v1841, %v2019
      %v2021 = vpop.f32.mrf.mxu0
      %v2022 = vpop.f32.mrf.mxu0
      %v2023 = vadd.f32 %v1841, %v2022
      %v2024 = vpop.f32.mrf.mxu0
      %2025 = vmatprep.mubr.bf16.mxu0 %v1937
      %2026 = vmatmul.mubr.bf16.gmra.mxu0 %v1767
      %v2027 = vpop.f32.mrf.mxu0
      %v2028 = vadd.f32 %v1841, %v2027
      %v2029 = vpop.f32.mrf.mxu0
      %v2030 = vpop.f32.mrf.mxu0
      %v2031 = vadd.f32 %v1841, %v2030
      %v2032 = vpop.f32.mrf.mxu0
      %2033 = vmatprep.mubr.bf16.mxu0 %v1939
      %2034 = vmatmul.mubr.bf16.gmra.mxu0 %v1770
      %v2035 = vpop.f32.mrf.mxu0
      %v2036 = vadd.f32 %v1841, %v2035
      %v2037 = vpop.f32.mrf.mxu0
      %v2038 = vpop.f32.mrf.mxu0
      %v2039 = vadd.f32 %v1841, %v2038
      %v2040 = vpop.f32.mrf.mxu0
      %2041 = vmatprep.mubr.bf16.mxu0 %v1941
      %2042 = vmatmul.mubr.bf16.gmra.mxu0 %v1773
      %v2043 = vpop.f32.mrf.mxu0
      %v2044 = vadd.f32 %v1841, %v2043
      %v2045 = vpop.f32.mrf.mxu0
      %v2046 = vpop.f32.mrf.mxu0
      %v2047 = vadd.f32 %v1841, %v2046
      %v2048 = vpop.f32.mrf.mxu0
      %2049 = vmatprep.mubr.bf16.mxu0 %v1943
      %2050 = vmatmul.mubr.bf16.gmra.mxu0 %v1776
      %v2051 = vpop.f32.mrf.mxu0
      %v2052 = vadd.f32 %v1841, %v2051
      %v2053 = vpop.f32.mrf.mxu0
      %v2054 = vpop.f32.mrf.mxu0
      %v2055 = vadd.f32 %v1841, %v2054
      %v2056 = vpop.f32.mrf.mxu0
      %2057 = vmatprep.mubr.bf16.mxu0 %v1945
      %2058 = vmatmul.mubr.bf16.gmra.mxu0 %v1779
      %v2059 = vpop.f32.mrf.mxu0
      %v2060 = vadd.f32 %v1841, %v2059
      %v2061 = vpop.f32.mrf.mxu0
      %v2062 = vpop.f32.mrf.mxu0
      %v2063 = vadd.f32 %v1841, %v2062
      %v2064 = vpop.f32.mrf.mxu0
      %2065 = vmatprep.mubr.bf16.mxu0 %v1947
      %2066 = vmatmul.mubr.bf16.gmra.mxu0 %v1782
      %v2067 = vpop.f32.mrf.mxu0
      %v2068 = vadd.f32 %v1841, %v2067
      %v2069 = vpop.f32.mrf.mxu0
      %v2070 = vpop.f32.mrf.mxu0
      %v2071 = vadd.f32 %v1841, %v2070
      %v2072 = vpop.f32.mrf.mxu0
      %2073 = vmatprep.mubr.bf16.mxu0 %v1949
      %2074 = vmatmul.mubr.bf16.gmra.mxu0 %v1785
      %v2075 = vpop.f32.mrf.mxu0
      %v2076 = vadd.f32 %v1841, %v2075
      %v2077 = vpop.f32.mrf.mxu0
      %v2078 = vpop.f32.mrf.mxu0
      %v2079 = vadd.f32 %v1841, %v2078
      %v2080 = vpop.f32.mrf.mxu0
      %2081 = vmatprep.mubr.bf16.mxu0 %v1951
      %2082 = vmatmul.mubr.bf16.gmra.mxu0 %v1788
      %v2083 = vpop.f32.mrf.mxu0
      %v2084 = vadd.f32 %v1841, %v2083
      %v2085 = vpop.f32.mrf.mxu0
      %v2086 = vpop.f32.mrf.mxu0
      %v2087 = vadd.f32 %v1841, %v2086
      %v2088 = vpop.f32.mrf.mxu0
      %2089 = vmatprep.mubr.bf16.mxu0 %v1953
      %2090 = vmatmul.mubr.bf16.gmra.mxu0 %v1791
      %v2091 = vpop.f32.mrf.mxu0
      %v2092 = vadd.f32 %v1841, %v2091
      %v2093 = vpop.f32.mrf.mxu0
      %v2094 = vpop.f32.mrf.mxu0
      %v2095 = vadd.f32 %v1841, %v2094
      %v2096 = vpop.f32.mrf.mxu0
      %2097 = vmatprep.mubr.bf16.mxu0 %v1955
      %2098 = vmatmul.mubr.bf16.gmra.mxu0 %v1794
      %v2099 = vpop.f32.mrf.mxu0
      %v2100 = vadd.f32 %v1841, %v2099
      %v2101 = vpop.f32.mrf.mxu0
      %v2102 = vpop.f32.mrf.mxu0
      %v2103 = vadd.f32 %v1841, %v2102
      %v2104 = vpop.f32.mrf.mxu0
      %2105 = vmatprep.mubr.bf16.mxu0 %v1957
      %2106 = vmatmul.mubr.bf16.gmra.mxu0 %v1797
      %v2107 = vpop.f32.mrf.mxu0
      %v2108 = vadd.f32 %v1841, %v2107
      %v2109 = vpop.f32.mrf.mxu0
      %v2110 = vpop.f32.mrf.mxu0
      %v2111 = vadd.f32 %v1841, %v2110
      %v2112 = vpop.f32.mrf.mxu0
      %2113 = vmatprep.mubr.bf16.mxu0 %v1959
      %2114 = vmatmul.mubr.bf16.gmra.mxu0 %v1800
      %v2115 = vpop.f32.mrf.mxu0
      %v2116 = vadd.f32 %v1841, %v2115
      %v2117 = vpop.f32.mrf.mxu0
      %v2118 = vpop.f32.mrf.mxu0
      %v2119 = vadd.f32 %v1841, %v2118
      %v2120 = vpop.f32.mrf.mxu0
      %2121 = vmatprep.mubr.bf16.mxu0 %v1961
      %2122 = vmatmul.mubr.bf16.gmra.mxu0 %v1803
      %v2123 = vpop.f32.mrf.mxu0
      %v2124 = vadd.f32 %v1841, %v2123
      %v2125 = vpop.f32.mrf.mxu0
      %v2126 = vpop.f32.mrf.mxu0
      %v2127 = vadd.f32 %v1841, %v2126
      %v2128 = vpop.f32.mrf.mxu0
      %2129 = vdwg.mxu0
      %v2130 = vld [vmem:[%s587] sm:$0xff]
      %v2131 = vld [vmem:[%s587 + $0x8] sm:$0xff]
      %v2132 = vld [vmem:[%s587 + $0x10] sm:$0xff]
      %v2133 = vld [vmem:[%s587 + $0x18] sm:$0xff]
      %v2134 = vld [vmem:[%s587 + $0x20] sm:$0xff]
      %v2135 = vld [vmem:[%s587 + $0x28] sm:$0xff]
      %v2136 = vld [vmem:[%s587 + $0x30] sm:$0xff]
      %v2137 = vld [vmem:[%s587 + $0x38] sm:$0xff]
      %v2138 = vld [vmem:[%s587 + $0x40] sm:$0xff]
      %v2139 = vld [vmem:[%s587 + $0x48] sm:$0xff]
      %v2140 = vld [vmem:[%s587 + $0x50] sm:$0xff]
      %v2141 = vld [vmem:[%s587 + $0x58] sm:$0xff]
      %v2142 = vld [vmem:[%s587 + $0x60] sm:$0xff]
      %v2143 = vld [vmem:[%s587 + $0x68] sm:$0xff]
      %v2144 = vld [vmem:[%s587 + $0x70] sm:$0xff]
      %v2145 = vld [vmem:[%s587 + $0x78] sm:$0xff]
      %v2146 = vld [vmem:[%s587 + $0x80] sm:$0xff]
      %v2147 = vld [vmem:[%s587 + $0x88] sm:$0xff]
      %v2148 = vld [vmem:[%s587 + $0x90] sm:$0xff]
      %v2149 = vld [vmem:[%s587 + $0x98] sm:$0xff]
      %v2150 = vld [vmem:[%s587 + $0xa0] sm:$0xff]
      %v2151 = vld [vmem:[%s587 + $0xa8] sm:$0xff]
      %v2152 = vld [vmem:[%s587 + $0xb0] sm:$0xff]
      %v2153 = vld [vmem:[%s587 + $0xb8] sm:$0xff]
      %v2154 = vld [vmem:[%s587 + $0xc0] sm:$0xff]
      %v2155 = vld [vmem:[%s587 + $0xc8] sm:$0xff]
      %v2156 = vld [vmem:[%s587 + $0xd0] sm:$0xff]
      %v2157 = vld [vmem:[%s587 + $0xd8] sm:$0xff]
      %v2158 = vld [vmem:[%s587 + $0xe0] sm:$0xff]
      %v2159 = vld [vmem:[%s587 + $0xe8] sm:$0xff]
      %v2160 = vld [vmem:[%s587 + $0xf0] sm:$0xff]
      %v2161 = vld [vmem:[%s587 + $0xf8] sm:$0xff]
      %v2162 = vxor.u32 %v2004, 2147483648
      %v2163 = vxor.u32 %v2007, 2147483648
      %v2164 = vxor.u32 %v2012, 2147483648
      %v2165 = vxor.u32 %v2015, 2147483648
      %v2166 = vxor.u32 %v2020, 2147483648
      %v2167 = vxor.u32 %v2023, 2147483648
      %v2168 = vxor.u32 %v2028, 2147483648
      %v2169 = vxor.u32 %v2031, 2147483648
      %v2170 = vxor.u32 %v2036, 2147483648
      %v2171 = vxor.u32 %v2039, 2147483648
      %v2172 = vxor.u32 %v2044, 2147483648
      %v2173 = vxor.u32 %v2047, 2147483648
      %v2174 = vxor.u32 %v2052, 2147483648
      %v2175 = vxor.u32 %v2055, 2147483648
      %v2176 = vxor.u32 %v2060, 2147483648
      %v2177 = vxor.u32 %v2063, 2147483648
      %v2178 = vxor.u32 %v2068, 2147483648
      %v2179 = vxor.u32 %v2071, 2147483648
      %v2180 = vxor.u32 %v2076, 2147483648
      %v2181 = vxor.u32 %v2079, 2147483648
      %v2182 = vxor.u32 %v2084, 2147483648
      %v2183 = vxor.u32 %v2087, 2147483648
      %v2184 = vxor.u32 %v2092, 2147483648
      %v2185 = vxor.u32 %v2095, 2147483648
      %v2186 = vxor.u32 %v2100, 2147483648
      %v2187 = vxor.u32 %v2103, 2147483648
      %v2188 = vxor.u32 %v2108, 2147483648
      %v2189 = vxor.u32 %v2111, 2147483648
      %v2190 = vxor.u32 %v2116, 2147483648
      %v2191 = vxor.u32 %v2119, 2147483648
      %v2192 = vxor.u32 %v2124, 2147483648
      %v2193 = vxor.u32 %v2127, 2147483648
      %v2194 = vmul.f32 %v2162, 1.442695
      %v2195 = vpow.pop %v2194
      %v2196 = vmul.f32 %v2163, 1.442695
      %v2197 = vpow.pop %v2196
      %v2198 = vmul.f32 %v2164, 1.442695
      %v2199 = vpow.pop %v2198
      %v2200 = vmul.f32 %v2165, 1.442695
      %v2201 = vpow.pop %v2200
      %v2202 = vmul.f32 %v2166, 1.442695
      %v2203 = vpow.pop %v2202
      %v2204 = vmul.f32 %v2167, 1.442695
      %v2205 = vpow.pop %v2204
      %v2206 = vmul.f32 %v2168, 1.442695
      %v2207 = vpow.pop %v2206
      %v2208 = vmul.f32 %v2169, 1.442695
      %v2209 = vpow.pop %v2208
      %v2210 = vmul.f32 %v2170, 1.442695
      %v2211 = vpow.pop %v2210
      %v2212 = vmul.f32 %v2171, 1.442695
      %v2213 = vpow.pop %v2212
      %v2214 = vmul.f32 %v2172, 1.442695
      %v2215 = vpow.pop %v2214
      %v2216 = vmul.f32 %v2173, 1.442695
      %v2217 = vpow.pop %v2216
      %v2218 = vmul.f32 %v2174, 1.442695
      %v2219 = vpow.pop %v2218
      %v2220 = vmul.f32 %v2175, 1.442695
      %v2221 = vpow.pop %v2220
      %v2222 = vmul.f32 %v2176, 1.442695
      %v2223 = vpow.pop %v2222
      %v2224 = vmul.f32 %v2177, 1.442695
      %v2225 = vpow.pop %v2224
      %v2226 = vmul.f32 %v2178, 1.442695
      %v2227 = vpow.pop %v2226
      %v2228 = vmul.f32 %v2179, 1.442695
      %v2229 = vpow.pop %v2228
      %v2230 = vmul.f32 %v2180, 1.442695
      %v2231 = vpow.pop %v2230
      %v2232 = vmul.f32 %v2181, 1.442695
      %v2233 = vpow.pop %v2232
      %v2234 = vmul.f32 %v2182, 1.442695
      %v2235 = vpow.pop %v2234
      %v2236 = vmul.f32 %v2183, 1.442695
      %v2237 = vpow.pop %v2236
      %v2238 = vmul.f32 %v2184, 1.442695
      %v2239 = vpow.pop %v2238
      %v2240 = vmul.f32 %v2185, 1.442695
      %v2241 = vpow.pop %v2240
      %v2242 = vmul.f32 %v2186, 1.442695
      %v2243 = vpow.pop %v2242
      %v2244 = vmul.f32 %v2187, 1.442695
      %v2245 = vpow.pop %v2244
      %v2246 = vmul.f32 %v2188, 1.442695
      %v2247 = vpow.pop %v2246
      %v2248 = vmul.f32 %v2189, 1.442695
      %v2249 = vpow.pop %v2248
      %v2250 = vmul.f32 %v2190, 1.442695
      %v2251 = vpow.pop %v2250
      %v2252 = vmul.f32 %v2191, 1.442695
      %v2253 = vpow.pop %v2252
      %v2254 = vmul.f32 %v2192, 1.442695
      %v2255 = vpow.pop %v2254
      %v2256 = vmul.f32 %v2193, 1.442695
      %v2257 = vpow.pop %v2256
      %v2258 = vadd.f32 %v2195, 1.0
      %v2259 = vadd.f32 %v2197, 1.0
      %v2260 = vadd.f32 %v2199, 1.0
      %v2261 = vadd.f32 %v2201, 1.0
      %v2262 = vadd.f32 %v2203, 1.0
      %v2263 = vadd.f32 %v2205, 1.0
      %v2264 = vadd.f32 %v2207, 1.0
      %v2265 = vadd.f32 %v2209, 1.0
      %v2266 = vadd.f32 %v2211, 1.0
      %v2267 = vadd.f32 %v2213, 1.0
      %v2268 = vadd.f32 %v2215, 1.0
      %v2269 = vadd.f32 %v2217, 1.0
      %v2270 = vadd.f32 %v2219, 1.0
      %v2271 = vadd.f32 %v2221, 1.0
      %v2272 = vadd.f32 %v2223, 1.0
      %v2273 = vadd.f32 %v2225, 1.0
      %v2274 = vadd.f32 %v2227, 1.0
      %v2275 = vadd.f32 %v2229, 1.0
      %v2276 = vadd.f32 %v2231, 1.0
      %v2277 = vadd.f32 %v2233, 1.0
      %v2278 = vadd.f32 %v2235, 1.0
      %v2279 = vadd.f32 %v2237, 1.0
      %v2280 = vadd.f32 %v2239, 1.0
      %v2281 = vadd.f32 %v2241, 1.0
      %v2282 = vadd.f32 %v2243, 1.0
      %v2283 = vadd.f32 %v2245, 1.0
      %v2284 = vadd.f32 %v2247, 1.0
      %v2285 = vadd.f32 %v2249, 1.0
      %v2286 = vadd.f32 %v2251, 1.0
      %v2287 = vadd.f32 %v2253, 1.0
      %v2288 = vadd.f32 %v2255, 1.0
      %v2289 = vadd.f32 %v2257, 1.0
      %v2290 = vrcp.pop %v2258
      %v2291 = vmul.f32 1.0, %v2290
      %v2292 = vrcp.pop %v2259
      %v2293 = vmul.f32 1.0, %v2292
      %v2294 = vrcp.pop %v2260
      %v2295 = vmul.f32 1.0, %v2294
      %v2296 = vrcp.pop %v2261
      %v2297 = vmul.f32 1.0, %v2296
      %v2298 = vrcp.pop %v2262
      %v2299 = vmul.f32 1.0, %v2298
      %v2300 = vrcp.pop %v2263
      %v2301 = vmul.f32 1.0, %v2300
      %v2302 = vrcp.pop %v2264
      %v2303 = vmul.f32 1.0, %v2302
      %v2304 = vrcp.pop %v2265
      %v2305 = vmul.f32 1.0, %v2304
      %v2306 = vrcp.pop %v2266
      %v2307 = vmul.f32 1.0, %v2306
      %v2308 = vrcp.pop %v2267
      %v2309 = vmul.f32 1.0, %v2308
      %v2310 = vrcp.pop %v2268
      %v2311 = vmul.f32 1.0, %v2310
      %v2312 = vrcp.pop %v2269
      %v2313 = vmul.f32 1.0, %v2312
      %v2314 = vrcp.pop %v2270
      %v2315 = vmul.f32 1.0, %v2314
      %v2316 = vrcp.pop %v2271
      %v2317 = vmul.f32 1.0, %v2316
      %v2318 = vrcp.pop %v2272
      %v2319 = vmul.f32 1.0, %v2318
      %v2320 = vrcp.pop %v2273
      %v2321 = vmul.f32 1.0, %v2320
      %v2322 = vrcp.pop %v2274
      %v2323 = vmul.f32 1.0, %v2322
      %v2324 = vrcp.pop %v2275
      %v2325 = vmul.f32 1.0, %v2324
      %v2326 = vrcp.pop %v2276
      %v2327 = vmul.f32 1.0, %v2326
      %v2328 = vrcp.pop %v2277
      %v2329 = vmul.f32 1.0, %v2328
      %v2330 = vrcp.pop %v2278
      %v2331 = vmul.f32 1.0, %v2330
      %v2332 = vrcp.pop %v2279
      %v2333 = vmul.f32 1.0, %v2332
      %v2334 = vrcp.pop %v2280
      %v2335 = vmul.f32 1.0, %v2334
      %v2336 = vrcp.pop %v2281
      %v2337 = vmul.f32 1.0, %v2336
      %v2338 = vrcp.pop %v2282
      %v2339 = vmul.f32 1.0, %v2338
      %v2340 = vrcp.pop %v2283
      %v2341 = vmul.f32 1.0, %v2340
      %v2342 = vrcp.pop %v2284
      %v2343 = vmul.f32 1.0, %v2342
      %v2344 = vrcp.pop %v2285
      %v2345 = vmul.f32 1.0, %v2344
      %v2346 = vrcp.pop %v2286
      %v2347 = vmul.f32 1.0, %v2346
      %v2348 = vrcp.pop %v2287
      %v2349 = vmul.f32 1.0, %v2348
      %v2350 = vrcp.pop %v2288
      %v2351 = vmul.f32 1.0, %v2350
      %v2352 = vrcp.pop %v2289
      %v2353 = vmul.f32 1.0, %v2352
      %v2354 = vtanh.pop %v2004
      %v2355 = vtanh.pop %v2007
      %v2356 = vtanh.pop %v2012
      %v2357 = vtanh.pop %v2015
      %v2358 = vtanh.pop %v2020
      %v2359 = vtanh.pop %v2023
      %v2360 = vtanh.pop %v2028
      %v2361 = vtanh.pop %v2031
      %v2362 = vtanh.pop %v2036
      %v2363 = vtanh.pop %v2039
      %v2364 = vtanh.pop %v2044
      %v2365 = vtanh.pop %v2047
      %v2366 = vtanh.pop %v2052
      %v2367 = vtanh.pop %v2055
      %v2368 = vtanh.pop %v2060
      %v2369 = vtanh.pop %v2063
      %v2370 = vtanh.pop %v2068
      %v2371 = vtanh.pop %v2071
      %v2372 = vtanh.pop %v2076
      %v2373 = vtanh.pop %v2079
      %v2374 = vtanh.pop %v2084
      %v2375 = vtanh.pop %v2087
      %v2376 = vtanh.pop %v2092
      %v2377 = vtanh.pop %v2095
      %v2378 = vtanh.pop %v2100
      %v2379 = vtanh.pop %v2103
      %v2380 = vtanh.pop %v2108
      %v2381 = vtanh.pop %v2111
      %v2382 = vtanh.pop %v2116
      %v2383 = vtanh.pop %v2119
      %v2384 = vtanh.pop %v2124
      %v2385 = vtanh.pop %v2127
      %2418 = vrot.lane.b32.xlu0 %v2130, 3
      %v2419 = vpop.permute.xlu0 %2418
      %2420 = vrot.lane.b32.xlu0 %v2131, 3
      %v2421 = vpop.permute.xlu0 %2420
      %2422 = vrot.lane.b32.xlu0 %v2132, 3
      %v2423 = vpop.permute.xlu0 %2422
      %2424 = vrot.lane.b32.xlu0 %v2133, 3
      %v2425 = vpop.permute.xlu0 %2424
      %2426 = vrot.lane.b32.xlu0 %v2134, 3
      %v2427 = vpop.permute.xlu0 %2426
      %2428 = vrot.lane.b32.xlu0 %v2135, 3
      %v2429 = vpop.permute.xlu0 %2428
      %2430 = vrot.lane.b32.xlu0 %v2136, 3
      %v2431 = vpop.permute.xlu0 %2430
      %2432 = vrot.lane.b32.xlu0 %v2137, 3
      %v2433 = vpop.permute.xlu0 %2432
      %2434 = vrot.lane.b32.xlu0 %v2138, 3
      %v2435 = vpop.permute.xlu0 %2434
      %2436 = vrot.lane.b32.xlu0 %v2139, 3
      %v2437 = vpop.permute.xlu0 %2436
      %2438 = vrot.lane.b32.xlu0 %v2140, 3
      %v2439 = vpop.permute.xlu0 %2438
      %2440 = vrot.lane.b32.xlu0 %v2141, 3
      %v2441 = vpop.permute.xlu0 %2440
      %2442 = vrot.lane.b32.xlu0 %v2142, 3
      %v2443 = vpop.permute.xlu0 %2442
      %2444 = vrot.lane.b32.xlu0 %v2143, 3
      %v2445 = vpop.permute.xlu0 %2444
      %2446 = vrot.lane.b32.xlu0 %v2144, 3
      %v2447 = vpop.permute.xlu0 %2446
      %2448 = vrot.lane.b32.xlu0 %v2145, 3
      %v2449 = vpop.permute.xlu0 %2448
      %2450 = vrot.lane.b32.xlu0 %v2146, 3
      %v2451 = vpop.permute.xlu0 %2450
      %2452 = vrot.lane.b32.xlu0 %v2147, 3
      %v2453 = vpop.permute.xlu0 %2452
      %2454 = vrot.lane.b32.xlu0 %v2148, 3
      %v2455 = vpop.permute.xlu0 %2454
      %2456 = vrot.lane.b32.xlu0 %v2149, 3
      %v2457 = vpop.permute.xlu0 %2456
      %2458 = vrot.lane.b32.xlu0 %v2150, 3
      %v2459 = vpop.permute.xlu0 %2458
      %2460 = vrot.lane.b32.xlu0 %v2151, 3
      %v2461 = vpop.permute.xlu0 %2460
      %2462 = vrot.lane.b32.xlu0 %v2152, 3
      %v2463 = vpop.permute.xlu0 %2462
      %2464 = vrot.lane.b32.xlu0 %v2153, 3
      %v2465 = vpop.permute.xlu0 %2464
      %2466 = vrot.lane.b32.xlu0 %v2154, 3
      %v2467 = vpop.permute.xlu0 %2466
      %2468 = vrot.lane.b32.xlu0 %v2155, 3
      %v2469 = vpop.permute.xlu0 %2468
      %2470 = vrot.lane.b32.xlu0 %v2156, 3
      %v2471 = vpop.permute.xlu0 %2470
      %2472 = vrot.lane.b32.xlu0 %v2157, 3
      %v2473 = vpop.permute.xlu0 %2472
      %2474 = vrot.lane.b32.xlu0 %v2158, 3
      %v2475 = vpop.permute.xlu0 %2474
      %2476 = vrot.lane.b32.xlu0 %v2159, 3
      %v2477 = vpop.permute.xlu0 %2476
      %2478 = vrot.lane.b32.xlu0 %v2160, 3
      %v2479 = vpop.permute.xlu0 %2478
      %2480 = vrot.lane.b32.xlu0 %v2161, 3
      %v2481 = vpop.permute.xlu0 %2480
      %v2514 = vmul.f32 %v2291, %v2419
      %v2515 = vmul.f32 %v2293, %v2421
      %v2516 = vmul.f32 %v2295, %v2423
      %v2517 = vmul.f32 %v2297, %v2425
      %v2518 = vmul.f32 %v2299, %v2427
      %v2519 = vmul.f32 %v2301, %v2429
      %v2520 = vmul.f32 %v2303, %v2431
      %v2521 = vmul.f32 %v2305, %v2433
      %v2522 = vmul.f32 %v2307, %v2435
      %v2523 = vmul.f32 %v2309, %v2437
      %v2524 = vmul.f32 %v2311, %v2439
      %v2525 = vmul.f32 %v2313, %v2441
      %v2526 = vmul.f32 %v2315, %v2443
      %v2527 = vmul.f32 %v2317, %v2445
      %v2528 = vmul.f32 %v2319, %v2447
      %v2529 = vmul.f32 %v2321, %v2449
      %v2530 = vmul.f32 %v2323, %v2451
      %v2531 = vmul.f32 %v2325, %v2453
      %v2532 = vmul.f32 %v2327, %v2455
      %v2533 = vmul.f32 %v2329, %v2457
      %v2534 = vmul.f32 %v2331, %v2459
      %v2535 = vmul.f32 %v2333, %v2461
      %v2536 = vmul.f32 %v2335, %v2463
      %v2537 = vmul.f32 %v2337, %v2465
      %v2538 = vmul.f32 %v2339, %v2467
      %v2539 = vmul.f32 %v2341, %v2469
      %v2540 = vmul.f32 %v2343, %v2471
      %v2541 = vmul.f32 %v2345, %v2473
      %v2542 = vmul.f32 %v2347, %v2475
      %v2543 = vmul.f32 %v2349, %v2477
      %v2544 = vmul.f32 %v2351, %v2479
      %v2545 = vmul.f32 %v2353, %v2481
      %2578 = vrot.lane.b32.xlu0 %v2354, 119
      %v2579 = vpop.permute.xlu0 %2578
      %2580 = vrot.lane.b32.xlu0 %v2355, 119
      %v2581 = vpop.permute.xlu0 %2580
      %2582 = vrot.lane.b32.xlu0 %v2356, 119
      %v2583 = vpop.permute.xlu0 %2582
      %2584 = vrot.lane.b32.xlu0 %v2357, 119
      %v2585 = vpop.permute.xlu0 %2584
      %2586 = vrot.lane.b32.xlu0 %v2358, 119
      %v2587 = vpop.permute.xlu0 %2586
      %2588 = vrot.lane.b32.xlu0 %v2359, 119
      %v2589 = vpop.permute.xlu0 %2588
      %2590 = vrot.lane.b32.xlu0 %v2360, 119
      %v2591 = vpop.permute.xlu0 %2590
      %2592 = vrot.lane.b32.xlu0 %v2361, 119
      %v2593 = vpop.permute.xlu0 %2592
      %2594 = vrot.lane.b32.xlu0 %v2362, 119
      %v2595 = vpop.permute.xlu0 %2594
      %2596 = vrot.lane.b32.xlu0 %v2363, 119
      %v2597 = vpop.permute.xlu0 %2596
      %2598 = vrot.lane.b32.xlu0 %v2364, 119
      %v2599 = vpop.permute.xlu0 %2598
      %2600 = vrot.lane.b32.xlu0 %v2365, 119
      %v2601 = vpop.permute.xlu0 %2600
      %2602 = vrot.lane.b32.xlu0 %v2366, 119
      %v2603 = vpop.permute.xlu0 %2602
      %2604 = vrot.lane.b32.xlu0 %v2367, 119
      %v2605 = vpop.permute.xlu0 %2604
      %2606 = vrot.lane.b32.xlu0 %v2368, 119
      %v2607 = vpop.permute.xlu0 %2606
      %2608 = vrot.lane.b32.xlu0 %v2369, 119
      %v2609 = vpop.permute.xlu0 %2608
      %2610 = vrot.lane.b32.xlu0 %v2370, 119
      %v2611 = vpop.permute.xlu0 %2610
      %2612 = vrot.lane.b32.xlu0 %v2371, 119
      %v2613 = vpop.permute.xlu0 %2612
      %2614 = vrot.lane.b32.xlu0 %v2372, 119
      %v2615 = vpop.permute.xlu0 %2614
      %2616 = vrot.lane.b32.xlu0 %v2373, 119
      %v2617 = vpop.permute.xlu0 %2616
      %2618 = vrot.lane.b32.xlu0 %v2374, 119
      %v2619 = vpop.permute.xlu0 %2618
      %2620 = vrot.lane.b32.xlu0 %v2375, 119
      %v2621 = vpop.permute.xlu0 %2620
      %2622 = vrot.lane.b32.xlu0 %v2376, 119
      %v2623 = vpop.permute.xlu0 %2622
      %2624 = vrot.lane.b32.xlu0 %v2377, 119
      %v2625 = vpop.permute.xlu0 %2624
      %2626 = vrot.lane.b32.xlu0 %v2378, 119
      %v2627 = vpop.permute.xlu0 %2626
      %2628 = vrot.lane.b32.xlu0 %v2379, 119
      %v2629 = vpop.permute.xlu0 %2628
      %2630 = vrot.lane.b32.xlu0 %v2380, 119
      %v2631 = vpop.permute.xlu0 %2630
      %2632 = vrot.lane.b32.xlu0 %v2381, 119
      %v2633 = vpop.permute.xlu0 %2632
      %2634 = vrot.lane.b32.xlu0 %v2382, 119
      %v2635 = vpop.permute.xlu0 %2634
      %2636 = vrot.lane.b32.xlu0 %v2383, 119
      %v2637 = vpop.permute.xlu0 %2636
      %2638 = vrot.lane.b32.xlu0 %v2384, 119
      %v2639 = vpop.permute.xlu0 %2638
      %2640 = vrot.lane.b32.xlu0 %v2385, 119
      %v2641 = vpop.permute.xlu0 %2640
      %v2674 = vmul.f32 %v2291, %v2579
      %v2675 = vmul.f32 %v2293, %v2581
      %v2676 = vmul.f32 %v2295, %v2583
      %v2677 = vmul.f32 %v2297, %v2585
      %v2678 = vmul.f32 %v2299, %v2587
      %v2679 = vmul.f32 %v2301, %v2589
      %v2680 = vmul.f32 %v2303, %v2591
      %v2681 = vmul.f32 %v2305, %v2593
      %v2682 = vmul.f32 %v2307, %v2595
      %v2683 = vmul.f32 %v2309, %v2597
      %v2684 = vmul.f32 %v2311, %v2599
      %v2685 = vmul.f32 %v2313, %v2601
      %v2686 = vmul.f32 %v2315, %v2603
      %v2687 = vmul.f32 %v2317, %v2605
      %v2688 = vmul.f32 %v2319, %v2607
      %v2689 = vmul.f32 %v2321, %v2609
      %v2690 = vmul.f32 %v2323, %v2611
      %v2691 = vmul.f32 %v2325, %v2613
      %v2692 = vmul.f32 %v2327, %v2615
      %v2693 = vmul.f32 %v2329, %v2617
      %v2694 = vmul.f32 %v2331, %v2619
      %v2695 = vmul.f32 %v2333, %v2621
      %v2696 = vmul.f32 %v2335, %v2623
      %v2697 = vmul.f32 %v2337, %v2625
      %v2698 = vmul.f32 %v2339, %v2627
      %v2699 = vmul.f32 %v2341, %v2629
      %v2700 = vmul.f32 %v2343, %v2631
      %v2701 = vmul.f32 %v2345, %v2633
      %v2702 = vmul.f32 %v2347, %v2635
      %v2703 = vmul.f32 %v2349, %v2637
      %v2704 = vmul.f32 %v2351, %v2639
      %v2705 = vmul.f32 %v2353, %v2641
      %2738 = vrot.lane.b32.xlu0 %v2674, 3
      %v2739 = vpop.permute.xlu0 %2738
      %2740 = vrot.lane.b32.xlu0 %v2675, 3
      %v2741 = vpop.permute.xlu0 %2740
      %2742 = vrot.lane.b32.xlu0 %v2676, 3
      %v2743 = vpop.permute.xlu0 %2742
      %2744 = vrot.lane.b32.xlu0 %v2677, 3
      %v2745 = vpop.permute.xlu0 %2744
      %2746 = vrot.lane.b32.xlu0 %v2678, 3
      %v2747 = vpop.permute.xlu0 %2746
      %2748 = vrot.lane.b32.xlu0 %v2679, 3
      %v2749 = vpop.permute.xlu0 %2748
      %2750 = vrot.lane.b32.xlu0 %v2680, 3
      %v2751 = vpop.permute.xlu0 %2750
      %2752 = vrot.lane.b32.xlu0 %v2681, 3
      %v2753 = vpop.permute.xlu0 %2752
      %2754 = vrot.lane.b32.xlu0 %v2682, 3
      %v2755 = vpop.permute.xlu0 %2754
      %2756 = vrot.lane.b32.xlu0 %v2683, 3
      %v2757 = vpop.permute.xlu0 %2756
      %2758 = vrot.lane.b32.xlu0 %v2684, 3
      %v2759 = vpop.permute.xlu0 %2758
      %2760 = vrot.lane.b32.xlu0 %v2685, 3
      %v2761 = vpop.permute.xlu0 %2760
      %2762 = vrot.lane.b32.xlu0 %v2686, 3
      %v2763 = vpop.permute.xlu0 %2762
      %2764 = vrot.lane.b32.xlu0 %v2687, 3
      %v2765 = vpop.permute.xlu0 %2764
      %2766 = vrot.lane.b32.xlu0 %v2688, 3
      %v2767 = vpop.permute.xlu0 %2766
      %2768 = vrot.lane.b32.xlu0 %v2689, 3
      %v2769 = vpop.permute.xlu0 %2768
      %2770 = vrot.lane.b32.xlu0 %v2690, 3
      %v2771 = vpop.permute.xlu0 %2770
      %2772 = vrot.lane.b32.xlu0 %v2691, 3
      %v2773 = vpop.permute.xlu0 %2772
      %2774 = vrot.lane.b32.xlu0 %v2692, 3
      %v2775 = vpop.permute.xlu0 %2774
      %2776 = vrot.lane.b32.xlu0 %v2693, 3
      %v2777 = vpop.permute.xlu0 %2776
      %2778 = vrot.lane.b32.xlu0 %v2694, 3
      %v2779 = vpop.permute.xlu0 %2778
      %2780 = vrot.lane.b32.xlu0 %v2695, 3
      %v2781 = vpop.permute.xlu0 %2780
      %2782 = vrot.lane.b32.xlu0 %v2696, 3
      %v2783 = vpop.permute.xlu0 %2782
      %2784 = vrot.lane.b32.xlu0 %v2697, 3
      %v2785 = vpop.permute.xlu0 %2784
      %2786 = vrot.lane.b32.xlu0 %v2698, 3
      %v2787 = vpop.permute.xlu0 %2786
      %2788 = vrot.lane.b32.xlu0 %v2699, 3
      %v2789 = vpop.permute.xlu0 %2788
      %2790 = vrot.lane.b32.xlu0 %v2700, 3
      %v2791 = vpop.permute.xlu0 %2790
      %2792 = vrot.lane.b32.xlu0 %v2701, 3
      %v2793 = vpop.permute.xlu0 %2792
      %2794 = vrot.lane.b32.xlu0 %v2702, 3
      %v2795 = vpop.permute.xlu0 %2794
      %2796 = vrot.lane.b32.xlu0 %v2703, 3
      %v2797 = vpop.permute.xlu0 %2796
      %2798 = vrot.lane.b32.xlu0 %v2704, 3
      %v2799 = vpop.permute.xlu0 %2798
      %2800 = vrot.lane.b32.xlu0 %v2705, 3
      %v2801 = vpop.permute.xlu0 %2800
      %v2834 = vadd.f32 %v2514, %v2739
      %v2835 = vadd.f32 %v2515, %v2741
      %v2836 = vadd.f32 %v2516, %v2743
      %v2837 = vadd.f32 %v2517, %v2745
      %v2838 = vadd.f32 %v2518, %v2747
      %v2839 = vadd.f32 %v2519, %v2749
      %v2840 = vadd.f32 %v2520, %v2751
      %v2841 = vadd.f32 %v2521, %v2753
      %v2842 = vadd.f32 %v2522, %v2755
      %v2843 = vadd.f32 %v2523, %v2757
      %v2844 = vadd.f32 %v2524, %v2759
      %v2845 = vadd.f32 %v2525, %v2761
      %v2846 = vadd.f32 %v2526, %v2763
      %v2847 = vadd.f32 %v2527, %v2765
      %v2848 = vadd.f32 %v2528, %v2767
      %v2849 = vadd.f32 %v2529, %v2769
      %v2850 = vadd.f32 %v2530, %v2771
      %v2851 = vadd.f32 %v2531, %v2773
      %v2852 = vadd.f32 %v2532, %v2775
      %v2853 = vadd.f32 %v2533, %v2777
      %v2854 = vadd.f32 %v2534, %v2779
      %v2855 = vadd.f32 %v2535, %v2781
      %v2856 = vadd.f32 %v2536, %v2783
      %v2857 = vadd.f32 %v2537, %v2785
      %v2858 = vadd.f32 %v2538, %v2787
      %v2859 = vadd.f32 %v2539, %v2789
      %v2860 = vadd.f32 %v2540, %v2791
      %v2861 = vadd.f32 %v2541, %v2793
      %v2862 = vadd.f32 %v2542, %v2795
      %v2863 = vadd.f32 %v2543, %v2797
      %v2864 = vadd.f32 %v2544, %v2799
      %v2865 = vadd.f32 %v2545, %v2801
      %v2866 = vtanh.pop %v2834
      %v2867 = vtanh.pop %v2835
      %v2868 = vtanh.pop %v2836
      %v2869 = vtanh.pop %v2837
      %v2870 = vtanh.pop %v2838
      %v2871 = vtanh.pop %v2839
      %v2872 = vtanh.pop %v2840
      %v2873 = vtanh.pop %v2841
      %v2874 = vtanh.pop %v2842
      %v2875 = vtanh.pop %v2843
      %v2876 = vtanh.pop %v2844
      %v2877 = vtanh.pop %v2845
      %v2878 = vtanh.pop %v2846
      %v2879 = vtanh.pop %v2847
      %v2880 = vtanh.pop %v2848
      %v2881 = vtanh.pop %v2849
      %v2882 = vtanh.pop %v2850
      %v2883 = vtanh.pop %v2851
      %v2884 = vtanh.pop %v2852
      %v2885 = vtanh.pop %v2853
      %v2886 = vtanh.pop %v2854
      %v2887 = vtanh.pop %v2855
      %v2888 = vtanh.pop %v2856
      %v2889 = vtanh.pop %v2857
      %v2890 = vtanh.pop %v2858
      %v2891 = vtanh.pop %v2859
      %v2892 = vtanh.pop %v2860
      %v2893 = vtanh.pop %v2861
      %v2894 = vtanh.pop %v2862
      %v2895 = vtanh.pop %v2863
      %v2896 = vtanh.pop %v2864
      %v2897 = vtanh.pop %v2865
      %2930 = vrot.lane.b32.xlu0 %v2866, 3
      %v2931 = vpop.permute.xlu0 %2930
      %2932 = vrot.lane.b32.xlu0 %v2867, 3
      %v2933 = vpop.permute.xlu0 %2932
      %2934 = vrot.lane.b32.xlu0 %v2868, 3
      %v2935 = vpop.permute.xlu0 %2934
      %2936 = vrot.lane.b32.xlu0 %v2869, 3
      %v2937 = vpop.permute.xlu0 %2936
      %2938 = vrot.lane.b32.xlu0 %v2870, 3
      %v2939 = vpop.permute.xlu0 %2938
      %2940 = vrot.lane.b32.xlu0 %v2871, 3
      %v2941 = vpop.permute.xlu0 %2940
      %2942 = vrot.lane.b32.xlu0 %v2872, 3
      %v2943 = vpop.permute.xlu0 %2942
      %2944 = vrot.lane.b32.xlu0 %v2873, 3
      %v2945 = vpop.permute.xlu0 %2944
      %2946 = vrot.lane.b32.xlu0 %v2874, 3
      %v2947 = vpop.permute.xlu0 %2946
      %2948 = vrot.lane.b32.xlu0 %v2875, 3
      %v2949 = vpop.permute.xlu0 %2948
      %2950 = vrot.lane.b32.xlu0 %v2876, 3
      %v2951 = vpop.permute.xlu0 %2950
      %2952 = vrot.lane.b32.xlu0 %v2877, 3
      %v2953 = vpop.permute.xlu0 %2952
      %2954 = vrot.lane.b32.xlu0 %v2878, 3
      %v2955 = vpop.permute.xlu0 %2954
      %2956 = vrot.lane.b32.xlu0 %v2879, 3
      %v2957 = vpop.permute.xlu0 %2956
      %2958 = vrot.lane.b32.xlu0 %v2880, 3
      %v2959 = vpop.permute.xlu0 %2958
      %2960 = vrot.lane.b32.xlu0 %v2881, 3
      %v2961 = vpop.permute.xlu0 %2960
      %2962 = vrot.lane.b32.xlu0 %v2882, 3
      %v2963 = vpop.permute.xlu0 %2962
      %2964 = vrot.lane.b32.xlu0 %v2883, 3
      %v2965 = vpop.permute.xlu0 %2964
      %2966 = vrot.lane.b32.xlu0 %v2884, 3
      %v2967 = vpop.permute.xlu0 %2966
      %2968 = vrot.lane.b32.xlu0 %v2885, 3
      %v2969 = vpop.permute.xlu0 %2968
      %2970 = vrot.lane.b32.xlu0 %v2886, 3
      %v2971 = vpop.permute.xlu0 %2970
      %2972 = vrot.lane.b32.xlu0 %v2887, 3
      %v2973 = vpop.permute.xlu0 %2972
      %2974 = vrot.lane.b32.xlu0 %v2888, 3
      %v2975 = vpop.permute.xlu0 %2974
      %2976 = vrot.lane.b32.xlu0 %v2889, 3
      %v2977 = vpop.permute.xlu0 %2976
      %2978 = vrot.lane.b32.xlu0 %v2890, 3
      %v2979 = vpop.permute.xlu0 %2978
      %2980 = vrot.lane.b32.xlu0 %v2891, 3
      %v2981 = vpop.permute.xlu0 %2980
      %2982 = vrot.lane.b32.xlu0 %v2892, 3
      %v2983 = vpop.permute.xlu0 %2982
      %2984 = vrot.lane.b32.xlu0 %v2893, 3
      %v2985 = vpop.permute.xlu0 %2984
      %2986 = vrot.lane.b32.xlu0 %v2894, 3
      %v2987 = vpop.permute.xlu0 %2986
      %2988 = vrot.lane.b32.xlu0 %v2895, 3
      %v2989 = vpop.permute.xlu0 %2988
      %2990 = vrot.lane.b32.xlu0 %v2896, 3
      %v2991 = vpop.permute.xlu0 %2990
      %2992 = vrot.lane.b32.xlu0 %v2897, 3
      %v2993 = vpop.permute.xlu0 %2992
      %v3026 = vmul.f32 %v2291, %v2931
      %v3027 = vmul.f32 %v2293, %v2933
      %v3028 = vmul.f32 %v2295, %v2935
      %v3029 = vmul.f32 %v2297, %v2937
      %v3030 = vmul.f32 %v2299, %v2939
      %v3031 = vmul.f32 %v2301, %v2941
      %v3032 = vmul.f32 %v2303, %v2943
      %v3033 = vmul.f32 %v2305, %v2945
      %v3034 = vmul.f32 %v2307, %v2947
      %v3035 = vmul.f32 %v2309, %v2949
      %v3036 = vmul.f32 %v2311, %v2951
      %v3037 = vmul.f32 %v2313, %v2953
      %v3038 = vmul.f32 %v2315, %v2955
      %v3039 = vmul.f32 %v2317, %v2957
      %v3040 = vmul.f32 %v2319, %v2959
      %v3041 = vmul.f32 %v2321, %v2961
      %v3042 = vmul.f32 %v2323, %v2963
      %v3043 = vmul.f32 %v2325, %v2965
      %v3044 = vmul.f32 %v2327, %v2967
      %v3045 = vmul.f32 %v2329, %v2969
      %v3046 = vmul.f32 %v2331, %v2971
      %v3047 = vmul.f32 %v2333, %v2973
      %v3048 = vmul.f32 %v2335, %v2975
      %v3049 = vmul.f32 %v2337, %v2977
      %v3050 = vmul.f32 %v2339, %v2979
      %v3051 = vmul.f32 %v2341, %v2981
      %v3052 = vmul.f32 %v2343, %v2983
      %v3053 = vmul.f32 %v2345, %v2985
      %v3054 = vmul.f32 %v2347, %v2987
      %v3055 = vmul.f32 %v2349, %v2989
      %v3056 = vmul.f32 %v2351, %v2991
      %v3057 = vmul.f32 %v2353, %v2993
      %v3058 = vld [vmem:[%s8] sm:$0xf]
      %v3059 = vld [vmem:[%s8 + $0x4] sm:$0xf]
      %v3060 = vld [vmem:[%s8 + $0x8] sm:$0xf]
      %v3061 = vld [vmem:[%s8 + $0xc] sm:$0x3]
      %v3062 = vld [vmem:[%s9] sm:$0x1]
      %v3063 = vpack.c.bf16 %v3027, %v3026
      %v3064 = vpack.c.bf16 %v3029, %v3028
      %v3065 = vpack.c.bf16 %v3031, %v3030
      %v3066 = vpack.c.bf16 %v3033, %v3032
      %v3067 = vpack.c.bf16 %v3035, %v3034
      %v3068 = vpack.c.bf16 %v3037, %v3036
      %v3069 = vpack.c.bf16 %v3039, %v3038
      %v3070 = vpack.c.bf16 %v3041, %v3040
      %v3071 = vpack.c.bf16 %v3043, %v3042
      %v3072 = vpack.c.bf16 %v3045, %v3044
      %v3073 = vpack.c.bf16 %v3047, %v3046
      %v3074 = vpack.c.bf16 %v3049, %v3048
      %v3075 = vpack.c.bf16 %v3051, %v3050
      %v3076 = vpack.c.bf16 %v3053, %v3052
      %v3077 = vpack.c.bf16 %v3055, %v3054
      %v3078 = vpack.c.bf16 %v3057, %v3056
      %v3080 = vshrl.u32 %v3063, 16
      %v3082 = vrot.slane %v3080, 7
      %v3083 = vshll.u32 %v3063, 16
      %v3085 = vor.u32 %v3082, %v3083
      %v3087 = vshrl.u32 %v3064, 16
      %v3089 = vrot.slane %v3087, 7
      %v3090 = vshll.u32 %v3064, 16
      %v3092 = vor.u32 %v3089, %v3090
      %v3094 = vshrl.u32 %v3065, 16
      %v3096 = vrot.slane %v3094, 7
      %v3097 = vshll.u32 %v3065, 16
      %v3099 = vor.u32 %v3096, %v3097
      %v3101 = vshrl.u32 %v3066, 16
      %v3103 = vrot.slane %v3101, 7
      %v3104 = vshll.u32 %v3066, 16
      %v3106 = vor.u32 %v3103, %v3104
      %v3108 = vshrl.u32 %v3067, 16
      %v3110 = vrot.slane %v3108, 7
      %v3111 = vshll.u32 %v3067, 16
      %v3113 = vor.u32 %v3110, %v3111
      %v3115 = vshrl.u32 %v3068, 16
      %v3117 = vrot.slane %v3115, 7
      %v3118 = vshll.u32 %v3068, 16
      %v3120 = vor.u32 %v3117, %v3118
      %v3122 = vshrl.u32 %v3069, 16
      %v3124 = vrot.slane %v3122, 7
      %v3125 = vshll.u32 %v3069, 16
      %v3127 = vor.u32 %v3124, %v3125
      %v3129 = vshrl.u32 %v3070, 16
      %v3131 = vrot.slane %v3129, 7
      %v3132 = vshll.u32 %v3070, 16
      %v3134 = vor.u32 %v3131, %v3132
      %v3136 = vshrl.u32 %v3071, 16
      %v3138 = vrot.slane %v3136, 7
      %v3139 = vshll.u32 %v3071, 16
      %v3141 = vor.u32 %v3138, %v3139
      %v3143 = vshrl.u32 %v3072, 16
      %v3145 = vrot.slane %v3143, 7
      %v3146 = vshll.u32 %v3072, 16
      %v3148 = vor.u32 %v3145, %v3146
      %v3150 = vshrl.u32 %v3073, 16
      %v3152 = vrot.slane %v3150, 7
      %v3153 = vshll.u32 %v3073, 16
      %v3155 = vor.u32 %v3152, %v3153
      %v3157 = vshrl.u32 %v3074, 16
      %v3159 = vrot.slane %v3157, 7
      %v3160 = vshll.u32 %v3074, 16
      %v3162 = vor.u32 %v3159, %v3160
      %v3164 = vshrl.u32 %v3075, 16
      %v3166 = vrot.slane %v3164, 7
      %v3167 = vshll.u32 %v3075, 16
      %v3169 = vor.u32 %v3166, %v3167
      %v3171 = vshrl.u32 %v3076, 16
      %v3173 = vrot.slane %v3171, 7
      %v3174 = vshll.u32 %v3076, 16
      %v3176 = vor.u32 %v3173, %v3174
      %v3178 = vshrl.u32 %v3077, 16
      %v3180 = vrot.slane %v3178, 7
      %v3181 = vshll.u32 %v3077, 16
      %v3183 = vor.u32 %v3180, %v3181
      %v3185 = vshrl.u32 %v3078, 16
      %v3187 = vrot.slane %v3185, 7
      %v3188 = vshll.u32 %v3078, 16
      %v3190 = vor.u32 %v3187, %v3188
      %3191 = vrot.lane.b32.xlu0 %v3085, 122
      %v3192 = vpop.permute.xlu0 %3191
      %3193 = vrot.lane.b32.xlu0 %v3082, 122
      %v3194 = vpop.permute.xlu0 %3193
      %3195 = vrot.lane.b32.xlu0 %v3092, 122
      %v3196 = vpop.permute.xlu0 %3195
      %3197 = vrot.lane.b32.xlu0 %v3089, 122
      %v3198 = vpop.permute.xlu0 %3197
      %3199 = vrot.lane.b32.xlu0 %v3099, 122
      %v3200 = vpop.permute.xlu0 %3199
      %3201 = vrot.lane.b32.xlu0 %v3096, 122
      %v3202 = vpop.permute.xlu0 %3201
      %3203 = vrot.lane.b32.xlu0 %v3106, 122
      %v3204 = vpop.permute.xlu0 %3203
      %3205 = vrot.lane.b32.xlu0 %v3103, 122
      %v3206 = vpop.permute.xlu0 %3205
      %3207 = vrot.lane.b32.xlu0 %v3113, 122
      %v3208 = vpop.permute.xlu0 %3207
      %3209 = vrot.lane.b32.xlu0 %v3110, 122
      %v3210 = vpop.permute.xlu0 %3209
      %3211 = vrot.lane.b32.xlu0 %v3120, 122
      %v3212 = vpop.permute.xlu0 %3211
      %3213 = vrot.lane.b32.xlu0 %v3117, 122
      %v3214 = vpop.permute.xlu0 %3213
      %3215 = vrot.lane.b32.xlu0 %v3127, 122
      %v3216 = vpop.permute.xlu0 %3215
      %3217 = vrot.lane.b32.xlu0 %v3124, 122
      %v3218 = vpop.permute.xlu0 %3217
      %3219 = vrot.lane.b32.xlu0 %v3134, 122
      %v3220 = vpop.permute.xlu0 %3219
      %3221 = vrot.lane.b32.xlu0 %v3131, 122
      %v3222 = vpop.permute.xlu0 %3221
      %3223 = vrot.lane.b32.xlu0 %v3141, 122
      %v3224 = vpop.permute.xlu0 %3223
      %3225 = vrot.lane.b32.xlu0 %v3138, 122
      %v3226 = vpop.permute.xlu0 %3225
      %3227 = vrot.lane.b32.xlu0 %v3148, 122
      %v3228 = vpop.permute.xlu0 %3227
      %3229 = vrot.lane.b32.xlu0 %v3145, 122
      %v3230 = vpop.permute.xlu0 %3229
      %3231 = vrot.lane.b32.xlu0 %v3155, 122
      %v3232 = vpop.permute.xlu0 %3231
      %3233 = vrot.lane.b32.xlu0 %v3152, 122
      %v3234 = vpop.permute.xlu0 %3233
      %3235 = vrot.lane.b32.xlu0 %v3162, 122
      %v3236 = vpop.permute.xlu0 %3235
      %3237 = vrot.lane.b32.xlu0 %v3159, 122
      %v3238 = vpop.permute.xlu0 %3237
      %3239 = vrot.lane.b32.xlu0 %v3169, 122
      %v3240 = vpop.permute.xlu0 %3239
      %3241 = vrot.lane.b32.xlu0 %v3166, 122
      %v3242 = vpop.permute.xlu0 %3241
      %3243 = vrot.lane.b32.xlu0 %v3176, 122
      %v3244 = vpop.permute.xlu0 %3243
      %3245 = vrot.lane.b32.xlu0 %v3173, 122
      %v3246 = vpop.permute.xlu0 %3245
      %3247 = vrot.lane.b32.xlu0 %v3183, 122
      %v3248 = vpop.permute.xlu0 %3247
      %3249 = vrot.lane.b32.xlu0 %v3180, 122
      %v3250 = vpop.permute.xlu0 %3249
      %3251 = vrot.lane.b32.xlu0 %v3190, 122
      %v3252 = vpop.permute.xlu0 %3251
      %3253 = vrot.lane.b32.xlu0 %v3187, 122
      %v3254 = vpop.permute.xlu0 %3253
      %v3287 = vsel %vm1219, 0, %v3192
      %v3288 = vsel %vm1219, 0, %v3196
      %v3289 = vsel %vm1219, 0, %v3200
      %v3290 = vsel %vm1219, 0, %v3204
      %v3291 = vsel %vm1219, 0, %v3208
      %v3292 = vsel %vm1219, 0, %v3212
      %v3293 = vsel %vm1219, 0, %v3216
      %v3294 = vsel %vm1219, 0, %v3220
      %v3295 = vsel %vm1219, 0, %v3224
      %v3296 = vsel %vm1219, 0, %v3228
      %v3297 = vsel %vm1219, 0, %v3232
      %v3298 = vsel %vm1219, 0, %v3236
      %v3299 = vsel %vm1219, 0, %v3240
      %v3300 = vsel %vm1219, 0, %v3244
      %v3301 = vsel %vm1219, 0, %v3248
      %v3302 = vsel %vm1219, 0, %v3252
      %v3303 = vsel %vm1219, %v3194, 0
      %v3304 = vsel %vm1219, %v3198, 0
      %v3305 = vsel %vm1219, %v3202, 0
      %v3306 = vsel %vm1219, %v3206, 0
      %v3307 = vsel %vm1219, %v3210, 0
      %v3308 = vsel %vm1219, %v3214, 0
      %v3309 = vsel %vm1219, %v3218, 0
      %v3310 = vsel %vm1219, %v3222, 0
      %v3311 = vsel %vm1219, %v3226, 0
      %v3312 = vsel %vm1219, %v3230, 0
      %v3313 = vsel %vm1219, %v3234, 0
      %v3314 = vsel %vm1219, %v3238, 0
      %v3315 = vsel %vm1219, %v3242, 0
      %v3316 = vsel %vm1219, %v3246, 0
      %v3317 = vsel %vm1219, %v3250, 0
      %v3318 = vsel %vm1219, %v3254, 0
      %v3320 = vshrl.u32 %v3287, 16
      %v3322 = vshll.u32 %v3287, 16
      %v3324 = vrot.slane %v3322, 1
      %v3325 = vor.u32 %v3320, %v3324
      %v3327 = vshll.u32 %v3303, 16
      %v3329 = vrot.slane %v3327, 1
      %v3330 = vsel %vm1252, %v3325, %v3329
      %v3332 = vshrl.u32 %v3288, 16
      %v3334 = vshll.u32 %v3288, 16
      %v3336 = vrot.slane %v3334, 1
      %v3337 = vor.u32 %v3332, %v3336
      %v3339 = vshll.u32 %v3304, 16
      %v3341 = vrot.slane %v3339, 1
      %v3342 = vsel %vm1252, %v3337, %v3341
      %v3344 = vshrl.u32 %v3289, 16
      %v3346 = vshll.u32 %v3289, 16
      %v3348 = vrot.slane %v3346, 1
      %v3349 = vor.u32 %v3344, %v3348
      %v3351 = vshll.u32 %v3305, 16
      %v3353 = vrot.slane %v3351, 1
      %v3354 = vsel %vm1252, %v3349, %v3353
      %v3356 = vshrl.u32 %v3290, 16
      %v3358 = vshll.u32 %v3290, 16
      %v3360 = vrot.slane %v3358, 1
      %v3361 = vor.u32 %v3356, %v3360
      %v3363 = vshll.u32 %v3306, 16
      %v3365 = vrot.slane %v3363, 1
      %v3366 = vsel %vm1252, %v3361, %v3365
      %v3368 = vshrl.u32 %v3291, 16
      %v3370 = vshll.u32 %v3291, 16
      %v3372 = vrot.slane %v3370, 1
      %v3373 = vor.u32 %v3368, %v3372
      %v3375 = vshll.u32 %v3307, 16
      %v3377 = vrot.slane %v3375, 1
      %v3378 = vsel %vm1252, %v3373, %v3377
      %v3380 = vshrl.u32 %v3292, 16
      %v3382 = vshll.u32 %v3292, 16
      %v3384 = vrot.slane %v3382, 1
      %v3385 = vor.u32 %v3380, %v3384
      %v3387 = vshll.u32 %v3308, 16
      %v3389 = vrot.slane %v3387, 1
      %v3390 = vsel %vm1252, %v3385, %v3389
      %v3392 = vshrl.u32 %v3293, 16
      %v3394 = vshll.u32 %v3293, 16
      %v3396 = vrot.slane %v3394, 1
      %v3397 = vor.u32 %v3392, %v3396
      %v3399 = vshll.u32 %v3309, 16
      %v3401 = vrot.slane %v3399, 1
      %v3402 = vsel %vm1252, %v3397, %v3401
      %v3404 = vshrl.u32 %v3294, 16
      %v3406 = vshll.u32 %v3294, 16
      %v3408 = vrot.slane %v3406, 1
      %v3409 = vor.u32 %v3404, %v3408
      %v3411 = vshll.u32 %v3310, 16
      %v3413 = vrot.slane %v3411, 1
      %v3414 = vsel %vm1252, %v3409, %v3413
      %v3416 = vshrl.u32 %v3295, 16
      %v3418 = vshll.u32 %v3295, 16
      %v3420 = vrot.slane %v3418, 1
      %v3421 = vor.u32 %v3416, %v3420
      %v3423 = vshll.u32 %v3311, 16
      %v3425 = vrot.slane %v3423, 1
      %v3426 = vsel %vm1252, %v3421, %v3425
      %v3428 = vshrl.u32 %v3296, 16
      %v3430 = vshll.u32 %v3296, 16
      %v3432 = vrot.slane %v3430, 1
      %v3433 = vor.u32 %v3428, %v3432
      %v3435 = vshll.u32 %v3312, 16
      %v3437 = vrot.slane %v3435, 1
      %v3438 = vsel %vm1252, %v3433, %v3437
      %v3440 = vshrl.u32 %v3297, 16
      %v3442 = vshll.u32 %v3297, 16
      %v3444 = vrot.slane %v3442, 1
      %v3445 = vor.u32 %v3440, %v3444
      %v3447 = vshll.u32 %v3313, 16
      %v3449 = vrot.slane %v3447, 1
      %v3450 = vsel %vm1252, %v3445, %v3449
      %v3452 = vshrl.u32 %v3298, 16
      %v3454 = vshll.u32 %v3298, 16
      %v3456 = vrot.slane %v3454, 1
      %v3457 = vor.u32 %v3452, %v3456
      %v3459 = vshll.u32 %v3314, 16
      %v3461 = vrot.slane %v3459, 1
      %v3462 = vsel %vm1252, %v3457, %v3461
      %v3464 = vshrl.u32 %v3299, 16
      %v3466 = vshll.u32 %v3299, 16
      %v3468 = vrot.slane %v3466, 1
      %v3469 = vor.u32 %v3464, %v3468
      %v3471 = vshll.u32 %v3315, 16
      %v3473 = vrot.slane %v3471, 1
      %v3474 = vsel %vm1252, %v3469, %v3473
      %v3476 = vshrl.u32 %v3300, 16
      %v3478 = vshll.u32 %v3300, 16
      %v3480 = vrot.slane %v3478, 1
      %v3481 = vor.u32 %v3476, %v3480
      %v3483 = vshll.u32 %v3316, 16
      %v3485 = vrot.slane %v3483, 1
      %v3486 = vsel %vm1252, %v3481, %v3485
      %v3488 = vshrl.u32 %v3301, 16
      %v3490 = vshll.u32 %v3301, 16
      %v3492 = vrot.slane %v3490, 1
      %v3493 = vor.u32 %v3488, %v3492
      %v3495 = vshll.u32 %v3317, 16
      %v3497 = vrot.slane %v3495, 1
      %v3498 = vsel %vm1252, %v3493, %v3497
      %v3500 = vshrl.u32 %v3302, 16
      %v3502 = vshll.u32 %v3302, 16
      %v3504 = vrot.slane %v3502, 1
      %v3505 = vor.u32 %v3500, %v3504
      %v3507 = vshll.u32 %v3318, 16
      %v3509 = vrot.slane %v3507, 1
      %v3510 = vsel %vm1252, %v3505, %v3509
      %3511 = vrot.lane.b32.xlu0 %v1260, 3
      %v3512 = vpop.permute.xlu0 %3511
      %3513 = vrot.lane.b32.xlu0 %v3330, 3
      %v3514 = vpop.permute.xlu0 %3513
      %3515 = vrot.lane.b32.xlu0 %v3342, 3
      %v3516 = vpop.permute.xlu0 %3515
      %3517 = vrot.lane.b32.xlu0 %v3354, 3
      %v3518 = vpop.permute.xlu0 %3517
      %3519 = vrot.lane.b32.xlu0 %v3366, 3
      %v3520 = vpop.permute.xlu0 %3519
      %3521 = vrot.lane.b32.xlu0 %v3378, 3
      %v3522 = vpop.permute.xlu0 %3521
      %3523 = vrot.lane.b32.xlu0 %v3390, 3
      %v3524 = vpop.permute.xlu0 %3523
      %3525 = vrot.lane.b32.xlu0 %v3402, 3
      %v3526 = vpop.permute.xlu0 %3525
      %3527 = vrot.lane.b32.xlu0 %v3414, 3
      %v3528 = vpop.permute.xlu0 %3527
      %3529 = vrot.lane.b32.xlu0 %v3426, 3
      %v3530 = vpop.permute.xlu0 %3529
      %3531 = vrot.lane.b32.xlu0 %v3438, 3
      %v3532 = vpop.permute.xlu0 %3531
      %3533 = vrot.lane.b32.xlu0 %v3450, 3
      %v3534 = vpop.permute.xlu0 %3533
      %3535 = vrot.lane.b32.xlu0 %v3462, 3
      %v3536 = vpop.permute.xlu0 %3535
      %3537 = vrot.lane.b32.xlu0 %v3474, 3
      %v3538 = vpop.permute.xlu0 %3537
      %3539 = vrot.lane.b32.xlu0 %v3486, 3
      %v3540 = vpop.permute.xlu0 %3539
      %3541 = vrot.lane.b32.xlu0 %v3498, 3
      %v3542 = vpop.permute.xlu0 %3541
      %3543 = vrot.lane.b32.xlu0 %v3510, 3
      %v3544 = vpop.permute.xlu0 %3543
      %v3577 = vrot.slane %v3287, 1
      %v3578 = vrot.slane %v3303, 1
      %v3579 = vsel %vm1520, %v3577, %v3578
      %v3580 = vrot.slane %v3288, 1
      %v3581 = vrot.slane %v3304, 1
      %v3582 = vsel %vm1520, %v3580, %v3581
      %v3583 = vrot.slane %v3289, 1
      %v3584 = vrot.slane %v3305, 1
      %v3585 = vsel %vm1520, %v3583, %v3584
      %v3586 = vrot.slane %v3290, 1
      %v3587 = vrot.slane %v3306, 1
      %v3588 = vsel %vm1520, %v3586, %v3587
      %v3589 = vrot.slane %v3291, 1
      %v3590 = vrot.slane %v3307, 1
      %v3591 = vsel %vm1520, %v3589, %v3590
      %v3592 = vrot.slane %v3292, 1
      %v3593 = vrot.slane %v3308, 1
      %v3594 = vsel %vm1520, %v3592, %v3593
      %v3595 = vrot.slane %v3293, 1
      %v3596 = vrot.slane %v3309, 1
      %v3597 = vsel %vm1520, %v3595, %v3596
      %v3598 = vrot.slane %v3294, 1
      %v3599 = vrot.slane %v3310, 1
      %v3600 = vsel %vm1520, %v3598, %v3599
      %v3601 = vrot.slane %v3295, 1
      %v3602 = vrot.slane %v3311, 1
      %v3603 = vsel %vm1520, %v3601, %v3602
      %v3604 = vrot.slane %v3296, 1
      %v3605 = vrot.slane %v3312, 1
      %v3606 = vsel %vm1520, %v3604, %v3605
      %v3607 = vrot.slane %v3297, 1
      %v3608 = vrot.slane %v3313, 1
      %v3609 = vsel %vm1520, %v3607, %v3608
      %v3610 = vrot.slane %v3298, 1
      %v3611 = vrot.slane %v3314, 1
      %v3612 = vsel %vm1520, %v3610, %v3611
      %v3613 = vrot.slane %v3299, 1
      %v3614 = vrot.slane %v3315, 1
      %v3615 = vsel %vm1520, %v3613, %v3614
      %v3616 = vrot.slane %v3300, 1
      %v3617 = vrot.slane %v3316, 1
      %v3618 = vsel %vm1520, %v3616, %v3617
      %v3619 = vrot.slane %v3301, 1
      %v3620 = vrot.slane %v3317, 1
      %v3621 = vsel %vm1520, %v3619, %v3620
      %v3622 = vrot.slane %v3302, 1
      %v3623 = vrot.slane %v3318, 1
      %v3624 = vsel %vm1520, %v3622, %v3623
      %3625 = vrot.lane.b32.xlu0 %v1522, 6
      %v3626 = vpop.permute.xlu0 %3625
      %3627 = vrot.lane.b32.xlu0 %v3579, 6
      %v3628 = vpop.permute.xlu0 %3627
      %3629 = vrot.lane.b32.xlu0 %v3582, 6
      %v3630 = vpop.permute.xlu0 %3629
      %3631 = vrot.lane.b32.xlu0 %v3585, 6
      %v3632 = vpop.permute.xlu0 %3631
      %3633 = vrot.lane.b32.xlu0 %v3588, 6
      %v3634 = vpop.permute.xlu0 %3633
      %3635 = vrot.lane.b32.xlu0 %v3591, 6
      %v3636 = vpop.permute.xlu0 %3635
      %3637 = vrot.lane.b32.xlu0 %v3594, 6
      %v3638 = vpop.permute.xlu0 %3637
      %3639 = vrot.lane.b32.xlu0 %v3597, 6
      %v3640 = vpop.permute.xlu0 %3639
      %3641 = vrot.lane.b32.xlu0 %v3600, 6
      %v3642 = vpop.permute.xlu0 %3641
      %3643 = vrot.lane.b32.xlu0 %v3603, 6
      %v3644 = vpop.permute.xlu0 %3643
      %3645 = vrot.lane.b32.xlu0 %v3606, 6
      %v3646 = vpop.permute.xlu0 %3645
      %3647 = vrot.lane.b32.xlu0 %v3609, 6
      %v3648 = vpop.permute.xlu0 %3647
      %3649 = vrot.lane.b32.xlu0 %v3612, 6
      %v3650 = vpop.permute.xlu0 %3649
      %3651 = vrot.lane.b32.xlu0 %v3615, 6
      %v3652 = vpop.permute.xlu0 %3651
      %3653 = vrot.lane.b32.xlu0 %v3618, 6
      %v3654 = vpop.permute.xlu0 %3653
      %3655 = vrot.lane.b32.xlu0 %v3621, 6
      %v3656 = vpop.permute.xlu0 %3655
      %3657 = vrot.lane.b32.xlu0 %v3624, 6
      %v3658 = vpop.permute.xlu0 %3657
      %vm3659 = vcmask 23552
      %v3661 = vsel %vm3659, 0, %v3512
      %v3663 = vsel %vm3659, %v3287, %v3514
      %v3665 = vsel %vm3659, %v3288, %v3516
      %v3667 = vsel %vm3659, %v3289, %v3518
      %v3669 = vsel %vm3659, %v3290, %v3520
      %v3671 = vsel %vm3659, %v3291, %v3522
      %v3673 = vsel %vm3659, %v3292, %v3524
      %v3675 = vsel %vm3659, %v3293, %v3526
      %v3677 = vsel %vm3659, %v3294, %v3528
      %v3679 = vsel %vm3659, %v3295, %v3530
      %v3681 = vsel %vm3659, %v3296, %v3532
      %v3683 = vsel %vm3659, %v3297, %v3534
      %v3685 = vsel %vm3659, %v3298, %v3536
      %v3687 = vsel %vm3659, %v3299, %v3538
      %v3689 = vsel %vm3659, %v3300, %v3540
      %v3691 = vsel %vm3659, %v3301, %v3542
      %v3693 = vsel %vm3659, %v3302, %v3544
      %v3695 = vsel %vm961, %v3661, %v3626
      %v3697 = vsel %vm961, %v3663, %v3628
      %v3699 = vsel %vm961, %v3665, %v3630
      %v3701 = vsel %vm961, %v3667, %v3632
      %v3703 = vsel %vm961, %v3669, %v3634
      %v3705 = vsel %vm961, %v3671, %v3636
      %v3707 = vsel %vm961, %v3673, %v3638
      %v3709 = vsel %vm961, %v3675, %v3640
      %v3711 = vsel %vm961, %v3677, %v3642
      %v3713 = vsel %vm961, %v3679, %v3644
      %v3715 = vsel %vm961, %v3681, %v3646
      %v3717 = vsel %vm961, %v3683, %v3648
      %v3719 = vsel %vm961, %v3685, %v3650
      %v3721 = vsel %vm961, %v3687, %v3652
      %v3723 = vsel %vm961, %v3689, %v3654
      %v3725 = vsel %vm961, %v3691, %v3656
      %v3727 = vsel %vm961, %v3693, %v3658
      %3744 = vrot.lane.b32.xlu0 %v3697, 9
      %v3745 = vpop.permute.xlu0 %3744
      %3746 = vrot.lane.b32.xlu0 %v3699, 9
      %v3747 = vpop.permute.xlu0 %3746
      %3748 = vrot.lane.b32.xlu0 %v3701, 9
      %v3749 = vpop.permute.xlu0 %3748
      %3750 = vrot.lane.b32.xlu0 %v3703, 9
      %v3751 = vpop.permute.xlu0 %3750
      %3752 = vrot.lane.b32.xlu0 %v3705, 9
      %v3753 = vpop.permute.xlu0 %3752
      %3754 = vrot.lane.b32.xlu0 %v3707, 9
      %v3755 = vpop.permute.xlu0 %3754
      %3756 = vrot.lane.b32.xlu0 %v3709, 9
      %v3757 = vpop.permute.xlu0 %3756
      %3758 = vrot.lane.b32.xlu0 %v3711, 9
      %v3759 = vpop.permute.xlu0 %3758
      %3760 = vrot.lane.b32.xlu0 %v3713, 9
      %v3761 = vpop.permute.xlu0 %3760
      %3762 = vrot.lane.b32.xlu0 %v3715, 9
      %v3763 = vpop.permute.xlu0 %3762
      %3764 = vrot.lane.b32.xlu0 %v3717, 9
      %v3765 = vpop.permute.xlu0 %3764
      %3766 = vrot.lane.b32.xlu0 %v3719, 9
      %v3767 = vpop.permute.xlu0 %3766
      %3768 = vrot.lane.b32.xlu0 %v3721, 9
      %v3769 = vpop.permute.xlu0 %3768
      %3770 = vrot.lane.b32.xlu0 %v3723, 9
      %v3771 = vpop.permute.xlu0 %3770
      %3772 = vrot.lane.b32.xlu0 %v3725, 9
      %v3773 = vpop.permute.xlu0 %3772
      %3774 = vrot.lane.b32.xlu0 %v3727, 9
      %v3775 = vpop.permute.xlu0 %3774
      %3777 = vrot.lane.b32.xlu0 %v3699, 18
      %v3778 = vpop.permute.xlu0 %3777
      %3779 = vrot.lane.b32.xlu0 %v3701, 18
      %v3780 = vpop.permute.xlu0 %3779
      %3781 = vrot.lane.b32.xlu0 %v3703, 18
      %v3782 = vpop.permute.xlu0 %3781
      %3783 = vrot.lane.b32.xlu0 %v3705, 18
      %v3784 = vpop.permute.xlu0 %3783
      %3785 = vrot.lane.b32.xlu0 %v3707, 18
      %v3786 = vpop.permute.xlu0 %3785
      %3787 = vrot.lane.b32.xlu0 %v3709, 18
      %v3788 = vpop.permute.xlu0 %3787
      %3789 = vrot.lane.b32.xlu0 %v3711, 18
      %v3790 = vpop.permute.xlu0 %3789
      %3791 = vrot.lane.b32.xlu0 %v3713, 18
      %v3792 = vpop.permute.xlu0 %3791
      %3793 = vrot.lane.b32.xlu0 %v3715, 18
      %v3794 = vpop.permute.xlu0 %3793
      %3795 = vrot.lane.b32.xlu0 %v3717, 18
      %v3796 = vpop.permute.xlu0 %3795
      %3797 = vrot.lane.b32.xlu0 %v3719, 18
      %v3798 = vpop.permute.xlu0 %3797
      %3799 = vrot.lane.b32.xlu0 %v3721, 18
      %v3800 = vpop.permute.xlu0 %3799
      %3801 = vrot.lane.b32.xlu0 %v3723, 18
      %v3802 = vpop.permute.xlu0 %3801
      %3803 = vrot.lane.b32.xlu0 %v3725, 18
      %v3804 = vpop.permute.xlu0 %3803
      %3805 = vrot.lane.b32.xlu0 %v3727, 18
      %v3806 = vpop.permute.xlu0 %3805
      %3807 = vrot.lane.b32.xlu0 %v3695, 18
      %v3808 = vpop.permute.xlu0 %3807
      %vm3809 = vcmask 72704
      %v3811 = vsel %vm3809, %v3695, %v3745
      %v3813 = vsel %vm3809, %v3697, %v3747
      %v3815 = vsel %vm3809, %v3699, %v3749
      %v3817 = vsel %vm3809, %v3701, %v3751
      %v3819 = vsel %vm3809, %v3703, %v3753
      %v3821 = vsel %vm3809, %v3705, %v3755
      %v3823 = vsel %vm3809, %v3707, %v3757
      %v3825 = vsel %vm3809, %v3709, %v3759
      %v3827 = vsel %vm3809, %v3711, %v3761
      %v3829 = vsel %vm3809, %v3713, %v3763
      %v3831 = vsel %vm3809, %v3715, %v3765
      %v3833 = vsel %vm3809, %v3717, %v3767
      %v3835 = vsel %vm3809, %v3719, %v3769
      %v3837 = vsel %vm3809, %v3721, %v3771
      %v3839 = vsel %vm3809, %v3723, %v3773
      %v3841 = vsel %vm3809, %v3725, %v3775
      %vm3842 = vcmask 146432
      %v3844 = vsel %vm3842, %v3811, %v3778
      %v3846 = vsel %vm3842, %v3813, %v3780
      %v3848 = vsel %vm3842, %v3815, %v3782
      %v3850 = vsel %vm3842, %v3817, %v3784
      %v3852 = vsel %vm3842, %v3819, %v3786
      %v3854 = vsel %vm3842, %v3821, %v3788
      %v3856 = vsel %vm3842, %v3823, %v3790
      %v3858 = vsel %vm3842, %v3825, %v3792
      %v3860 = vsel %vm3842, %v3827, %v3794
      %v3862 = vsel %vm3842, %v3829, %v3796
      %v3864 = vsel %vm3842, %v3831, %v3798
      %v3866 = vsel %vm3842, %v3833, %v3800
      %v3868 = vsel %vm3842, %v3835, %v3802
      %v3870 = vsel %vm3842, %v3837, %v3804
      %v3872 = vsel %vm3842, %v3839, %v3806
      %v3874 = vsel %vm3842, %v3841, %v3808
      %v3876 = vlaneseq
      %v3877 = vshrl.u32 %v3876, 7
      %v3878 = vsub.s32 0, %v3877
      %v3879 = vrot.slane %v3062, %v3878
      %v3885 = vunpack.c.l.b16 %v3058
      %v3886 = vunpack.c.l.b16 %v3059
      %v3887 = vunpack.c.l.b16 %v3060
      %v3888 = vunpack.c.l.b16 %v3061
      %v3889 = vpack.c.b16 %v3886, %v3885
      %v3890 = vpack.c.b16 %v3888, %v3887
      %vm3892 = vcmask 220160
      %v3893 = vsel %vm3892, %v3844, 0
      %v3895 = vsel %vm3892, %v3846, 0
      %v3897 = vsel %vm3892, %v3848, 0
      %v3899 = vsel %vm3892, %v3850, 0
      %v3901 = vsel %vm3892, %v3852, 0
      %v3903 = vsel %vm3892, %v3854, 0
      %v3905 = vsel %vm3892, %v3856, 0
      %v3907 = vsel %vm3892, %v3858, 0
      %v3909 = vsel %vm3892, %v3860, 0
      %v3911 = vsel %vm3892, %v3862, 0
      %v3913 = vsel %vm3892, %v3864, 0
      %v3915 = vsel %vm3892, %v3866, 0
      %v3917 = vsel %vm3892, %v3868, 0
      %v3919 = vsel %vm3892, %v3870, 0
      %v3921 = vsel %vm3892, %v3872, 0
      %v3923 = vsel %vm3892, %v3874, 0
      %vm3925 = vcmask 1044480
      %vm3926 = vcmask 1045504
      %v3927 = vsel %vm3925, 4294967295, 65535
      %v3928 = vsel %vm3926, %v3927, 0
      %v3930 = vand.u32 %v3890, %v3928
      %3932 = vmatprep.subr.bf16.mxu0 0
      %3933 = vmatpush1.bf16.msra.mxu0 0
      %3934 = vmatprep.subr.bf16.mxu0 0
      %3935 = vmatpush1.bf16.msra.mxu0 0
      %3936 = vmatprep.subr.bf16.mxu0 0
      %3937 = vmatpush1.bf16.msra.mxu0 0
      %3938 = vmatprep.subr.bf16.mxu0 0
      %3939 = vmatpush1.bf16.msra.mxu0 0
      %3940 = vmatprep.subr.bf16.mxu0 0
      %3941 = vmatpush1.bf16.msra.mxu0 0
      %3942 = vmatprep.subr.bf16.mxu0 0
      %3943 = vmatpush1.bf16.msra.mxu0 0
      %3944 = vmatprep.subr.bf16.mxu0 0
      %3945 = vmatpush1.bf16.msra.mxu0 %v3930
      %3946 = vmatprep.subr.bf16.mxu0 0
      %3947 = vmatpush1.bf16.msra.mxu0 %v3889
      %3948 = vmatprep.subr.bf16.mxu0 0
      %3949 = vmatpush2.bf16.msra.mxu0 0
      %3950 = vmatprep.subr.bf16.mxu0 0
      %3951 = vmatpush2.bf16.msra.mxu0 0
      %3952 = vmatprep.subr.bf16.mxu0 0
      %3953 = vmatpush2.bf16.msra.mxu0 0
      %3954 = vmatprep.subr.bf16.mxu0 0
      %3955 = vmatpush2.bf16.msra.mxu0 0
      %3956 = vmatprep.subr.bf16.mxu0 0
      %3957 = vmatpush2.bf16.msra.mxu0 0
      %3958 = vmatprep.subr.bf16.mxu0 0
      %3959 = vmatpush2.bf16.msra.mxu0 0
      %3960 = vmatprep.subr.bf16.mxu0 0
      %3961 = vmatpush2.bf16.msra.mxu0 0
      %3962 = vmatprep.subr.bf16.mxu0 0
      %3963 = vmatpush2.bf16.msra.mxu0 0
      %3964 = vmatprep.mubr.bf16.mxu0 0
      %3965 = vmatmul.mubr.bf16.gmra.mxu0 %v3893
      %v3966 = vpop.f32.mrf.mxu0
      %v3967 = vadd.f32 %v3879, %v3966
      %v3968 = vpop.f32.mrf.mxu0
      %v3969 = vpop.f32.mrf.mxu0
      %v3970 = vadd.f32 %v3879, %v3969
      %v3971 = vpop.f32.mrf.mxu0
      %3972 = vmatprep.mubr.bf16.mxu0 0
      %3973 = vmatmul.mubr.bf16.gmra.mxu0 %v3895
      %v3974 = vpop.f32.mrf.mxu0
      %v3975 = vadd.f32 %v3879, %v3974
      %v3976 = vpop.f32.mrf.mxu0
      %v3977 = vpop.f32.mrf.mxu0
      %v3978 = vadd.f32 %v3879, %v3977
      %v3979 = vpop.f32.mrf.mxu0
      %3980 = vmatprep.mubr.bf16.mxu0 0
      %3981 = vmatmul.mubr.bf16.gmra.mxu0 %v3897
      %v3982 = vpop.f32.mrf.mxu0
      %v3983 = vadd.f32 %v3879, %v3982
      %v3984 = vpop.f32.mrf.mxu0
      %v3985 = vpop.f32.mrf.mxu0
      %v3986 = vadd.f32 %v3879, %v3985
      %v3987 = vpop.f32.mrf.mxu0
      %3988 = vmatprep.mubr.bf16.mxu0 0
      %3989 = vmatmul.mubr.bf16.gmra.mxu0 %v3899
      %v3990 = vpop.f32.mrf.mxu0
      %v3991 = vadd.f32 %v3879, %v3990
      %v3992 = vpop.f32.mrf.mxu0
      %v3993 = vpop.f32.mrf.mxu0
      %v3994 = vadd.f32 %v3879, %v3993
      %v3995 = vpop.f32.mrf.mxu0
      %3996 = vmatprep.mubr.bf16.mxu0 0
      %3997 = vmatmul.mubr.bf16.gmra.mxu0 %v3901
      %v3998 = vpop.f32.mrf.mxu0
      %v3999 = vadd.f32 %v3879, %v3998
      %v4000 = vpop.f32.mrf.mxu0
      %v4001 = vpop.f32.mrf.mxu0
      %v4002 = vadd.f32 %v3879, %v4001
      %v4003 = vpop.f32.mrf.mxu0
      %4004 = vmatprep.mubr.bf16.mxu0 0
      %4005 = vmatmul.mubr.bf16.gmra.mxu0 %v3903
      %v4006 = vpop.f32.mrf.mxu0
      %v4007 = vadd.f32 %v3879, %v4006
      %v4008 = vpop.f32.mrf.mxu0
      %v4009 = vpop.f32.mrf.mxu0
      %v4010 = vadd.f32 %v3879, %v4009
      %v4011 = vpop.f32.mrf.mxu0
      %4012 = vmatprep.mubr.bf16.mxu0 0
      %4013 = vmatmul.mubr.bf16.gmra.mxu0 %v3905
      %v4014 = vpop.f32.mrf.mxu0
      %v4015 = vadd.f32 %v3879, %v4014
      %v4016 = vpop.f32.mrf.mxu0
      %v4017 = vpop.f32.mrf.mxu0
      %v4018 = vadd.f32 %v3879, %v4017
      %v4019 = vpop.f32.mrf.mxu0
      %4020 = vmatprep.mubr.bf16.mxu0 0
      %4021 = vmatmul.mubr.bf16.gmra.mxu0 %v3907
      %v4022 = vpop.f32.mrf.mxu0
      %v4023 = vadd.f32 %v3879, %v4022
      %v4024 = vpop.f32.mrf.mxu0
      %v4025 = vpop.f32.mrf.mxu0
      %v4026 = vadd.f32 %v3879, %v4025
      %v4027 = vpop.f32.mrf.mxu0
      %4028 = vmatprep.mubr.bf16.mxu0 0
      %4029 = vmatmul.mubr.bf16.gmra.mxu0 %v3909
      %v4030 = vpop.f32.mrf.mxu0
      %v4031 = vadd.f32 %v3879, %v4030
      %v4032 = vpop.f32.mrf.mxu0
      %v4033 = vpop.f32.mrf.mxu0
      %v4034 = vadd.f32 %v3879, %v4033
      %v4035 = vpop.f32.mrf.mxu0
      %4036 = vmatprep.mubr.bf16.mxu0 0
      %4037 = vmatmul.mubr.bf16.gmra.mxu0 %v3911
      %v4038 = vpop.f32.mrf.mxu0
      %v4039 = vadd.f32 %v3879, %v4038
      %v4040 = vpop.f32.mrf.mxu0
      %v4041 = vpop.f32.mrf.mxu0
      %v4042 = vadd.f32 %v3879, %v4041
      %v4043 = vpop.f32.mrf.mxu0
      %4044 = vmatprep.mubr.bf16.mxu0 0
      %4045 = vmatmul.mubr.bf16.gmra.mxu0 %v3913
      %v4046 = vpop.f32.mrf.mxu0
      %v4047 = vadd.f32 %v3879, %v4046
      %v4048 = vpop.f32.mrf.mxu0
      %v4049 = vpop.f32.mrf.mxu0
      %v4050 = vadd.f32 %v3879, %v4049
      %v4051 = vpop.f32.mrf.mxu0
      %4052 = vmatprep.mubr.bf16.mxu0 0
      %4053 = vmatmul.mubr.bf16.gmra.mxu0 %v3915
      %v4054 = vpop.f32.mrf.mxu0
      %v4055 = vadd.f32 %v3879, %v4054
      %v4056 = vpop.f32.mrf.mxu0
      %v4057 = vpop.f32.mrf.mxu0
      %v4058 = vadd.f32 %v3879, %v4057
      %v4059 = vpop.f32.mrf.mxu0
      %4060 = vmatprep.mubr.bf16.mxu0 0
      %4061 = vmatmul.mubr.bf16.gmra.mxu0 %v3917
      %v4062 = vpop.f32.mrf.mxu0
      %v4063 = vadd.f32 %v3879, %v4062
      %v4064 = vpop.f32.mrf.mxu0
      %v4065 = vpop.f32.mrf.mxu0
      %v4066 = vadd.f32 %v3879, %v4065
      %v4067 = vpop.f32.mrf.mxu0
      %4068 = vmatprep.mubr.bf16.mxu0 0
      %4069 = vmatmul.mubr.bf16.gmra.mxu0 %v3919
      %v4070 = vpop.f32.mrf.mxu0
      %v4071 = vadd.f32 %v3879, %v4070
      %v4072 = vpop.f32.mrf.mxu0
      %v4073 = vpop.f32.mrf.mxu0
      %v4074 = vadd.f32 %v3879, %v4073
      %v4075 = vpop.f32.mrf.mxu0
      %4076 = vmatprep.mubr.bf16.mxu0 0
      %4077 = vmatmul.mubr.bf16.gmra.mxu0 %v3921
      %v4078 = vpop.f32.mrf.mxu0
      %v4079 = vadd.f32 %v3879, %v4078
      %v4080 = vpop.f32.mrf.mxu0
      %v4081 = vpop.f32.mrf.mxu0
      %v4082 = vadd.f32 %v3879, %v4081
      %v4083 = vpop.f32.mrf.mxu0
      %4084 = vmatprep.mubr.bf16.mxu0 0
      %4085 = vmatmul.mubr.bf16.gmra.mxu0 %v3923
      %v4086 = vpop.f32.mrf.mxu0
      %v4087 = vadd.f32 %v3879, %v4086
      %v4088 = vpop.f32.mrf.mxu0
      %v4089 = vpop.f32.mrf.mxu0
      %v4090 = vadd.f32 %v3879, %v4089
      %v4091 = vpop.f32.mrf.mxu0
      %4092 = vdwg.mxu0
      %v4093 = vmax.f32 %v3967, 0.0
      %v4094 = vmax.f32 %v3970, 0.0
      %v4095 = vmax.f32 %v3975, 0.0
      %v4096 = vmax.f32 %v3978, 0.0
      %v4097 = vmax.f32 %v3983, 0.0
      %v4098 = vmax.f32 %v3986, 0.0
      %v4099 = vmax.f32 %v3991, 0.0
      %v4100 = vmax.f32 %v3994, 0.0
      %v4101 = vmax.f32 %v3999, 0.0
      %v4102 = vmax.f32 %v4002, 0.0
      %v4103 = vmax.f32 %v4007, 0.0
      %v4104 = vmax.f32 %v4010, 0.0
      %v4105 = vmax.f32 %v4015, 0.0
      %v4106 = vmax.f32 %v4018, 0.0
      %v4107 = vmax.f32 %v4023, 0.0
      %v4108 = vmax.f32 %v4026, 0.0
      %v4109 = vmax.f32 %v4031, 0.0
      %v4110 = vmax.f32 %v4034, 0.0
      %v4111 = vmax.f32 %v4039, 0.0
      %v4112 = vmax.f32 %v4042, 0.0
      %v4113 = vmax.f32 %v4047, 0.0
      %v4114 = vmax.f32 %v4050, 0.0
      %v4115 = vmax.f32 %v4055, 0.0
      %v4116 = vmax.f32 %v4058, 0.0
      %v4117 = vmax.f32 %v4063, 0.0
      %v4118 = vmax.f32 %v4066, 0.0
      %v4119 = vmax.f32 %v4071, 0.0
      %v4120 = vmax.f32 %v4074, 0.0
      %v4121 = vmax.f32 %v4079, 0.0
      %v4122 = vmax.f32 %v4082, 0.0
      %v4123 = vmax.f32 %v4087, 0.0
      %v4124 = vmax.f32 %v4090, 0.0
      %v4125 = vld [vmem:[%s592] sm:$0xff]
      %v4126 = vld [vmem:[%s592 + $0x8] sm:$0xff]
      %v4127 = vld [vmem:[%s592 + $0x10] sm:$0xff]
      %v4128 = vld [vmem:[%s592 + $0x18] sm:$0xff]
      %v4129 = vld [vmem:[%s592 + $0x20] sm:$0xff]
      %v4130 = vld [vmem:[%s592 + $0x28] sm:$0xff]
      %v4131 = vld [vmem:[%s592 + $0x30] sm:$0xff]
      %v4132 = vld [vmem:[%s592 + $0x38] sm:$0xff]
      %v4133 = vld [vmem:[%s592 + $0x40] sm:$0xff]
      %v4134 = vld [vmem:[%s592 + $0x48] sm:$0xff]
      %v4135 = vld [vmem:[%s592 + $0x50] sm:$0xff]
      %v4136 = vld [vmem:[%s592 + $0x58] sm:$0xff]
      %v4137 = vld [vmem:[%s592 + $0x60] sm:$0xff]
      %v4138 = vld [vmem:[%s592 + $0x68] sm:$0xff]
      %v4139 = vld [vmem:[%s592 + $0x70] sm:$0xff]
      %v4140 = vld [vmem:[%s592 + $0x78] sm:$0xff]
      %v4141 = vld [vmem:[%s592 + $0x80] sm:$0xff]
      %v4142 = vld [vmem:[%s592 + $0x88] sm:$0xff]
      %v4143 = vld [vmem:[%s592 + $0x90] sm:$0xff]
      %v4144 = vld [vmem:[%s592 + $0x98] sm:$0xff]
      %v4145 = vld [vmem:[%s592 + $0xa0] sm:$0xff]
      %v4146 = vld [vmem:[%s592 + $0xa8] sm:$0xff]
      %v4147 = vld [vmem:[%s592 + $0xb0] sm:$0xff]
      %v4148 = vld [vmem:[%s592 + $0xb8] sm:$0xff]
      %v4149 = vld [vmem:[%s592 + $0xc0] sm:$0xff]
      %v4150 = vld [vmem:[%s592 + $0xc8] sm:$0xff]
      %v4151 = vld [vmem:[%s592 + $0xd0] sm:$0xff]
      %v4152 = vld [vmem:[%s592 + $0xd8] sm:$0xff]
      %v4153 = vld [vmem:[%s592 + $0xe0] sm:$0xff]
      %v4154 = vld [vmem:[%s592 + $0xe8] sm:$0xff]
      %v4155 = vld [vmem:[%s592 + $0xf0] sm:$0xff]
      %v4156 = vld [vmem:[%s592 + $0xf8] sm:$0xff]
      %v4157 = vsub.f32 %v4125, %v4093
      %v4158 = vsub.f32 %v4126, %v4094
      %v4159 = vsub.f32 %v4127, %v4095
      %v4160 = vsub.f32 %v4128, %v4096
      %v4161 = vsub.f32 %v4129, %v4097
      %v4162 = vsub.f32 %v4130, %v4098
      %v4163 = vsub.f32 %v4131, %v4099
      %v4164 = vsub.f32 %v4132, %v4100
      %v4165 = vsub.f32 %v4133, %v4101
      %v4166 = vsub.f32 %v4134, %v4102
      %v4167 = vsub.f32 %v4135, %v4103
      %v4168 = vsub.f32 %v4136, %v4104
      %v4169 = vsub.f32 %v4137, %v4105
      %v4170 = vsub.f32 %v4138, %v4106
      %v4171 = vsub.f32 %v4139, %v4107
      %v4172 = vsub.f32 %v4140, %v4108
      %v4173 = vsub.f32 %v4141, %v4109
      %v4174 = vsub.f32 %v4142, %v4110
      %v4175 = vsub.f32 %v4143, %v4111
      %v4176 = vsub.f32 %v4144, %v4112
      %v4177 = vsub.f32 %v4145, %v4113
      %v4178 = vsub.f32 %v4146, %v4114
      %v4179 = vsub.f32 %v4147, %v4115
      %v4180 = vsub.f32 %v4148, %v4116
      %v4181 = vsub.f32 %v4149, %v4117
      %v4182 = vsub.f32 %v4150, %v4118
      %v4183 = vsub.f32 %v4151, %v4119
      %v4184 = vsub.f32 %v4152, %v4120
      %v4185 = vsub.f32 %v4153, %v4121
      %v4186 = vsub.f32 %v4154, %v4122
      %v4187 = vsub.f32 %v4155, %v4123
      %v4188 = vsub.f32 %v4156, %v4124
      %v4189 = vmax.f32 %v4157, 0.0
      %v4190 = vmax.f32 %v4158, 0.0
      %v4191 = vmax.f32 %v4159, 0.0
      %v4192 = vmax.f32 %v4160, 0.0
      %v4193 = vmax.f32 %v4161, 0.0
      %v4194 = vmax.f32 %v4162, 0.0
      %v4195 = vmax.f32 %v4163, 0.0
      %v4196 = vmax.f32 %v4164, 0.0
      %v4197 = vmax.f32 %v4165, 0.0
      %v4198 = vmax.f32 %v4166, 0.0
      %v4199 = vmax.f32 %v4167, 0.0
      %v4200 = vmax.f32 %v4168, 0.0
      %v4201 = vmax.f32 %v4169, 0.0
      %v4202 = vmax.f32 %v4170, 0.0
      %v4203 = vmax.f32 %v4171, 0.0
      %v4204 = vmax.f32 %v4172, 0.0
      %v4205 = vmax.f32 %v4173, 0.0
      %v4206 = vmax.f32 %v4174, 0.0
      %v4207 = vmax.f32 %v4175, 0.0
      %v4208 = vmax.f32 %v4176, 0.0
      %v4209 = vmax.f32 %v4177, 0.0
      %v4210 = vmax.f32 %v4178, 0.0
      %v4211 = vmax.f32 %v4179, 0.0
      %v4212 = vmax.f32 %v4180, 0.0
      %v4213 = vmax.f32 %v4181, 0.0
      %v4214 = vmax.f32 %v4182, 0.0
      %v4215 = vmax.f32 %v4183, 0.0
      %v4216 = vmax.f32 %v4184, 0.0
      %v4217 = vmax.f32 %v4185, 0.0
      %v4218 = vmax.f32 %v4186, 0.0
      %v4219 = vmax.f32 %v4187, 0.0
      %v4220 = vmax.f32 %v4188, 0.0
      %v4221 = vsub.f32 0.0, %v4157
      %v4222 = vsub.f32 0.0, %v4158
      %v4223 = vsub.f32 0.0, %v4159
      %v4224 = vsub.f32 0.0, %v4160
      %v4225 = vsub.f32 0.0, %v4161
      %v4226 = vsub.f32 0.0, %v4162
      %v4227 = vsub.f32 0.0, %v4163
      %v4228 = vsub.f32 0.0, %v4164
      %v4229 = vsub.f32 0.0, %v4165
      %v4230 = vsub.f32 0.0, %v4166
      %v4231 = vsub.f32 0.0, %v4167
      %v4232 = vsub.f32 0.0, %v4168
      %v4233 = vsub.f32 0.0, %v4169
      %v4234 = vsub.f32 0.0, %v4170
      %v4235 = vsub.f32 0.0, %v4171
      %v4236 = vsub.f32 0.0, %v4172
      %v4237 = vsub.f32 0.0, %v4173
      %v4238 = vsub.f32 0.0, %v4174
      %v4239 = vsub.f32 0.0, %v4175
      %v4240 = vsub.f32 0.0, %v4176
      %v4241 = vsub.f32 0.0, %v4177
      %v4242 = vsub.f32 0.0, %v4178
      %v4243 = vsub.f32 0.0, %v4179
      %v4244 = vsub.f32 0.0, %v4180
      %v4245 = vsub.f32 0.0, %v4181
      %v4246 = vsub.f32 0.0, %v4182
      %v4247 = vsub.f32 0.0, %v4183
      %v4248 = vsub.f32 0.0, %v4184
      %v4249 = vsub.f32 0.0, %v4185
      %v4250 = vsub.f32 0.0, %v4186
      %v4251 = vsub.f32 0.0, %v4187
      %v4252 = vsub.f32 0.0, %v4188
      %v4253 = vmax.f32 %v4221, 0.0
      %v4254 = vmax.f32 %v4222, 0.0
      %v4255 = vmax.f32 %v4223, 0.0
      %v4256 = vmax.f32 %v4224, 0.0
      %v4257 = vmax.f32 %v4225, 0.0
      %v4258 = vmax.f32 %v4226, 0.0
      %v4259 = vmax.f32 %v4227, 0.0
      %v4260 = vmax.f32 %v4228, 0.0
      %v4261 = vmax.f32 %v4229, 0.0
      %v4262 = vmax.f32 %v4230, 0.0
      %v4263 = vmax.f32 %v4231, 0.0
      %v4264 = vmax.f32 %v4232, 0.0
      %v4265 = vmax.f32 %v4233, 0.0
      %v4266 = vmax.f32 %v4234, 0.0
      %v4267 = vmax.f32 %v4235, 0.0
      %v4268 = vmax.f32 %v4236, 0.0
      %v4269 = vmax.f32 %v4237, 0.0
      %v4270 = vmax.f32 %v4238, 0.0
      %v4271 = vmax.f32 %v4239, 0.0
      %v4272 = vmax.f32 %v4240, 0.0
      %v4273 = vmax.f32 %v4241, 0.0
      %v4274 = vmax.f32 %v4242, 0.0
      %v4275 = vmax.f32 %v4243, 0.0
      %v4276 = vmax.f32 %v4244, 0.0
      %v4277 = vmax.f32 %v4245, 0.0
      %v4278 = vmax.f32 %v4246, 0.0
      %v4279 = vmax.f32 %v4247, 0.0
      %v4280 = vmax.f32 %v4248, 0.0
      %v4281 = vmax.f32 %v4249, 0.0
      %v4282 = vmax.f32 %v4250, 0.0
      %v4283 = vmax.f32 %v4251, 0.0
      %v4284 = vmax.f32 %v4252, 0.0
      %4317 = vrot.lane.b32.xlu0 %v4253, 3
      %v4318 = vpop.permute.xlu0 %4317
      %4319 = vrot.lane.b32.xlu0 %v4254, 3
      %v4320 = vpop.permute.xlu0 %4319
      %4321 = vrot.lane.b32.xlu0 %v4255, 3
      %v4322 = vpop.permute.xlu0 %4321
      %4323 = vrot.lane.b32.xlu0 %v4256, 3
      %v4324 = vpop.permute.xlu0 %4323
      %4325 = vrot.lane.b32.xlu0 %v4257, 3
      %v4326 = vpop.permute.xlu0 %4325
      %4327 = vrot.lane.b32.xlu0 %v4258, 3
      %v4328 = vpop.permute.xlu0 %4327
      %4329 = vrot.lane.b32.xlu0 %v4259, 3
      %v4330 = vpop.permute.xlu0 %4329
      %4331 = vrot.lane.b32.xlu0 %v4260, 3
      %v4332 = vpop.permute.xlu0 %4331
      %4333 = vrot.lane.b32.xlu0 %v4261, 3
      %v4334 = vpop.permute.xlu0 %4333
      %4335 = vrot.lane.b32.xlu0 %v4262, 3
      %v4336 = vpop.permute.xlu0 %4335
      %4337 = vrot.lane.b32.xlu0 %v4263, 3
      %v4338 = vpop.permute.xlu0 %4337
      %4339 = vrot.lane.b32.xlu0 %v4264, 3
      %v4340 = vpop.permute.xlu0 %4339
      %4341 = vrot.lane.b32.xlu0 %v4265, 3
      %v4342 = vpop.permute.xlu0 %4341
      %4343 = vrot.lane.b32.xlu0 %v4266, 3
      %v4344 = vpop.permute.xlu0 %4343
      %4345 = vrot.lane.b32.xlu0 %v4267, 3
      %v4346 = vpop.permute.xlu0 %4345
      %4347 = vrot.lane.b32.xlu0 %v4268, 3
      %v4348 = vpop.permute.xlu0 %4347
      %4349 = vrot.lane.b32.xlu0 %v4269, 3
      %v4350 = vpop.permute.xlu0 %4349
      %4351 = vrot.lane.b32.xlu0 %v4270, 3
      %v4352 = vpop.permute.xlu0 %4351
      %4353 = vrot.lane.b32.xlu0 %v4271, 3
      %v4354 = vpop.permute.xlu0 %4353
      %4355 = vrot.lane.b32.xlu0 %v4272, 3
      %v4356 = vpop.permute.xlu0 %4355
      %4357 = vrot.lane.b32.xlu0 %v4273, 3
      %v4358 = vpop.permute.xlu0 %4357
      %4359 = vrot.lane.b32.xlu0 %v4274, 3
      %v4360 = vpop.permute.xlu0 %4359
      %4361 = vrot.lane.b32.xlu0 %v4275, 3
      %v4362 = vpop.permute.xlu0 %4361
      %4363 = vrot.lane.b32.xlu0 %v4276, 3
      %v4364 = vpop.permute.xlu0 %4363
      %4365 = vrot.lane.b32.xlu0 %v4277, 3
      %v4366 = vpop.permute.xlu0 %4365
      %4367 = vrot.lane.b32.xlu0 %v4278, 3
      %v4368 = vpop.permute.xlu0 %4367
      %4369 = vrot.lane.b32.xlu0 %v4279, 3
      %v4370 = vpop.permute.xlu0 %4369
      %4371 = vrot.lane.b32.xlu0 %v4280, 3
      %v4372 = vpop.permute.xlu0 %4371
      %4373 = vrot.lane.b32.xlu0 %v4281, 3
      %v4374 = vpop.permute.xlu0 %4373
      %4375 = vrot.lane.b32.xlu0 %v4282, 3
      %v4376 = vpop.permute.xlu0 %4375
      %4377 = vrot.lane.b32.xlu0 %v4283, 3
      %v4378 = vpop.permute.xlu0 %4377
      %4379 = vrot.lane.b32.xlu0 %v4284, 3
      %v4380 = vpop.permute.xlu0 %4379
      %v4413 = vsel %vm3659, %v4189, %v4318
      %v4414 = vsel %vm3659, %v4190, %v4320
      %v4415 = vsel %vm3659, %v4191, %v4322
      %v4416 = vsel %vm3659, %v4192, %v4324
      %v4417 = vsel %vm3659, %v4193, %v4326
      %v4418 = vsel %vm3659, %v4194, %v4328
      %v4419 = vsel %vm3659, %v4195, %v4330
      %v4420 = vsel %vm3659, %v4196, %v4332
      %v4421 = vsel %vm3659, %v4197, %v4334
      %v4422 = vsel %vm3659, %v4198, %v4336
      %v4423 = vsel %vm3659, %v4199, %v4338
      %v4424 = vsel %vm3659, %v4200, %v4340
      %v4425 = vsel %vm3659, %v4201, %v4342
      %v4426 = vsel %vm3659, %v4202, %v4344
      %v4427 = vsel %vm3659, %v4203, %v4346
      %v4428 = vsel %vm3659, %v4204, %v4348
      %v4429 = vsel %vm3659, %v4205, %v4350
      %v4430 = vsel %vm3659, %v4206, %v4352
      %v4431 = vsel %vm3659, %v4207, %v4354
      %v4432 = vsel %vm3659, %v4208, %v4356
      %v4433 = vsel %vm3659, %v4209, %v4358
      %v4434 = vsel %vm3659, %v4210, %v4360
      %v4435 = vsel %vm3659, %v4211, %v4362
      %v4436 = vsel %vm3659, %v4212, %v4364
      %v4437 = vsel %vm3659, %v4213, %v4366
      %v4438 = vsel %vm3659, %v4214, %v4368
      %v4439 = vsel %vm3659, %v4215, %v4370
      %v4440 = vsel %vm3659, %v4216, %v4372
      %v4441 = vsel %vm3659, %v4217, %v4374
      %v4442 = vsel %vm3659, %v4218, %v4376
      %v4443 = vsel %vm3659, %v4219, %v4378
      %v4444 = vsel %vm3659, %v4220, %v4380
      %4477 = vrot.lane.b32.xlu0 %v3026, 122
      %v4478 = vpop.permute.xlu0 %4477
      %4479 = vrot.lane.b32.xlu0 %v3027, 122
      %v4480 = vpop.permute.xlu0 %4479
      %4481 = vrot.lane.b32.xlu0 %v3028, 122
      %v4482 = vpop.permute.xlu0 %4481
      %4483 = vrot.lane.b32.xlu0 %v3029, 122
      %v4484 = vpop.permute.xlu0 %4483
      %4485 = vrot.lane.b32.xlu0 %v3030, 122
      %v4486 = vpop.permute.xlu0 %4485
      %4487 = vrot.lane.b32.xlu0 %v3031, 122
      %v4488 = vpop.permute.xlu0 %4487
      %4489 = vrot.lane.b32.xlu0 %v3032, 122
      %v4490 = vpop.permute.xlu0 %4489
      %4491 = vrot.lane.b32.xlu0 %v3033, 122
      %v4492 = vpop.permute.xlu0 %4491
      %4493 = vrot.lane.b32.xlu0 %v3034, 122
      %v4494 = vpop.permute.xlu0 %4493
      %4495 = vrot.lane.b32.xlu0 %v3035, 122
      %v4496 = vpop.permute.xlu0 %4495
      %4497 = vrot.lane.b32.xlu0 %v3036, 122
      %v4498 = vpop.permute.xlu0 %4497
      %4499 = vrot.lane.b32.xlu0 %v3037, 122
      %v4500 = vpop.permute.xlu0 %4499
      %4501 = vrot.lane.b32.xlu0 %v3038, 122
      %v4502 = vpop.permute.xlu0 %4501
      %4503 = vrot.lane.b32.xlu0 %v3039, 122
      %v4504 = vpop.permute.xlu0 %4503
      %4505 = vrot.lane.b32.xlu0 %v3040, 122
      %v4506 = vpop.permute.xlu0 %4505
      %4507 = vrot.lane.b32.xlu0 %v3041, 122
      %v4508 = vpop.permute.xlu0 %4507
      %4509 = vrot.lane.b32.xlu0 %v3042, 122
      %v4510 = vpop.permute.xlu0 %4509
      %4511 = vrot.lane.b32.xlu0 %v3043, 122
      %v4512 = vpop.permute.xlu0 %4511
      %4513 = vrot.lane.b32.xlu0 %v3044, 122
      %v4514 = vpop.permute.xlu0 %4513
      %4515 = vrot.lane.b32.xlu0 %v3045, 122
      %v4516 = vpop.permute.xlu0 %4515
      %4517 = vrot.lane.b32.xlu0 %v3046, 122
      %v4518 = vpop.permute.xlu0 %4517
      %4519 = vrot.lane.b32.xlu0 %v3047, 122
      %v4520 = vpop.permute.xlu0 %4519
      %4521 = vrot.lane.b32.xlu0 %v3048, 122
      %v4522 = vpop.permute.xlu0 %4521
      %4523 = vrot.lane.b32.xlu0 %v3049, 122
      %v4524 = vpop.permute.xlu0 %4523
      %4525 = vrot.lane.b32.xlu0 %v3050, 122
      %v4526 = vpop.permute.xlu0 %4525
      %4527 = vrot.lane.b32.xlu0 %v3051, 122
      %v4528 = vpop.permute.xlu0 %4527
      %4529 = vrot.lane.b32.xlu0 %v3052, 122
      %v4530 = vpop.permute.xlu0 %4529
      %4531 = vrot.lane.b32.xlu0 %v3053, 122
      %v4532 = vpop.permute.xlu0 %4531
      %4533 = vrot.lane.b32.xlu0 %v3054, 122
      %v4534 = vpop.permute.xlu0 %4533
      %4535 = vrot.lane.b32.xlu0 %v3055, 122
      %v4536 = vpop.permute.xlu0 %4535
      %4537 = vrot.lane.b32.xlu0 %v3056, 122
      %v4538 = vpop.permute.xlu0 %4537
      %4539 = vrot.lane.b32.xlu0 %v3057, 122
      %v4540 = vpop.permute.xlu0 %4539
      %4605 = vrot.lane.b32.xlu0 %v4413, 6
      %v4606 = vpop.permute.xlu0 %4605
      %4607 = vrot.lane.b32.xlu0 %v4414, 6
      %v4608 = vpop.permute.xlu0 %4607
      %4609 = vrot.lane.b32.xlu0 %v4415, 6
      %v4610 = vpop.permute.xlu0 %4609
      %4611 = vrot.lane.b32.xlu0 %v4416, 6
      %v4612 = vpop.permute.xlu0 %4611
      %4613 = vrot.lane.b32.xlu0 %v4417, 6
      %v4614 = vpop.permute.xlu0 %4613
      %4615 = vrot.lane.b32.xlu0 %v4418, 6
      %v4616 = vpop.permute.xlu0 %4615
      %4617 = vrot.lane.b32.xlu0 %v4419, 6
      %v4618 = vpop.permute.xlu0 %4617
      %4619 = vrot.lane.b32.xlu0 %v4420, 6
      %v4620 = vpop.permute.xlu0 %4619
      %4621 = vrot.lane.b32.xlu0 %v4421, 6
      %v4622 = vpop.permute.xlu0 %4621
      %4623 = vrot.lane.b32.xlu0 %v4422, 6
      %v4624 = vpop.permute.xlu0 %4623
      %4625 = vrot.lane.b32.xlu0 %v4423, 6
      %v4626 = vpop.permute.xlu0 %4625
      %4627 = vrot.lane.b32.xlu0 %v4424, 6
      %v4628 = vpop.permute.xlu0 %4627
      %4629 = vrot.lane.b32.xlu0 %v4425, 6
      %v4630 = vpop.permute.xlu0 %4629
      %4631 = vrot.lane.b32.xlu0 %v4426, 6
      %v4632 = vpop.permute.xlu0 %4631
      %4633 = vrot.lane.b32.xlu0 %v4427, 6
      %v4634 = vpop.permute.xlu0 %4633
      %4635 = vrot.lane.b32.xlu0 %v4428, 6
      %v4636 = vpop.permute.xlu0 %4635
      %4637 = vrot.lane.b32.xlu0 %v4429, 6
      %v4638 = vpop.permute.xlu0 %4637
      %4639 = vrot.lane.b32.xlu0 %v4430, 6
      %v4640 = vpop.permute.xlu0 %4639
      %4641 = vrot.lane.b32.xlu0 %v4431, 6
      %v4642 = vpop.permute.xlu0 %4641
      %4643 = vrot.lane.b32.xlu0 %v4432, 6
      %v4644 = vpop.permute.xlu0 %4643
      %4645 = vrot.lane.b32.xlu0 %v4433, 6
      %v4646 = vpop.permute.xlu0 %4645
      %4647 = vrot.lane.b32.xlu0 %v4434, 6
      %v4648 = vpop.permute.xlu0 %4647
      %4649 = vrot.lane.b32.xlu0 %v4435, 6
      %v4650 = vpop.permute.xlu0 %4649
      %4651 = vrot.lane.b32.xlu0 %v4436, 6
      %v4652 = vpop.permute.xlu0 %4651
      %4653 = vrot.lane.b32.xlu0 %v4437, 6
      %v4654 = vpop.permute.xlu0 %4653
      %4655 = vrot.lane.b32.xlu0 %v4438, 6
      %v4656 = vpop.permute.xlu0 %4655
      %4657 = vrot.lane.b32.xlu0 %v4439, 6
      %v4658 = vpop.permute.xlu0 %4657
      %4659 = vrot.lane.b32.xlu0 %v4440, 6
      %v4660 = vpop.permute.xlu0 %4659
      %4661 = vrot.lane.b32.xlu0 %v4441, 6
      %v4662 = vpop.permute.xlu0 %4661
      %4663 = vrot.lane.b32.xlu0 %v4442, 6
      %v4664 = vpop.permute.xlu0 %4663
      %4665 = vrot.lane.b32.xlu0 %v4443, 6
      %v4666 = vpop.permute.xlu0 %4665
      %4667 = vrot.lane.b32.xlu0 %v4444, 6
      %v4668 = vpop.permute.xlu0 %4667
      %v4701 = vsel %vm3659, %v4478, %v2834
      %v4702 = vsel %vm3659, %v4480, %v2835
      %v4703 = vsel %vm3659, %v4482, %v2836
      %v4704 = vsel %vm3659, %v4484, %v2837
      %v4705 = vsel %vm3659, %v4486, %v2838
      %v4706 = vsel %vm3659, %v4488, %v2839
      %v4707 = vsel %vm3659, %v4490, %v2840
      %v4708 = vsel %vm3659, %v4492, %v2841
      %v4709 = vsel %vm3659, %v4494, %v2842
      %v4710 = vsel %vm3659, %v4496, %v2843
      %v4711 = vsel %vm3659, %v4498, %v2844
      %v4712 = vsel %vm3659, %v4500, %v2845
      %v4713 = vsel %vm3659, %v4502, %v2846
      %v4714 = vsel %vm3659, %v4504, %v2847
      %v4715 = vsel %vm3659, %v4506, %v2848
      %v4716 = vsel %vm3659, %v4508, %v2849
      %v4717 = vsel %vm3659, %v4510, %v2850
      %v4718 = vsel %vm3659, %v4512, %v2851
      %v4719 = vsel %vm3659, %v4514, %v2852
      %v4720 = vsel %vm3659, %v4516, %v2853
      %v4721 = vsel %vm3659, %v4518, %v2854
      %v4722 = vsel %vm3659, %v4520, %v2855
      %v4723 = vsel %vm3659, %v4522, %v2856
      %v4724 = vsel %vm3659, %v4524, %v2857
      %v4725 = vsel %vm3659, %v4526, %v2858
      %v4726 = vsel %vm3659, %v4528, %v2859
      %v4727 = vsel %vm3659, %v4530, %v2860
      %v4728 = vsel %vm3659, %v4532, %v2861
      %v4729 = vsel %vm3659, %v4534, %v2862
      %v4730 = vsel %vm3659, %v4536, %v2863
      %v4731 = vsel %vm3659, %v4538, %v2864
      %v4732 = vsel %vm3659, %v4540, %v2865
      %v4733 = vsel %vm961, %v4701, %v4606
      %v4734 = vsel %vm961, %v4702, %v4608
      %v4735 = vsel %vm961, %v4703, %v4610
      %v4736 = vsel %vm961, %v4704, %v4612
      %v4737 = vsel %vm961, %v4705, %v4614
      %v4738 = vsel %vm961, %v4706, %v4616
      %v4739 = vsel %vm961, %v4707, %v4618
      %v4740 = vsel %vm961, %v4708, %v4620
      %v4741 = vsel %vm961, %v4709, %v4622
      %v4742 = vsel %vm961, %v4710, %v4624
      %v4743 = vsel %vm961, %v4711, %v4626
      %v4744 = vsel %vm961, %v4712, %v4628
      %v4745 = vsel %vm961, %v4713, %v4630
      %v4746 = vsel %vm961, %v4714, %v4632
      %v4747 = vsel %vm961, %v4715, %v4634
      %v4748 = vsel %vm961, %v4716, %v4636
      %v4749 = vsel %vm961, %v4717, %v4638
      %v4750 = vsel %vm961, %v4718, %v4640
      %v4751 = vsel %vm961, %v4719, %v4642
      %v4752 = vsel %vm961, %v4720, %v4644
      %v4753 = vsel %vm961, %v4721, %v4646
      %v4754 = vsel %vm961, %v4722, %v4648
      %v4755 = vsel %vm961, %v4723, %v4650
      %v4756 = vsel %vm961, %v4724, %v4652
      %v4757 = vsel %vm961, %v4725, %v4654
      %v4758 = vsel %vm961, %v4726, %v4656
      %v4759 = vsel %vm961, %v4727, %v4658
      %v4760 = vsel %vm961, %v4728, %v4660
      %v4761 = vsel %vm961, %v4729, %v4662
      %v4762 = vsel %vm961, %v4730, %v4664
      %v4763 = vsel %vm961, %v4731, %v4666
      %v4764 = vsel %vm961, %v4732, %v4668
      %vm4765 = vcmask 97280
      %v4766 = vsel %vm4765, %v4733, 0.0
      %v4767 = vsel %vm4765, %v4734, 0.0
      %v4768 = vsel %vm4765, %v4735, 0.0
      %v4769 = vsel %vm4765, %v4736, 0.0
      %v4770 = vsel %vm4765, %v4737, 0.0
      %v4771 = vsel %vm4765, %v4738, 0.0
      %v4772 = vsel %vm4765, %v4739, 0.0
      %v4773 = vsel %vm4765, %v4740, 0.0
      %v4774 = vsel %vm4765, %v4741, 0.0
      %v4775 = vsel %vm4765, %v4742, 0.0
      %v4776 = vsel %vm4765, %v4743, 0.0
      %v4777 = vsel %vm4765, %v4744, 0.0
      %v4778 = vsel %vm4765, %v4745, 0.0
      %v4779 = vsel %vm4765, %v4746, 0.0
      %v4780 = vsel %vm4765, %v4747, 0.0
      %v4781 = vsel %vm4765, %v4748, 0.0
      %v4782 = vsel %vm4765, %v4749, 0.0
      %v4783 = vsel %vm4765, %v4750, 0.0
      %v4784 = vsel %vm4765, %v4751, 0.0
      %v4785 = vsel %vm4765, %v4752, 0.0
      %v4786 = vsel %vm4765, %v4753, 0.0
      %v4787 = vsel %vm4765, %v4754, 0.0
      %v4788 = vsel %vm4765, %v4755, 0.0
      %v4789 = vsel %vm4765, %v4756, 0.0
      %v4790 = vsel %vm4765, %v4757, 0.0
      %v4791 = vsel %vm4765, %v4758, 0.0
      %v4792 = vsel %vm4765, %v4759, 0.0
      %v4793 = vsel %vm4765, %v4760, 0.0
      %v4794 = vsel %vm4765, %v4761, 0.0
      %v4795 = vsel %vm4765, %v4762, 0.0
      %v4796 = vsel %vm4765, %v4763, 0.0
      %v4797 = vsel %vm4765, %v4764, 0.0
      %4798 = vst [vmem:[%s602] sm:$0xff] %v4766
      %4799 = vst [vmem:[%s602 + $0x8] sm:$0xff] %v4767
      %4800 = vst [vmem:[%s602 + $0x10] sm:$0xff] %v4768
      %4801 = vst [vmem:[%s602 + $0x18] sm:$0xff] %v4769
      %4802 = vst [vmem:[%s602 + $0x20] sm:$0xff] %v4770
      %4803 = vst [vmem:[%s602 + $0x28] sm:$0xff] %v4771
      %4804 = vst [vmem:[%s602 + $0x30] sm:$0xff] %v4772
      %4805 = vst [vmem:[%s602 + $0x38] sm:$0xff] %v4773
      %4806 = vst [vmem:[%s602 + $0x40] sm:$0xff] %v4774
      %4807 = vst [vmem:[%s602 + $0x48] sm:$0xff] %v4775
      %4808 = vst [vmem:[%s602 + $0x50] sm:$0xff] %v4776
      %4809 = vst [vmem:[%s602 + $0x58] sm:$0xff] %v4777
      %4810 = vst [vmem:[%s602 + $0x60] sm:$0xff] %v4778
      %4811 = vst [vmem:[%s602 + $0x68] sm:$0xff] %v4779
      %4812 = vst [vmem:[%s602 + $0x70] sm:$0xff] %v4780
      %4813 = vst [vmem:[%s602 + $0x78] sm:$0xff] %v4781
      %4814 = vst [vmem:[%s602 + $0x80] sm:$0xff] %v4782
      %4815 = vst [vmem:[%s602 + $0x88] sm:$0xff] %v4783
      %4816 = vst [vmem:[%s602 + $0x90] sm:$0xff] %v4784
      %4817 = vst [vmem:[%s602 + $0x98] sm:$0xff] %v4785
      %4818 = vst [vmem:[%s602 + $0xa0] sm:$0xff] %v4786
      %4819 = vst [vmem:[%s602 + $0xa8] sm:$0xff] %v4787
      %4820 = vst [vmem:[%s602 + $0xb0] sm:$0xff] %v4788
      %4821 = vst [vmem:[%s602 + $0xb8] sm:$0xff] %v4789
      %4822 = vst [vmem:[%s602 + $0xc0] sm:$0xff] %v4790
      %4823 = vst [vmem:[%s602 + $0xc8] sm:$0xff] %v4791
      %4824 = vst [vmem:[%s602 + $0xd0] sm:$0xff] %v4792
      %4825 = vst [vmem:[%s602 + $0xd8] sm:$0xff] %v4793
      %4826 = vst [vmem:[%s602 + $0xe0] sm:$0xff] %v4794
      %4827 = vst [vmem:[%s602 + $0xe8] sm:$0xff] %v4795
      %4828 = vst [vmem:[%s602 + $0xf0] sm:$0xff] %v4796
      %4829 = vst [vmem:[%s602 + $0xf8] sm:$0xff] %v4797
      %v4830 = vld [vmem:[%s10] sm:$0xf]
      %v4831 = vld [vmem:[%s10 + $0x4] sm:$0xf]
      %v4832 = vld [vmem:[%s10 + $0x8] sm:$0xf]
      %v4833 = vld [vmem:[%s10 + $0xc] sm:$0xf]
      %v4834 = vld [vmem:[%s10 + $0x10] sm:$0xf]
      %v4835 = vld [vmem:[%s10 + $0x14] sm:$0xf]
      %v4836 = vld [vmem:[%s10 + $0x18] sm:$0x7]
      %v4837 = vld [vmem:[%s11] sm:$0x1]
      %v4838 = vpack.c.bf16 %v4414, %v4413
      %v4839 = vpack.c.bf16 %v4416, %v4415
      %v4840 = vpack.c.bf16 %v4418, %v4417
      %v4841 = vpack.c.bf16 %v4420, %v4419
      %v4842 = vpack.c.bf16 %v4422, %v4421
      %v4843 = vpack.c.bf16 %v4424, %v4423
      %v4844 = vpack.c.bf16 %v4426, %v4425
      %v4845 = vpack.c.bf16 %v4428, %v4427
      %v4846 = vpack.c.bf16 %v4430, %v4429
      %v4847 = vpack.c.bf16 %v4432, %v4431
      %v4848 = vpack.c.bf16 %v4434, %v4433
      %v4849 = vpack.c.bf16 %v4436, %v4435
      %v4850 = vpack.c.bf16 %v4438, %v4437
      %v4851 = vpack.c.bf16 %v4440, %v4439
      %v4852 = vpack.c.bf16 %v4442, %v4441
      %v4853 = vpack.c.bf16 %v4444, %v4443
      %v4855 = vshrl.u32 %v4838, 16
      %v4857 = vrot.slane %v4855, 7
      %v4858 = vshll.u32 %v4838, 16
      %v4860 = vor.u32 %v4857, %v4858
      %v4862 = vshrl.u32 %v4839, 16
      %v4864 = vrot.slane %v4862, 7
      %v4865 = vshll.u32 %v4839, 16
      %v4867 = vor.u32 %v4864, %v4865
      %v4869 = vshrl.u32 %v4840, 16
      %v4871 = vrot.slane %v4869, 7
      %v4872 = vshll.u32 %v4840, 16
      %v4874 = vor.u32 %v4871, %v4872
      %v4876 = vshrl.u32 %v4841, 16
      %v4878 = vrot.slane %v4876, 7
      %v4879 = vshll.u32 %v4841, 16
      %v4881 = vor.u32 %v4878, %v4879
      %v4883 = vshrl.u32 %v4842, 16
      %v4885 = vrot.slane %v4883, 7
      %v4886 = vshll.u32 %v4842, 16
      %v4888 = vor.u32 %v4885, %v4886
      %v4890 = vshrl.u32 %v4843, 16
      %v4892 = vrot.slane %v4890, 7
      %v4893 = vshll.u32 %v4843, 16
      %v4895 = vor.u32 %v4892, %v4893
      %v4897 = vshrl.u32 %v4844, 16
      %v4899 = vrot.slane %v4897, 7
      %v4900 = vshll.u32 %v4844, 16
      %v4902 = vor.u32 %v4899, %v4900
      %v4904 = vshrl.u32 %v4845, 16
      %v4906 = vrot.slane %v4904, 7
      %v4907 = vshll.u32 %v4845, 16
      %v4909 = vor.u32 %v4906, %v4907
      %v4911 = vshrl.u32 %v4846, 16
      %v4913 = vrot.slane %v4911, 7
      %v4914 = vshll.u32 %v4846, 16
      %v4916 = vor.u32 %v4913, %v4914
      %v4918 = vshrl.u32 %v4847, 16
      %v4920 = vrot.slane %v4918, 7
      %v4921 = vshll.u32 %v4847, 16
      %v4923 = vor.u32 %v4920, %v4921
      %v4925 = vshrl.u32 %v4848, 16
      %v4927 = vrot.slane %v4925, 7
      %v4928 = vshll.u32 %v4848, 16
      %v4930 = vor.u32 %v4927, %v4928
      %v4932 = vshrl.u32 %v4849, 16
      %v4934 = vrot.slane %v4932, 7
      %v4935 = vshll.u32 %v4849, 16
      %v4937 = vor.u32 %v4934, %v4935
      %v4939 = vshrl.u32 %v4850, 16
      %v4941 = vrot.slane %v4939, 7
      %v4942 = vshll.u32 %v4850, 16
      %v4944 = vor.u32 %v4941, %v4942
      %v4946 = vshrl.u32 %v4851, 16
      %v4948 = vrot.slane %v4946, 7
      %v4949 = vshll.u32 %v4851, 16
      %v4951 = vor.u32 %v4948, %v4949
      %v4953 = vshrl.u32 %v4852, 16
      %v4955 = vrot.slane %v4953, 7
      %v4956 = vshll.u32 %v4852, 16
      %v4958 = vor.u32 %v4955, %v4956
      %v4960 = vshrl.u32 %v4853, 16
      %v4962 = vrot.slane %v4960, 7
      %v4963 = vshll.u32 %v4853, 16
      %v4965 = vor.u32 %v4962, %v4963
      %v4998 = vsel %vm1219, 0, %v4860
      %v4999 = vsel %vm1219, 0, %v4867
      %v5000 = vsel %vm1219, 0, %v4874
      %v5001 = vsel %vm1219, 0, %v4881
      %v5002 = vsel %vm1219, 0, %v4888
      %v5003 = vsel %vm1219, 0, %v4895
      %v5004 = vsel %vm1219, 0, %v4902
      %v5005 = vsel %vm1219, 0, %v4909
      %v5006 = vsel %vm1219, 0, %v4916
      %v5007 = vsel %vm1219, 0, %v4923
      %v5008 = vsel %vm1219, 0, %v4930
      %v5009 = vsel %vm1219, 0, %v4937
      %v5010 = vsel %vm1219, 0, %v4944
      %v5011 = vsel %vm1219, 0, %v4951
      %v5012 = vsel %vm1219, 0, %v4958
      %v5013 = vsel %vm1219, 0, %v4965
      %v5014 = vsel %vm1219, %v4857, 0
      %v5015 = vsel %vm1219, %v4864, 0
      %v5016 = vsel %vm1219, %v4871, 0
      %v5017 = vsel %vm1219, %v4878, 0
      %v5018 = vsel %vm1219, %v4885, 0
      %v5019 = vsel %vm1219, %v4892, 0
      %v5020 = vsel %vm1219, %v4899, 0
      %v5021 = vsel %vm1219, %v4906, 0
      %v5022 = vsel %vm1219, %v4913, 0
      %v5023 = vsel %vm1219, %v4920, 0
      %v5024 = vsel %vm1219, %v4927, 0
      %v5025 = vsel %vm1219, %v4934, 0
      %v5026 = vsel %vm1219, %v4941, 0
      %v5027 = vsel %vm1219, %v4948, 0
      %v5028 = vsel %vm1219, %v4955, 0
      %v5029 = vsel %vm1219, %v4962, 0
      %v5031 = vshrl.u32 %v4998, 16
      %v5033 = vshll.u32 %v4998, 16
      %v5035 = vrot.slane %v5033, 1
      %v5036 = vor.u32 %v5031, %v5035
      %v5038 = vshll.u32 %v5014, 16
      %v5040 = vrot.slane %v5038, 1
      %v5041 = vsel %vm1252, %v5036, %v5040
      %v5043 = vshrl.u32 %v4999, 16
      %v5045 = vshll.u32 %v4999, 16
      %v5047 = vrot.slane %v5045, 1
      %v5048 = vor.u32 %v5043, %v5047
      %v5050 = vshll.u32 %v5015, 16
      %v5052 = vrot.slane %v5050, 1
      %v5053 = vsel %vm1252, %v5048, %v5052
      %v5055 = vshrl.u32 %v5000, 16
      %v5057 = vshll.u32 %v5000, 16
      %v5059 = vrot.slane %v5057, 1
      %v5060 = vor.u32 %v5055, %v5059
      %v5062 = vshll.u32 %v5016, 16
      %v5064 = vrot.slane %v5062, 1
      %v5065 = vsel %vm1252, %v5060, %v5064
      %v5067 = vshrl.u32 %v5001, 16
      %v5069 = vshll.u32 %v5001, 16
      %v5071 = vrot.slane %v5069, 1
      %v5072 = vor.u32 %v5067, %v5071
      %v5074 = vshll.u32 %v5017, 16
      %v5076 = vrot.slane %v5074, 1
      %v5077 = vsel %vm1252, %v5072, %v5076
      %v5079 = vshrl.u32 %v5002, 16
      %v5081 = vshll.u32 %v5002, 16
      %v5083 = vrot.slane %v5081, 1
      %v5084 = vor.u32 %v5079, %v5083
      %v5086 = vshll.u32 %v5018, 16
      %v5088 = vrot.slane %v5086, 1
      %v5089 = vsel %vm1252, %v5084, %v5088
      %v5091 = vshrl.u32 %v5003, 16
      %v5093 = vshll.u32 %v5003, 16
      %v5095 = vrot.slane %v5093, 1
      %v5096 = vor.u32 %v5091, %v5095
      %v5098 = vshll.u32 %v5019, 16
      %v5100 = vrot.slane %v5098, 1
      %v5101 = vsel %vm1252, %v5096, %v5100
      %v5103 = vshrl.u32 %v5004, 16
      %v5105 = vshll.u32 %v5004, 16
      %v5107 = vrot.slane %v5105, 1
      %v5108 = vor.u32 %v5103, %v5107
      %v5110 = vshll.u32 %v5020, 16
      %v5112 = vrot.slane %v5110, 1
      %v5113 = vsel %vm1252, %v5108, %v5112
      %v5115 = vshrl.u32 %v5005, 16
      %v5117 = vshll.u32 %v5005, 16
      %v5119 = vrot.slane %v5117, 1
      %v5120 = vor.u32 %v5115, %v5119
      %v5122 = vshll.u32 %v5021, 16
      %v5124 = vrot.slane %v5122, 1
      %v5125 = vsel %vm1252, %v5120, %v5124
      %v5127 = vshrl.u32 %v5006, 16
      %v5129 = vshll.u32 %v5006, 16
      %v5131 = vrot.slane %v5129, 1
      %v5132 = vor.u32 %v5127, %v5131
      %v5134 = vshll.u32 %v5022, 16
      %v5136 = vrot.slane %v5134, 1
      %v5137 = vsel %vm1252, %v5132, %v5136
      %v5139 = vshrl.u32 %v5007, 16
      %v5141 = vshll.u32 %v5007, 16
      %v5143 = vrot.slane %v5141, 1
      %v5144 = vor.u32 %v5139, %v5143
      %v5146 = vshll.u32 %v5023, 16
      %v5148 = vrot.slane %v5146, 1
      %v5149 = vsel %vm1252, %v5144, %v5148
      %v5151 = vshrl.u32 %v5008, 16
      %v5153 = vshll.u32 %v5008, 16
      %v5155 = vrot.slane %v5153, 1
      %v5156 = vor.u32 %v5151, %v5155
      %v5158 = vshll.u32 %v5024, 16
      %v5160 = vrot.slane %v5158, 1
      %v5161 = vsel %vm1252, %v5156, %v5160
      %v5163 = vshrl.u32 %v5009, 16
      %v5165 = vshll.u32 %v5009, 16
      %v5167 = vrot.slane %v5165, 1
      %v5168 = vor.u32 %v5163, %v5167
      %v5170 = vshll.u32 %v5025, 16
      %v5172 = vrot.slane %v5170, 1
      %v5173 = vsel %vm1252, %v5168, %v5172
      %v5175 = vshrl.u32 %v5010, 16
      %v5177 = vshll.u32 %v5010, 16
      %v5179 = vrot.slane %v5177, 1
      %v5180 = vor.u32 %v5175, %v5179
      %v5182 = vshll.u32 %v5026, 16
      %v5184 = vrot.slane %v5182, 1
      %v5185 = vsel %vm1252, %v5180, %v5184
      %v5187 = vshrl.u32 %v5011, 16
      %v5189 = vshll.u32 %v5011, 16
      %v5191 = vrot.slane %v5189, 1
      %v5192 = vor.u32 %v5187, %v5191
      %v5194 = vshll.u32 %v5027, 16
      %v5196 = vrot.slane %v5194, 1
      %v5197 = vsel %vm1252, %v5192, %v5196
      %v5199 = vshrl.u32 %v5012, 16
      %v5201 = vshll.u32 %v5012, 16
      %v5203 = vrot.slane %v5201, 1
      %v5204 = vor.u32 %v5199, %v5203
      %v5206 = vshll.u32 %v5028, 16
      %v5208 = vrot.slane %v5206, 1
      %v5209 = vsel %vm1252, %v5204, %v5208
      %v5211 = vshrl.u32 %v5013, 16
      %v5213 = vshll.u32 %v5013, 16
      %v5215 = vrot.slane %v5213, 1
      %v5216 = vor.u32 %v5211, %v5215
      %v5218 = vshll.u32 %v5029, 16
      %v5220 = vrot.slane %v5218, 1
      %v5221 = vsel %vm1252, %v5216, %v5220
      %5222 = vrot.lane.b32.xlu0 %v1260, 6
      %v5223 = vpop.permute.xlu0 %5222
      %5224 = vrot.lane.b32.xlu0 %v5041, 6
      %v5225 = vpop.permute.xlu0 %5224
      %5226 = vrot.lane.b32.xlu0 %v5053, 6
      %v5227 = vpop.permute.xlu0 %5226
      %5228 = vrot.lane.b32.xlu0 %v5065, 6
      %v5229 = vpop.permute.xlu0 %5228
      %5230 = vrot.lane.b32.xlu0 %v5077, 6
      %v5231 = vpop.permute.xlu0 %5230
      %5232 = vrot.lane.b32.xlu0 %v5089, 6
      %v5233 = vpop.permute.xlu0 %5232
      %5234 = vrot.lane.b32.xlu0 %v5101, 6
      %v5235 = vpop.permute.xlu0 %5234
      %5236 = vrot.lane.b32.xlu0 %v5113, 6
      %v5237 = vpop.permute.xlu0 %5236
      %5238 = vrot.lane.b32.xlu0 %v5125, 6
      %v5239 = vpop.permute.xlu0 %5238
      %5240 = vrot.lane.b32.xlu0 %v5137, 6
      %v5241 = vpop.permute.xlu0 %5240
      %5242 = vrot.lane.b32.xlu0 %v5149, 6
      %v5243 = vpop.permute.xlu0 %5242
      %5244 = vrot.lane.b32.xlu0 %v5161, 6
      %v5245 = vpop.permute.xlu0 %5244
      %5246 = vrot.lane.b32.xlu0 %v5173, 6
      %v5247 = vpop.permute.xlu0 %5246
      %5248 = vrot.lane.b32.xlu0 %v5185, 6
      %v5249 = vpop.permute.xlu0 %5248
      %5250 = vrot.lane.b32.xlu0 %v5197, 6
      %v5251 = vpop.permute.xlu0 %5250
      %5252 = vrot.lane.b32.xlu0 %v5209, 6
      %v5253 = vpop.permute.xlu0 %5252
      %5254 = vrot.lane.b32.xlu0 %v5221, 6
      %v5255 = vpop.permute.xlu0 %5254
      %v5288 = vrot.slane %v4998, 1
      %v5289 = vrot.slane %v5014, 1
      %v5290 = vsel %vm1520, %v5288, %v5289
      %v5291 = vrot.slane %v4999, 1
      %v5292 = vrot.slane %v5015, 1
      %v5293 = vsel %vm1520, %v5291, %v5292
      %v5294 = vrot.slane %v5000, 1
      %v5295 = vrot.slane %v5016, 1
      %v5296 = vsel %vm1520, %v5294, %v5295
      %v5297 = vrot.slane %v5001, 1
      %v5298 = vrot.slane %v5017, 1
      %v5299 = vsel %vm1520, %v5297, %v5298
      %v5300 = vrot.slane %v5002, 1
      %v5301 = vrot.slane %v5018, 1
      %v5302 = vsel %vm1520, %v5300, %v5301
      %v5303 = vrot.slane %v5003, 1
      %v5304 = vrot.slane %v5019, 1
      %v5305 = vsel %vm1520, %v5303, %v5304
      %v5306 = vrot.slane %v5004, 1
      %v5307 = vrot.slane %v5020, 1
      %v5308 = vsel %vm1520, %v5306, %v5307
      %v5309 = vrot.slane %v5005, 1
      %v5310 = vrot.slane %v5021, 1
      %v5311 = vsel %vm1520, %v5309, %v5310
      %v5312 = vrot.slane %v5006, 1
      %v5313 = vrot.slane %v5022, 1
      %v5314 = vsel %vm1520, %v5312, %v5313
      %v5315 = vrot.slane %v5007, 1
      %v5316 = vrot.slane %v5023, 1
      %v5317 = vsel %vm1520, %v5315, %v5316
      %v5318 = vrot.slane %v5008, 1
      %v5319 = vrot.slane %v5024, 1
      %v5320 = vsel %vm1520, %v5318, %v5319
      %v5321 = vrot.slane %v5009, 1
      %v5322 = vrot.slane %v5025, 1
      %v5323 = vsel %vm1520, %v5321, %v5322
      %v5324 = vrot.slane %v5010, 1
      %v5325 = vrot.slane %v5026, 1
      %v5326 = vsel %vm1520, %v5324, %v5325
      %v5327 = vrot.slane %v5011, 1
      %v5328 = vrot.slane %v5027, 1
      %v5329 = vsel %vm1520, %v5327, %v5328
      %v5330 = vrot.slane %v5012, 1
      %v5331 = vrot.slane %v5028, 1
      %v5332 = vsel %vm1520, %v5330, %v5331
      %v5333 = vrot.slane %v5013, 1
      %v5334 = vrot.slane %v5029, 1
      %v5335 = vsel %vm1520, %v5333, %v5334
      %5336 = vrot.lane.b32.xlu0 %v1522, 12
      %v5337 = vpop.permute.xlu0 %5336
      %5338 = vrot.lane.b32.xlu0 %v5290, 12
      %v5339 = vpop.permute.xlu0 %5338
      %5340 = vrot.lane.b32.xlu0 %v5293, 12
      %v5341 = vpop.permute.xlu0 %5340
      %5342 = vrot.lane.b32.xlu0 %v5296, 12
      %v5343 = vpop.permute.xlu0 %5342
      %5344 = vrot.lane.b32.xlu0 %v5299, 12
      %v5345 = vpop.permute.xlu0 %5344
      %5346 = vrot.lane.b32.xlu0 %v5302, 12
      %v5347 = vpop.permute.xlu0 %5346
      %5348 = vrot.lane.b32.xlu0 %v5305, 12
      %v5349 = vpop.permute.xlu0 %5348
      %5350 = vrot.lane.b32.xlu0 %v5308, 12
      %v5351 = vpop.permute.xlu0 %5350
      %5352 = vrot.lane.b32.xlu0 %v5311, 12
      %v5353 = vpop.permute.xlu0 %5352
      %5354 = vrot.lane.b32.xlu0 %v5314, 12
      %v5355 = vpop.permute.xlu0 %5354
      %5356 = vrot.lane.b32.xlu0 %v5317, 12
      %v5357 = vpop.permute.xlu0 %5356
      %5358 = vrot.lane.b32.xlu0 %v5320, 12
      %v5359 = vpop.permute.xlu0 %5358
      %5360 = vrot.lane.b32.xlu0 %v5323, 12
      %v5361 = vpop.permute.xlu0 %5360
      %5362 = vrot.lane.b32.xlu0 %v5326, 12
      %v5363 = vpop.permute.xlu0 %5362
      %5364 = vrot.lane.b32.xlu0 %v5329, 12
      %v5365 = vpop.permute.xlu0 %5364
      %5366 = vrot.lane.b32.xlu0 %v5332, 12
      %v5367 = vpop.permute.xlu0 %5366
      %5368 = vrot.lane.b32.xlu0 %v5335, 12
      %v5369 = vpop.permute.xlu0 %5368
      %v5371 = vsel %vm961, 0, %v5223
      %v5373 = vsel %vm961, %v4998, %v5225
      %v5375 = vsel %vm961, %v4999, %v5227
      %v5377 = vsel %vm961, %v5000, %v5229
      %v5379 = vsel %vm961, %v5001, %v5231
      %v5381 = vsel %vm961, %v5002, %v5233
      %v5383 = vsel %vm961, %v5003, %v5235
      %v5385 = vsel %vm961, %v5004, %v5237
      %v5387 = vsel %vm961, %v5005, %v5239
      %v5389 = vsel %vm961, %v5006, %v5241
      %v5391 = vsel %vm961, %v5007, %v5243
      %v5393 = vsel %vm961, %v5008, %v5245
      %v5395 = vsel %vm961, %v5009, %v5247
      %v5397 = vsel %vm961, %v5010, %v5249
      %v5399 = vsel %vm961, %v5011, %v5251
      %v5401 = vsel %vm961, %v5012, %v5253
      %v5403 = vsel %vm961, %v5013, %v5255
      %v5405 = vsel %vm4765, %v5371, %v5337
      %v5407 = vsel %vm4765, %v5373, %v5339
      %v5409 = vsel %vm4765, %v5375, %v5341
      %v5411 = vsel %vm4765, %v5377, %v5343
      %v5413 = vsel %vm4765, %v5379, %v5345
      %v5415 = vsel %vm4765, %v5381, %v5347
      %v5417 = vsel %vm4765, %v5383, %v5349
      %v5419 = vsel %vm4765, %v5385, %v5351
      %v5421 = vsel %vm4765, %v5387, %v5353
      %v5423 = vsel %vm4765, %v5389, %v5355
      %v5425 = vsel %vm4765, %v5391, %v5357
      %v5427 = vsel %vm4765, %v5393, %v5359
      %v5429 = vsel %vm4765, %v5395, %v5361
      %v5431 = vsel %vm4765, %v5397, %v5363
      %v5433 = vsel %vm4765, %v5399, %v5365
      %v5435 = vsel %vm4765, %v5401, %v5367
      %v5437 = vsel %vm4765, %v5403, %v5369
      %5454 = vrot.lane.b32.xlu0 %v5407, 18
      %v5455 = vpop.permute.xlu0 %5454
      %5456 = vrot.lane.b32.xlu0 %v5409, 18
      %v5457 = vpop.permute.xlu0 %5456
      %5458 = vrot.lane.b32.xlu0 %v5411, 18
      %v5459 = vpop.permute.xlu0 %5458
      %5460 = vrot.lane.b32.xlu0 %v5413, 18
      %v5461 = vpop.permute.xlu0 %5460
      %5462 = vrot.lane.b32.xlu0 %v5415, 18
      %v5463 = vpop.permute.xlu0 %5462
      %5464 = vrot.lane.b32.xlu0 %v5417, 18
      %v5465 = vpop.permute.xlu0 %5464
      %5466 = vrot.lane.b32.xlu0 %v5419, 18
      %v5467 = vpop.permute.xlu0 %5466
      %5468 = vrot.lane.b32.xlu0 %v5421, 18
      %v5469 = vpop.permute.xlu0 %5468
      %5470 = vrot.lane.b32.xlu0 %v5423, 18
      %v5471 = vpop.permute.xlu0 %5470
      %5472 = vrot.lane.b32.xlu0 %v5425, 18
      %v5473 = vpop.permute.xlu0 %5472
      %5474 = vrot.lane.b32.xlu0 %v5427, 18
      %v5475 = vpop.permute.xlu0 %5474
      %5476 = vrot.lane.b32.xlu0 %v5429, 18
      %v5477 = vpop.permute.xlu0 %5476
      %5478 = vrot.lane.b32.xlu0 %v5431, 18
      %v5479 = vpop.permute.xlu0 %5478
      %5480 = vrot.lane.b32.xlu0 %v5433, 18
      %v5481 = vpop.permute.xlu0 %5480
      %5482 = vrot.lane.b32.xlu0 %v5435, 18
      %v5483 = vpop.permute.xlu0 %5482
      %5484 = vrot.lane.b32.xlu0 %v5437, 18
      %v5485 = vpop.permute.xlu0 %5484
      %5487 = vrot.lane.b32.xlu0 %v5409, 36
      %v5488 = vpop.permute.xlu0 %5487
      %5489 = vrot.lane.b32.xlu0 %v5411, 36
      %v5490 = vpop.permute.xlu0 %5489
      %5491 = vrot.lane.b32.xlu0 %v5413, 36
      %v5492 = vpop.permute.xlu0 %5491
      %5493 = vrot.lane.b32.xlu0 %v5415, 36
      %v5494 = vpop.permute.xlu0 %5493
      %5495 = vrot.lane.b32.xlu0 %v5417, 36
      %v5496 = vpop.permute.xlu0 %5495
      %5497 = vrot.lane.b32.xlu0 %v5419, 36
      %v5498 = vpop.permute.xlu0 %5497
      %5499 = vrot.lane.b32.xlu0 %v5421, 36
      %v5500 = vpop.permute.xlu0 %5499
      %5501 = vrot.lane.b32.xlu0 %v5423, 36
      %v5502 = vpop.permute.xlu0 %5501
      %5503 = vrot.lane.b32.xlu0 %v5425, 36
      %v5504 = vpop.permute.xlu0 %5503
      %5505 = vrot.lane.b32.xlu0 %v5427, 36
      %v5506 = vpop.permute.xlu0 %5505
      %5507 = vrot.lane.b32.xlu0 %v5429, 36
      %v5508 = vpop.permute.xlu0 %5507
      %5509 = vrot.lane.b32.xlu0 %v5431, 36
      %v5510 = vpop.permute.xlu0 %5509
      %5511 = vrot.lane.b32.xlu0 %v5433, 36
      %v5512 = vpop.permute.xlu0 %5511
      %5513 = vrot.lane.b32.xlu0 %v5435, 36
      %v5514 = vpop.permute.xlu0 %5513
      %5515 = vrot.lane.b32.xlu0 %v5437, 36
      %v5516 = vpop.permute.xlu0 %5515
      %5517 = vrot.lane.b32.xlu0 %v5405, 36
      %v5518 = vpop.permute.xlu0 %5517
      %v5520 = vsel %vm3842, %v5405, %v5455
      %v5522 = vsel %vm3842, %v5407, %v5457
      %v5524 = vsel %vm3842, %v5409, %v5459
      %v5526 = vsel %vm3842, %v5411, %v5461
      %v5528 = vsel %vm3842, %v5413, %v5463
      %v5530 = vsel %vm3842, %v5415, %v5465
      %v5532 = vsel %vm3842, %v5417, %v5467
      %v5534 = vsel %vm3842, %v5419, %v5469
      %v5536 = vsel %vm3842, %v5421, %v5471
      %v5538 = vsel %vm3842, %v5423, %v5473
      %v5540 = vsel %vm3842, %v5425, %v5475
      %v5542 = vsel %vm3842, %v5427, %v5477
      %v5544 = vsel %vm3842, %v5429, %v5479
      %v5546 = vsel %vm3842, %v5431, %v5481
      %v5548 = vsel %vm3842, %v5433, %v5483
      %v5550 = vsel %vm3842, %v5435, %v5485
      %vm5551 = vcmask 293888
      %v5553 = vsel %vm5551, %v5520, %v5488
      %v5555 = vsel %vm5551, %v5522, %v5490
      %v5557 = vsel %vm5551, %v5524, %v5492
      %v5559 = vsel %vm5551, %v5526, %v5494
      %v5561 = vsel %vm5551, %v5528, %v5496
      %v5563 = vsel %vm5551, %v5530, %v5498
      %v5565 = vsel %vm5551, %v5532, %v5500
      %v5567 = vsel %vm5551, %v5534, %v5502
      %v5569 = vsel %vm5551, %v5536, %v5504
      %v5571 = vsel %vm5551, %v5538, %v5506
      %v5573 = vsel %vm5551, %v5540, %v5508
      %v5575 = vsel %vm5551, %v5542, %v5510
      %v5577 = vsel %vm5551, %v5544, %v5512
      %v5579 = vsel %vm5551, %v5546, %v5514
      %v5581 = vsel %vm5551, %v5548, %v5516
      %v5583 = vsel %vm5551, %v5550, %v5518
      %v5585 = vlaneseq
      %v5586 = vshrl.u32 %v5585, 7
      %v5587 = vsub.s32 0, %v5586
      %v5588 = vrot.slane %v4837, %v5587
      %v5597 = vunpack.c.l.b16 %v4830
      %v5598 = vunpack.c.l.b16 %v4831
      %v5599 = vunpack.c.l.b16 %v4832
      %v5600 = vunpack.c.l.b16 %v4833
      %v5601 = vunpack.c.l.b16 %v4834
      %v5602 = vunpack.c.l.b16 %v4835
      %v5603 = vunpack.c.l.b16 %v4836
      %v5604 = vpack.c.b16 %v5598, %v5597
      %v5605 = vpack.c.b16 %v5600, %v5599
      %v5606 = vpack.c.b16 %v5602, %v5601
      %v5607 = vpack.c.b16 %v5603, %v5603
      %vm5611 = vcmask 441344
      %v5612 = vsel %vm5611, %v5553, 0
      %v5614 = vsel %vm5611, %v5555, 0
      %v5616 = vsel %vm5611, %v5557, 0
      %v5618 = vsel %vm5611, %v5559, 0
      %v5620 = vsel %vm5611, %v5561, 0
      %v5622 = vsel %vm5611, %v5563, 0
      %v5624 = vsel %vm5611, %v5565, 0
      %v5626 = vsel %vm5611, %v5567, 0
      %v5628 = vsel %vm5611, %v5569, 0
      %v5630 = vsel %vm5611, %v5571, 0
      %v5632 = vsel %vm5611, %v5573, 0
      %v5634 = vsel %vm5611, %v5575, 0
      %v5636 = vsel %vm5611, %v5577, 0
      %v5638 = vsel %vm5611, %v5579, 0
      %v5640 = vsel %vm5611, %v5581, 0
      %v5642 = vsel %vm5611, %v5583, 0
      %vm5644 = vcmask 1042432
      %v5646 = vsel %vm5644, %v5607, 0
      %5648 = vmatprep.subr.bf16.mxu0 0
      %5649 = vmatpush1.bf16.msra.mxu0 0
      %5650 = vmatprep.subr.bf16.mxu0 0
      %5651 = vmatpush1.bf16.msra.mxu0 0
      %5652 = vmatprep.subr.bf16.mxu0 0
      %5653 = vmatpush1.bf16.msra.mxu0 0
      %5654 = vmatprep.subr.bf16.mxu0 0
      %5655 = vmatpush1.bf16.msra.mxu0 0
      %5656 = vmatprep.subr.bf16.mxu0 0
      %5657 = vmatpush1.bf16.msra.mxu0 %v5646
      %5658 = vmatprep.subr.bf16.mxu0 0
      %5659 = vmatpush1.bf16.msra.mxu0 %v5606
      %5660 = vmatprep.subr.bf16.mxu0 0
      %5661 = vmatpush1.bf16.msra.mxu0 %v5605
      %5662 = vmatprep.subr.bf16.mxu0 0
      %5663 = vmatpush1.bf16.msra.mxu0 %v5604
      %5664 = vmatprep.subr.bf16.mxu0 0
      %5665 = vmatpush2.bf16.msra.mxu0 0
      %5666 = vmatprep.subr.bf16.mxu0 0
      %5667 = vmatpush2.bf16.msra.mxu0 0
      %5668 = vmatprep.subr.bf16.mxu0 0
      %5669 = vmatpush2.bf16.msra.mxu0 0
      %5670 = vmatprep.subr.bf16.mxu0 0
      %5671 = vmatpush2.bf16.msra.mxu0 0
      %5672 = vmatprep.subr.bf16.mxu0 0
      %5673 = vmatpush2.bf16.msra.mxu0 0
      %5674 = vmatprep.subr.bf16.mxu0 0
      %5675 = vmatpush2.bf16.msra.mxu0 0
      %5676 = vmatprep.subr.bf16.mxu0 0
      %5677 = vmatpush2.bf16.msra.mxu0 0
      %5678 = vmatprep.subr.bf16.mxu0 0
      %5679 = vmatpush2.bf16.msra.mxu0 0
      %5680 = vmatprep.mubr.bf16.mxu0 0
      %5681 = vmatmul.mubr.bf16.gmra.mxu0 %v5612
      %v5682 = vpop.f32.mrf.mxu0
      %v5683 = vadd.f32 %v5588, %v5682
      %v5684 = vpop.f32.mrf.mxu0
      %v5685 = vpop.f32.mrf.mxu0
      %v5686 = vadd.f32 %v5588, %v5685
      %v5687 = vpop.f32.mrf.mxu0
      %5688 = vmatprep.mubr.bf16.mxu0 0
      %5689 = vmatmul.mubr.bf16.gmra.mxu0 %v5614
      %v5690 = vpop.f32.mrf.mxu0
      %v5691 = vadd.f32 %v5588, %v5690
      %v5692 = vpop.f32.mrf.mxu0
      %v5693 = vpop.f32.mrf.mxu0
      %v5694 = vadd.f32 %v5588, %v5693
      %v5695 = vpop.f32.mrf.mxu0
      %5696 = vmatprep.mubr.bf16.mxu0 0
      %5697 = vmatmul.mubr.bf16.gmra.mxu0 %v5616
      %v5698 = vpop.f32.mrf.mxu0
      %v5699 = vadd.f32 %v5588, %v5698
      %v5700 = vpop.f32.mrf.mxu0
      %v5701 = vpop.f32.mrf.mxu0
      %v5702 = vadd.f32 %v5588, %v5701
      %v5703 = vpop.f32.mrf.mxu0
      %5704 = vmatprep.mubr.bf16.mxu0 0
      %5705 = vmatmul.mubr.bf16.gmra.mxu0 %v5618
      %v5706 = vpop.f32.mrf.mxu0
      %v5707 = vadd.f32 %v5588, %v5706
      %v5708 = vpop.f32.mrf.mxu0
      %v5709 = vpop.f32.mrf.mxu0
      %v5710 = vadd.f32 %v5588, %v5709
      %v5711 = vpop.f32.mrf.mxu0
      %5712 = vmatprep.mubr.bf16.mxu0 0
      %5713 = vmatmul.mubr.bf16.gmra.mxu0 %v5620
      %v5714 = vpop.f32.mrf.mxu0
      %v5715 = vadd.f32 %v5588, %v5714
      %v5716 = vpop.f32.mrf.mxu0
      %v5717 = vpop.f32.mrf.mxu0
      %v5718 = vadd.f32 %v5588, %v5717
      %v5719 = vpop.f32.mrf.mxu0
      %5720 = vmatprep.mubr.bf16.mxu0 0
      %5721 = vmatmul.mubr.bf16.gmra.mxu0 %v5622
      %v5722 = vpop.f32.mrf.mxu0
      %v5723 = vadd.f32 %v5588, %v5722
      %v5724 = vpop.f32.mrf.mxu0
      %v5725 = vpop.f32.mrf.mxu0
      %v5726 = vadd.f32 %v5588, %v5725
      %v5727 = vpop.f32.mrf.mxu0
      %5728 = vmatprep.mubr.bf16.mxu0 0
      %5729 = vmatmul.mubr.bf16.gmra.mxu0 %v5624
      %v5730 = vpop.f32.mrf.mxu0
      %v5731 = vadd.f32 %v5588, %v5730
      %v5732 = vpop.f32.mrf.mxu0
      %v5733 = vpop.f32.mrf.mxu0
      %v5734 = vadd.f32 %v5588, %v5733
      %v5735 = vpop.f32.mrf.mxu0
      %5736 = vmatprep.mubr.bf16.mxu0 0
      %5737 = vmatmul.mubr.bf16.gmra.mxu0 %v5626
      %v5738 = vpop.f32.mrf.mxu0
      %v5739 = vadd.f32 %v5588, %v5738
      %v5740 = vpop.f32.mrf.mxu0
      %v5741 = vpop.f32.mrf.mxu0
      %v5742 = vadd.f32 %v5588, %v5741
      %v5743 = vpop.f32.mrf.mxu0
      %5744 = vmatprep.mubr.bf16.mxu0 0
      %5745 = vmatmul.mubr.bf16.gmra.mxu0 %v5628
      %v5746 = vpop.f32.mrf.mxu0
      %v5747 = vadd.f32 %v5588, %v5746
      %v5748 = vpop.f32.mrf.mxu0
      %v5749 = vpop.f32.mrf.mxu0
      %v5750 = vadd.f32 %v5588, %v5749
      %v5751 = vpop.f32.mrf.mxu0
      %5752 = vmatprep.mubr.bf16.mxu0 0
      %5753 = vmatmul.mubr.bf16.gmra.mxu0 %v5630
      %v5754 = vpop.f32.mrf.mxu0
      %v5755 = vadd.f32 %v5588, %v5754
      %v5756 = vpop.f32.mrf.mxu0
      %v5757 = vpop.f32.mrf.mxu0
      %v5758 = vadd.f32 %v5588, %v5757
      %v5759 = vpop.f32.mrf.mxu0
      %5760 = vmatprep.mubr.bf16.mxu0 0
      %5761 = vmatmul.mubr.bf16.gmra.mxu0 %v5632
      %v5762 = vpop.f32.mrf.mxu0
      %v5763 = vadd.f32 %v5588, %v5762
      %v5764 = vpop.f32.mrf.mxu0
      %v5765 = vpop.f32.mrf.mxu0
      %v5766 = vadd.f32 %v5588, %v5765
      %v5767 = vpop.f32.mrf.mxu0
      %5768 = vmatprep.mubr.bf16.mxu0 0
      %5769 = vmatmul.mubr.bf16.gmra.mxu0 %v5634
      %v5770 = vpop.f32.mrf.mxu0
      %v5771 = vadd.f32 %v5588, %v5770
      %v5772 = vpop.f32.mrf.mxu0
      %v5773 = vpop.f32.mrf.mxu0
      %v5774 = vadd.f32 %v5588, %v5773
      %v5775 = vpop.f32.mrf.mxu0
      %5776 = vmatprep.mubr.bf16.mxu0 0
      %5777 = vmatmul.mubr.bf16.gmra.mxu0 %v5636
      %v5778 = vpop.f32.mrf.mxu0
      %v5779 = vadd.f32 %v5588, %v5778
      %v5780 = vpop.f32.mrf.mxu0
      %v5781 = vpop.f32.mrf.mxu0
      %v5782 = vadd.f32 %v5588, %v5781
      %v5783 = vpop.f32.mrf.mxu0
      %5784 = vmatprep.mubr.bf16.mxu0 0
      %5785 = vmatmul.mubr.bf16.gmra.mxu0 %v5638
      %v5786 = vpop.f32.mrf.mxu0
      %v5787 = vadd.f32 %v5588, %v5786
      %v5788 = vpop.f32.mrf.mxu0
      %v5789 = vpop.f32.mrf.mxu0
      %v5790 = vadd.f32 %v5588, %v5789
      %v5791 = vpop.f32.mrf.mxu0
      %5792 = vmatprep.mubr.bf16.mxu0 0
      %5793 = vmatmul.mubr.bf16.gmra.mxu0 %v5640
      %v5794 = vpop.f32.mrf.mxu0
      %v5795 = vadd.f32 %v5588, %v5794
      %v5796 = vpop.f32.mrf.mxu0
      %v5797 = vpop.f32.mrf.mxu0
      %v5798 = vadd.f32 %v5588, %v5797
      %v5799 = vpop.f32.mrf.mxu0
      %5800 = vmatprep.mubr.bf16.mxu0 0
      %5801 = vmatmul.mubr.bf16.gmra.mxu0 %v5642
      %v5802 = vpop.f32.mrf.mxu0
      %v5803 = vadd.f32 %v5588, %v5802
      %v5804 = vpop.f32.mrf.mxu0
      %v5805 = vpop.f32.mrf.mxu0
      %v5806 = vadd.f32 %v5588, %v5805
      %v5807 = vpop.f32.mrf.mxu0
      %5808 = vdwg.mxu0
      %v5809 = vmax.f32 %v5683, 0.0
      %v5810 = vmax.f32 %v5686, 0.0
      %v5811 = vmax.f32 %v5691, 0.0
      %v5812 = vmax.f32 %v5694, 0.0
      %v5813 = vmax.f32 %v5699, 0.0
      %v5814 = vmax.f32 %v5702, 0.0
      %v5815 = vmax.f32 %v5707, 0.0
      %v5816 = vmax.f32 %v5710, 0.0
      %v5817 = vmax.f32 %v5715, 0.0
      %v5818 = vmax.f32 %v5718, 0.0
      %v5819 = vmax.f32 %v5723, 0.0
      %v5820 = vmax.f32 %v5726, 0.0
      %v5821 = vmax.f32 %v5731, 0.0
      %v5822 = vmax.f32 %v5734, 0.0
      %v5823 = vmax.f32 %v5739, 0.0
      %v5824 = vmax.f32 %v5742, 0.0
      %v5825 = vmax.f32 %v5747, 0.0
      %v5826 = vmax.f32 %v5750, 0.0
      %v5827 = vmax.f32 %v5755, 0.0
      %v5828 = vmax.f32 %v5758, 0.0
      %v5829 = vmax.f32 %v5763, 0.0
      %v5830 = vmax.f32 %v5766, 0.0
      %v5831 = vmax.f32 %v5771, 0.0
      %v5832 = vmax.f32 %v5774, 0.0
      %v5833 = vmax.f32 %v5779, 0.0
      %v5834 = vmax.f32 %v5782, 0.0
      %v5835 = vmax.f32 %v5787, 0.0
      %v5836 = vmax.f32 %v5790, 0.0
      %v5837 = vmax.f32 %v5795, 0.0
      %v5838 = vmax.f32 %v5798, 0.0
      %v5839 = vmax.f32 %v5803, 0.0
      %v5840 = vmax.f32 %v5806, 0.0
      %v5841 = vmax.f32 %v5809, %v5811
      %v5842 = vmax.f32 %v5810, %v5812
      %v5843 = vmax.f32 %v5813, %v5815
      %v5844 = vmax.f32 %v5814, %v5816
      %v5845 = vmax.f32 %v5817, %v5819
      %v5846 = vmax.f32 %v5818, %v5820
      %v5847 = vmax.f32 %v5821, %v5823
      %v5848 = vmax.f32 %v5822, %v5824
      %v5849 = vmax.f32 %v5825, %v5827
      %v5850 = vmax.f32 %v5826, %v5828
      %v5851 = vmax.f32 %v5829, %v5831
      %v5852 = vmax.f32 %v5830, %v5832
      %v5853 = vmax.f32 %v5833, %v5835
      %v5854 = vmax.f32 %v5834, %v5836
      %v5855 = vmax.f32 %v5837, %v5839
      %v5856 = vmax.f32 %v5838, %v5840
      %v5873 = vcombine.high %v5841, %v5841
      %v5875 = vunpack.c.l.s4 1983009808
      %v5876 = vunpack.c.0.s8 %v5875
      %v5877 = vlaneseq
      %v5878 = vshrl.u32 %v5877, 7
      %v5879 = vsub.s32 %v5876, %v5878
      %v5880 = vrot.slane %v5841, %v5879
      %v5882 = vunpack.c.l.s4 1983009808
      %v5883 = vunpack.c.0.s8 %v5882
      %v5884 = vlaneseq
      %v5885 = vshrl.u32 %v5884, 7
      %v5886 = vsub.s32 %v5883, %v5885
      %v5887 = vrot.slane %v5873, %v5886
      %v5888 = vcombine.high %v5880, %v5880
      %v5889 = vcombine.high %v5887, %v5887
      %v5890 = vcombine.high %v5842, %v5842
      %v5892 = vunpack.c.l.s4 1983009808
      %v5893 = vunpack.c.0.s8 %v5892
      %v5894 = vlaneseq
      %v5895 = vshrl.u32 %v5894, 7
      %v5896 = vsub.s32 %v5893, %v5895
      %v5897 = vrot.slane %v5842, %v5896
      %v5899 = vunpack.c.l.s4 1983009808
      %v5900 = vunpack.c.0.s8 %v5899
      %v5901 = vlaneseq
      %v5902 = vshrl.u32 %v5901, 7
      %v5903 = vsub.s32 %v5900, %v5902
      %v5904 = vrot.slane %v5890, %v5903
      %v5905 = vcombine.high %v5897, %v5897
      %v5906 = vcombine.high %v5904, %v5904
      %v5907 = vcombine.high %v5843, %v5843
      %v5909 = vunpack.c.l.s4 1983009808
      %v5910 = vunpack.c.0.s8 %v5909
      %v5911 = vlaneseq
      %v5912 = vshrl.u32 %v5911, 7
      %v5913 = vsub.s32 %v5910, %v5912
      %v5914 = vrot.slane %v5843, %v5913
      %v5916 = vunpack.c.l.s4 1983009808
      %v5917 = vunpack.c.0.s8 %v5916
      %v5918 = vlaneseq
      %v5919 = vshrl.u32 %v5918, 7
      %v5920 = vsub.s32 %v5917, %v5919
      %v5921 = vrot.slane %v5907, %v5920
      %v5922 = vcombine.high %v5914, %v5914
      %v5923 = vcombine.high %v5921, %v5921
      %v5924 = vcombine.high %v5844, %v5844
      %v5926 = vunpack.c.l.s4 1983009808
      %v5927 = vunpack.c.0.s8 %v5926
      %v5928 = vlaneseq
      %v5929 = vshrl.u32 %v5928, 7
      %v5930 = vsub.s32 %v5927, %v5929
      %v5931 = vrot.slane %v5844, %v5930
      %v5933 = vunpack.c.l.s4 1983009808
      %v5934 = vunpack.c.0.s8 %v5933
      %v5935 = vlaneseq
      %v5936 = vshrl.u32 %v5935, 7
      %v5937 = vsub.s32 %v5934, %v5936
      %v5938 = vrot.slane %v5924, %v5937
      %v5939 = vcombine.high %v5931, %v5931
      %v5940 = vcombine.high %v5938, %v5938
      %v5941 = vcombine.high %v5845, %v5845
      %v5943 = vunpack.c.l.s4 1983009808
      %v5944 = vunpack.c.0.s8 %v5943
      %v5945 = vlaneseq
      %v5946 = vshrl.u32 %v5945, 7
      %v5947 = vsub.s32 %v5944, %v5946
      %v5948 = vrot.slane %v5845, %v5947
      %v5950 = vunpack.c.l.s4 1983009808
      %v5951 = vunpack.c.0.s8 %v5950
      %v5952 = vlaneseq
      %v5953 = vshrl.u32 %v5952, 7
      %v5954 = vsub.s32 %v5951, %v5953
      %v5955 = vrot.slane %v5941, %v5954
      %v5956 = vcombine.high %v5948, %v5948
      %v5957 = vcombine.high %v5955, %v5955
      %v5958 = vcombine.high %v5846, %v5846
      %v5960 = vunpack.c.l.s4 1983009808
      %v5961 = vunpack.c.0.s8 %v5960
      %v5962 = vlaneseq
      %v5963 = vshrl.u32 %v5962, 7
      %v5964 = vsub.s32 %v5961, %v5963
      %v5965 = vrot.slane %v5846, %v5964
      %v5967 = vunpack.c.l.s4 1983009808
      %v5968 = vunpack.c.0.s8 %v5967
      %v5969 = vlaneseq
      %v5970 = vshrl.u32 %v5969, 7
      %v5971 = vsub.s32 %v5968, %v5970
      %v5972 = vrot.slane %v5958, %v5971
      %v5973 = vcombine.high %v5965, %v5965
      %v5974 = vcombine.high %v5972, %v5972
      %v5975 = vcombine.high %v5847, %v5847
      %v5977 = vunpack.c.l.s4 1983009808
      %v5978 = vunpack.c.0.s8 %v5977
      %v5979 = vlaneseq
      %v5980 = vshrl.u32 %v5979, 7
      %v5981 = vsub.s32 %v5978, %v5980
      %v5982 = vrot.slane %v5847, %v5981
      %v5984 = vunpack.c.l.s4 1983009808
      %v5985 = vunpack.c.0.s8 %v5984
      %v5986 = vlaneseq
      %v5987 = vshrl.u32 %v5986, 7
      %v5988 = vsub.s32 %v5985, %v5987
      %v5989 = vrot.slane %v5975, %v5988
      %v5990 = vcombine.high %v5982, %v5982
      %v5991 = vcombine.high %v5989, %v5989
      %v5992 = vcombine.high %v5848, %v5848
      %v5994 = vunpack.c.l.s4 1983009808
      %v5995 = vunpack.c.0.s8 %v5994
      %v5996 = vlaneseq
      %v5997 = vshrl.u32 %v5996, 7
      %v5998 = vsub.s32 %v5995, %v5997
      %v5999 = vrot.slane %v5848, %v5998
      %v6001 = vunpack.c.l.s4 1983009808
      %v6002 = vunpack.c.0.s8 %v6001
      %v6003 = vlaneseq
      %v6004 = vshrl.u32 %v6003, 7
      %v6005 = vsub.s32 %v6002, %v6004
      %v6006 = vrot.slane %v5992, %v6005
      %v6007 = vcombine.high %v5999, %v5999
      %v6008 = vcombine.high %v6006, %v6006
      %v6009 = vcombine.high %v5849, %v5849
      %v6011 = vunpack.c.l.s4 1983009808
      %v6012 = vunpack.c.0.s8 %v6011
      %v6013 = vlaneseq
      %v6014 = vshrl.u32 %v6013, 7
      %v6015 = vsub.s32 %v6012, %v6014
      %v6016 = vrot.slane %v5849, %v6015
      %v6018 = vunpack.c.l.s4 1983009808
      %v6019 = vunpack.c.0.s8 %v6018
      %v6020 = vlaneseq
      %v6021 = vshrl.u32 %v6020, 7
      %v6022 = vsub.s32 %v6019, %v6021
      %v6023 = vrot.slane %v6009, %v6022
      %v6024 = vcombine.high %v6016, %v6016
      %v6025 = vcombine.high %v6023, %v6023
      %v6026 = vcombine.high %v5850, %v5850
      %v6028 = vunpack.c.l.s4 1983009808
      %v6029 = vunpack.c.0.s8 %v6028
      %v6030 = vlaneseq
      %v6031 = vshrl.u32 %v6030, 7
      %v6032 = vsub.s32 %v6029, %v6031
      %v6033 = vrot.slane %v5850, %v6032
      %v6035 = vunpack.c.l.s4 1983009808
      %v6036 = vunpack.c.0.s8 %v6035
      %v6037 = vlaneseq
      %v6038 = vshrl.u32 %v6037, 7
      %v6039 = vsub.s32 %v6036, %v6038
      %v6040 = vrot.slane %v6026, %v6039
      %v6041 = vcombine.high %v6033, %v6033
      %v6042 = vcombine.high %v6040, %v6040
      %v6043 = vcombine.high %v5851, %v5851
      %v6045 = vunpack.c.l.s4 1983009808
      %v6046 = vunpack.c.0.s8 %v6045
      %v6047 = vlaneseq
      %v6048 = vshrl.u32 %v6047, 7
      %v6049 = vsub.s32 %v6046, %v6048
      %v6050 = vrot.slane %v5851, %v6049
      %v6052 = vunpack.c.l.s4 1983009808
      %v6053 = vunpack.c.0.s8 %v6052
      %v6054 = vlaneseq
      %v6055 = vshrl.u32 %v6054, 7
      %v6056 = vsub.s32 %v6053, %v6055
      %v6057 = vrot.slane %v6043, %v6056
      %v6058 = vcombine.high %v6050, %v6050
      %v6059 = vcombine.high %v6057, %v6057
      %v6060 = vcombine.high %v5852, %v5852
      %v6062 = vunpack.c.l.s4 1983009808
      %v6063 = vunpack.c.0.s8 %v6062
      %v6064 = vlaneseq
      %v6065 = vshrl.u32 %v6064, 7
      %v6066 = vsub.s32 %v6063, %v6065
      %v6067 = vrot.slane %v5852, %v6066
      %v6069 = vunpack.c.l.s4 1983009808
      %v6070 = vunpack.c.0.s8 %v6069
      %v6071 = vlaneseq
      %v6072 = vshrl.u32 %v6071, 7
      %v6073 = vsub.s32 %v6070, %v6072
      %v6074 = vrot.slane %v6060, %v6073
      %v6075 = vcombine.high %v6067, %v6067
      %v6076 = vcombine.high %v6074, %v6074
      %v6077 = vcombine.high %v5853, %v5853
      %v6079 = vunpack.c.l.s4 1983009808
      %v6080 = vunpack.c.0.s8 %v6079
      %v6081 = vlaneseq
      %v6082 = vshrl.u32 %v6081, 7
      %v6083 = vsub.s32 %v6080, %v6082
      %v6084 = vrot.slane %v5853, %v6083
      %v6086 = vunpack.c.l.s4 1983009808
      %v6087 = vunpack.c.0.s8 %v6086
      %v6088 = vlaneseq
      %v6089 = vshrl.u32 %v6088, 7
      %v6090 = vsub.s32 %v6087, %v6089
      %v6091 = vrot.slane %v6077, %v6090
      %v6092 = vcombine.high %v6084, %v6084
      %v6093 = vcombine.high %v6091, %v6091
      %v6094 = vcombine.high %v5854, %v5854
      %v6096 = vunpack.c.l.s4 1983009808
      %v6097 = vunpack.c.0.s8 %v6096
      %v6098 = vlaneseq
      %v6099 = vshrl.u32 %v6098, 7
      %v6100 = vsub.s32 %v6097, %v6099
      %v6101 = vrot.slane %v5854, %v6100
      %v6103 = vunpack.c.l.s4 1983009808
      %v6104 = vunpack.c.0.s8 %v6103
      %v6105 = vlaneseq
      %v6106 = vshrl.u32 %v6105, 7
      %v6107 = vsub.s32 %v6104, %v6106
      %v6108 = vrot.slane %v6094, %v6107
      %v6109 = vcombine.high %v6101, %v6101
      %v6110 = vcombine.high %v6108, %v6108
      %v6111 = vcombine.high %v5855, %v5855
      %v6113 = vunpack.c.l.s4 1983009808
      %v6114 = vunpack.c.0.s8 %v6113
      %v6115 = vlaneseq
      %v6116 = vshrl.u32 %v6115, 7
      %v6117 = vsub.s32 %v6114, %v6116
      %v6118 = vrot.slane %v5855, %v6117
      %v6120 = vunpack.c.l.s4 1983009808
      %v6121 = vunpack.c.0.s8 %v6120
      %v6122 = vlaneseq
      %v6123 = vshrl.u32 %v6122, 7
      %v6124 = vsub.s32 %v6121, %v6123
      %v6125 = vrot.slane %v6111, %v6124
      %v6126 = vcombine.high %v6118, %v6118
      %v6127 = vcombine.high %v6125, %v6125
      %v6128 = vcombine.high %v5856, %v5856
      %v6130 = vunpack.c.l.s4 1983009808
      %v6131 = vunpack.c.0.s8 %v6130
      %v6132 = vlaneseq
      %v6133 = vshrl.u32 %v6132, 7
      %v6134 = vsub.s32 %v6131, %v6133
      %v6135 = vrot.slane %v5856, %v6134
      %v6137 = vunpack.c.l.s4 1983009808
      %v6138 = vunpack.c.0.s8 %v6137
      %v6139 = vlaneseq
      %v6140 = vshrl.u32 %v6139, 7
      %v6141 = vsub.s32 %v6138, %v6140
      %v6142 = vrot.slane %v6128, %v6141
      %v6143 = vcombine.high %v6135, %v6135
      %v6144 = vcombine.high %v6142, %v6142
      %v6209 = vrot.slane %v5880, 7
      %v6210 = vrot.slane %v6209, 2
      %v6211 = vrot.slane %v5888, 7
      %v6212 = vrot.slane %v6211, 2
      %v6213 = vrot.slane %v5887, 7
      %v6214 = vrot.slane %v6213, 2
      %v6215 = vrot.slane %v5889, 7
      %v6216 = vrot.slane %v6215, 2
      %v6217 = vrot.slane %v5897, 7
      %v6218 = vrot.slane %v6217, 2
      %v6219 = vrot.slane %v5905, 7
      %v6220 = vrot.slane %v6219, 2
      %v6221 = vrot.slane %v5904, 7
      %v6222 = vrot.slane %v6221, 2
      %v6223 = vrot.slane %v5906, 7
      %v6224 = vrot.slane %v6223, 2
      %v6225 = vrot.slane %v5914, 7
      %v6226 = vrot.slane %v6225, 2
      %v6227 = vrot.slane %v5922, 7
      %v6228 = vrot.slane %v6227, 2
      %v6229 = vrot.slane %v5921, 7
      %v6230 = vrot.slane %v6229, 2
      %v6231 = vrot.slane %v5923, 7
      %v6232 = vrot.slane %v6231, 2
      %v6233 = vrot.slane %v5931, 7
      %v6234 = vrot.slane %v6233, 2
      %v6235 = vrot.slane %v5939, 7
      %v6236 = vrot.slane %v6235, 2
      %v6237 = vrot.slane %v5938, 7
      %v6238 = vrot.slane %v6237, 2
      %v6239 = vrot.slane %v5940, 7
      %v6240 = vrot.slane %v6239, 2
      %v6241 = vrot.slane %v5948, 7
      %v6242 = vrot.slane %v6241, 2
      %v6243 = vrot.slane %v5956, 7
      %v6244 = vrot.slane %v6243, 2
      %v6245 = vrot.slane %v5955, 7
      %v6246 = vrot.slane %v6245, 2
      %v6247 = vrot.slane %v5957, 7
      %v6248 = vrot.slane %v6247, 2
      %v6249 = vrot.slane %v5965, 7
      %v6250 = vrot.slane %v6249, 2
      %v6251 = vrot.slane %v5973, 7
      %v6252 = vrot.slane %v6251, 2
      %v6253 = vrot.slane %v5972, 7
      %v6254 = vrot.slane %v6253, 2
      %v6255 = vrot.slane %v5974, 7
      %v6256 = vrot.slane %v6255, 2
      %v6257 = vrot.slane %v5982, 7
      %v6258 = vrot.slane %v6257, 2
      %v6259 = vrot.slane %v5990, 7
      %v6260 = vrot.slane %v6259, 2
      %v6261 = vrot.slane %v5989, 7
      %v6262 = vrot.slane %v6261, 2
      %v6263 = vrot.slane %v5991, 7
      %v6264 = vrot.slane %v6263, 2
      %v6265 = vrot.slane %v5999, 7
      %v6266 = vrot.slane %v6265, 2
      %v6267 = vrot.slane %v6007, 7
      %v6268 = vrot.slane %v6267, 2
      %v6269 = vrot.slane %v6006, 7
      %v6270 = vrot.slane %v6269, 2
      %v6271 = vrot.slane %v6008, 7
      %v6272 = vrot.slane %v6271, 2
      %v6273 = vrot.slane %v6016, 7
      %v6274 = vrot.slane %v6273, 2
      %v6275 = vrot.slane %v6024, 7
      %v6276 = vrot.slane %v6275, 2
      %v6277 = vrot.slane %v6023, 7
      %v6278 = vrot.slane %v6277, 2
      %v6279 = vrot.slane %v6025, 7
      %v6280 = vrot.slane %v6279, 2
      %v6281 = vrot.slane %v6033, 7
      %v6282 = vrot.slane %v6281, 2
      %v6283 = vrot.slane %v6041, 7
      %v6284 = vrot.slane %v6283, 2
      %v6285 = vrot.slane %v6040, 7
      %v6286 = vrot.slane %v6285, 2
      %v6287 = vrot.slane %v6042, 7
      %v6288 = vrot.slane %v6287, 2
      %v6289 = vrot.slane %v6050, 7
      %v6290 = vrot.slane %v6289, 2
      %v6291 = vrot.slane %v6058, 7
      %v6292 = vrot.slane %v6291, 2
      %v6293 = vrot.slane %v6057, 7
      %v6294 = vrot.slane %v6293, 2
      %v6295 = vrot.slane %v6059, 7
      %v6296 = vrot.slane %v6295, 2
      %v6297 = vrot.slane %v6067, 7
      %v6298 = vrot.slane %v6297, 2
      %v6299 = vrot.slane %v6075, 7
      %v6300 = vrot.slane %v6299, 2
      %v6301 = vrot.slane %v6074, 7
      %v6302 = vrot.slane %v6301, 2
      %v6303 = vrot.slane %v6076, 7
      %v6304 = vrot.slane %v6303, 2
      %v6305 = vrot.slane %v6084, 7
      %v6306 = vrot.slane %v6305, 2
      %v6307 = vrot.slane %v6092, 7
      %v6308 = vrot.slane %v6307, 2
      %v6309 = vrot.slane %v6091, 7
      %v6310 = vrot.slane %v6309, 2
      %v6311 = vrot.slane %v6093, 7
      %v6312 = vrot.slane %v6311, 2
      %v6313 = vrot.slane %v6101, 7
      %v6314 = vrot.slane %v6313, 2
      %v6315 = vrot.slane %v6109, 7
      %v6316 = vrot.slane %v6315, 2
      %v6317 = vrot.slane %v6108, 7
      %v6318 = vrot.slane %v6317, 2
      %v6319 = vrot.slane %v6110, 7
      %v6320 = vrot.slane %v6319, 2
      %v6321 = vrot.slane %v6118, 7
      %v6322 = vrot.slane %v6321, 2
      %v6323 = vrot.slane %v6126, 7
      %v6324 = vrot.slane %v6323, 2
      %v6325 = vrot.slane %v6125, 7
      %v6326 = vrot.slane %v6325, 2
      %v6327 = vrot.slane %v6127, 7
      %v6328 = vrot.slane %v6327, 2
      %v6329 = vrot.slane %v6135, 7
      %v6330 = vrot.slane %v6329, 2
      %v6331 = vrot.slane %v6143, 7
      %v6332 = vrot.slane %v6331, 2
      %v6333 = vrot.slane %v6142, 7
      %v6334 = vrot.slane %v6333, 2
      %v6335 = vrot.slane %v6144, 7
      %v6336 = vrot.slane %v6335, 2
      %v6401 = vmax.f32 %v5880, %v6210
      %v6402 = vmax.f32 %v5888, %v6212
      %v6403 = vmax.f32 %v5887, %v6214
      %v6404 = vmax.f32 %v5889, %v6216
      %v6405 = vmax.f32 %v5897, %v6218
      %v6406 = vmax.f32 %v5905, %v6220
      %v6407 = vmax.f32 %v5904, %v6222
      %v6408 = vmax.f32 %v5906, %v6224
      %v6409 = vmax.f32 %v5914, %v6226
      %v6410 = vmax.f32 %v5922, %v6228
      %v6411 = vmax.f32 %v5921, %v6230
      %v6412 = vmax.f32 %v5923, %v6232
      %v6413 = vmax.f32 %v5931, %v6234
      %v6414 = vmax.f32 %v5939, %v6236
      %v6415 = vmax.f32 %v5938, %v6238
      %v6416 = vmax.f32 %v5940, %v6240
      %v6417 = vmax.f32 %v5948, %v6242
      %v6418 = vmax.f32 %v5956, %v6244
      %v6419 = vmax.f32 %v5955, %v6246
      %v6420 = vmax.f32 %v5957, %v6248
      %v6421 = vmax.f32 %v5965, %v6250
      %v6422 = vmax.f32 %v5973, %v6252
      %v6423 = vmax.f32 %v5972, %v6254
      %v6424 = vmax.f32 %v5974, %v6256
      %v6425 = vmax.f32 %v5982, %v6258
      %v6426 = vmax.f32 %v5990, %v6260
      %v6427 = vmax.f32 %v5989, %v6262
      %v6428 = vmax.f32 %v5991, %v6264
      %v6429 = vmax.f32 %v5999, %v6266
      %v6430 = vmax.f32 %v6007, %v6268
      %v6431 = vmax.f32 %v6006, %v6270
      %v6432 = vmax.f32 %v6008, %v6272
      %v6433 = vmax.f32 %v6016, %v6274
      %v6434 = vmax.f32 %v6024, %v6276
      %v6435 = vmax.f32 %v6023, %v6278
      %v6436 = vmax.f32 %v6025, %v6280
      %v6437 = vmax.f32 %v6033, %v6282
      %v6438 = vmax.f32 %v6041, %v6284
      %v6439 = vmax.f32 %v6040, %v6286
      %v6440 = vmax.f32 %v6042, %v6288
      %v6441 = vmax.f32 %v6050, %v6290
      %v6442 = vmax.f32 %v6058, %v6292
      %v6443 = vmax.f32 %v6057, %v6294
      %v6444 = vmax.f32 %v6059, %v6296
      %v6445 = vmax.f32 %v6067, %v6298
      %v6446 = vmax.f32 %v6075, %v6300
      %v6447 = vmax.f32 %v6074, %v6302
      %v6448 = vmax.f32 %v6076, %v6304
      %v6449 = vmax.f32 %v6084, %v6306
      %v6450 = vmax.f32 %v6092, %v6308
      %v6451 = vmax.f32 %v6091, %v6310
      %v6452 = vmax.f32 %v6093, %v6312
      %v6453 = vmax.f32 %v6101, %v6314
      %v6454 = vmax.f32 %v6109, %v6316
      %v6455 = vmax.f32 %v6108, %v6318
      %v6456 = vmax.f32 %v6110, %v6320
      %v6457 = vmax.f32 %v6118, %v6322
      %v6458 = vmax.f32 %v6126, %v6324
      %v6459 = vmax.f32 %v6125, %v6326
      %v6460 = vmax.f32 %v6127, %v6328
      %v6461 = vmax.f32 %v6135, %v6330
      %v6462 = vmax.f32 %v6143, %v6332
      %v6463 = vmax.f32 %v6142, %v6334
      %v6464 = vmax.f32 %v6144, %v6336
      %v6465 = vld [vmem:[%s597] sm:$0xff]
      %v6466 = vld [vmem:[%s597 + $0x8] sm:$0xff]
      %v6467 = vld [vmem:[%s597 + $0x10] sm:$0xff]
      %v6468 = vld [vmem:[%s597 + $0x18] sm:$0xff]
      %v6469 = vld [vmem:[%s597 + $0x20] sm:$0xff]
      %v6470 = vld [vmem:[%s597 + $0x28] sm:$0xff]
      %v6471 = vld [vmem:[%s597 + $0x30] sm:$0xff]
      %v6472 = vld [vmem:[%s597 + $0x38] sm:$0xff]
      %v6473 = vld [vmem:[%s12] sm:$0xf]
      %v6474 = vld [vmem:[%s12 + $0x4] sm:$0xf]
      %v6475 = vld [vmem:[%s12 + $0x8] sm:$0xf]
      %v6476 = vld [vmem:[%s12 + $0xc] sm:$0xf]
      %v6477 = vld [vmem:[%s12 + $0x10] sm:$0xf]
      %v6478 = vld [vmem:[%s12 + $0x14] sm:$0xf]
      %v6479 = vld [vmem:[%s12 + $0x18] sm:$0xf]
      %v6480 = vld [vmem:[%s12 + $0x1c] sm:$0xf]
      %v6481 = vld [vmem:[%s12 + $0x20] sm:$0xf]
      %v6482 = vld [vmem:[%s12 + $0x24] sm:$0xf]
      %v6483 = vld [vmem:[%s12 + $0x28] sm:$0xf]
      %v6484 = vld [vmem:[%s12 + $0x2c] sm:$0xf]
      %v6485 = vld [vmem:[%s12 + $0x30] sm:$0xf]
      %v6486 = vld [vmem:[%s12 + $0x34] sm:$0xf]
      %v6487 = vld [vmem:[%s12 + $0x38] sm:$0xf]
      %v6488 = vld [vmem:[%s12 + $0x3c] sm:$0xf]
      %v6489 = vld [vmem:[%s12 + $0x40] sm:$0xf]
      %v6490 = vld [vmem:[%s12 + $0x44] sm:$0xf]
      %v6491 = vld [vmem:[%s13] sm:$0x1]
      %v6492 = vpack.c.bf16 %v6465, %v6465
      %v6493 = vpack.c.bf16 %v6466, %v6466
      %v6494 = vpack.c.bf16 %v6467, %v6467
      %v6495 = vpack.c.bf16 %v6468, %v6468
      %v6496 = vpack.c.bf16 %v6469, %v6469
      %v6497 = vpack.c.bf16 %v6470, %v6470
      %v6498 = vpack.c.bf16 %v6471, %v6471
      %v6499 = vpack.c.bf16 %v6472, %v6472
      %v6501 = vshrl.u32 %v6492, 16
      %v6503 = vrot.slane %v6501, 7
      %v6504 = vshll.u32 %v6492, 16
      %v6506 = vor.u32 %v6503, %v6504
      %v6508 = vshrl.u32 %v6493, 16
      %v6510 = vrot.slane %v6508, 7
      %v6511 = vshll.u32 %v6493, 16
      %v6513 = vor.u32 %v6510, %v6511
      %v6515 = vshrl.u32 %v6494, 16
      %v6517 = vrot.slane %v6515, 7
      %v6518 = vshll.u32 %v6494, 16
      %v6520 = vor.u32 %v6517, %v6518
      %v6522 = vshrl.u32 %v6495, 16
      %v6524 = vrot.slane %v6522, 7
      %v6525 = vshll.u32 %v6495, 16
      %v6527 = vor.u32 %v6524, %v6525
      %v6529 = vshrl.u32 %v6496, 16
      %v6531 = vrot.slane %v6529, 7
      %v6532 = vshll.u32 %v6496, 16
      %v6534 = vor.u32 %v6531, %v6532
      %v6536 = vshrl.u32 %v6497, 16
      %v6538 = vrot.slane %v6536, 7
      %v6539 = vshll.u32 %v6497, 16
      %v6541 = vor.u32 %v6538, %v6539
      %v6543 = vshrl.u32 %v6498, 16
      %v6545 = vrot.slane %v6543, 7
      %v6546 = vshll.u32 %v6498, 16
      %v6548 = vor.u32 %v6545, %v6546
      %v6550 = vshrl.u32 %v6499, 16
      %v6552 = vrot.slane %v6550, 7
      %v6553 = vshll.u32 %v6499, 16
      %v6555 = vor.u32 %v6552, %v6553
      %v6564 = vsel %vm1219, 0, %v6506
      %v6565 = vsel %vm1219, 0, %v6513
      %v6566 = vsel %vm1219, 0, %v6520
      %v6567 = vsel %vm1219, 0, %v6527
      %v6568 = vsel %vm1219, 0, %v6534
      %v6569 = vsel %vm1219, 0, %v6541
      %v6570 = vsel %vm1219, 0, %v6548
      %v6571 = vsel %vm1219, 0, %v6555
      %vm6572 = vcmask 1044480
      %vm6573 = vsmask.f32 4352
      %vm6574 = vmand %vm6572, %vm6573
      %v6575 = vsel %vm6574, %v6564, 0
      %v6576 = vsel %vm6574, %v6565, 0
      %v6577 = vsel %vm6574, %v6566, 0
      %v6578 = vsel %vm6574, %v6567, 0
      %v6579 = vsel %vm6574, %v6568, 0
      %v6580 = vsel %vm6574, %v6569, 0
      %v6581 = vsel %vm6574, %v6570, 0
      %v6582 = vsel %vm6574, %v6571, 0
      %v6584 = vshrl.u32 %v6575, 16
      %v6586 = vshll.u32 %v6575, 16
      %v6588 = vrot.slane %v6586, 1
      %v6589 = vor.u32 %v6584, %v6588
      %v6591 = vshrl.u32 %v6576, 16
      %v6593 = vshll.u32 %v6576, 16
      %v6595 = vrot.slane %v6593, 1
      %v6596 = vor.u32 %v6591, %v6595
      %v6598 = vshrl.u32 %v6577, 16
      %v6600 = vshll.u32 %v6577, 16
      %v6602 = vrot.slane %v6600, 1
      %v6603 = vor.u32 %v6598, %v6602
      %v6605 = vshrl.u32 %v6578, 16
      %v6607 = vshll.u32 %v6578, 16
      %v6609 = vrot.slane %v6607, 1
      %v6610 = vor.u32 %v6605, %v6609
      %v6612 = vshrl.u32 %v6579, 16
      %v6614 = vshll.u32 %v6579, 16
      %v6616 = vrot.slane %v6614, 1
      %v6617 = vor.u32 %v6612, %v6616
      %v6619 = vshrl.u32 %v6580, 16
      %v6621 = vshll.u32 %v6580, 16
      %v6623 = vrot.slane %v6621, 1
      %v6624 = vor.u32 %v6619, %v6623
      %v6626 = vshrl.u32 %v6581, 16
      %v6628 = vshll.u32 %v6581, 16
      %v6630 = vrot.slane %v6628, 1
      %v6631 = vor.u32 %v6626, %v6630
      %v6633 = vshrl.u32 %v6582, 16
      %v6635 = vshll.u32 %v6582, 16
      %v6637 = vrot.slane %v6635, 1
      %v6638 = vor.u32 %v6633, %v6637
      %6639 = vrot.lane.b32.xlu0 %v1259, 16
      %v6640 = vpop.permute.xlu0 %6639
      %6641 = vrot.lane.b32.xlu0 %v6589, 16
      %v6642 = vpop.permute.xlu0 %6641
      %6643 = vrot.lane.b32.xlu0 %v6596, 16
      %v6644 = vpop.permute.xlu0 %6643
      %6645 = vrot.lane.b32.xlu0 %v6603, 16
      %v6646 = vpop.permute.xlu0 %6645
      %6647 = vrot.lane.b32.xlu0 %v6610, 16
      %v6648 = vpop.permute.xlu0 %6647
      %6649 = vrot.lane.b32.xlu0 %v6617, 16
      %v6650 = vpop.permute.xlu0 %6649
      %6651 = vrot.lane.b32.xlu0 %v6624, 16
      %v6652 = vpop.permute.xlu0 %6651
      %6653 = vrot.lane.b32.xlu0 %v6631, 16
      %v6654 = vpop.permute.xlu0 %6653
      %6655 = vrot.lane.b32.xlu0 %v6638, 16
      %v6656 = vpop.permute.xlu0 %6655
      %v6665 = vrot.slane %v6575, 1
      %v6666 = vrot.slane %v6576, 1
      %v6667 = vrot.slane %v6577, 1
      %v6668 = vrot.slane %v6578, 1
      %v6669 = vrot.slane %v6579, 1
      %v6670 = vrot.slane %v6580, 1
      %v6671 = vrot.slane %v6581, 1
      %v6672 = vrot.slane %v6582, 1
      %6673 = vrot.lane.b32.xlu0 %v1521, 32
      %v6674 = vpop.permute.xlu0 %6673
      %6675 = vrot.lane.b32.xlu0 %v6665, 32
      %v6676 = vpop.permute.xlu0 %6675
      %6677 = vrot.lane.b32.xlu0 %v6666, 32
      %v6678 = vpop.permute.xlu0 %6677
      %6679 = vrot.lane.b32.xlu0 %v6667, 32
      %v6680 = vpop.permute.xlu0 %6679
      %6681 = vrot.lane.b32.xlu0 %v6668, 32
      %v6682 = vpop.permute.xlu0 %6681
      %6683 = vrot.lane.b32.xlu0 %v6669, 32
      %v6684 = vpop.permute.xlu0 %6683
      %6685 = vrot.lane.b32.xlu0 %v6670, 32
      %v6686 = vpop.permute.xlu0 %6685
      %6687 = vrot.lane.b32.xlu0 %v6671, 32
      %v6688 = vpop.permute.xlu0 %6687
      %6689 = vrot.lane.b32.xlu0 %v6672, 32
      %v6690 = vpop.permute.xlu0 %6689
      %vm6691 = vcmask 130048
      %v6693 = vsel %vm6691, 0, %v6640
      %v6695 = vsel %vm6691, %v6575, %v6642
      %v6697 = vsel %vm6691, %v6576, %v6644
      %v6699 = vsel %vm6691, %v6577, %v6646
      %v6701 = vsel %vm6691, %v6578, %v6648
      %v6703 = vsel %vm6691, %v6579, %v6650
      %v6705 = vsel %vm6691, %v6580, %v6652
      %v6707 = vsel %vm6691, %v6581, %v6654
      %v6709 = vsel %vm6691, %v6582, %v6656
      %vm6710 = vcmask 261120
      %v6712 = vsel %vm6710, %v6693, %v6674
      %v6714 = vsel %vm6710, %v6695, %v6676
      %v6716 = vsel %vm6710, %v6697, %v6678
      %v6718 = vsel %vm6710, %v6699, %v6680
      %v6720 = vsel %vm6710, %v6701, %v6682
      %v6722 = vsel %vm6710, %v6703, %v6684
      %v6724 = vsel %vm6710, %v6705, %v6686
      %v6726 = vsel %vm6710, %v6707, %v6688
      %v6728 = vsel %vm6710, %v6709, %v6690
      %6737 = vrot.lane.b32.xlu0 %v6714, 48
      %v6738 = vpop.permute.xlu0 %6737
      %6739 = vrot.lane.b32.xlu0 %v6716, 48
      %v6740 = vpop.permute.xlu0 %6739
      %6741 = vrot.lane.b32.xlu0 %v6718, 48
      %v6742 = vpop.permute.xlu0 %6741
      %6743 = vrot.lane.b32.xlu0 %v6720, 48
      %v6744 = vpop.permute.xlu0 %6743
      %6745 = vrot.lane.b32.xlu0 %v6722, 48
      %v6746 = vpop.permute.xlu0 %6745
      %6747 = vrot.lane.b32.xlu0 %v6724, 48
      %v6748 = vpop.permute.xlu0 %6747
      %6749 = vrot.lane.b32.xlu0 %v6726, 48
      %v6750 = vpop.permute.xlu0 %6749
      %6751 = vrot.lane.b32.xlu0 %v6728, 48
      %v6752 = vpop.permute.xlu0 %6751
      %6754 = vrot.lane.b32.xlu0 %v6716, 96
      %v6755 = vpop.permute.xlu0 %6754
      %6756 = vrot.lane.b32.xlu0 %v6718, 96
      %v6757 = vpop.permute.xlu0 %6756
      %6758 = vrot.lane.b32.xlu0 %v6720, 96
      %v6759 = vpop.permute.xlu0 %6758
      %6760 = vrot.lane.b32.xlu0 %v6722, 96
      %v6761 = vpop.permute.xlu0 %6760
      %6762 = vrot.lane.b32.xlu0 %v6724, 96
      %v6763 = vpop.permute.xlu0 %6762
      %6764 = vrot.lane.b32.xlu0 %v6726, 96
      %v6765 = vpop.permute.xlu0 %6764
      %6766 = vrot.lane.b32.xlu0 %v6728, 96
      %v6767 = vpop.permute.xlu0 %6766
      %6768 = vrot.lane.b32.xlu0 %v6712, 96
      %v6769 = vpop.permute.xlu0 %6768
      %vm6770 = vcmask 392192
      %v6772 = vsel %vm6770, %v6712, %v6738
      %v6774 = vsel %vm6770, %v6714, %v6740
      %v6776 = vsel %vm6770, %v6716, %v6742
      %v6778 = vsel %vm6770, %v6718, %v6744
      %v6780 = vsel %vm6770, %v6720, %v6746
      %v6782 = vsel %vm6770, %v6722, %v6748
      %v6784 = vsel %vm6770, %v6724, %v6750
      %v6786 = vsel %vm6770, %v6726, %v6752
      %vm6787 = vcmask 785408
      %v6789 = vsel %vm6787, %v6772, %v6755
      %v6791 = vsel %vm6787, %v6774, %v6757
      %v6793 = vsel %vm6787, %v6776, %v6759
      %v6795 = vsel %vm6787, %v6778, %v6761
      %v6797 = vsel %vm6787, %v6780, %v6763
      %v6799 = vsel %vm6787, %v6782, %v6765
      %v6801 = vsel %vm6787, %v6784, %v6767
      %v6803 = vsel %vm6787, %v6786, %v6769
      %v6812 = vunpack.c.l.b16 %v6789
      %v6813 = vunpack.c.l.b16 %v6755
      %v6814 = vunpack.c.l.b16 %v6791
      %v6815 = vunpack.c.l.b16 %v6757
      %v6816 = vunpack.c.l.b16 %v6793
      %v6817 = vunpack.c.l.b16 %v6759
      %v6818 = vunpack.c.l.b16 %v6795
      %v6819 = vunpack.c.l.b16 %v6761
      %v6820 = vunpack.c.l.b16 %v6797
      %v6821 = vunpack.c.l.b16 %v6763
      %v6822 = vunpack.c.l.b16 %v6799
      %v6823 = vunpack.c.l.b16 %v6765
      %v6824 = vunpack.c.l.b16 %v6801
      %v6825 = vunpack.c.l.b16 %v6767
      %v6826 = vunpack.c.l.b16 %v6803
      %v6827 = vunpack.c.l.b16 %v6769
      %v6829 = vlaneseq
      %v6830 = vshrl.u32 %v6829, 7
      %v6831 = vsub.s32 0, %v6830
      %v6832 = vrot.slane %v6491, %v6831
      %v6834 = vpack.c.b16 %v6814, %v6812
      %v6835 = vpack.c.b16 %v6815, %v6813
      %v6836 = vpack.c.b16 %v6818, %v6816
      %v6837 = vpack.c.b16 %v6819, %v6817
      %v6838 = vpack.c.b16 %v6822, %v6820
      %v6839 = vpack.c.b16 %v6823, %v6821
      %v6840 = vpack.c.b16 %v6826, %v6824
      %v6841 = vpack.c.b16 %v6827, %v6825
      %v6864 = vunpack.c.l.b16 %v6473
      %v6865 = vunpack.c.l.b16 %v6474
      %v6866 = vunpack.c.l.b16 %v6475
      %v6867 = vunpack.c.l.b16 %v6476
      %v6868 = vunpack.c.l.b16 %v6477
      %v6869 = vunpack.c.l.b16 %v6478
      %v6870 = vunpack.c.l.b16 %v6479
      %v6871 = vunpack.c.l.b16 %v6480
      %v6872 = vunpack.c.l.b16 %v6481
      %v6873 = vunpack.c.l.b16 %v6482
      %v6874 = vunpack.c.l.b16 %v6483
      %v6875 = vunpack.c.l.b16 %v6484
      %v6876 = vunpack.c.l.b16 %v6485
      %v6877 = vunpack.c.l.b16 %v6486
      %v6878 = vunpack.c.l.b16 %v6487
      %v6879 = vunpack.c.l.b16 %v6488
      %v6880 = vunpack.c.l.b16 %v6489
      %v6881 = vunpack.c.l.b16 %v6490
      %v6882 = vpack.c.b16 %v6865, %v6864
      %v6883 = vpack.c.b16 %v6867, %v6866
      %v6884 = vpack.c.b16 %v6869, %v6868
      %v6885 = vpack.c.b16 %v6871, %v6870
      %v6886 = vpack.c.b16 %v6873, %v6872
      %v6887 = vpack.c.b16 %v6875, %v6874
      %v6888 = vpack.c.b16 %v6877, %v6876
      %v6889 = vpack.c.b16 %v6879, %v6878
      %v6890 = vpack.c.b16 %v6881, %v6880
      %v6901 = vsel %vm6691, %v6835, 0
      %v6904 = vsel %vm6691, %v6837, 0
      %v6907 = vsel %vm6691, %v6839, 0
      %v6910 = vsel %vm6691, %v6841, 0
      %6912 = vmatprep.subr.bf16.mxu0 0
      %6913 = vmatpush1.bf16.msra.mxu0 %v6889
      %6914 = vmatprep.subr.bf16.mxu0 0
      %6915 = vmatpush1.bf16.msra.mxu0 %v6888
      %6916 = vmatprep.subr.bf16.mxu0 0
      %6917 = vmatpush1.bf16.msra.mxu0 %v6887
      %6918 = vmatprep.subr.bf16.mxu0 0
      %6919 = vmatpush1.bf16.msra.mxu0 %v6886
      %6920 = vmatprep.subr.bf16.mxu0 0
      %6921 = vmatpush1.bf16.msra.mxu0 %v6885
      %6922 = vmatprep.subr.bf16.mxu0 0
      %6923 = vmatpush1.bf16.msra.mxu0 %v6884
      %6924 = vmatprep.subr.bf16.mxu0 0
      %6925 = vmatpush1.bf16.msra.mxu0 %v6883
      %6926 = vmatprep.subr.bf16.mxu0 0
      %6927 = vmatpush1.bf16.msra.mxu0 %v6882
      %6928 = vmatprep.subr.bf16.mxu0 0
      %6929 = vmatpush2.bf16.msra.mxu0 0
      %6930 = vmatprep.subr.bf16.mxu0 0
      %6931 = vmatpush2.bf16.msra.mxu0 0
      %6932 = vmatprep.subr.bf16.mxu0 0
      %6933 = vmatpush2.bf16.msra.mxu0 0
      %6934 = vmatprep.subr.bf16.mxu0 0
      %6935 = vmatpush2.bf16.msra.mxu0 0
      %6936 = vmatprep.subr.bf16.mxu0 0
      %6937 = vmatpush2.bf16.msra.mxu0 0
      %6938 = vmatprep.subr.bf16.mxu0 0
      %6939 = vmatpush2.bf16.msra.mxu0 0
      %6940 = vmatprep.subr.bf16.mxu0 0
      %6941 = vmatpush2.bf16.msra.mxu0 0
      %6942 = vmatprep.subr.bf16.mxu0 0
      %6943 = vmatpush2.bf16.msra.mxu0 %v6890
      %6944 = vmatprep.mubr.bf16.mxu0 %v6901
      %6945 = vmatmul.mubr.bf16.gmra.mxu0 %v6834
      %v6946 = vpop.f32.mrf.mxu0
      %v6947 = vadd.f32 %v6832, %v6946
      %v6948 = vpop.f32.mrf.mxu0
      %v6949 = vpop.f32.mrf.mxu0
      %v6950 = vadd.f32 %v6832, %v6949
      %v6951 = vpop.f32.mrf.mxu0
      %6952 = vmatprep.mubr.bf16.mxu0 %v6904
      %6953 = vmatmul.mubr.bf16.gmra.mxu0 %v6836
      %v6954 = vpop.f32.mrf.mxu0
      %v6955 = vadd.f32 %v6832, %v6954
      %v6956 = vpop.f32.mrf.mxu0
      %v6957 = vpop.f32.mrf.mxu0
      %v6958 = vadd.f32 %v6832, %v6957
      %v6959 = vpop.f32.mrf.mxu0
      %6960 = vmatprep.mubr.bf16.mxu0 %v6907
      %6961 = vmatmul.mubr.bf16.gmra.mxu0 %v6838
      %v6962 = vpop.f32.mrf.mxu0
      %v6963 = vadd.f32 %v6832, %v6962
      %v6964 = vpop.f32.mrf.mxu0
      %v6965 = vpop.f32.mrf.mxu0
      %v6966 = vadd.f32 %v6832, %v6965
      %v6967 = vpop.f32.mrf.mxu0
      %6968 = vmatprep.mubr.bf16.mxu0 %v6910
      %6969 = vmatmul.mubr.bf16.gmra.mxu0 %v6840
      %v6970 = vpop.f32.mrf.mxu0
      %v6971 = vadd.f32 %v6832, %v6970
      %v6972 = vpop.f32.mrf.mxu0
      %v6973 = vpop.f32.mrf.mxu0
      %v6974 = vadd.f32 %v6832, %v6973
      %v6975 = vpop.f32.mrf.mxu0
      %6976 = vdwg.mxu0
      %v6977 = vmax.f32 %v6947, 0.0
      %v6978 = vmax.f32 %v6950, 0.0
      %v6979 = vmax.f32 %v6955, 0.0
      %v6980 = vmax.f32 %v6958, 0.0
      %v6981 = vmax.f32 %v6963, 0.0
      %v6982 = vmax.f32 %v6966, 0.0
      %v6983 = vmax.f32 %v6971, 0.0
      %v6984 = vmax.f32 %v6974, 0.0
      %v6993 = vcombine.high %v6977, %v6977
      %v6995 = vunpack.c.l.s4 1983009808
      %v6996 = vunpack.c.0.s8 %v6995
      %v6997 = vlaneseq
      %v6998 = vshrl.u32 %v6997, 7
      %v6999 = vsub.s32 %v6996, %v6998
      %v7000 = vrot.slane %v6977, %v6999
      %v7002 = vunpack.c.l.s4 1983009808
      %v7003 = vunpack.c.0.s8 %v7002
      %v7004 = vlaneseq
      %v7005 = vshrl.u32 %v7004, 7
      %v7006 = vsub.s32 %v7003, %v7005
      %v7007 = vrot.slane %v6993, %v7006
      %v7008 = vcombine.high %v7000, %v7000
      %v7009 = vcombine.high %v7007, %v7007
      %v7010 = vcombine.high %v6978, %v6978
      %v7012 = vunpack.c.l.s4 1983009808
      %v7013 = vunpack.c.0.s8 %v7012
      %v7014 = vlaneseq
      %v7015 = vshrl.u32 %v7014, 7
      %v7016 = vsub.s32 %v7013, %v7015
      %v7017 = vrot.slane %v6978, %v7016
      %v7019 = vunpack.c.l.s4 1983009808
      %v7020 = vunpack.c.0.s8 %v7019
      %v7021 = vlaneseq
      %v7022 = vshrl.u32 %v7021, 7
      %v7023 = vsub.s32 %v7020, %v7022
      %v7024 = vrot.slane %v7010, %v7023
      %v7025 = vcombine.high %v7017, %v7017
      %v7026 = vcombine.high %v7024, %v7024
      %v7027 = vcombine.high %v6979, %v6979
      %v7029 = vunpack.c.l.s4 1983009808
      %v7030 = vunpack.c.0.s8 %v7029
      %v7031 = vlaneseq
      %v7032 = vshrl.u32 %v7031, 7
      %v7033 = vsub.s32 %v7030, %v7032
      %v7034 = vrot.slane %v6979, %v7033
      %v7036 = vunpack.c.l.s4 1983009808
      %v7037 = vunpack.c.0.s8 %v7036
      %v7038 = vlaneseq
      %v7039 = vshrl.u32 %v7038, 7
      %v7040 = vsub.s32 %v7037, %v7039
      %v7041 = vrot.slane %v7027, %v7040
      %v7042 = vcombine.high %v7034, %v7034
      %v7043 = vcombine.high %v7041, %v7041
      %v7044 = vcombine.high %v6980, %v6980
      %v7046 = vunpack.c.l.s4 1983009808
      %v7047 = vunpack.c.0.s8 %v7046
      %v7048 = vlaneseq
      %v7049 = vshrl.u32 %v7048, 7
      %v7050 = vsub.s32 %v7047, %v7049
      %v7051 = vrot.slane %v6980, %v7050
      %v7053 = vunpack.c.l.s4 1983009808
      %v7054 = vunpack.c.0.s8 %v7053
      %v7055 = vlaneseq
      %v7056 = vshrl.u32 %v7055, 7
      %v7057 = vsub.s32 %v7054, %v7056
      %v7058 = vrot.slane %v7044, %v7057
      %v7059 = vcombine.high %v7051, %v7051
      %v7060 = vcombine.high %v7058, %v7058
      %v7061 = vcombine.high %v6981, %v6981
      %v7063 = vunpack.c.l.s4 1983009808
      %v7064 = vunpack.c.0.s8 %v7063
      %v7065 = vlaneseq
      %v7066 = vshrl.u32 %v7065, 7
      %v7067 = vsub.s32 %v7064, %v7066
      %v7068 = vrot.slane %v6981, %v7067
      %v7070 = vunpack.c.l.s4 1983009808
      %v7071 = vunpack.c.0.s8 %v7070
      %v7072 = vlaneseq
      %v7073 = vshrl.u32 %v7072, 7
      %v7074 = vsub.s32 %v7071, %v7073
      %v7075 = vrot.slane %v7061, %v7074
      %v7076 = vcombine.high %v7068, %v7068
      %v7077 = vcombine.high %v7075, %v7075
      %v7078 = vcombine.high %v6982, %v6982
      %v7080 = vunpack.c.l.s4 1983009808
      %v7081 = vunpack.c.0.s8 %v7080
      %v7082 = vlaneseq
      %v7083 = vshrl.u32 %v7082, 7
      %v7084 = vsub.s32 %v7081, %v7083
      %v7085 = vrot.slane %v6982, %v7084
      %v7087 = vunpack.c.l.s4 1983009808
      %v7088 = vunpack.c.0.s8 %v7087
      %v7089 = vlaneseq
      %v7090 = vshrl.u32 %v7089, 7
      %v7091 = vsub.s32 %v7088, %v7090
      %v7092 = vrot.slane %v7078, %v7091
      %v7093 = vcombine.high %v7085, %v7085
      %v7094 = vcombine.high %v7092, %v7092
      %v7095 = vcombine.high %v6983, %v6983
      %v7097 = vunpack.c.l.s4 1983009808
      %v7098 = vunpack.c.0.s8 %v7097
      %v7099 = vlaneseq
      %v7100 = vshrl.u32 %v7099, 7
      %v7101 = vsub.s32 %v7098, %v7100
      %v7102 = vrot.slane %v6983, %v7101
      %v7104 = vunpack.c.l.s4 1983009808
      %v7105 = vunpack.c.0.s8 %v7104
      %v7106 = vlaneseq
      %v7107 = vshrl.u32 %v7106, 7
      %v7108 = vsub.s32 %v7105, %v7107
      %v7109 = vrot.slane %v7095, %v7108
      %v7110 = vcombine.high %v7102, %v7102
      %v7111 = vcombine.high %v7109, %v7109
      %v7112 = vcombine.high %v6984, %v6984
      %v7114 = vunpack.c.l.s4 1983009808
      %v7115 = vunpack.c.0.s8 %v7114
      %v7116 = vlaneseq
      %v7117 = vshrl.u32 %v7116, 7
      %v7118 = vsub.s32 %v7115, %v7117
      %v7119 = vrot.slane %v6984, %v7118
      %v7121 = vunpack.c.l.s4 1983009808
      %v7122 = vunpack.c.0.s8 %v7121
      %v7123 = vlaneseq
      %v7124 = vshrl.u32 %v7123, 7
      %v7125 = vsub.s32 %v7122, %v7124
      %v7126 = vrot.slane %v7112, %v7125
      %v7127 = vcombine.high %v7119, %v7119
      %v7128 = vcombine.high %v7126, %v7126
      %v7129 = vrot.slane %v7000, 1
      %v7130 = vrot.slane %v7008, 1
      %v7131 = vrot.slane %v7007, 1
      %v7132 = vrot.slane %v7009, 1
      %v7133 = vrot.slane %v7017, 1
      %v7134 = vrot.slane %v7025, 1
      %v7135 = vrot.slane %v7024, 1
      %v7136 = vrot.slane %v7026, 1
      %v7137 = vrot.slane %v7034, 1
      %v7138 = vrot.slane %v7042, 1
      %v7139 = vrot.slane %v7041, 1
      %v7140 = vrot.slane %v7043, 1
      %v7141 = vrot.slane %v7051, 1
      %v7142 = vrot.slane %v7059, 1
      %v7143 = vrot.slane %v7058, 1
      %v7144 = vrot.slane %v7060, 1
      %v7145 = vrot.slane %v7068, 1
      %v7146 = vrot.slane %v7076, 1
      %v7147 = vrot.slane %v7075, 1
      %v7148 = vrot.slane %v7077, 1
      %v7149 = vrot.slane %v7085, 1
      %v7150 = vrot.slane %v7093, 1
      %v7151 = vrot.slane %v7092, 1
      %v7152 = vrot.slane %v7094, 1
      %v7153 = vrot.slane %v7102, 1
      %v7154 = vrot.slane %v7110, 1
      %v7155 = vrot.slane %v7109, 1
      %v7156 = vrot.slane %v7111, 1
      %v7157 = vrot.slane %v7119, 1
      %v7158 = vrot.slane %v7127, 1
      %v7159 = vrot.slane %v7126, 1
      %v7160 = vrot.slane %v7128, 1
      %v7225 = vsub.f32 %v6401, %v7000
      %v7226 = vsub.f32 %v6402, %v7129
      %v7227 = vsub.f32 %v6403, %v7008
      %v7228 = vsub.f32 %v6404, %v7130
      %v7229 = vsub.f32 %v6405, %v7007
      %v7230 = vsub.f32 %v6406, %v7131
      %v7231 = vsub.f32 %v6407, %v7009
      %v7232 = vsub.f32 %v6408, %v7132
      %v7233 = vsub.f32 %v6409, %v7017
      %v7234 = vsub.f32 %v6410, %v7133
      %v7235 = vsub.f32 %v6411, %v7025
      %v7236 = vsub.f32 %v6412, %v7134
      %v7237 = vsub.f32 %v6413, %v7024
      %v7238 = vsub.f32 %v6414, %v7135
      %v7239 = vsub.f32 %v6415, %v7026
      %v7240 = vsub.f32 %v6416, %v7136
      %v7241 = vsub.f32 %v6417, %v7034
      %v7242 = vsub.f32 %v6418, %v7137
      %v7243 = vsub.f32 %v6419, %v7042
      %v7244 = vsub.f32 %v6420, %v7138
      %v7245 = vsub.f32 %v6421, %v7041
      %v7246 = vsub.f32 %v6422, %v7139
      %v7247 = vsub.f32 %v6423, %v7043
      %v7248 = vsub.f32 %v6424, %v7140
      %v7249 = vsub.f32 %v6425, %v7051
      %v7250 = vsub.f32 %v6426, %v7141
      %v7251 = vsub.f32 %v6427, %v7059
      %v7252 = vsub.f32 %v6428, %v7142
      %v7253 = vsub.f32 %v6429, %v7058
      %v7254 = vsub.f32 %v6430, %v7143
      %v7255 = vsub.f32 %v6431, %v7060
      %v7256 = vsub.f32 %v6432, %v7144
      %v7257 = vsub.f32 %v6433, %v7068
      %v7258 = vsub.f32 %v6434, %v7145
      %v7259 = vsub.f32 %v6435, %v7076
      %v7260 = vsub.f32 %v6436, %v7146
      %v7261 = vsub.f32 %v6437, %v7075
      %v7262 = vsub.f32 %v6438, %v7147
      %v7263 = vsub.f32 %v6439, %v7077
      %v7264 = vsub.f32 %v6440, %v7148
      %v7265 = vsub.f32 %v6441, %v7085
      %v7266 = vsub.f32 %v6442, %v7149
      %v7267 = vsub.f32 %v6443, %v7093
      %v7268 = vsub.f32 %v6444, %v7150
      %v7269 = vsub.f32 %v6445, %v7092
      %v7270 = vsub.f32 %v6446, %v7151
      %v7271 = vsub.f32 %v6447, %v7094
      %v7272 = vsub.f32 %v6448, %v7152
      %v7273 = vsub.f32 %v6449, %v7102
      %v7274 = vsub.f32 %v6450, %v7153
      %v7275 = vsub.f32 %v6451, %v7110
      %v7276 = vsub.f32 %v6452, %v7154
      %v7277 = vsub.f32 %v6453, %v7109
      %v7278 = vsub.f32 %v6454, %v7155
      %v7279 = vsub.f32 %v6455, %v7111
      %v7280 = vsub.f32 %v6456, %v7156
      %v7281 = vsub.f32 %v6457, %v7119
      %v7282 = vsub.f32 %v6458, %v7157
      %v7283 = vsub.f32 %v6459, %v7127
      %v7284 = vsub.f32 %v6460, %v7158
      %v7285 = vsub.f32 %v6461, %v7126
      %v7286 = vsub.f32 %v6462, %v7159
      %v7287 = vsub.f32 %v6463, %v7128
      %v7288 = vsub.f32 %v6464, %v7160
      %v7289 = vmax.f32 %v7225, 0.0
      %v7290 = vmax.f32 %v7226, 0.0
      %v7291 = vmax.f32 %v7227, 0.0
      %v7292 = vmax.f32 %v7228, 0.0
      %v7293 = vmax.f32 %v7229, 0.0
      %v7294 = vmax.f32 %v7230, 0.0
      %v7295 = vmax.f32 %v7231, 0.0
      %v7296 = vmax.f32 %v7232, 0.0
      %v7297 = vmax.f32 %v7233, 0.0
      %v7298 = vmax.f32 %v7234, 0.0
      %v7299 = vmax.f32 %v7235, 0.0
      %v7300 = vmax.f32 %v7236, 0.0
      %v7301 = vmax.f32 %v7237, 0.0
      %v7302 = vmax.f32 %v7238, 0.0
      %v7303 = vmax.f32 %v7239, 0.0
      %v7304 = vmax.f32 %v7240, 0.0
      %v7305 = vmax.f32 %v7241, 0.0
      %v7306 = vmax.f32 %v7242, 0.0
      %v7307 = vmax.f32 %v7243, 0.0
      %v7308 = vmax.f32 %v7244, 0.0
      %v7309 = vmax.f32 %v7245, 0.0
      %v7310 = vmax.f32 %v7246, 0.0
      %v7311 = vmax.f32 %v7247, 0.0
      %v7312 = vmax.f32 %v7248, 0.0
      %v7313 = vmax.f32 %v7249, 0.0
      %v7314 = vmax.f32 %v7250, 0.0
      %v7315 = vmax.f32 %v7251, 0.0
      %v7316 = vmax.f32 %v7252, 0.0
      %v7317 = vmax.f32 %v7253, 0.0
      %v7318 = vmax.f32 %v7254, 0.0
      %v7319 = vmax.f32 %v7255, 0.0
      %v7320 = vmax.f32 %v7256, 0.0
      %v7321 = vmax.f32 %v7257, 0.0
      %v7322 = vmax.f32 %v7258, 0.0
      %v7323 = vmax.f32 %v7259, 0.0
      %v7324 = vmax.f32 %v7260, 0.0
      %v7325 = vmax.f32 %v7261, 0.0
      %v7326 = vmax.f32 %v7262, 0.0
      %v7327 = vmax.f32 %v7263, 0.0
      %v7328 = vmax.f32 %v7264, 0.0
      %v7329 = vmax.f32 %v7265, 0.0
      %v7330 = vmax.f32 %v7266, 0.0
      %v7331 = vmax.f32 %v7267, 0.0
      %v7332 = vmax.f32 %v7268, 0.0
      %v7333 = vmax.f32 %v7269, 0.0
      %v7334 = vmax.f32 %v7270, 0.0
      %v7335 = vmax.f32 %v7271, 0.0
      %v7336 = vmax.f32 %v7272, 0.0
      %v7337 = vmax.f32 %v7273, 0.0
      %v7338 = vmax.f32 %v7274, 0.0
      %v7339 = vmax.f32 %v7275, 0.0
      %v7340 = vmax.f32 %v7276, 0.0
      %v7341 = vmax.f32 %v7277, 0.0
      %v7342 = vmax.f32 %v7278, 0.0
      %v7343 = vmax.f32 %v7279, 0.0
      %v7344 = vmax.f32 %v7280, 0.0
      %v7345 = vmax.f32 %v7281, 0.0
      %v7346 = vmax.f32 %v7282, 0.0
      %v7347 = vmax.f32 %v7283, 0.0
      %v7348 = vmax.f32 %v7284, 0.0
      %v7349 = vmax.f32 %v7285, 0.0
      %v7350 = vmax.f32 %v7286, 0.0
      %v7351 = vmax.f32 %v7287, 0.0
      %v7352 = vmax.f32 %v7288, 0.0
      %v7353 = vsub.f32 0.0, %v7225
      %v7354 = vsub.f32 0.0, %v7226
      %v7355 = vsub.f32 0.0, %v7227
      %v7356 = vsub.f32 0.0, %v7228
      %v7357 = vsub.f32 0.0, %v7229
      %v7358 = vsub.f32 0.0, %v7230
      %v7359 = vsub.f32 0.0, %v7231
      %v7360 = vsub.f32 0.0, %v7232
      %v7361 = vsub.f32 0.0, %v7233
      %v7362 = vsub.f32 0.0, %v7234
      %v7363 = vsub.f32 0.0, %v7235
      %v7364 = vsub.f32 0.0, %v7236
      %v7365 = vsub.f32 0.0, %v7237
      %v7366 = vsub.f32 0.0, %v7238
      %v7367 = vsub.f32 0.0, %v7239
      %v7368 = vsub.f32 0.0, %v7240
      %v7369 = vsub.f32 0.0, %v7241
      %v7370 = vsub.f32 0.0, %v7242
      %v7371 = vsub.f32 0.0, %v7243
      %v7372 = vsub.f32 0.0, %v7244
      %v7373 = vsub.f32 0.0, %v7245
      %v7374 = vsub.f32 0.0, %v7246
      %v7375 = vsub.f32 0.0, %v7247
      %v7376 = vsub.f32 0.0, %v7248
      %v7377 = vsub.f32 0.0, %v7249
      %v7378 = vsub.f32 0.0, %v7250
      %v7379 = vsub.f32 0.0, %v7251
      %v7380 = vsub.f32 0.0, %v7252
      %v7381 = vsub.f32 0.0, %v7253
      %v7382 = vsub.f32 0.0, %v7254
      %v7383 = vsub.f32 0.0, %v7255
      %v7384 = vsub.f32 0.0, %v7256
      %v7385 = vsub.f32 0.0, %v7257
      %v7386 = vsub.f32 0.0, %v7258
      %v7387 = vsub.f32 0.0, %v7259
      %v7388 = vsub.f32 0.0, %v7260
      %v7389 = vsub.f32 0.0, %v7261
      %v7390 = vsub.f32 0.0, %v7262
      %v7391 = vsub.f32 0.0, %v7263
      %v7392 = vsub.f32 0.0, %v7264
      %v7393 = vsub.f32 0.0, %v7265
      %v7394 = vsub.f32 0.0, %v7266
      %v7395 = vsub.f32 0.0, %v7267
      %v7396 = vsub.f32 0.0, %v7268
      %v7397 = vsub.f32 0.0, %v7269
      %v7398 = vsub.f32 0.0, %v7270
      %v7399 = vsub.f32 0.0, %v7271
      %v7400 = vsub.f32 0.0, %v7272
      %v7401 = vsub.f32 0.0, %v7273
      %v7402 = vsub.f32 0.0, %v7274
      %v7403 = vsub.f32 0.0, %v7275
      %v7404 = vsub.f32 0.0, %v7276
      %v7405 = vsub.f32 0.0, %v7277
      %v7406 = vsub.f32 0.0, %v7278
      %v7407 = vsub.f32 0.0, %v7279
      %v7408 = vsub.f32 0.0, %v7280
      %v7409 = vsub.f32 0.0, %v7281
      %v7410 = vsub.f32 0.0, %v7282
      %v7411 = vsub.f32 0.0, %v7283
      %v7412 = vsub.f32 0.0, %v7284
      %v7413 = vsub.f32 0.0, %v7285
      %v7414 = vsub.f32 0.0, %v7286
      %v7415 = vsub.f32 0.0, %v7287
      %v7416 = vsub.f32 0.0, %v7288
      %v7417 = vmax.f32 %v7353, 0.0
      %v7418 = vmax.f32 %v7354, 0.0
      %v7419 = vmax.f32 %v7355, 0.0
      %v7420 = vmax.f32 %v7356, 0.0
      %v7421 = vmax.f32 %v7357, 0.0
      %v7422 = vmax.f32 %v7358, 0.0
      %v7423 = vmax.f32 %v7359, 0.0
      %v7424 = vmax.f32 %v7360, 0.0
      %v7425 = vmax.f32 %v7361, 0.0
      %v7426 = vmax.f32 %v7362, 0.0
      %v7427 = vmax.f32 %v7363, 0.0
      %v7428 = vmax.f32 %v7364, 0.0
      %v7429 = vmax.f32 %v7365, 0.0
      %v7430 = vmax.f32 %v7366, 0.0
      %v7431 = vmax.f32 %v7367, 0.0
      %v7432 = vmax.f32 %v7368, 0.0
      %v7433 = vmax.f32 %v7369, 0.0
      %v7434 = vmax.f32 %v7370, 0.0
      %v7435 = vmax.f32 %v7371, 0.0
      %v7436 = vmax.f32 %v7372, 0.0
      %v7437 = vmax.f32 %v7373, 0.0
      %v7438 = vmax.f32 %v7374, 0.0
      %v7439 = vmax.f32 %v7375, 0.0
      %v7440 = vmax.f32 %v7376, 0.0
      %v7441 = vmax.f32 %v7377, 0.0
      %v7442 = vmax.f32 %v7378, 0.0
      %v7443 = vmax.f32 %v7379, 0.0
      %v7444 = vmax.f32 %v7380, 0.0
      %v7445 = vmax.f32 %v7381, 0.0
      %v7446 = vmax.f32 %v7382, 0.0
      %v7447 = vmax.f32 %v7383, 0.0
      %v7448 = vmax.f32 %v7384, 0.0
      %v7449 = vmax.f32 %v7385, 0.0
      %v7450 = vmax.f32 %v7386, 0.0
      %v7451 = vmax.f32 %v7387, 0.0
      %v7452 = vmax.f32 %v7388, 0.0
      %v7453 = vmax.f32 %v7389, 0.0
      %v7454 = vmax.f32 %v7390, 0.0
      %v7455 = vmax.f32 %v7391, 0.0
      %v7456 = vmax.f32 %v7392, 0.0
      %v7457 = vmax.f32 %v7393, 0.0
      %v7458 = vmax.f32 %v7394, 0.0
      %v7459 = vmax.f32 %v7395, 0.0
      %v7460 = vmax.f32 %v7396, 0.0
      %v7461 = vmax.f32 %v7397, 0.0
      %v7462 = vmax.f32 %v7398, 0.0
      %v7463 = vmax.f32 %v7399, 0.0
      %v7464 = vmax.f32 %v7400, 0.0
      %v7465 = vmax.f32 %v7401, 0.0
      %v7466 = vmax.f32 %v7402, 0.0
      %v7467 = vmax.f32 %v7403, 0.0
      %v7468 = vmax.f32 %v7404, 0.0
      %v7469 = vmax.f32 %v7405, 0.0
      %v7470 = vmax.f32 %v7406, 0.0
      %v7471 = vmax.f32 %v7407, 0.0
      %v7472 = vmax.f32 %v7408, 0.0
      %v7473 = vmax.f32 %v7409, 0.0
      %v7474 = vmax.f32 %v7410, 0.0
      %v7475 = vmax.f32 %v7411, 0.0
      %v7476 = vmax.f32 %v7412, 0.0
      %v7477 = vmax.f32 %v7413, 0.0
      %v7478 = vmax.f32 %v7414, 0.0
      %v7479 = vmax.f32 %v7415, 0.0
      %v7480 = vmax.f32 %v7416, 0.0
      %v7545 = vlaneseq
      %v7546 = vshrl.u32 %v7545, 7
      %v7547 = vsub.s32 0, %v7546
      %v7548 = vrot.slane %v7289, %v7547
      %v7549 = vlaneseq
      %v7550 = vshrl.u32 %v7549, 7
      %v7551 = vsub.s32 0, %v7550
      %v7552 = vrot.slane %v7290, %v7551
      %v7553 = vlaneseq
      %v7554 = vshrl.u32 %v7553, 7
      %v7555 = vsub.s32 0, %v7554
      %v7556 = vrot.slane %v7291, %v7555
      %v7557 = vlaneseq
      %v7558 = vshrl.u32 %v7557, 7
      %v7559 = vsub.s32 0, %v7558
      %v7560 = vrot.slane %v7292, %v7559
      %v7561 = vlaneseq
      %v7562 = vshrl.u32 %v7561, 7
      %v7563 = vsub.s32 0, %v7562
      %v7564 = vrot.slane %v7293, %v7563
      %v7565 = vlaneseq
      %v7566 = vshrl.u32 %v7565, 7
      %v7567 = vsub.s32 0, %v7566
      %v7568 = vrot.slane %v7294, %v7567
      %v7569 = vlaneseq
      %v7570 = vshrl.u32 %v7569, 7
      %v7571 = vsub.s32 0, %v7570
      %v7572 = vrot.slane %v7295, %v7571
      %v7573 = vlaneseq
      %v7574 = vshrl.u32 %v7573, 7
      %v7575 = vsub.s32 0, %v7574
      %v7576 = vrot.slane %v7296, %v7575
      %v7577 = vlaneseq
      %v7578 = vshrl.u32 %v7577, 7
      %v7579 = vsub.s32 0, %v7578
      %v7580 = vrot.slane %v7297, %v7579
      %v7581 = vlaneseq
      %v7582 = vshrl.u32 %v7581, 7
      %v7583 = vsub.s32 0, %v7582
      %v7584 = vrot.slane %v7298, %v7583
      %v7585 = vlaneseq
      %v7586 = vshrl.u32 %v7585, 7
      %v7587 = vsub.s32 0, %v7586
      %v7588 = vrot.slane %v7299, %v7587
      %v7589 = vlaneseq
      %v7590 = vshrl.u32 %v7589, 7
      %v7591 = vsub.s32 0, %v7590
      %v7592 = vrot.slane %v7300, %v7591
      %v7593 = vlaneseq
      %v7594 = vshrl.u32 %v7593, 7
      %v7595 = vsub.s32 0, %v7594
      %v7596 = vrot.slane %v7301, %v7595
      %v7597 = vlaneseq
      %v7598 = vshrl.u32 %v7597, 7
      %v7599 = vsub.s32 0, %v7598
      %v7600 = vrot.slane %v7302, %v7599
      %v7601 = vlaneseq
      %v7602 = vshrl.u32 %v7601, 7
      %v7603 = vsub.s32 0, %v7602
      %v7604 = vrot.slane %v7303, %v7603
      %v7605 = vlaneseq
      %v7606 = vshrl.u32 %v7605, 7
      %v7607 = vsub.s32 0, %v7606
      %v7608 = vrot.slane %v7304, %v7607
      %v7609 = vlaneseq
      %v7610 = vshrl.u32 %v7609, 7
      %v7611 = vsub.s32 0, %v7610
      %v7612 = vrot.slane %v7305, %v7611
      %v7613 = vlaneseq
      %v7614 = vshrl.u32 %v7613, 7
      %v7615 = vsub.s32 0, %v7614
      %v7616 = vrot.slane %v7306, %v7615
      %v7617 = vlaneseq
      %v7618 = vshrl.u32 %v7617, 7
      %v7619 = vsub.s32 0, %v7618
      %v7620 = vrot.slane %v7307, %v7619
      %v7621 = vlaneseq
      %v7622 = vshrl.u32 %v7621, 7
      %v7623 = vsub.s32 0, %v7622
      %v7624 = vrot.slane %v7308, %v7623
      %v7625 = vlaneseq
      %v7626 = vshrl.u32 %v7625, 7
      %v7627 = vsub.s32 0, %v7626
      %v7628 = vrot.slane %v7309, %v7627
      %v7629 = vlaneseq
      %v7630 = vshrl.u32 %v7629, 7
      %v7631 = vsub.s32 0, %v7630
      %v7632 = vrot.slane %v7310, %v7631
      %v7633 = vlaneseq
      %v7634 = vshrl.u32 %v7633, 7
      %v7635 = vsub.s32 0, %v7634
      %v7636 = vrot.slane %v7311, %v7635
      %v7637 = vlaneseq
      %v7638 = vshrl.u32 %v7637, 7
      %v7639 = vsub.s32 0, %v7638
      %v7640 = vrot.slane %v7312, %v7639
      %v7641 = vlaneseq
      %v7642 = vshrl.u32 %v7641, 7
      %v7643 = vsub.s32 0, %v7642
      %v7644 = vrot.slane %v7313, %v7643
      %v7645 = vlaneseq
      %v7646 = vshrl.u32 %v7645, 7
      %v7647 = vsub.s32 0, %v7646
      %v7648 = vrot.slane %v7314, %v7647
      %v7649 = vlaneseq
      %v7650 = vshrl.u32 %v7649, 7
      %v7651 = vsub.s32 0, %v7650
      %v7652 = vrot.slane %v7315, %v7651
      %v7653 = vlaneseq
      %v7654 = vshrl.u32 %v7653, 7
      %v7655 = vsub.s32 0, %v7654
      %v7656 = vrot.slane %v7316, %v7655
      %v7657 = vlaneseq
      %v7658 = vshrl.u32 %v7657, 7
      %v7659 = vsub.s32 0, %v7658
      %v7660 = vrot.slane %v7317, %v7659
      %v7661 = vlaneseq
      %v7662 = vshrl.u32 %v7661, 7
      %v7663 = vsub.s32 0, %v7662
      %v7664 = vrot.slane %v7318, %v7663
      %v7665 = vlaneseq
      %v7666 = vshrl.u32 %v7665, 7
      %v7667 = vsub.s32 0, %v7666
      %v7668 = vrot.slane %v7319, %v7667
      %v7669 = vlaneseq
      %v7670 = vshrl.u32 %v7669, 7
      %v7671 = vsub.s32 0, %v7670
      %v7672 = vrot.slane %v7320, %v7671
      %v7673 = vlaneseq
      %v7674 = vshrl.u32 %v7673, 7
      %v7675 = vsub.s32 0, %v7674
      %v7676 = vrot.slane %v7321, %v7675
      %v7677 = vlaneseq
      %v7678 = vshrl.u32 %v7677, 7
      %v7679 = vsub.s32 0, %v7678
      %v7680 = vrot.slane %v7322, %v7679
      %v7681 = vlaneseq
      %v7682 = vshrl.u32 %v7681, 7
      %v7683 = vsub.s32 0, %v7682
      %v7684 = vrot.slane %v7323, %v7683
      %v7685 = vlaneseq
      %v7686 = vshrl.u32 %v7685, 7
      %v7687 = vsub.s32 0, %v7686
      %v7688 = vrot.slane %v7324, %v7687
      %v7689 = vlaneseq
      %v7690 = vshrl.u32 %v7689, 7
      %v7691 = vsub.s32 0, %v7690
      %v7692 = vrot.slane %v7325, %v7691
      %v7693 = vlaneseq
      %v7694 = vshrl.u32 %v7693, 7
      %v7695 = vsub.s32 0, %v7694
      %v7696 = vrot.slane %v7326, %v7695
      %v7697 = vlaneseq
      %v7698 = vshrl.u32 %v7697, 7
      %v7699 = vsub.s32 0, %v7698
      %v7700 = vrot.slane %v7327, %v7699
      %v7701 = vlaneseq
      %v7702 = vshrl.u32 %v7701, 7
      %v7703 = vsub.s32 0, %v7702
      %v7704 = vrot.slane %v7328, %v7703
      %v7705 = vlaneseq
      %v7706 = vshrl.u32 %v7705, 7
      %v7707 = vsub.s32 0, %v7706
      %v7708 = vrot.slane %v7329, %v7707
      %v7709 = vlaneseq
      %v7710 = vshrl.u32 %v7709, 7
      %v7711 = vsub.s32 0, %v7710
      %v7712 = vrot.slane %v7330, %v7711
      %v7713 = vlaneseq
      %v7714 = vshrl.u32 %v7713, 7
      %v7715 = vsub.s32 0, %v7714
      %v7716 = vrot.slane %v7331, %v7715
      %v7717 = vlaneseq
      %v7718 = vshrl.u32 %v7717, 7
      %v7719 = vsub.s32 0, %v7718
      %v7720 = vrot.slane %v7332, %v7719
      %v7721 = vlaneseq
      %v7722 = vshrl.u32 %v7721, 7
      %v7723 = vsub.s32 0, %v7722
      %v7724 = vrot.slane %v7333, %v7723
      %v7725 = vlaneseq
      %v7726 = vshrl.u32 %v7725, 7
      %v7727 = vsub.s32 0, %v7726
      %v7728 = vrot.slane %v7334, %v7727
      %v7729 = vlaneseq
      %v7730 = vshrl.u32 %v7729, 7
      %v7731 = vsub.s32 0, %v7730
      %v7732 = vrot.slane %v7335, %v7731
      %v7733 = vlaneseq
      %v7734 = vshrl.u32 %v7733, 7
      %v7735 = vsub.s32 0, %v7734
      %v7736 = vrot.slane %v7336, %v7735
      %v7737 = vlaneseq
      %v7738 = vshrl.u32 %v7737, 7
      %v7739 = vsub.s32 0, %v7738
      %v7740 = vrot.slane %v7337, %v7739
      %v7741 = vlaneseq
      %v7742 = vshrl.u32 %v7741, 7
      %v7743 = vsub.s32 0, %v7742
      %v7744 = vrot.slane %v7338, %v7743
      %v7745 = vlaneseq
      %v7746 = vshrl.u32 %v7745, 7
      %v7747 = vsub.s32 0, %v7746
      %v7748 = vrot.slane %v7339, %v7747
      %v7749 = vlaneseq
      %v7750 = vshrl.u32 %v7749, 7
      %v7751 = vsub.s32 0, %v7750
      %v7752 = vrot.slane %v7340, %v7751
      %v7753 = vlaneseq
      %v7754 = vshrl.u32 %v7753, 7
      %v7755 = vsub.s32 0, %v7754
      %v7756 = vrot.slane %v7341, %v7755
      %v7757 = vlaneseq
      %v7758 = vshrl.u32 %v7757, 7
      %v7759 = vsub.s32 0, %v7758
      %v7760 = vrot.slane %v7342, %v7759
      %v7761 = vlaneseq
      %v7762 = vshrl.u32 %v7761, 7
      %v7763 = vsub.s32 0, %v7762
      %v7764 = vrot.slane %v7343, %v7763
      %v7765 = vlaneseq
      %v7766 = vshrl.u32 %v7765, 7
      %v7767 = vsub.s32 0, %v7766
      %v7768 = vrot.slane %v7344, %v7767
      %v7769 = vlaneseq
      %v7770 = vshrl.u32 %v7769, 7
      %v7771 = vsub.s32 0, %v7770
      %v7772 = vrot.slane %v7345, %v7771
      %v7773 = vlaneseq
      %v7774 = vshrl.u32 %v7773, 7
      %v7775 = vsub.s32 0, %v7774
      %v7776 = vrot.slane %v7346, %v7775
      %v7777 = vlaneseq
      %v7778 = vshrl.u32 %v7777, 7
      %v7779 = vsub.s32 0, %v7778
      %v7780 = vrot.slane %v7347, %v7779
      %v7781 = vlaneseq
      %v7782 = vshrl.u32 %v7781, 7
      %v7783 = vsub.s32 0, %v7782
      %v7784 = vrot.slane %v7348, %v7783
      %v7785 = vlaneseq
      %v7786 = vshrl.u32 %v7785, 7
      %v7787 = vsub.s32 0, %v7786
      %v7788 = vrot.slane %v7349, %v7787
      %v7789 = vlaneseq
      %v7790 = vshrl.u32 %v7789, 7
      %v7791 = vsub.s32 0, %v7790
      %v7792 = vrot.slane %v7350, %v7791
      %v7793 = vlaneseq
      %v7794 = vshrl.u32 %v7793, 7
      %v7795 = vsub.s32 0, %v7794
      %v7796 = vrot.slane %v7351, %v7795
      %v7797 = vlaneseq
      %v7798 = vshrl.u32 %v7797, 7
      %v7799 = vsub.s32 0, %v7798
      %v7800 = vrot.slane %v7352, %v7799
      %vm7801 = vcmask 1041409
      %v7802 = vsel %vm7801, %v7552, %v7548
      %vm7803 = vcmask 1042434
      %v7804 = vsel %vm7803, %v7556, %v7802
      %vm7805 = vcmask 1043459
      %v7806 = vsel %vm7805, %v7560, %v7804
      %vm7807 = vcmask 1044484
      %v7808 = vsel %vm7807, %v7564, %v7806
      %vm7809 = vcmask 1045509
      %v7810 = vsel %vm7809, %v7568, %v7808
      %vm7811 = vcmask 1046534
      %v7812 = vsel %vm7811, %v7572, %v7810
      %vm7813 = vcmask 1047559
      %v7814 = vsel %vm7813, %v7576, %v7812
      %v7815 = vsel %vm7801, %v7584, %v7580
      %v7816 = vsel %vm7803, %v7588, %v7815
      %v7817 = vsel %vm7805, %v7592, %v7816
      %v7818 = vsel %vm7807, %v7596, %v7817
      %v7819 = vsel %vm7809, %v7600, %v7818
      %v7820 = vsel %vm7811, %v7604, %v7819
      %v7821 = vsel %vm7813, %v7608, %v7820
      %v7822 = vsel %vm7801, %v7616, %v7612
      %v7823 = vsel %vm7803, %v7620, %v7822
      %v7824 = vsel %vm7805, %v7624, %v7823
      %v7825 = vsel %vm7807, %v7628, %v7824
      %v7826 = vsel %vm7809, %v7632, %v7825
      %v7827 = vsel %vm7811, %v7636, %v7826
      %v7828 = vsel %vm7813, %v7640, %v7827
      %v7829 = vsel %vm7801, %v7648, %v7644
      %v7830 = vsel %vm7803, %v7652, %v7829
      %v7831 = vsel %vm7805, %v7656, %v7830
      %v7832 = vsel %vm7807, %v7660, %v7831
      %v7833 = vsel %vm7809, %v7664, %v7832
      %v7834 = vsel %vm7811, %v7668, %v7833
      %v7835 = vsel %vm7813, %v7672, %v7834
      %v7836 = vsel %vm7801, %v7680, %v7676
      %v7837 = vsel %vm7803, %v7684, %v7836
      %v7838 = vsel %vm7805, %v7688, %v7837
      %v7839 = vsel %vm7807, %v7692, %v7838
      %v7840 = vsel %vm7809, %v7696, %v7839
      %v7841 = vsel %vm7811, %v7700, %v7840
      %v7842 = vsel %vm7813, %v7704, %v7841
      %v7843 = vsel %vm7801, %v7712, %v7708
      %v7844 = vsel %vm7803, %v7716, %v7843
      %v7845 = vsel %vm7805, %v7720, %v7844
      %v7846 = vsel %vm7807, %v7724, %v7845
      %v7847 = vsel %vm7809, %v7728, %v7846
      %v7848 = vsel %vm7811, %v7732, %v7847
      %v7849 = vsel %vm7813, %v7736, %v7848
      %v7850 = vsel %vm7801, %v7744, %v7740
      %v7851 = vsel %vm7803, %v7748, %v7850
      %v7852 = vsel %vm7805, %v7752, %v7851
      %v7853 = vsel %vm7807, %v7756, %v7852
      %v7854 = vsel %vm7809, %v7760, %v7853
      %v7855 = vsel %vm7811, %v7764, %v7854
      %v7856 = vsel %vm7813, %v7768, %v7855
      %v7857 = vsel %vm7801, %v7776, %v7772
      %v7858 = vsel %vm7803, %v7780, %v7857
      %v7859 = vsel %vm7805, %v7784, %v7858
      %v7860 = vsel %vm7807, %v7788, %v7859
      %v7861 = vsel %vm7809, %v7792, %v7860
      %v7862 = vsel %vm7811, %v7796, %v7861
      %v7863 = vsel %vm7813, %v7800, %v7862
      %v7936 = vlaneseq
      %v7937 = vshrl.u32 %v7936, 7
      %v7938 = vsub.s32 0, %v7937
      %v7939 = vrot.slane %v7417, %v7938
      %v7940 = vlaneseq
      %v7941 = vshrl.u32 %v7940, 7
      %v7942 = vsub.s32 0, %v7941
      %v7943 = vrot.slane %v7418, %v7942
      %v7944 = vlaneseq
      %v7945 = vshrl.u32 %v7944, 7
      %v7946 = vsub.s32 0, %v7945
      %v7947 = vrot.slane %v7419, %v7946
      %v7948 = vlaneseq
      %v7949 = vshrl.u32 %v7948, 7
      %v7950 = vsub.s32 0, %v7949
      %v7951 = vrot.slane %v7420, %v7950
      %v7952 = vlaneseq
      %v7953 = vshrl.u32 %v7952, 7
      %v7954 = vsub.s32 0, %v7953
      %v7955 = vrot.slane %v7421, %v7954
      %v7956 = vlaneseq
      %v7957 = vshrl.u32 %v7956, 7
      %v7958 = vsub.s32 0, %v7957
      %v7959 = vrot.slane %v7422, %v7958
      %v7960 = vlaneseq
      %v7961 = vshrl.u32 %v7960, 7
      %v7962 = vsub.s32 0, %v7961
      %v7963 = vrot.slane %v7423, %v7962
      %v7964 = vlaneseq
      %v7965 = vshrl.u32 %v7964, 7
      %v7966 = vsub.s32 0, %v7965
      %v7967 = vrot.slane %v7424, %v7966
      %v7968 = vlaneseq
      %v7969 = vshrl.u32 %v7968, 7
      %v7970 = vsub.s32 0, %v7969
      %v7971 = vrot.slane %v7425, %v7970
      %v7972 = vlaneseq
      %v7973 = vshrl.u32 %v7972, 7
      %v7974 = vsub.s32 0, %v7973
      %v7975 = vrot.slane %v7426, %v7974
      %v7976 = vlaneseq
      %v7977 = vshrl.u32 %v7976, 7
      %v7978 = vsub.s32 0, %v7977
      %v7979 = vrot.slane %v7427, %v7978
      %v7980 = vlaneseq
      %v7981 = vshrl.u32 %v7980, 7
      %v7982 = vsub.s32 0, %v7981
      %v7983 = vrot.slane %v7428, %v7982
      %v7984 = vlaneseq
      %v7985 = vshrl.u32 %v7984, 7
      %v7986 = vsub.s32 0, %v7985
      %v7987 = vrot.slane %v7429, %v7986
      %v7988 = vlaneseq
      %v7989 = vshrl.u32 %v7988, 7
      %v7990 = vsub.s32 0, %v7989
      %v7991 = vrot.slane %v7430, %v7990
      %v7992 = vlaneseq
      %v7993 = vshrl.u32 %v7992, 7
      %v7994 = vsub.s32 0, %v7993
      %v7995 = vrot.slane %v7431, %v7994
      %v7996 = vlaneseq
      %v7997 = vshrl.u32 %v7996, 7
      %v7998 = vsub.s32 0, %v7997
      %v7999 = vrot.slane %v7432, %v7998
      %v8000 = vlaneseq
      %v8001 = vshrl.u32 %v8000, 7
      %v8002 = vsub.s32 0, %v8001
      %v8003 = vrot.slane %v7433, %v8002
      %v8004 = vlaneseq
      %v8005 = vshrl.u32 %v8004, 7
      %v8006 = vsub.s32 0, %v8005
      %v8007 = vrot.slane %v7434, %v8006
      %v8008 = vlaneseq
      %v8009 = vshrl.u32 %v8008, 7
      %v8010 = vsub.s32 0, %v8009
      %v8011 = vrot.slane %v7435, %v8010
      %v8012 = vlaneseq
      %v8013 = vshrl.u32 %v8012, 7
      %v8014 = vsub.s32 0, %v8013
      %v8015 = vrot.slane %v7436, %v8014
      %v8016 = vlaneseq
      %v8017 = vshrl.u32 %v8016, 7
      %v8018 = vsub.s32 0, %v8017
      %v8019 = vrot.slane %v7437, %v8018
      %v8020 = vlaneseq
      %v8021 = vshrl.u32 %v8020, 7
      %v8022 = vsub.s32 0, %v8021
      %v8023 = vrot.slane %v7438, %v8022
      %v8024 = vlaneseq
      %v8025 = vshrl.u32 %v8024, 7
      %v8026 = vsub.s32 0, %v8025
      %v8027 = vrot.slane %v7439, %v8026
      %v8028 = vlaneseq
      %v8029 = vshrl.u32 %v8028, 7
      %v8030 = vsub.s32 0, %v8029
      %v8031 = vrot.slane %v7440, %v8030
      %v8032 = vlaneseq
      %v8033 = vshrl.u32 %v8032, 7
      %v8034 = vsub.s32 0, %v8033
      %v8035 = vrot.slane %v7441, %v8034
      %v8036 = vlaneseq
      %v8037 = vshrl.u32 %v8036, 7
      %v8038 = vsub.s32 0, %v8037
      %v8039 = vrot.slane %v7442, %v8038
      %v8040 = vlaneseq
      %v8041 = vshrl.u32 %v8040, 7
      %v8042 = vsub.s32 0, %v8041
      %v8043 = vrot.slane %v7443, %v8042
      %v8044 = vlaneseq
      %v8045 = vshrl.u32 %v8044, 7
      %v8046 = vsub.s32 0, %v8045
      %v8047 = vrot.slane %v7444, %v8046
      %v8048 = vlaneseq
      %v8049 = vshrl.u32 %v8048, 7
      %v8050 = vsub.s32 0, %v8049
      %v8051 = vrot.slane %v7445, %v8050
      %v8052 = vlaneseq
      %v8053 = vshrl.u32 %v8052, 7
      %v8054 = vsub.s32 0, %v8053
      %v8055 = vrot.slane %v7446, %v8054
      %v8056 = vlaneseq
      %v8057 = vshrl.u32 %v8056, 7
      %v8058 = vsub.s32 0, %v8057
      %v8059 = vrot.slane %v7447, %v8058
      %v8060 = vlaneseq
      %v8061 = vshrl.u32 %v8060, 7
      %v8062 = vsub.s32 0, %v8061
      %v8063 = vrot.slane %v7448, %v8062
      %v8064 = vlaneseq
      %v8065 = vshrl.u32 %v8064, 7
      %v8066 = vsub.s32 0, %v8065
      %v8067 = vrot.slane %v7449, %v8066
      %v8068 = vlaneseq
      %v8069 = vshrl.u32 %v8068, 7
      %v8070 = vsub.s32 0, %v8069
      %v8071 = vrot.slane %v7450, %v8070
      %v8072 = vlaneseq
      %v8073 = vshrl.u32 %v8072, 7
      %v8074 = vsub.s32 0, %v8073
      %v8075 = vrot.slane %v7451, %v8074
      %v8076 = vlaneseq
      %v8077 = vshrl.u32 %v8076, 7
      %v8078 = vsub.s32 0, %v8077
      %v8079 = vrot.slane %v7452, %v8078
      %v8080 = vlaneseq
      %v8081 = vshrl.u32 %v8080, 7
      %v8082 = vsub.s32 0, %v8081
      %v8083 = vrot.slane %v7453, %v8082
      %v8084 = vlaneseq
      %v8085 = vshrl.u32 %v8084, 7
      %v8086 = vsub.s32 0, %v8085
      %v8087 = vrot.slane %v7454, %v8086
      %v8088 = vlaneseq
      %v8089 = vshrl.u32 %v8088, 7
      %v8090 = vsub.s32 0, %v8089
      %v8091 = vrot.slane %v7455, %v8090
      %v8092 = vlaneseq
      %v8093 = vshrl.u32 %v8092, 7
      %v8094 = vsub.s32 0, %v8093
      %v8095 = vrot.slane %v7456, %v8094
      %v8096 = vlaneseq
      %v8097 = vshrl.u32 %v8096, 7
      %v8098 = vsub.s32 0, %v8097
      %v8099 = vrot.slane %v7457, %v8098
      %v8100 = vlaneseq
      %v8101 = vshrl.u32 %v8100, 7
      %v8102 = vsub.s32 0, %v8101
      %v8103 = vrot.slane %v7458, %v8102
      %v8104 = vlaneseq
      %v8105 = vshrl.u32 %v8104, 7
      %v8106 = vsub.s32 0, %v8105
      %v8107 = vrot.slane %v7459, %v8106
      %v8108 = vlaneseq
      %v8109 = vshrl.u32 %v8108, 7
      %v8110 = vsub.s32 0, %v8109
      %v8111 = vrot.slane %v7460, %v8110
      %v8112 = vlaneseq
      %v8113 = vshrl.u32 %v8112, 7
      %v8114 = vsub.s32 0, %v8113
      %v8115 = vrot.slane %v7461, %v8114
      %v8116 = vlaneseq
      %v8117 = vshrl.u32 %v8116, 7
      %v8118 = vsub.s32 0, %v8117
      %v8119 = vrot.slane %v7462, %v8118
      %v8120 = vlaneseq
      %v8121 = vshrl.u32 %v8120, 7
      %v8122 = vsub.s32 0, %v8121
      %v8123 = vrot.slane %v7463, %v8122
      %v8124 = vlaneseq
      %v8125 = vshrl.u32 %v8124, 7
      %v8126 = vsub.s32 0, %v8125
      %v8127 = vrot.slane %v7464, %v8126
      %v8128 = vlaneseq
      %v8129 = vshrl.u32 %v8128, 7
      %v8130 = vsub.s32 0, %v8129
      %v8131 = vrot.slane %v7465, %v8130
      %v8132 = vlaneseq
      %v8133 = vshrl.u32 %v8132, 7
      %v8134 = vsub.s32 0, %v8133
      %v8135 = vrot.slane %v7466, %v8134
      %v8136 = vlaneseq
      %v8137 = vshrl.u32 %v8136, 7
      %v8138 = vsub.s32 0, %v8137
      %v8139 = vrot.slane %v7467, %v8138
      %v8140 = vlaneseq
      %v8141 = vshrl.u32 %v8140, 7
      %v8142 = vsub.s32 0, %v8141
      %v8143 = vrot.slane %v7468, %v8142
      %v8144 = vlaneseq
      %v8145 = vshrl.u32 %v8144, 7
      %v8146 = vsub.s32 0, %v8145
      %v8147 = vrot.slane %v7469, %v8146
      %v8148 = vlaneseq
      %v8149 = vshrl.u32 %v8148, 7
      %v8150 = vsub.s32 0, %v8149
      %v8151 = vrot.slane %v7470, %v8150
      %v8152 = vlaneseq
      %v8153 = vshrl.u32 %v8152, 7
      %v8154 = vsub.s32 0, %v8153
      %v8155 = vrot.slane %v7471, %v8154
      %v8156 = vlaneseq
      %v8157 = vshrl.u32 %v8156, 7
      %v8158 = vsub.s32 0, %v8157
      %v8159 = vrot.slane %v7472, %v8158
      %v8160 = vlaneseq
      %v8161 = vshrl.u32 %v8160, 7
      %v8162 = vsub.s32 0, %v8161
      %v8163 = vrot.slane %v7473, %v8162
      %v8164 = vlaneseq
      %v8165 = vshrl.u32 %v8164, 7
      %v8166 = vsub.s32 0, %v8165
      %v8167 = vrot.slane %v7474, %v8166
      %v8168 = vlaneseq
      %v8169 = vshrl.u32 %v8168, 7
      %v8170 = vsub.s32 0, %v8169
      %v8171 = vrot.slane %v7475, %v8170
      %v8172 = vlaneseq
      %v8173 = vshrl.u32 %v8172, 7
      %v8174 = vsub.s32 0, %v8173
      %v8175 = vrot.slane %v7476, %v8174
      %v8176 = vlaneseq
      %v8177 = vshrl.u32 %v8176, 7
      %v8178 = vsub.s32 0, %v8177
      %v8179 = vrot.slane %v7477, %v8178
      %v8180 = vlaneseq
      %v8181 = vshrl.u32 %v8180, 7
      %v8182 = vsub.s32 0, %v8181
      %v8183 = vrot.slane %v7478, %v8182
      %v8184 = vlaneseq
      %v8185 = vshrl.u32 %v8184, 7
      %v8186 = vsub.s32 0, %v8185
      %v8187 = vrot.slane %v7479, %v8186
      %v8188 = vlaneseq
      %v8189 = vshrl.u32 %v8188, 7
      %v8190 = vsub.s32 0, %v8189
      %v8191 = vrot.slane %v7480, %v8190
      %v8192 = vsel %vm7801, %v7943, %v7939
      %v8193 = vsel %vm7803, %v7947, %v8192
      %v8194 = vsel %vm7805, %v7951, %v8193
      %v8195 = vsel %vm7807, %v7955, %v8194
      %v8196 = vsel %vm7809, %v7959, %v8195
      %v8197 = vsel %vm7811, %v7963, %v8196
      %v8198 = vsel %vm7813, %v7967, %v8197
      %v8199 = vsel %vm7801, %v7975, %v7971
      %v8200 = vsel %vm7803, %v7979, %v8199
      %v8201 = vsel %vm7805, %v7983, %v8200
      %v8202 = vsel %vm7807, %v7987, %v8201
      %v8203 = vsel %vm7809, %v7991, %v8202
      %v8204 = vsel %vm7811, %v7995, %v8203
      %v8205 = vsel %vm7813, %v7999, %v8204
      %v8206 = vsel %vm7801, %v8007, %v8003
      %v8207 = vsel %vm7803, %v8011, %v8206
      %v8208 = vsel %vm7805, %v8015, %v8207
      %v8209 = vsel %vm7807, %v8019, %v8208
      %v8210 = vsel %vm7809, %v8023, %v8209
      %v8211 = vsel %vm7811, %v8027, %v8210
      %v8212 = vsel %vm7813, %v8031, %v8211
      %v8213 = vsel %vm7801, %v8039, %v8035
      %v8214 = vsel %vm7803, %v8043, %v8213
      %v8215 = vsel %vm7805, %v8047, %v8214
      %v8216 = vsel %vm7807, %v8051, %v8215
      %v8217 = vsel %vm7809, %v8055, %v8216
      %v8218 = vsel %vm7811, %v8059, %v8217
      %v8219 = vsel %vm7813, %v8063, %v8218
      %v8220 = vsel %vm7801, %v8071, %v8067
      %v8221 = vsel %vm7803, %v8075, %v8220
      %v8222 = vsel %vm7805, %v8079, %v8221
      %v8223 = vsel %vm7807, %v8083, %v8222
      %v8224 = vsel %vm7809, %v8087, %v8223
      %v8225 = vsel %vm7811, %v8091, %v8224
      %v8226 = vsel %vm7813, %v8095, %v8225
      %v8227 = vsel %vm7801, %v8103, %v8099
      %v8228 = vsel %vm7803, %v8107, %v8227
      %v8229 = vsel %vm7805, %v8111, %v8228
      %v8230 = vsel %vm7807, %v8115, %v8229
      %v8231 = vsel %vm7809, %v8119, %v8230
      %v8232 = vsel %vm7811, %v8123, %v8231
      %v8233 = vsel %vm7813, %v8127, %v8232
      %v8234 = vsel %vm7801, %v8135, %v8131
      %v8235 = vsel %vm7803, %v8139, %v8234
      %v8236 = vsel %vm7805, %v8143, %v8235
      %v8237 = vsel %vm7807, %v8147, %v8236
      %v8238 = vsel %vm7809, %v8151, %v8237
      %v8239 = vsel %vm7811, %v8155, %v8238
      %v8240 = vsel %vm7813, %v8159, %v8239
      %v8241 = vsel %vm7801, %v8167, %v8163
      %v8242 = vsel %vm7803, %v8171, %v8241
      %v8243 = vsel %vm7805, %v8175, %v8242
      %v8244 = vsel %vm7807, %v8179, %v8243
      %v8245 = vsel %vm7809, %v8183, %v8244
      %v8246 = vsel %vm7811, %v8187, %v8245
      %v8247 = vsel %vm7813, %v8191, %v8246
      %8248 = vrot.lane.b32.xlu0 %v8198, 16
      %v8249 = vpop.permute.xlu0 %8248
      %8250 = vrot.lane.b32.xlu0 %v8205, 16
      %v8251 = vpop.permute.xlu0 %8250
      %8252 = vrot.lane.b32.xlu0 %v8212, 16
      %v8253 = vpop.permute.xlu0 %8252
      %8254 = vrot.lane.b32.xlu0 %v8219, 16
      %v8255 = vpop.permute.xlu0 %8254
      %8256 = vrot.lane.b32.xlu0 %v8226, 16
      %v8257 = vpop.permute.xlu0 %8256
      %8258 = vrot.lane.b32.xlu0 %v8233, 16
      %v8259 = vpop.permute.xlu0 %8258
      %8260 = vrot.lane.b32.xlu0 %v8240, 16
      %v8261 = vpop.permute.xlu0 %8260
      %8262 = vrot.lane.b32.xlu0 %v8247, 16
      %v8263 = vpop.permute.xlu0 %8262
      %v8272 = vsel %vm6691, %v7814, %v8249
      %v8273 = vsel %vm6691, %v7821, %v8251
      %v8274 = vsel %vm6691, %v7828, %v8253
      %v8275 = vsel %vm6691, %v7835, %v8255
      %v8276 = vsel %vm6691, %v7842, %v8257
      %v8277 = vsel %vm6691, %v7849, %v8259
      %v8278 = vsel %vm6691, %v7856, %v8261
      %v8279 = vsel %vm6691, %v7863, %v8263
      %v8280 = vsel %vm6710, %v8272, 0.0
      %v8281 = vsel %vm6710, %v8273, 0.0
      %v8282 = vsel %vm6710, %v8274, 0.0
      %v8283 = vsel %vm6710, %v8275, 0.0
      %v8284 = vsel %vm6710, %v8276, 0.0
      %v8285 = vsel %vm6710, %v8277, 0.0
      %v8286 = vsel %vm6710, %v8278, 0.0
      %v8287 = vsel %vm6710, %v8279, 0.0
      %8288 = vst [vmem:[%s607] sm:$0xff] %v8280
      %8289 = vst [vmem:[%s607 + $0x8] sm:$0xff] %v8281
      %8290 = vst [vmem:[%s607 + $0x10] sm:$0xff] %v8282
      %8291 = vst [vmem:[%s607 + $0x18] sm:$0xff] %v8283
      %8292 = vst [vmem:[%s607 + $0x20] sm:$0xff] %v8284
      %8293 = vst [vmem:[%s607 + $0x28] sm:$0xff] %v8285
      %8294 = vst [vmem:[%s607 + $0x30] sm:$0xff] %v8286
      %8295 = vst [vmem:[%s607 + $0x38] sm:$0xff] %v8287
      %p8296 = scmp.lt.s32.totalorder %s27, 1
      %s8297 = scalar_select %p8296, %s27, 1
      %s8298 = smul.addr %s8297, 32
      %s8299 = smul.addr %s8298, 8
      %s8300 = scalar_lea.vmem %s14, %s8299
      %p8301 = scmp.lt.s32.totalorder %s27, 1
      %s8302 = scalar_select %p8301, %s27, 1
      %s8303 = smul.addr %s8302, 8
      %s8304 = smul.addr %s8303, 8
      %s8305 = scalar_lea.vmem %s15, %s8304
      // Predicated region
      $region77: #{two_layer_prednet_forward.3} parent=75 // pred_check
        %p8306 = pneg %p369
      $region78: #{two_layer_prednet_forward.3} parent=75 // pred_check_branch
        %8308 = sbr.rel (%p8306) target = $region80
      $region79: #{two_layer_prednet_forward.3} parent=75 // pred_region
        _
      $region80: #{two_layer_prednet_forward.3} parent=75 // pred_fallthru
        _
      // Predicated region
      $region81: #{two_layer_prednet_forward.3} parent=75 // pred_check
        %p8309 = pneg %p395
      $region82: #{two_layer_prednet_forward.3} parent=75 // pred_check_branch
        %8311 = sbr.rel (%p8309) target = $region84
      $region83: #{two_layer_prednet_forward.3} parent=75 // pred_region
        _
      $region84: #{two_layer_prednet_forward.3} parent=75 // pred_fallthru
        _
    $region76: #{two_layer_prednet_forward.3} parent=5 // pred_fallthru
      _
    %p8312 = scmp.le.s32.totalorder 2, %s22
    // Predicated region
    $region85: #{two_layer_prednet_forward.3} parent=5 // pred_check
      %p8313 = pneg %p8312
    $region86: #{two_layer_prednet_forward.3} parent=5 // pred_check_branch
      %8315 = sbr.rel (%p8313) target = $region88
    $region87: #{two_layer_prednet_forward.3} parent=5 // pred_region
      %s8316 = ssub.s32 %s22, 2
      // Predicated region
      $region89: #{two_layer_prednet_forward.3} parent=87 // pred_check
        %p8317 = pneg %p375
      $region90: #{two_layer_prednet_forward.3} parent=87 // pred_check_branch
        %8319 = sbr.rel (%p8317) target = $region92
      $region91: #{two_layer_prednet_forward.3} parent=87 // pred_region
        %p8320 = scmp.lt.s32.totalorder %s28, 1
        %s8321 = scalar_select %p8320, %s28, 1
        %s8322 = smul.addr %s8321, 32
        %s8323 = smul.addr %s8322, 8
        %s8324 = scalar_lea.vmem %s14, %s8323
      $region92: #{two_layer_prednet_forward.3} parent=87 // pred_fallthru
        _
      // Predicated region
      $region93: #{two_layer_prednet_forward.3} parent=87 // pred_check
        %p8325 = pneg %p401
      $region94: #{two_layer_prednet_forward.3} parent=87 // pred_check_branch
        %8327 = sbr.rel (%p8325) target = $region96
      $region95: #{two_layer_prednet_forward.3} parent=87 // pred_region
        %p8328 = scmp.lt.s32.totalorder %s28, 1
        %s8329 = scalar_select %p8328, %s28, 1
        %s8330 = smul.addr %s8329, 8
        %s8331 = smul.addr %s8330, 8
        %s8332 = scalar_lea.vmem %s15, %s8331
      $region96: #{two_layer_prednet_forward.3} parent=87 // pred_fallthru
        _
    $region88: #{two_layer_prednet_forward.3} parent=5 // pred_fallthru
      _
  $region6: #{two_layer_prednet_forward.3} parent=0 // loop_footer
    %s26 = sadd.s32 1, %s22
  $region7: #{two_layer_prednet_forward.3} parent=0 // loop_footer_branch
    %21 = sbr.rel target = $region3
  $region8: #{two_layer_prednet_forward.3} parent=0 // loop_exit
    _

</llo_original>
